<compile_context>
chip_gen: v5e
topology: v5e:2x2
jax: 0.10.0
libtpu: 0.0.40
codegen_flags: <defaults>
</compile_context>

<pallas_src>
import math
import functools
from functools import partial

import jax
import jax.numpy as jnp
from jax import lax
from jax.experimental import pallas as pl
from jax.experimental.pallas import tpu as pltpu


def _round_up(x, m):
    return ((x + m - 1) // m) * m


@functools.lru_cache(maxsize=1)
def _vmem_budget_bytes():
    """Per-generation VMEM budget (bytes): ~75% of physical, capped at 112 MiB."""
    cap = None
    try:
        info = pltpu.get_tpu_info()
        for name in ("vmem_capacity_bytes", "vmem_size_bytes", "vmem_bytes"):
            cap = getattr(info, name, None)
            if cap:
                break
    except Exception:
        cap = None
    if not cap:
        cap = 64 * 1024 * 1024          # conservative fallback (v7x per-TC VMEM)
    return int(min(cap * 3 // 4, 112 * 1024 * 1024))


# --------------------- tiled matmul + bias (MXU kernel) ----------------------

def _matmul_bias_kernel(x_ref, w_ref, b_ref, o_ref, acc_ref):
    @pl.when(pl.program_id(2) == 0)
    def _():
        acc_ref[...] = jnp.zeros_like(acc_ref)

    acc_ref[...] += jnp.dot(x_ref[...], w_ref[...],
                            preferred_element_type=jnp.float32)

    @pl.when(pl.program_id(2) == pl.num_programs(2) - 1)
    def _():
        # Bias add only in the K-finalize step (hoisted out of the K loop).
        o_ref[...] = (acc_ref[...] + b_ref[...]).astype(o_ref.dtype)


def _biggest_divisor(dim, cands):
    for t in cands:
        if dim % t == 0:
            return t
    return dim


def matmul_bias(x, w, b, out_dtype=jnp.float32):
    """(M, K) @ (K, N) + (N,) -> (M, N) out_dtype.

    bf16 operands / f32 VMEM accumulator.  M/K/N are zero-padded to tile
    multiples (N to >=128 for lane-dense stores); tiles are shrunk against the
    per-generation VMEM budget."""
    M, K = x.shape
    Kw, N = w.shape
    assert Kw == K
    xb = x.astype(jnp.bfloat16)
    wb = w.astype(jnp.bfloat16)
    bf = b.astype(jnp.float32)

    budget = _vmem_budget_bytes()
    Np = _round_up(N, 128)                       # lane-dense output
    Kp = _round_up(K, 128)
    Mp = _round_up(M, 16)                        # bf16 sublane-packing friendly

    tn = _biggest_divisor(Np, (512, 256, 128))
    tk = _biggest_divisor(Kp, (512, 256, 128))
    tm = _biggest_divisor(Mp, (512, 256, 128, 64, 32, 16))

    def vmem_bytes(tm_, tn_, tk_):
        # double-buffered inputs + double-buffered output + f32 accumulator
        return (2 * (tm_ * tk_ * 2 + tk_ * tn_ * 2 + tn_ * 4)
                + 2 * tm_ * tn_ * 4 + tm_ * tn_ * 4)

    while vmem_bytes(tm, tn, tk) > budget and tk > 128:
        tk //= 2
    while vmem_bytes(tm, tn, tk) > budget and tn > 128:
        tn //= 2
    while vmem_bytes(tm, tn, tk) > budget and tm > 16:
        tm //= 2

    if Mp != M or Kp != K:
        xb = jnp.pad(xb, ((0, Mp - M), (0, Kp - K)))
    if Kp != K or Np != N:
        wb = jnp.pad(wb, ((0, Kp - K), (0, Np - N)))
    if Np != N:
        bf = jnp.pad(bf, (0, Np - N))
    b2 = bf.reshape(1, Np)

    grid = (Mp // tm, Np // tn, Kp // tk)
    out = pl.pallas_call(
        _matmul_bias_kernel,
        out_shape=jax.ShapeDtypeStruct((Mp, Np), out_dtype),
        grid=grid,
        in_specs=[pl.BlockSpec((tm, tk), lambda i, j, k: (i, k)),
                  pl.BlockSpec((tk, tn), lambda i, j, k: (k, j)),
                  pl.BlockSpec((1, tn), lambda i, j, k: (0, j))],
        out_specs=pl.BlockSpec((tm, tn), lambda i, j, k: (i, j)),
        scratch_shapes=[pltpu.VMEM((tm, tn), jnp.float32)],
        compiler_params=pltpu.CompilerParams(
            dimension_semantics=("parallel", "parallel", "arbitrary"),
            vmem_limit_bytes=budget),
    )(xb, wb, b2)
    if Mp != M or Np != N:
        out = out[:M, :N]
    return out


# ------------------ per-mode real-embedded complex matmul --------------------

def _mode_matmul_kernel(x_ref, wt_ref, o_ref):
    # x: (G, B, KP); wt: (G, KP_out, KP_in); contract last dims, batch over G.
    o_ref[...] = lax.dot_general(
        x_ref[...], wt_ref[...],
        dimension_numbers=(((2,), (2,)), ((0,), (0,))),
        preferred_element_type=jnp.float32)


def mode_matmul(x, wt):
    """Batched per-mode matmul.  x: (L, B, K2), wt: (L, K2_out, K2_in) -> (L, B, K2).

    Modes are packed block-diagonally so the contraction/output width fills the
    256-wide MXU of v6e/v7x.
    TODO(synk): rows per matmul are still only B (tiny batch); folding more work
    into the row dim needs per-mode weights to be shared, which they are not."""
    L, B, K2 = x.shape
    budget = _vmem_budget_bytes()

    P = 1
    if K2 < 256 and K2 % 128 == 0 and 256 % K2 == 0:
        P = 256 // K2
    Lp = _round_up(L, P)
    if Lp != L:
        x = jnp.pad(x, ((0, Lp - L), (0, 0), (0, 0)))
        wt = jnp.pad(wt, ((0, Lp - L), (0, 0), (0, 0)))
    Lg = Lp // P
    KP = P * K2
    if P > 1:
        xg = jnp.transpose(x.reshape(Lg, P, B, K2), (0, 2, 1, 3)).reshape(Lg, B, KP)
        wtg = wt.reshape(Lg, P, K2, K2)
        wbd = jnp.zeros((Lg, KP, KP), wt.dtype)
        for p in range(P):
            wbd = wbd.at[:, p * K2:(p + 1) * K2, p * K2:(p + 1) * K2].set(wtg[:, p])
    else:
        xg, wbd = x, wt

    # VMEM-aware mode-group size (weights are the dominant double-buffered block).
    per_mode = KP * KP * 2 + B * KP * 2 + B * KP * 4
    G = max(1, min(Lg, (budget // 3) // max(per_mode, 1)))
    G = min(G, 16)
    Lgp = _round_up(Lg, G)
    if Lgp != Lg:
        xg = jnp.pad(xg, ((0, Lgp - Lg), (0, 0), (0, 0)))
        wbd = jnp.pad(wbd, ((0, Lgp - Lg), (0, 0), (0, 0)))

    out = pl.pallas_call(
        _mode_matmul_kernel,
        out_shape=jax.ShapeDtypeStruct((Lgp, B, KP), jnp.float32),
        grid=(Lgp // G,),
        in_specs=[pl.BlockSpec((G, B, KP), lambda m: (m, 0, 0)),
                  pl.BlockSpec((G, KP, KP), lambda m: (m, 0, 0))],
        out_specs=pl.BlockSpec((G, B, KP), lambda m: (m, 0, 0)),
        compiler_params=pltpu.CompilerParams(
            dimension_semantics=("parallel",),
            vmem_limit_bytes=budget),
    )(xg.astype(jnp.bfloat16), wbd.astype(jnp.bfloat16))

    out = out[:Lg]
    if P > 1:
        out = jnp.transpose(out.reshape(Lg, B, P, K2), (0, 2, 1, 3)).reshape(Lp, B, K2)
    return out[:L]


# ------------------------ grouped global normalization -----------------------

def _norm_onepass_kernel(x_ref, o_ref, *, subtract_mean, n_elems):
    x = x_ref[...].astype(jnp.float32)
    mean = jnp.sum(x) * (1.0 / n_elems)
    var = jnp.sum((x - mean) * (x - mean)) * (1.0 / (n_elems - 1.0))  # torch.std: unbiased
    # Scalar rsqrt (single EUP op) + VPU broadcast multiply; 1e-12 floor guards
    # constant inputs (PyTorch would produce inf/nan there -- documented deviation).
    inv = lax.rsqrt(jnp.maximum(var, 1e-12))
    if subtract_mean:
        o_ref[...] = (x - mean) * inv
    else:
        o_ref[...] = x * inv


def _norm_apply_kernel(stats_ref, x_ref, o_ref, *, subtract_mean):
    g = pl.program_id(0)
    mean = stats_ref[g, 0]
    inv = stats_ref[g, 1]
    x = x_ref[...].astype(jnp.float32)
    if subtract_mean:
        o_ref[...] = (x - mean) * inv
    else:
        o_ref[...] = x * inv


def _pick_row_tile(rows):
    for t in (512, 256, 128, 64, 32, 16):
        if rows >= t:
            return t
    return rows


def grouped_global_norm(x, subtract_mean):
    """Per-group global normalization over everything but the leading group axis.

    subtract_mean=True  -> (x - mean) / std
    subtract_mean=False -> x / std       (std still computed about the mean)."""
    G = x.shape[0]
    total = x.size // G
    budget = _vmem_budget_bytes()
    if total % 128 == 0:
        rows, width = total // 128, 128                  # lane-dense layout
    else:
        rows, width = 1, total
    xr = x.reshape(G, rows, width)

    if rows * width * 4 * 3 <= budget:
        # Small: one block per group; two-pass stats + normalize in one kernel.
        out = pl.pallas_call(
            partial(_norm_onepass_kernel, subtract_mean=subtract_mean,
                    n_elems=float(total)),
            out_shape=jax.ShapeDtypeStruct((G, rows, width), jnp.float32),
            grid=(G,),
            in_specs=[pl.BlockSpec((1, rows, width), lambda g: (g, 0, 0))],
            out_specs=pl.BlockSpec((1, rows, width), lambda g: (g, 0, 0)),
            compiler_params=pltpu.CompilerParams(
                dimension_semantics=("parallel",),
                vmem_limit_bytes=budget),
        )(xr)
        return out.reshape(x.shape)

    # Large: stats via one fused XLA reduce (read once), then a read-once /
    # write-once lane-dense Pallas apply kernel (both axes parallel for v7x).
    # TODO(synk): a Pallas stats kernel (SMEM accumulation) could replace the
    # XLA reduce; note the E[x^2]-mean^2 form differs numerically from the
    # two-pass small path for data with large mean.
    xf = xr.astype(jnp.float32)
    n = float(total)
    s = jnp.sum(xf, axis=(1, 2))
    ss = jnp.sum(xf * xf, axis=(1, 2))
    mean = s / n
    var = (ss - n * mean * mean) / (n - 1.0)
    inv = lax.rsqrt(jnp.maximum(var, 1e-12))
    stats = jnp.stack([mean, inv], axis=-1)              # (G, 2) scalars in SMEM

    tr = _pick_row_tile(rows)
    rows_p = _round_up(rows, tr)
    if rows_p != rows:
        xr = jnp.pad(xr, ((0, 0), (0, rows_p - rows), (0, 0)))
    out = pl.pallas_call(
        partial(_norm_apply_kernel, subtract_mean=subtract_mean),
        out_shape=jax.ShapeDtypeStruct((G, rows_p, width), jnp.float32),
        grid=(G, rows_p // tr),
        in_specs=[pl.BlockSpec(memory_space=pltpu.MemorySpace.SMEM),
                  pl.BlockSpec((1, tr, width), lambda g, r: (g, r, 0))],
        out_specs=pl.BlockSpec((1, tr, width), lambda g, r: (g, r, 0)),
        compiler_params=pltpu.CompilerParams(
            dimension_semantics=("parallel", "parallel"),
            vmem_limit_bytes=budget),
    )(stats, xr)
    return out[:, :rows].reshape(x.shape)


# ------------------------------ conv1d wrappers ------------------------------

def _im2col(x, F, stride, padding):
    """x: (B, Cin, L) -> (patches (B*L_out, Cin*F), L_out), PyTorch Conv1d layout.
    Patches are emitted in the input dtype (callers pass bf16)."""
    B, Cin, L = x.shape
    xp = jnp.pad(x, ((0, 0), (0, 0), (padding, padding)))
    L_out = (L + 2 * padding - F) // stride + 1
    cols = [xp[:, :, t:t + stride * (L_out - 1) + 1:stride] for t in range(F)]
    patches = jnp.stack(cols, axis=-1)                           # (B, Cin, L_out, F)
    patches = jnp.transpose(patches, (0, 2, 1, 3)).reshape(B * L_out, Cin * F)
    return patches, L_out


def conv1d_nc(x, w, b, stride, padding, out_dtype=jnp.float32):
    """PyTorch Conv1d (NCW).  x: (B, Cin, L), w: (Cout, Cin, F), b: (Cout,)."""
    B = x.shape[0]
    Cout, Cin, F = w.shape
    patches, L_out = _im2col(x.astype(jnp.bfloat16), F, stride, padding)
    wm = jnp.transpose(w.reshape(Cout, Cin * F)).astype(jnp.bfloat16)
    out = matmul_bias(patches, wm, b, out_dtype=out_dtype)       # (B*L_out, Cout)
    return jnp.transpose(out.reshape(B, L_out, Cout), (0, 2, 1))


def conv1d_pair_sum(x1, w1, b1, x2, w2, b2, stride, padding, out_dtype=jnp.float32):
    """conv(x1,w1,b1) + conv(x2,w2,b2), fused into one Pallas matmul by
    concatenating the two im2col patch sets along K."""
    B = x1.shape[0]
    Cout, Cin, F = w1.shape
    p1, L_out = _im2col(x1.astype(jnp.bfloat16), F, stride, padding)
    p2, _ = _im2col(x2.astype(jnp.bfloat16), F, stride, padding)
    patches = jnp.concatenate([p1, p2], axis=1)                  # (B*L_out, 2*Cin*F)
    wm = jnp.concatenate([jnp.transpose(w1.reshape(Cout, Cin * F)),
                          jnp.transpose(w2.reshape(Cout, Cin * F))],
                         axis=0).astype(jnp.bfloat16)
    out = matmul_bias(patches, wm, b1 + b2, out_dtype=out_dtype)
    return jnp.transpose(out.reshape(B, L_out, Cout), (0, 2, 1))


# --------------------------- sparseKernelFT1d (x2) ---------------------------

def _embed_ft_weights(wr, wi):
    """(CK_in, CK_out, M) -> (M, 2CK_out, 2CK_in) real embedding of the complex
    weights, bf16, computed ONCE per block (hoisted out of the DWT level loop)."""
    wr_oi = jnp.transpose(wr, (2, 1, 0))                         # (M, out, in)
    wi_oi = jnp.transpose(wi, (2, 1, 0))
    top = jnp.concatenate([wr_oi, -wi_oi], axis=-1)              # real-output rows
    bot = jnp.concatenate([wi_oi, wr_oi], axis=-1)               # imag-output rows
    return jnp.concatenate([top, bot], axis=-2).astype(jnp.bfloat16)


def sparse_kernel_ft1d_pair(wt_a_full, wt_b_full, x_a, x_b, modes):
    """Two sparseKernelFT1d branches (a=hp, b=lp) fused: one XLA rfft/irfft on
    the batch-stacked pair, one Pallas real-embedded mode matmul with the two
    branches stacked along the mode axis, one grouped standardize call.
    x_*: (B, N, c, k).  Returns (out_a, out_b), each (B, N, c, k) float32."""
    B, N, cc, kk = x_a.shape
    CK = cc * kk
    xs = jnp.concatenate([x_a.reshape(B, N, CK), x_b.reshape(B, N, CK)], axis=0)
    xv = jnp.transpose(xs, (0, 2, 1)).astype(jnp.float32)        # (2B, CK, N)
    if N == 1:
        Nf = 1
        xr_f, xi_f = xv, jnp.zeros_like(xv)                      # rfft of length-1
    else:
        x_fft = jnp.fft.rfft(xv, axis=-1)                        # XLA FFT
        Nf = N // 2 + 1
        xr_f = jnp.real(x_fft).astype(jnp.float32)
        xi_f = jnp.imag(x_fft).astype(jnp.float32)
    l = min(modes, Nf)
    xr = xr_f[:, :, :l]
    xi = xi_f[:, :, :l]

    def emb_x(r, i):                                             # (B, CK, l) -> (l, B, 2CK)
        return jnp.concatenate([jnp.transpose(r, (2, 0, 1)),
                                jnp.transpose(i, (2, 0, 1))], axis=-1)

    X = jnp.concatenate([emb_x(xr[:B], xi[:B]), emb_x(xr[B:], xi[B:])], axis=0)
    Wt = jnp.concatenate([wt_a_full[:l], wt_b_full[:l]], axis=0)
    Y = mode_matmul(X.astype(jnp.bfloat16), Wt)                  # (2l, B, 2CK) f32

    def unemb(y):                                                # (l, B, 2CK) -> (re, im)
        return (jnp.transpose(y[:, :, :CK], (1, 2, 0)),
                jnp.transpose(y[:, :, CK:], (1, 2, 0)))

    ra, ia = unemb(Y[:l])
    rb, ib = unemb(Y[l:])
    out_r = (jnp.zeros((2 * B, CK, Nf), jnp.float32)
             .at[:B, :, :l].set(ra).at[B:, :, :l].set(rb))
    out_i = (jnp.zeros((2 * B, CK, Nf), jnp.float32)
             .at[:B, :, :l].set(ia).at[B:, :, :l].set(ib))
    if N == 1:
        xo = out_r                                               # irfft(n=1) -> Re(c0)
    else:
        xo = jnp.fft.irfft(lax.complex(out_r, out_i), n=N, axis=-1)
    xo = jnp.transpose(xo, (0, 2, 1)).reshape(2, B, N, cc, kk)
    xo = grouped_global_norm(xo, subtract_mean=True)             # per-branch (x-mean)/std
    return xo[0], xo[1]


# -------------------------------- DWT / IDWT ---------------------------------

def dwt_forward(blk, x, filter_size, M):
    B, N, C, D = x.shape
    CD = C * D
    pad = (filter_size - 1) // 2
    cA = jnp.transpose(x, (0, 2, 3, 1)).reshape(B, CD, N)
    dcs = []
    max_rank = math.floor(math.log2(N))
    assert max_rank > 0
    # hp and lp convs share the same im2col patches -> fuse along Cout (lane-dense).
    w_cat = jnp.concatenate([blk['ec_hp_w'], blk['ec_lp_w']], axis=0)
    b_cat = jnp.concatenate([blk['ec_hp_b'], blk['ec_lp_b']], axis=0)
    # Hoist the sparse-FT weight real-embedding out of the per-level loop.
    wt_hp = _embed_ft_weights(blk['hp_wr'], blk['hp_wi'])
    wt_lp = _embed_ft_weights(blk['lp_wr'], blk['lp_wi'])
    for _ in range(max_rank):
        cA3 = cA.reshape(B, CD, -1)
        # bf16 writeback: the consumer is the FFT glue which recasts anyway.
        both = conv1d_nc(cA3, w_cat, b_cat, 2, pad, out_dtype=jnp.bfloat16)
        hp, lp = both[:, :CD, :], both[:, CD:, :]
        cD, cA = sparse_kernel_ft1d_pair(
            wt_hp, wt_lp, hp.reshape(B, -1, C, D), lp.reshape(B, -1, C, D), M)
        dcs.append(cD)
    return cA, dcs


def idwt_forward(blk, cA, dcs, filter_size):
    max_rank = len(dcs)
    B, _, C, D = dcs[-1].shape
    CD = C * D
    pad = (filter_size - 1) // 2
    cA = cA.reshape(B, CD, -1)
    for lv in range(max_rank):
        rc = dcs[-lv - 1].reshape(B, CD, -1)
        cA = cA[:, :, :rc.shape[2]]
        cDu = jnp.repeat(rc, 2, axis=-1)                         # nearest upsample x2
        cAu = jnp.repeat(cA, 2, axis=-1)
        # rc_lp(cA) + rc_hp(cD) fused into one matmul; bf16 writeback since the
        # result is immediately re-normalized.
        summed = conv1d_pair_sum(cAu, blk['rc_lp_w'], blk['rc_lp_b'],
                                 cDu, blk['rc_hp_w'], blk['rc_hp_b'], 1, pad,
                                 out_dtype=jnp.bfloat16)
        cA = grouped_global_norm(summed[None], subtract_mean=False)[0]
    return cA.reshape(B, -1, C, D)


def yakir_forward(params, queries, keys, values, attn_mask,
                  *, c, d_model, filter_size, M):
    B, N, H, E = values.shape
    v = values.reshape(B * N, H * E)
    v = matmul_bias(v, jnp.transpose(params['L1_w']), params['L1_b'])
    v = v.reshape(B, N, c, d_model)
    for blk in params['blocks']:
        cA, dcs = dwt_forward(blk, v, filter_size, M)
        wb = idwt_forward(blk, cA, dcs, filter_size) * (1.0 / math.sqrt(c))
        v = jax.nn.relu(wb)
    v = matmul_bias(v.reshape(B * N, c * d_model),
                    jnp.transpose(params['L2_w']), params['L2_b'])
    return v.reshape(B, N, d_model), None


# ------------------------------ parameter init -------------------------------

def init_params(key, c, d_model, nWaveletBlocks, nheads, filter_size, M):
    ich = d_model // nheads * nheads
    CD = ich * c
    keys = jax.random.split(key, 4 + nWaveletBlocks)

    def uni(k, shape, fan_in):
        bound = 1.0 / math.sqrt(fan_in)
        return jax.random.uniform(k, shape, jnp.float32, -bound, bound)

    p = {
        'L1_w': uni(keys[0], (d_model * c, d_model), d_model),
        'L1_b': uni(keys[1], (d_model * c,), d_model),
        'L2_w': uni(keys[2], (d_model, d_model * c), d_model * c),
        'L2_b': uni(keys[3], (d_model,), d_model * c),
        'blocks': [],
    }
    for i in range(nWaveletBlocks):
        bk = jax.random.split(keys[4 + i], 12)
        scale = 1.0 / (c * ich * c * ich)
        blk = {
            'ec_hp_w': uni(bk[0], (CD, CD, filter_size), CD * filter_size),
            'ec_hp_b': uni(bk[1], (CD,), CD * filter_size),
            'ec_lp_w': uni(bk[2], (CD, CD, filter_size), CD * filter_size),
            'ec_lp_b': uni(bk[3], (CD,), CD * filter_size),
            'hp_wr': jax.random.uniform(bk[4], (CD, CD, M), jnp.float32, 0.0, scale),
            'hp_wi': jax.random.uniform(bk[5], (CD, CD, M), jnp.float32, 0.0, scale),
            'lp_wr': jax.random.uniform(bk[6], (CD, CD, M), jnp.float32, 0.0, scale),
            'lp_wi': jax.random.uniform(bk[7], (CD, CD, M), jnp.float32, 0.0, scale),
            'rc_lp_w': uni(bk[8], (CD, CD, filter_size), CD * filter_size),
            'rc_lp_b': uni(bk[9], (CD,), CD * filter_size),
            'rc_hp_w': uni(bk[10], (CD, CD, filter_size), CD * filter_size),
            'rc_hp_b': uni(bk[11], (CD,), CD * filter_size),
        }
        p['blocks'].append(blk)
    return p


# ----------------------------------- main ------------------------------------

if __name__ == "__main__":
    # Module hyperparameters (filter_size must be odd per DWT/IDWT asserts).
    c, d_model, nWaveletBlocks, nheads, filter_size, M = 2, 32, 1, 4, 3, 16
    B, N = 2, 16                     # N is a power of two (required by DWT levels)
    H, E = nheads, d_model // nheads

    key = jax.random.PRNGKey(0)
    kp, kq = jax.random.split(key)
    params = init_params(kp, c, d_model, nWaveletBlocks, nheads, filter_size, M)

    values = jax.random.normal(kq, (B, N, H, E), jnp.float32)
    queries = values
    keys_in = values

    fwd = jax.jit(partial(yakir_forward, c=c, d_model=d_model,
                          filter_size=filter_size, M=M))
    out, attn = fwd(params, queries, keys_in, values, None)
    out = jax.block_until_ready(out)
    assert out.shape == (B, N, d_model)
    assert bool(jnp.all(jnp.isfinite(out)))
    print("KERNEL_OK")
</pallas_src>

<mosaic_0001>
module attributes {stable_mosaic.version = 11 : i64} {
  func.func @_matmul_bias_kernel(%arg0: i32, %arg1: i32, %arg2: i32, %arg3: memref<32x128xbf16, #tpu.memory_space<vmem>>, %arg4: memref<128x128xbf16, #tpu.memory_space<vmem>>, %arg5: memref<1x128xf32, #tpu.memory_space<vmem>>, %arg6: memref<32x128xf32, #tpu.memory_space<vmem>>, %arg7: memref<32x128xf32, #tpu.memory_space<vmem>>) attributes {dimension_semantics = [#tpu.dimension_semantics<parallel>, #tpu.dimension_semantics<parallel>, #tpu.dimension_semantics<arbitrary>], iteration_bounds = array<i64: 1, 1, 1>, scalar_prefetch = 0 : i64, scratch_operands = 1 : i64, tpu.core_type = #tpu.core_type<tc>, window_params = [{transform_indices = @transform_0, window_bounds = array<i64: 32, 128>}, {transform_indices = @transform_1, window_bounds = array<i64: 128, 128>}, {transform_indices = @transform_2, window_bounds = array<i64: 1, 128>}, {transform_indices = @transform_3, window_bounds = array<i64: 32, 128>}]} {
    %c0_i32 = arith.constant 0 : i32
    %0 = arith.cmpi eq, %arg2, %c0_i32 : i32
    %1 = arith.extui %0 : i1 to i32
    %c0_i32_0 = arith.constant 0 : i32
    %2 = arith.cmpi ne, %1, %c0_i32_0 : i32
    scf.if %2 {
      %cst_10 = arith.constant 0.000000e+00 : f32
      %12 = vector.broadcast %cst_10 : f32 to vector<32x128xf32>
      %c0_11 = arith.constant 0 : index
      %c0_12 = arith.constant 0 : index
      %13 = vector.load %arg7[%c0_11, %c0_12] : memref<32x128xf32, #tpu.memory_space<vmem>>, vector<32x128xf32>
      tpu.vector_store %arg7[%c0_11, %c0_12], %12 {strides = array<i32>} : memref<32x128xf32, #tpu.memory_space<vmem>>, vector<32x128xf32>,
    } else {
    }
    %c0 = arith.constant 0 : index
    %c0_1 = arith.constant 0 : index
    %3 = vector.load %arg7[%c0, %c0_1] : memref<32x128xf32, #tpu.memory_space<vmem>>, vector<32x128xf32>
    %c0_2 = arith.constant 0 : index
    %c0_3 = arith.constant 0 : index
    %4 = vector.load %arg3[%c0_2, %c0_3] : memref<32x128xbf16, #tpu.memory_space<vmem>>, vector<32x128xbf16>
    %c0_4 = arith.constant 0 : index
    %c0_5 = arith.constant 0 : index
    %5 = vector.load %arg4[%c0_4, %c0_5] : memref<128x128xbf16, #tpu.memory_space<vmem>>, vector<128x128xbf16>
    %cst = arith.constant dense<0.000000e+00> : vector<32x128xf32>
    %6 = tpu.matmul %4, %5, %cst {dimension_numbers = #tpu.dot_dimension_numbers<[1], [0], [0], [1], [0, 0, 1, 1], [], []>} : vector<32x128xbf16>, vector<128x128xbf16>, vector<32x128xf32> -> vector<32x128xf32>
    %7 = arith.addf %3, %6 : vector<32x128xf32>
    %c0_6 = arith.constant 0 : index
    %c0_7 = arith.constant 0 : index
    %8 = vector.load %arg7[%c0_6, %c0_7] : memref<32x128xf32, #tpu.memory_space<vmem>>, vector<32x128xf32>
    tpu.vector_store %arg7[%c0_6, %c0_7], %7 {strides = array<i32>} : memref<32x128xf32, #tpu.memory_space<vmem>>, vector<32x128xf32>,
    %c0_i32_8 = arith.constant 0 : i32
    %9 = arith.cmpi eq, %arg2, %c0_i32_8 : i32
    %10 = arith.extui %9 : i1 to i32
    %c0_i32_9 = arith.constant 0 : i32
    %11 = arith.cmpi ne, %10, %c0_i32_9 : i32
    scf.if %11 {
      %c0_10 = arith.constant 0 : index
      %c0_11 = arith.constant 0 : index
      %12 = vector.load %arg7[%c0_10, %c0_11] : memref<32x128xf32, #tpu.memory_space<vmem>>, vector<32x128xf32>
      %c0_12 = arith.constant 0 : index
      %c0_13 = arith.constant 0 : index
      %13 = vector.load %arg5[%c0_12, %c0_13] : memref<1x128xf32, #tpu.memory_space<vmem>>, vector<1x128xf32>
      %14 = vector.broadcast %13 : vector<1x128xf32> to vector<32x128xf32>
      %15 = arith.addf %12, %14 : vector<32x128xf32>
      %c0_14 = arith.constant 0 : index
      %c0_15 = arith.constant 0 : index
      %16 = vector.load %arg6[%c0_14, %c0_15] : memref<32x128xf32, #tpu.memory_space<vmem>>, vector<32x128xf32>
      tpu.vector_store %arg6[%c0_14, %c0_15], %15 {strides = array<i32>} : memref<32x128xf32, #tpu.memory_space<vmem>>, vector<32x128xf32>,
    } else {
    }
    return
  }
  func.func @transform_0(%arg0: i32, %arg1: i32, %arg2: i32) -> (i32, i32) {
    %c0_i32 = arith.constant 0 : i32
    return %arg0, %arg2 : i32, i32
  }
  func.func @transform_1(%arg0: i32, %arg1: i32, %arg2: i32) -> (i32, i32) {
    %c0_i32 = arith.constant 0 : i32
    return %arg2, %arg1 : i32, i32
  }
  func.func @transform_2(%arg0: i32, %arg1: i32, %arg2: i32) -> (i32, i32) {
    %c0_i32 = arith.constant 0 : i32
    %c0_i32_0 = arith.constant 0 : i32
    return %c0_i32, %arg1 : i32, i32
  }
  func.func @transform_3(%arg0: i32, %arg1: i32, %arg2: i32) -> (i32, i32) {
    %c0_i32 = arith.constant 0 : i32
    return %arg0, %arg1 : i32, i32
  }
}

module attributes {stable_mosaic.version = 11 : i64} {
  func.func @_matmul_bias_kernel(%arg0: i32, %arg1: i32, %arg2: i32, %arg3: memref<16x256xbf16, #tpu.memory_space<vmem>>, %arg4: memref<256x128xbf16, #tpu.memory_space<vmem>>, %arg5: memref<1x128xf32, #tpu.memory_space<vmem>>, %arg6: memref<16x128xbf16, #tpu.memory_space<vmem>>, %arg7: memref<16x128xf32, #tpu.memory_space<vmem>>) attributes {dimension_semantics = [#tpu.dimension_semantics<parallel>, #tpu.dimension_semantics<parallel>, #tpu.dimension_semantics<arbitrary>], iteration_bounds = array<i64: 1, 1, 1>, scalar_prefetch = 0 : i64, scratch_operands = 1 : i64, tpu.core_type = #tpu.core_type<tc>, window_params = [{transform_indices = @transform_0, window_bounds = array<i64: 16, 256>}, {transform_indices = @transform_1, window_bounds = array<i64: 256, 128>}, {transform_indices = @transform_2, window_bounds = array<i64: 1, 128>}, {transform_indices = @transform_3, window_bounds = array<i64: 16, 128>}]} {
    %c0_i32 = arith.constant 0 : i32
    %0 = arith.cmpi eq, %arg2, %c0_i32 : i32
    %1 = arith.extui %0 : i1 to i32
    %c0_i32_0 = arith.constant 0 : i32
    %2 = arith.cmpi ne, %1, %c0_i32_0 : i32
    scf.if %2 {
      %cst_10 = arith.constant 0.000000e+00 : f32
      %12 = vector.broadcast %cst_10 : f32 to vector<16x128xf32>
      %c0_11 = arith.constant 0 : index
      %c0_12 = arith.constant 0 : index
      %13 = vector.load %arg7[%c0_11, %c0_12] : memref<16x128xf32, #tpu.memory_space<vmem>>, vector<16x128xf32>
      tpu.vector_store %arg7[%c0_11, %c0_12], %12 {strides = array<i32>} : memref<16x128xf32, #tpu.memory_space<vmem>>, vector<16x128xf32>,
    } else {
    }
    %c0 = arith.constant 0 : index
    %c0_1 = arith.constant 0 : index
    %3 = vector.load %arg7[%c0, %c0_1] : memref<16x128xf32, #tpu.memory_space<vmem>>, vector<16x128xf32>
    %c0_2 = arith.constant 0 : index
    %c0_3 = arith.constant 0 : index
    %4 = vector.load %arg3[%c0_2, %c0_3] : memref<16x256xbf16, #tpu.memory_space<vmem>>, vector<16x256xbf16>
    %c0_4 = arith.constant 0 : index
    %c0_5 = arith.constant 0 : index
    %5 = vector.load %arg4[%c0_4, %c0_5] : memref<256x128xbf16, #tpu.memory_space<vmem>>, vector<256x128xbf16>
    %cst = arith.constant dense<0.000000e+00> : vector<16x128xf32>
    %6 = tpu.matmul %4, %5, %cst {dimension_numbers = #tpu.dot_dimension_numbers<[1], [0], [0], [1], [0, 0, 1, 1], [], []>} : vector<16x256xbf16>, vector<256x128xbf16>, vector<16x128xf32> -> vector<16x128xf32>
    %7 = arith.addf %3, %6 : vector<16x128xf32>
    %c0_6 = arith.constant 0 : index
    %c0_7 = arith.constant 0 : index
    %8 = vector.load %arg7[%c0_6, %c0_7] : memref<16x128xf32, #tpu.memory_space<vmem>>, vector<16x128xf32>
    tpu.vector_store %arg7[%c0_6, %c0_7], %7 {strides = array<i32>} : memref<16x128xf32, #tpu.memory_space<vmem>>, vector<16x128xf32>,
    %c0_i32_8 = arith.constant 0 : i32
    %9 = arith.cmpi eq, %arg2, %c0_i32_8 : i32
    %10 = arith.extui %9 : i1 to i32
    %c0_i32_9 = arith.constant 0 : i32
    %11 = arith.cmpi ne, %10, %c0_i32_9 : i32
    scf.if %11 {
      %c0_10 = arith.constant 0 : index
      %c0_11 = arith.constant 0 : index
      %12 = vector.load %arg7[%c0_10, %c0_11] : memref<16x128xf32, #tpu.memory_space<vmem>>, vector<16x128xf32>
      %c0_12 = arith.constant 0 : index
      %c0_13 = arith.constant 0 : index
      %13 = vector.load %arg5[%c0_12, %c0_13] : memref<1x128xf32, #tpu.memory_space<vmem>>, vector<1x128xf32>
      %14 = vector.broadcast %13 : vector<1x128xf32> to vector<16x128xf32>
      %15 = arith.addf %12, %14 : vector<16x128xf32>
      %16 = arith.truncf %15 : vector<16x128xf32> to vector<16x128xbf16>
      %c0_14 = arith.constant 0 : index
      %c0_15 = arith.constant 0 : index
      %17 = vector.load %arg6[%c0_14, %c0_15] : memref<16x128xbf16, #tpu.memory_space<vmem>>, vector<16x128xbf16>
      tpu.vector_store %arg6[%c0_14, %c0_15], %16 {strides = array<i32>} : memref<16x128xbf16, #tpu.memory_space<vmem>>, vector<16x128xbf16>,
    } else {
    }
    return
  }
  func.func @transform_0(%arg0: i32, %arg1: i32, %arg2: i32) -> (i32, i32) {
    %c0_i32 = arith.constant 0 : i32
    return %arg0, %arg2 : i32, i32
  }
  func.func @transform_1(%arg0: i32, %arg1: i32, %arg2: i32) -> (i32, i32) {
    %c0_i32 = arith.constant 0 : i32
    return %arg2, %arg1 : i32, i32
  }
  func.func @transform_2(%arg0: i32, %arg1: i32, %arg2: i32) -> (i32, i32) {
    %c0_i32 = arith.constant 0 : i32
    %c0_i32_0 = arith.constant 0 : i32
    return %c0_i32, %arg1 : i32, i32
  }
  func.func @transform_3(%arg0: i32, %arg1: i32, %arg2: i32) -> (i32, i32) {
    %c0_i32 = arith.constant 0 : i32
    return %arg0, %arg1 : i32, i32
  }
}

module attributes {stable_mosaic.version = 11 : i64} {
  func.func @_mode_matmul_kernel(%arg0: i32, %arg1: memref<5x2x256xbf16, #tpu.memory_space<vmem>>, %arg2: memref<5x256x256xbf16, #tpu.memory_space<vmem>>, %arg3: memref<5x2x256xf32, #tpu.memory_space<vmem>>) attributes {dimension_semantics = [#tpu.dimension_semantics<parallel>], iteration_bounds = array<i64: 1>, scalar_prefetch = 0 : i64, scratch_operands = 0 : i64, tpu.core_type = #tpu.core_type<tc>, window_params = [{transform_indices = @transform_0, window_bounds = array<i64: 5, 2, 256>}, {transform_indices = @transform_1, window_bounds = array<i64: 5, 256, 256>}, {transform_indices = @transform_2, window_bounds = array<i64: 5, 2, 256>}]} {
    %c0 = arith.constant 0 : index
    %c0_0 = arith.constant 0 : index
    %c0_1 = arith.constant 0 : index
    %0 = vector.load %arg1[%c0, %c0_0, %c0_1] : memref<5x2x256xbf16, #tpu.memory_space<vmem>>, vector<5x2x256xbf16>
    %c0_2 = arith.constant 0 : index
    %c0_3 = arith.constant 0 : index
    %c0_4 = arith.constant 0 : index
    %1 = vector.load %arg2[%c0_2, %c0_3, %c0_4] : memref<5x256x256xbf16, #tpu.memory_space<vmem>>, vector<5x256x256xbf16>
    %cst = arith.constant dense<0.000000e+00> : vector<5x2x256xf32>
    %2 = tpu.matmul %0, %1, %cst {dimension_numbers = #tpu.dot_dimension_numbers<[2], [2], [1], [1], [0, 0, 0, 1, 1, 1], [0], [0]>} : vector<5x2x256xbf16>, vector<5x256x256xbf16>, vector<5x2x256xf32> -> vector<5x2x256xf32>
    %c0_5 = arith.constant 0 : index
    %c0_6 = arith.constant 0 : index
    %c0_7 = arith.constant 0 : index
    %3 = vector.load %arg3[%c0_5, %c0_6, %c0_7] : memref<5x2x256xf32, #tpu.memory_space<vmem>>, vector<5x2x256xf32>
    tpu.vector_store %arg3[%c0_5, %c0_6, %c0_7], %2 {strides = array<i32>} : memref<5x2x256xf32, #tpu.memory_space<vmem>>, vector<5x2x256xf32>,
    return
  }
  func.func @transform_0(%arg0: i32) -> (i32, i32, i32) {
    %c0_i32 = arith.constant 0 : i32
    %c0_i32_0 = arith.constant 0 : i32
    %c0_i32_1 = arith.constant 0 : i32
    return %arg0, %c0_i32, %c0_i32_0 : i32, i32, i32
  }
  func.func @transform_1(%arg0: i32) -> (i32, i32, i32) {
    %c0_i32 = arith.constant 0 : i32
    %c0_i32_0 = arith.constant 0 : i32
    %c0_i32_1 = arith.constant 0 : i32
    return %arg0, %c0_i32, %c0_i32_0 : i32, i32, i32
  }
  func.func @transform_2(%arg0: i32) -> (i32, i32, i32) {
    %c0_i32 = arith.constant 0 : i32
    %c0_i32_0 = arith.constant 0 : i32
    %c0_i32_1 = arith.constant 0 : i32
    return %arg0, %c0_i32, %c0_i32_0 : i32, i32, i32
  }
}

module attributes {stable_mosaic.version = 11 : i64} {
  func.func @_norm_onepass_kernel(%arg0: i32, %arg1: memref<1x8x128xf32, #tpu.memory_space<vmem>>, %arg2: memref<1x8x128xf32, #tpu.memory_space<vmem>>) attributes {dimension_semantics = [#tpu.dimension_semantics<parallel>], iteration_bounds = array<i64: 2>, scalar_prefetch = 0 : i64, scratch_operands = 0 : i64, tpu.core_type = #tpu.core_type<tc>, window_params = [{transform_indices = @transform_0, window_bounds = array<i64: 1, 8, 128>}, {transform_indices = @transform_1, window_bounds = array<i64: 1, 8, 128>}]} {
    %c0 = arith.constant 0 : index
    %c0_0 = arith.constant 0 : index
    %c0_1 = arith.constant 0 : index
    %0 = vector.load %arg1[%c0, %c0_0, %c0_1] : memref<1x8x128xf32, #tpu.memory_space<vmem>>, vector<1x8x128xf32>
    %1 = vector.shape_cast %0 : vector<1x8x128xf32> to vector<1x1x8x128xf32>
    %cst = arith.constant dense<0.000000e+00> : vector<1xf32>
    %2 = vector.multi_reduction <add>, %1, %cst [1, 2, 3] : vector<1x1x8x128xf32> to vector<1xf32>
    %3 = vector.shape_cast %2 : vector<1xf32> to vector<1x1x1x1xf32>
    %4 = vector.extract %3[0, 0, 0, 0] : f32 from vector<1x1x1x1xf32>
    %cst_2 = arith.constant 9.765625E-4 : f32
    %5 = arith.mulf %4, %cst_2 : f32
    %6 = vector.broadcast %5 : f32 to vector<1x8x128xf32>
    %7 = arith.subf %0, %6 : vector<1x8x128xf32>
    %8 = vector.broadcast %5 : f32 to vector<1x8x128xf32>
    %9 = arith.subf %0, %8 : vector<1x8x128xf32>
    %10 = arith.mulf %7, %9 : vector<1x8x128xf32>
    %11 = vector.shape_cast %10 : vector<1x8x128xf32> to vector<1x1x8x128xf32>
    %cst_3 = arith.constant dense<0.000000e+00> : vector<1xf32>
    %12 = vector.multi_reduction <add>, %11, %cst_3 [1, 2, 3] : vector<1x1x8x128xf32> to vector<1xf32>
    %13 = vector.shape_cast %12 : vector<1xf32> to vector<1x1x1x1xf32>
    %14 = vector.extract %13[0, 0, 0, 0] : f32 from vector<1x1x1x1xf32>
    %cst_4 = arith.constant 9.77517105E-4 : f32
    %15 = arith.mulf %14, %cst_4 : f32
    %cst_5 = arith.constant 9.99999996E-13 : f32
    %16 = arith.maximumf %15, %cst_5 : f32
    %17 = math.rsqrt %16 : f32
    %18 = vector.broadcast %5 : f32 to vector<1x8x128xf32>
    %19 = arith.subf %0, %18 : vector<1x8x128xf32>
    %20 = vector.broadcast %17 : f32 to vector<1x8x128xf32>
    %21 = arith.mulf %19, %20 : vector<1x8x128xf32>
    %c0_6 = arith.constant 0 : index
    %c0_7 = arith.constant 0 : index
    %c0_8 = arith.constant 0 : index
    %22 = vector.load %arg2[%c0_6, %c0_7, %c0_8] : memref<1x8x128xf32, #tpu.memory_space<vmem>>, vector<1x8x128xf32>
    tpu.vector_store %arg2[%c0_6, %c0_7, %c0_8], %21 {strides = array<i32>} : memref<1x8x128xf32, #tpu.memory_space<vmem>>, vector<1x8x128xf32>,
    return
  }
  func.func @transform_0(%arg0: i32) -> (i32, i32, i32) {
    %c0_i32 = arith.constant 0 : i32
    %c0_i32_0 = arith.constant 0 : i32
    %c0_i32_1 = arith.constant 0 : i32
    return %arg0, %c0_i32, %c0_i32_0 : i32, i32, i32
  }
  func.func @transform_1(%arg0: i32) -> (i32, i32, i32) {
    %c0_i32 = arith.constant 0 : i32
    %c0_i32_0 = arith.constant 0 : i32
    %c0_i32_1 = arith.constant 0 : i32
    return %arg0, %c0_i32, %c0_i32_0 : i32, i32, i32
  }
}

module attributes {stable_mosaic.version = 11 : i64} {
  func.func @_mode_matmul_kernel(%arg0: i32, %arg1: memref<3x2x256xbf16, #tpu.memory_space<vmem>>, %arg2: memref<3x256x256xbf16, #tpu.memory_space<vmem>>, %arg3: memref<3x2x256xf32, #tpu.memory_space<vmem>>) attributes {dimension_semantics = [#tpu.dimension_semantics<parallel>], iteration_bounds = array<i64: 1>, scalar_prefetch = 0 : i64, scratch_operands = 0 : i64, tpu.core_type = #tpu.core_type<tc>, window_params = [{transform_indices = @transform_0, window_bounds = array<i64: 3, 2, 256>}, {transform_indices = @transform_1, window_bounds = array<i64: 3, 256, 256>}, {transform_indices = @transform_2, window_bounds = array<i64: 3, 2, 256>}]} {
    %c0 = arith.constant 0 : index
    %c0_0 = arith.constant 0 : index
    %c0_1 = arith.constant 0 : index
    %0 = vector.load %arg1[%c0, %c0_0, %c0_1] : memref<3x2x256xbf16, #tpu.memory_space<vmem>>, vector<3x2x256xbf16>
    %c0_2 = arith.constant 0 : index
    %c0_3 = arith.constant 0 : index
    %c0_4 = arith.constant 0 : index
    %1 = vector.load %arg2[%c0_2, %c0_3, %c0_4] : memref<3x256x256xbf16, #tpu.memory_space<vmem>>, vector<3x256x256xbf16>
    %cst = arith.constant dense<0.000000e+00> : vector<3x2x256xf32>
    %2 = tpu.matmul %0, %1, %cst {dimension_numbers = #tpu.dot_dimension_numbers<[2], [2], [1], [1], [0, 0, 0, 1, 1, 1], [0], [0]>} : vector<3x2x256xbf16>, vector<3x256x256xbf16>, vector<3x2x256xf32> -> vector<3x2x256xf32>
    %c0_5 = arith.constant 0 : index
    %c0_6 = arith.constant 0 : index
    %c0_7 = arith.constant 0 : index
    %3 = vector.load %arg3[%c0_5, %c0_6, %c0_7] : memref<3x2x256xf32, #tpu.memory_space<vmem>>, vector<3x2x256xf32>
    tpu.vector_store %arg3[%c0_5, %c0_6, %c0_7], %2 {strides = array<i32>} : memref<3x2x256xf32, #tpu.memory_space<vmem>>, vector<3x2x256xf32>,
    return
  }
  func.func @transform_0(%arg0: i32) -> (i32, i32, i32) {
    %c0_i32 = arith.constant 0 : i32
    %c0_i32_0 = arith.constant 0 : i32
    %c0_i32_1 = arith.constant 0 : i32
    return %arg0, %c0_i32, %c0_i32_0 : i32, i32, i32
  }
  func.func @transform_1(%arg0: i32) -> (i32, i32, i32) {
    %c0_i32 = arith.constant 0 : i32
    %c0_i32_0 = arith.constant 0 : i32
    %c0_i32_1 = arith.constant 0 : i32
    return %arg0, %c0_i32, %c0_i32_0 : i32, i32, i32
  }
  func.func @transform_2(%arg0: i32) -> (i32, i32, i32) {
    %c0_i32 = arith.constant 0 : i32
    %c0_i32_0 = arith.constant 0 : i32
    %c0_i32_1 = arith.constant 0 : i32
    return %arg0, %c0_i32, %c0_i32_0 : i32, i32, i32
  }
}

module attributes {stable_mosaic.version = 11 : i64} {
  func.func @_norm_onepass_kernel(%arg0: i32, %arg1: memref<1x4x128xf32, #tpu.memory_space<vmem>>, %arg2: memref<1x4x128xf32, #tpu.memory_space<vmem>>) attributes {dimension_semantics = [#tpu.dimension_semantics<parallel>], iteration_bounds = array<i64: 2>, scalar_prefetch = 0 : i64, scratch_operands = 0 : i64, tpu.core_type = #tpu.core_type<tc>, window_params = [{transform_indices = @transform_0, window_bounds = array<i64: 1, 4, 128>}, {transform_indices = @transform_1, window_bounds = array<i64: 1, 4, 128>}]} {
    %c0 = arith.constant 0 : index
    %c0_0 = arith.constant 0 : index
    %c0_1 = arith.constant 0 : index
    %0 = vector.load %arg1[%c0, %c0_0, %c0_1] : memref<1x4x128xf32, #tpu.memory_space<vmem>>, vector<1x4x128xf32>
    %1 = vector.shape_cast %0 : vector<1x4x128xf32> to vector<1x1x4x128xf32>
    %cst = arith.constant dense<0.000000e+00> : vector<1xf32>
    %2 = vector.multi_reduction <add>, %1, %cst [1, 2, 3] : vector<1x1x4x128xf32> to vector<1xf32>
    %3 = vector.shape_cast %2 : vector<1xf32> to vector<1x1x1x1xf32>
    %4 = vector.extract %3[0, 0, 0, 0] : f32 from vector<1x1x1x1xf32>
    %cst_2 = arith.constant 0.001953125 : f32
    %5 = arith.mulf %4, %cst_2 : f32
    %6 = vector.broadcast %5 : f32 to vector<1x4x128xf32>
    %7 = arith.subf %0, %6 : vector<1x4x128xf32>
    %8 = vector.broadcast %5 : f32 to vector<1x4x128xf32>
    %9 = arith.subf %0, %8 : vector<1x4x128xf32>
    %10 = arith.mulf %7, %9 : vector<1x4x128xf32>
    %11 = vector.shape_cast %10 : vector<1x4x128xf32> to vector<1x1x4x128xf32>
    %cst_3 = arith.constant dense<0.000000e+00> : vector<1xf32>
    %12 = vector.multi_reduction <add>, %11, %cst_3 [1, 2, 3] : vector<1x1x4x128xf32> to vector<1xf32>
    %13 = vector.shape_cast %12 : vector<1xf32> to vector<1x1x1x1xf32>
    %14 = vector.extract %13[0, 0, 0, 0] : f32 from vector<1x1x1x1xf32>
    %cst_4 = arith.constant 0.00195694715 : f32
    %15 = arith.mulf %14, %cst_4 : f32
    %cst_5 = arith.constant 9.99999996E-13 : f32
    %16 = arith.maximumf %15, %cst_5 : f32
    %17 = math.rsqrt %16 : f32
    %18 = vector.broadcast %5 : f32 to vector<1x4x128xf32>
    %19 = arith.subf %0, %18 : vector<1x4x128xf32>
    %20 = vector.broadcast %17 : f32 to vector<1x4x128xf32>
    %21 = arith.mulf %19, %20 : vector<1x4x128xf32>
    %c0_6 = arith.constant 0 : index
    %c0_7 = arith.constant 0 : index
    %c0_8 = arith.constant 0 : index
    %22 = vector.load %arg2[%c0_6, %c0_7, %c0_8] : memref<1x4x128xf32, #tpu.memory_space<vmem>>, vector<1x4x128xf32>
    tpu.vector_store %arg2[%c0_6, %c0_7, %c0_8], %21 {strides = array<i32>} : memref<1x4x128xf32, #tpu.memory_space<vmem>>, vector<1x4x128xf32>,
    return
  }
  func.func @transform_0(%arg0: i32) -> (i32, i32, i32) {
    %c0_i32 = arith.constant 0 : i32
    %c0_i32_0 = arith.constant 0 : i32
    %c0_i32_1 = arith.constant 0 : i32
    return %arg0, %c0_i32, %c0_i32_0 : i32, i32, i32
  }
  func.func @transform_1(%arg0: i32) -> (i32, i32, i32) {
    %c0_i32 = arith.constant 0 : i32
    %c0_i32_0 = arith.constant 0 : i32
    %c0_i32_1 = arith.constant 0 : i32
    return %arg0, %c0_i32, %c0_i32_0 : i32, i32, i32
  }
}

module attributes {stable_mosaic.version = 11 : i64} {
  func.func @_mode_matmul_kernel(%arg0: i32, %arg1: memref<2x2x256xbf16, #tpu.memory_space<vmem>>, %arg2: memref<2x256x256xbf16, #tpu.memory_space<vmem>>, %arg3: memref<2x2x256xf32, #tpu.memory_space<vmem>>) attributes {dimension_semantics = [#tpu.dimension_semantics<parallel>], iteration_bounds = array<i64: 1>, scalar_prefetch = 0 : i64, scratch_operands = 0 : i64, tpu.core_type = #tpu.core_type<tc>, window_params = [{transform_indices = @transform_0, window_bounds = array<i64: 2, 2, 256>}, {transform_indices = @transform_1, window_bounds = array<i64: 2, 256, 256>}, {transform_indices = @transform_2, window_bounds = array<i64: 2, 2, 256>}]} {
    %c0 = arith.constant 0 : index
    %c0_0 = arith.constant 0 : index
    %c0_1 = arith.constant 0 : index
    %0 = vector.load %arg1[%c0, %c0_0, %c0_1] : memref<2x2x256xbf16, #tpu.memory_space<vmem>>, vector<2x2x256xbf16>
    %c0_2 = arith.constant 0 : index
    %c0_3 = arith.constant 0 : index
    %c0_4 = arith.constant 0 : index
    %1 = vector.load %arg2[%c0_2, %c0_3, %c0_4] : memref<2x256x256xbf16, #tpu.memory_space<vmem>>, vector<2x256x256xbf16>
    %cst = arith.constant dense<0.000000e+00> : vector<2x2x256xf32>
    %2 = tpu.matmul %0, %1, %cst {dimension_numbers = #tpu.dot_dimension_numbers<[2], [2], [1], [1], [0, 0, 0, 1, 1, 1], [0], [0]>} : vector<2x2x256xbf16>, vector<2x256x256xbf16>, vector<2x2x256xf32> -> vector<2x2x256xf32>
    %c0_5 = arith.constant 0 : index
    %c0_6 = arith.constant 0 : index
    %c0_7 = arith.constant 0 : index
    %3 = vector.load %arg3[%c0_5, %c0_6, %c0_7] : memref<2x2x256xf32, #tpu.memory_space<vmem>>, vector<2x2x256xf32>
    tpu.vector_store %arg3[%c0_5, %c0_6, %c0_7], %2 {strides = array<i32>} : memref<2x2x256xf32, #tpu.memory_space<vmem>>, vector<2x2x256xf32>,
    return
  }
  func.func @transform_0(%arg0: i32) -> (i32, i32, i32) {
    %c0_i32 = arith.constant 0 : i32
    %c0_i32_0 = arith.constant 0 : i32
    %c0_i32_1 = arith.constant 0 : i32
    return %arg0, %c0_i32, %c0_i32_0 : i32, i32, i32
  }
  func.func @transform_1(%arg0: i32) -> (i32, i32, i32) {
    %c0_i32 = arith.constant 0 : i32
    %c0_i32_0 = arith.constant 0 : i32
    %c0_i32_1 = arith.constant 0 : i32
    return %arg0, %c0_i32, %c0_i32_0 : i32, i32, i32
  }
  func.func @transform_2(%arg0: i32) -> (i32, i32, i32) {
    %c0_i32 = arith.constant 0 : i32
    %c0_i32_0 = arith.constant 0 : i32
    %c0_i32_1 = arith.constant 0 : i32
    return %arg0, %c0_i32, %c0_i32_0 : i32, i32, i32
  }
}

module attributes {stable_mosaic.version = 11 : i64} {
  func.func @_norm_onepass_kernel(%arg0: i32, %arg1: memref<1x2x128xf32, #tpu.memory_space<vmem>>, %arg2: memref<1x2x128xf32, #tpu.memory_space<vmem>>) attributes {dimension_semantics = [#tpu.dimension_semantics<parallel>], iteration_bounds = array<i64: 2>, scalar_prefetch = 0 : i64, scratch_operands = 0 : i64, tpu.core_type = #tpu.core_type<tc>, window_params = [{transform_indices = @transform_0, window_bounds = array<i64: 1, 2, 128>}, {transform_indices = @transform_1, window_bounds = array<i64: 1, 2, 128>}]} {
    %c0 = arith.constant 0 : index
    %c0_0 = arith.constant 0 : index
    %c0_1 = arith.constant 0 : index
    %0 = vector.load %arg1[%c0, %c0_0, %c0_1] : memref<1x2x128xf32, #tpu.memory_space<vmem>>, vector<1x2x128xf32>
    %1 = vector.shape_cast %0 : vector<1x2x128xf32> to vector<1x1x2x128xf32>
    %cst = arith.constant dense<0.000000e+00> : vector<1xf32>
    %2 = vector.multi_reduction <add>, %1, %cst [1, 2, 3] : vector<1x1x2x128xf32> to vector<1xf32>
    %3 = vector.shape_cast %2 : vector<1xf32> to vector<1x1x1x1xf32>
    %4 = vector.extract %3[0, 0, 0, 0] : f32 from vector<1x1x1x1xf32>
    %cst_2 = arith.constant 3.906250e-03 : f32
    %5 = arith.mulf %4, %cst_2 : f32
    %6 = vector.broadcast %5 : f32 to vector<1x2x128xf32>
    %7 = arith.subf %0, %6 : vector<1x2x128xf32>
    %8 = vector.broadcast %5 : f32 to vector<1x2x128xf32>
    %9 = arith.subf %0, %8 : vector<1x2x128xf32>
    %10 = arith.mulf %7, %9 : vector<1x2x128xf32>
    %11 = vector.shape_cast %10 : vector<1x2x128xf32> to vector<1x1x2x128xf32>
    %cst_3 = arith.constant dense<0.000000e+00> : vector<1xf32>
    %12 = vector.multi_reduction <add>, %11, %cst_3 [1, 2, 3] : vector<1x1x2x128xf32> to vector<1xf32>
    %13 = vector.shape_cast %12 : vector<1xf32> to vector<1x1x1x1xf32>
    %14 = vector.extract %13[0, 0, 0, 0] : f32 from vector<1x1x1x1xf32>
    %cst_4 = arith.constant 0.00392156886 : f32
    %15 = arith.mulf %14, %cst_4 : f32
    %cst_5 = arith.constant 9.99999996E-13 : f32
    %16 = arith.maximumf %15, %cst_5 : f32
    %17 = math.rsqrt %16 : f32
    %18 = vector.broadcast %5 : f32 to vector<1x2x128xf32>
    %19 = arith.subf %0, %18 : vector<1x2x128xf32>
    %20 = vector.broadcast %17 : f32 to vector<1x2x128xf32>
    %21 = arith.mulf %19, %20 : vector<1x2x128xf32>
    %c0_6 = arith.constant 0 : index
    %c0_7 = arith.constant 0 : index
    %c0_8 = arith.constant 0 : index
    %22 = vector.load %arg2[%c0_6, %c0_7, %c0_8] : memref<1x2x128xf32, #tpu.memory_space<vmem>>, vector<1x2x128xf32>
    tpu.vector_store %arg2[%c0_6, %c0_7, %c0_8], %21 {strides = array<i32>} : memref<1x2x128xf32, #tpu.memory_space<vmem>>, vector<1x2x128xf32>,
    return
  }
  func.func @transform_0(%arg0: i32) -> (i32, i32, i32) {
    %c0_i32 = arith.constant 0 : i32
    %c0_i32_0 = arith.constant 0 : i32
    %c0_i32_1 = arith.constant 0 : i32
    return %arg0, %c0_i32, %c0_i32_0 : i32, i32, i32
  }
  func.func @transform_1(%arg0: i32) -> (i32, i32, i32) {
    %c0_i32 = arith.constant 0 : i32
    %c0_i32_0 = arith.constant 0 : i32
    %c0_i32_1 = arith.constant 0 : i32
    return %arg0, %c0_i32, %c0_i32_0 : i32, i32, i32
  }
}

module attributes {stable_mosaic.version = 11 : i64} {
  func.func @_mode_matmul_kernel(%arg0: i32, %arg1: memref<1x2x256xbf16, #tpu.memory_space<vmem>>, %arg2: memref<1x256x256xbf16, #tpu.memory_space<vmem>>, %arg3: memref<1x2x256xf32, #tpu.memory_space<vmem>>) attributes {dimension_semantics = [#tpu.dimension_semantics<parallel>], iteration_bounds = array<i64: 1>, scalar_prefetch = 0 : i64, scratch_operands = 0 : i64, tpu.core_type = #tpu.core_type<tc>, window_params = [{transform_indices = @transform_0, window_bounds = array<i64: 1, 2, 256>}, {transform_indices = @transform_1, window_bounds = array<i64: 1, 256, 256>}, {transform_indices = @transform_2, window_bounds = array<i64: 1, 2, 256>}]} {
    %c0 = arith.constant 0 : index
    %c0_0 = arith.constant 0 : index
    %c0_1 = arith.constant 0 : index
    %0 = vector.load %arg1[%c0, %c0_0, %c0_1] : memref<1x2x256xbf16, #tpu.memory_space<vmem>>, vector<1x2x256xbf16>
    %c0_2 = arith.constant 0 : index
    %c0_3 = arith.constant 0 : index
    %c0_4 = arith.constant 0 : index
    %1 = vector.load %arg2[%c0_2, %c0_3, %c0_4] : memref<1x256x256xbf16, #tpu.memory_space<vmem>>, vector<1x256x256xbf16>
    %cst = arith.constant dense<0.000000e+00> : vector<1x2x256xf32>
    %2 = tpu.matmul %0, %1, %cst {dimension_numbers = #tpu.dot_dimension_numbers<[2], [2], [1], [1], [0, 0, 0, 1, 1, 1], [0], [0]>} : vector<1x2x256xbf16>, vector<1x256x256xbf16>, vector<1x2x256xf32> -> vector<1x2x256xf32>
    %c0_5 = arith.constant 0 : index
    %c0_6 = arith.constant 0 : index
    %c0_7 = arith.constant 0 : index
    %3 = vector.load %arg3[%c0_5, %c0_6, %c0_7] : memref<1x2x256xf32, #tpu.memory_space<vmem>>, vector<1x2x256xf32>
    tpu.vector_store %arg3[%c0_5, %c0_6, %c0_7], %2 {strides = array<i32>} : memref<1x2x256xf32, #tpu.memory_space<vmem>>, vector<1x2x256xf32>,
    return
  }
  func.func @transform_0(%arg0: i32) -> (i32, i32, i32) {
    %c0_i32 = arith.constant 0 : i32
    %c0_i32_0 = arith.constant 0 : i32
    %c0_i32_1 = arith.constant 0 : i32
    return %arg0, %c0_i32, %c0_i32_0 : i32, i32, i32
  }
  func.func @transform_1(%arg0: i32) -> (i32, i32, i32) {
    %c0_i32 = arith.constant 0 : i32
    %c0_i32_0 = arith.constant 0 : i32
    %c0_i32_1 = arith.constant 0 : i32
    return %arg0, %c0_i32, %c0_i32_0 : i32, i32, i32
  }
  func.func @transform_2(%arg0: i32) -> (i32, i32, i32) {
    %c0_i32 = arith.constant 0 : i32
    %c0_i32_0 = arith.constant 0 : i32
    %c0_i32_1 = arith.constant 0 : i32
    return %arg0, %c0_i32, %c0_i32_0 : i32, i32, i32
  }
}

module attributes {stable_mosaic.version = 11 : i64} {
  func.func @_norm_onepass_kernel(%arg0: i32, %arg1: memref<1x1x128xf32, #tpu.memory_space<vmem>>, %arg2: memref<1x1x128xf32, #tpu.memory_space<vmem>>) attributes {dimension_semantics = [#tpu.dimension_semantics<parallel>], iteration_bounds = array<i64: 2>, scalar_prefetch = 0 : i64, scratch_operands = 0 : i64, tpu.core_type = #tpu.core_type<tc>, window_params = [{transform_indices = @transform_0, window_bounds = array<i64: 1, 1, 128>}, {transform_indices = @transform_1, window_bounds = array<i64: 1, 1, 128>}]} {
    %c0 = arith.constant 0 : index
    %c0_0 = arith.constant 0 : index
    %c0_1 = arith.constant 0 : index
    %0 = vector.load %arg1[%c0, %c0_0, %c0_1] : memref<1x1x128xf32, #tpu.memory_space<vmem>>, vector<1x1x128xf32>
    %1 = vector.shape_cast %0 : vector<1x1x128xf32> to vector<1x1x1x128xf32>
    %cst = arith.constant dense<0.000000e+00> : vector<1xf32>
    %2 = vector.multi_reduction <add>, %1, %cst [1, 2, 3] : vector<1x1x1x128xf32> to vector<1xf32>
    %3 = vector.shape_cast %2 : vector<1xf32> to vector<1x1x1x1xf32>
    %4 = vector.extract %3[0, 0, 0, 0] : f32 from vector<1x1x1x1xf32>
    %cst_2 = arith.constant 7.812500e-03 : f32
    %5 = arith.mulf %4, %cst_2 : f32
    %6 = vector.broadcast %5 : f32 to vector<1x1x128xf32>
    %7 = arith.subf %0, %6 : vector<1x1x128xf32>
    %8 = vector.broadcast %5 : f32 to vector<1x1x128xf32>
    %9 = arith.subf %0, %8 : vector<1x1x128xf32>
    %10 = arith.mulf %7, %9 : vector<1x1x128xf32>
    %11 = vector.shape_cast %10 : vector<1x1x128xf32> to vector<1x1x1x128xf32>
    %cst_3 = arith.constant dense<0.000000e+00> : vector<1xf32>
    %12 = vector.multi_reduction <add>, %11, %cst_3 [1, 2, 3] : vector<1x1x1x128xf32> to vector<1xf32>
    %13 = vector.shape_cast %12 : vector<1xf32> to vector<1x1x1x1xf32>
    %14 = vector.extract %13[0, 0, 0, 0] : f32 from vector<1x1x1x1xf32>
    %cst_4 = arith.constant 0.00787401571 : f32
    %15 = arith.mulf %14, %cst_4 : f32
    %cst_5 = arith.constant 9.99999996E-13 : f32
    %16 = arith.maximumf %15, %cst_5 : f32
    %17 = math.rsqrt %16 : f32
    %18 = vector.broadcast %5 : f32 to vector<1x1x128xf32>
    %19 = arith.subf %0, %18 : vector<1x1x128xf32>
    %20 = vector.broadcast %17 : f32 to vector<1x1x128xf32>
    %21 = arith.mulf %19, %20 : vector<1x1x128xf32>
    %c0_6 = arith.constant 0 : index
    %c0_7 = arith.constant 0 : index
    %c0_8 = arith.constant 0 : index
    %22 = vector.load %arg2[%c0_6, %c0_7, %c0_8] : memref<1x1x128xf32, #tpu.memory_space<vmem>>, vector<1x1x128xf32>
    tpu.vector_store %arg2[%c0_6, %c0_7, %c0_8], %21 {strides = array<i32>} : memref<1x1x128xf32, #tpu.memory_space<vmem>>, vector<1x1x128xf32>,
    return
  }
  func.func @transform_0(%arg0: i32) -> (i32, i32, i32) {
    %c0_i32 = arith.constant 0 : i32
    %c0_i32_0 = arith.constant 0 : i32
    %c0_i32_1 = arith.constant 0 : i32
    return %arg0, %c0_i32, %c0_i32_0 : i32, i32, i32
  }
  func.func @transform_1(%arg0: i32) -> (i32, i32, i32) {
    %c0_i32 = arith.constant 0 : i32
    %c0_i32_0 = arith.constant 0 : i32
    %c0_i32_1 = arith.constant 0 : i32
    return %arg0, %c0_i32, %c0_i32_0 : i32, i32, i32
  }
}

module attributes {stable_mosaic.version = 11 : i64} {
  func.func @_matmul_bias_kernel(%arg0: i32, %arg1: i32, %arg2: i32, %arg3: memref<16x128xbf16, #tpu.memory_space<vmem>>, %arg4: memref<128x128xbf16, #tpu.memory_space<vmem>>, %arg5: memref<1x128xf32, #tpu.memory_space<vmem>>, %arg6: memref<16x128xbf16, #tpu.memory_space<vmem>>, %arg7: memref<16x128xf32, #tpu.memory_space<vmem>>) attributes {dimension_semantics = [#tpu.dimension_semantics<parallel>, #tpu.dimension_semantics<parallel>, #tpu.dimension_semantics<arbitrary>], iteration_bounds = array<i64: 1, 1, 3>, scalar_prefetch = 0 : i64, scratch_operands = 1 : i64, tpu.core_type = #tpu.core_type<tc>, window_params = [{transform_indices = @transform_0, window_bounds = array<i64: 16, 128>}, {transform_indices = @transform_1, window_bounds = array<i64: 128, 128>}, {transform_indices = @transform_2, window_bounds = array<i64: 1, 128>}, {transform_indices = @transform_3, window_bounds = array<i64: 16, 128>}]} {
    %c0_i32 = arith.constant 0 : i32
    %0 = arith.cmpi eq, %arg2, %c0_i32 : i32
    %1 = arith.extui %0 : i1 to i32
    %c0_i32_0 = arith.constant 0 : i32
    %2 = arith.cmpi ne, %1, %c0_i32_0 : i32
    scf.if %2 {
      %cst_9 = arith.constant 0.000000e+00 : f32
      %12 = vector.broadcast %cst_9 : f32 to vector<16x128xf32>
      %c0_10 = arith.constant 0 : index
      %c0_11 = arith.constant 0 : index
      %13 = vector.load %arg7[%c0_10, %c0_11] : memref<16x128xf32, #tpu.memory_space<vmem>>, vector<16x128xf32>
      tpu.vector_store %arg7[%c0_10, %c0_11], %12 {strides = array<i32>} : memref<16x128xf32, #tpu.memory_space<vmem>>, vector<16x128xf32>,
    } else {
    }
    %c0 = arith.constant 0 : index
    %c0_1 = arith.constant 0 : index
    %3 = vector.load %arg7[%c0, %c0_1] : memref<16x128xf32, #tpu.memory_space<vmem>>, vector<16x128xf32>
    %c0_2 = arith.constant 0 : index
    %c0_3 = arith.constant 0 : index
    %4 = vector.load %arg3[%c0_2, %c0_3] : memref<16x128xbf16, #tpu.memory_space<vmem>>, vector<16x128xbf16>
    %c0_4 = arith.constant 0 : index
    %c0_5 = arith.constant 0 : index
    %5 = vector.load %arg4[%c0_4, %c0_5] : memref<128x128xbf16, #tpu.memory_space<vmem>>, vector<128x128xbf16>
    %cst = arith.constant dense<0.000000e+00> : vector<16x128xf32>
    %6 = tpu.matmul %4, %5, %cst {dimension_numbers = #tpu.dot_dimension_numbers<[1], [0], [0], [1], [0, 0, 1, 1], [], []>} : vector<16x128xbf16>, vector<128x128xbf16>, vector<16x128xf32> -> vector<16x128xf32>
    %7 = arith.addf %3, %6 : vector<16x128xf32>
    %c0_6 = arith.constant 0 : index
    %c0_7 = arith.constant 0 : index
    %8 = vector.load %arg7[%c0_6, %c0_7] : memref<16x128xf32, #tpu.memory_space<vmem>>, vector<16x128xf32>
    tpu.vector_store %arg7[%c0_6, %c0_7], %7 {strides = array<i32>} : memref<16x128xf32, #tpu.memory_space<vmem>>, vector<16x128xf32>,
    %c2_i32 = arith.constant 2 : i32
    %9 = arith.cmpi eq, %arg2, %c2_i32 : i32
    %10 = arith.extui %9 : i1 to i32
    %c0_i32_8 = arith.constant 0 : i32
    %11 = arith.cmpi ne, %10, %c0_i32_8 : i32
    scf.if %11 {
      %c0_9 = arith.constant 0 : index
      %c0_10 = arith.constant 0 : index
      %12 = vector.load %arg7[%c0_9, %c0_10] : memref<16x128xf32, #tpu.memory_space<vmem>>, vector<16x128xf32>
      %c0_11 = arith.constant 0 : index
      %c0_12 = arith.constant 0 : index
      %13 = vector.load %arg5[%c0_11, %c0_12] : memref<1x128xf32, #tpu.memory_space<vmem>>, vector<1x128xf32>
      %14 = vector.broadcast %13 : vector<1x128xf32> to vector<16x128xf32>
      %15 = arith.addf %12, %14 : vector<16x128xf32>
      %16 = arith.truncf %15 : vector<16x128xf32> to vector<16x128xbf16>
      %c0_13 = arith.constant 0 : index
      %c0_14 = arith.constant 0 : index
      %17 = vector.load %arg6[%c0_13, %c0_14] : memref<16x128xbf16, #tpu.memory_space<vmem>>, vector<16x128xbf16>
      tpu.vector_store %arg6[%c0_13, %c0_14], %16 {strides = array<i32>} : memref<16x128xbf16, #tpu.memory_space<vmem>>, vector<16x128xbf16>,
    } else {
    }
    return
  }
  func.func @transform_0(%arg0: i32, %arg1: i32, %arg2: i32) -> (i32, i32) {
    %c0_i32 = arith.constant 0 : i32
    return %arg0, %arg2 : i32, i32
  }
  func.func @transform_1(%arg0: i32, %arg1: i32, %arg2: i32) -> (i32, i32) {
    %c0_i32 = arith.constant 0 : i32
    return %arg2, %arg1 : i32, i32
  }
  func.func @transform_2(%arg0: i32, %arg1: i32, %arg2: i32) -> (i32, i32) {
    %c0_i32 = arith.constant 0 : i32
    %c0_i32_0 = arith.constant 0 : i32
    return %c0_i32, %arg1 : i32, i32
  }
  func.func @transform_3(%arg0: i32, %arg1: i32, %arg2: i32) -> (i32, i32) {
    %c0_i32 = arith.constant 0 : i32
    return %arg0, %arg1 : i32, i32
  }
}

module attributes {stable_mosaic.version = 11 : i64} {
  func.func @_norm_onepass_kernel(%arg0: i32, %arg1: memref<1x2x128xbf16, #tpu.memory_space<vmem>>, %arg2: memref<1x2x128xf32, #tpu.memory_space<vmem>>) attributes {dimension_semantics = [#tpu.dimension_semantics<parallel>], iteration_bounds = array<i64: 1>, scalar_prefetch = 0 : i64, scratch_operands = 0 : i64, tpu.core_type = #tpu.core_type<tc>, window_params = [{transform_indices = @transform_0, window_bounds = array<i64: 1, 2, 128>}, {transform_indices = @transform_1, window_bounds = array<i64: 1, 2, 128>}]} {
    %c0 = arith.constant 0 : index
    %c0_0 = arith.constant 0 : index
    %c0_1 = arith.constant 0 : index
    %0 = vector.load %arg1[%c0, %c0_0, %c0_1] : memref<1x2x128xbf16, #tpu.memory_space<vmem>>, vector<1x2x128xbf16>
    %1 = arith.extf %0 : vector<1x2x128xbf16> to vector<1x2x128xf32>
    %2 = vector.shape_cast %1 : vector<1x2x128xf32> to vector<1x1x2x128xf32>
    %cst = arith.constant dense<0.000000e+00> : vector<1xf32>
    %3 = vector.multi_reduction <add>, %2, %cst [1, 2, 3] : vector<1x1x2x128xf32> to vector<1xf32>
    %4 = vector.shape_cast %3 : vector<1xf32> to vector<1x1x1x1xf32>
    %5 = vector.extract %4[0, 0, 0, 0] : f32 from vector<1x1x1x1xf32>
    %cst_2 = arith.constant 3.906250e-03 : f32
    %6 = arith.mulf %5, %cst_2 : f32
    %7 = vector.broadcast %6 : f32 to vector<1x2x128xf32>
    %8 = arith.subf %1, %7 : vector<1x2x128xf32>
    %9 = vector.broadcast %6 : f32 to vector<1x2x128xf32>
    %10 = arith.subf %1, %9 : vector<1x2x128xf32>
    %11 = arith.mulf %8, %10 : vector<1x2x128xf32>
    %12 = vector.shape_cast %11 : vector<1x2x128xf32> to vector<1x1x2x128xf32>
    %cst_3 = arith.constant dense<0.000000e+00> : vector<1xf32>
    %13 = vector.multi_reduction <add>, %12, %cst_3 [1, 2, 3] : vector<1x1x2x128xf32> to vector<1xf32>
    %14 = vector.shape_cast %13 : vector<1xf32> to vector<1x1x1x1xf32>
    %15 = vector.extract %14[0, 0, 0, 0] : f32 from vector<1x1x1x1xf32>
    %cst_4 = arith.constant 0.00392156886 : f32
    %16 = arith.mulf %15, %cst_4 : f32
    %cst_5 = arith.constant 9.99999996E-13 : f32
    %17 = arith.maximumf %16, %cst_5 : f32
    %18 = math.rsqrt %17 : f32
    %19 = vector.broadcast %18 : f32 to vector<1x2x128xf32>
    %20 = arith.mulf %1, %19 : vector<1x2x128xf32>
    %c0_6 = arith.constant 0 : index
    %c0_7 = arith.constant 0 : index
    %c0_8 = arith.constant 0 : index
    %21 = vector.load %arg2[%c0_6, %c0_7, %c0_8] : memref<1x2x128xf32, #tpu.memory_space<vmem>>, vector<1x2x128xf32>
    tpu.vector_store %arg2[%c0_6, %c0_7, %c0_8], %20 {strides = array<i32>} : memref<1x2x128xf32, #tpu.memory_space<vmem>>, vector<1x2x128xf32>,
    return
  }
  func.func @transform_0(%arg0: i32) -> (i32, i32, i32) {
    %c0_i32 = arith.constant 0 : i32
    %c0_i32_0 = arith.constant 0 : i32
    %c0_i32_1 = arith.constant 0 : i32
    return %arg0, %c0_i32, %c0_i32_0 : i32, i32, i32
  }
  func.func @transform_1(%arg0: i32) -> (i32, i32, i32) {
    %c0_i32 = arith.constant 0 : i32
    %c0_i32_0 = arith.constant 0 : i32
    %c0_i32_1 = arith.constant 0 : i32
    return %arg0, %c0_i32, %c0_i32_0 : i32, i32, i32
  }
}

module attributes {stable_mosaic.version = 11 : i64} {
  func.func @_norm_onepass_kernel(%arg0: i32, %arg1: memref<1x4x128xbf16, #tpu.memory_space<vmem>>, %arg2: memref<1x4x128xf32, #tpu.memory_space<vmem>>) attributes {dimension_semantics = [#tpu.dimension_semantics<parallel>], iteration_bounds = array<i64: 1>, scalar_prefetch = 0 : i64, scratch_operands = 0 : i64, tpu.core_type = #tpu.core_type<tc>, window_params = [{transform_indices = @transform_0, window_bounds = array<i64: 1, 4, 128>}, {transform_indices = @transform_1, window_bounds = array<i64: 1, 4, 128>}]} {
    %c0 = arith.constant 0 : index
    %c0_0 = arith.constant 0 : index
    %c0_1 = arith.constant 0 : index
    %0 = vector.load %arg1[%c0, %c0_0, %c0_1] : memref<1x4x128xbf16, #tpu.memory_space<vmem>>, vector<1x4x128xbf16>
    %1 = arith.extf %0 : vector<1x4x128xbf16> to vector<1x4x128xf32>
    %2 = vector.shape_cast %1 : vector<1x4x128xf32> to vector<1x1x4x128xf32>
    %cst = arith.constant dense<0.000000e+00> : vector<1xf32>
    %3 = vector.multi_reduction <add>, %2, %cst [1, 2, 3] : vector<1x1x4x128xf32> to vector<1xf32>
    %4 = vector.shape_cast %3 : vector<1xf32> to vector<1x1x1x1xf32>
    %5 = vector.extract %4[0, 0, 0, 0] : f32 from vector<1x1x1x1xf32>
    %cst_2 = arith.constant 0.001953125 : f32
    %6 = arith.mulf %5, %cst_2 : f32
    %7 = vector.broadcast %6 : f32 to vector<1x4x128xf32>
    %8 = arith.subf %1, %7 : vector<1x4x128xf32>
    %9 = vector.broadcast %6 : f32 to vector<1x4x128xf32>
    %10 = arith.subf %1, %9 : vector<1x4x128xf32>
    %11 = arith.mulf %8, %10 : vector<1x4x128xf32>
    %12 = vector.shape_cast %11 : vector<1x4x128xf32> to vector<1x1x4x128xf32>
    %cst_3 = arith.constant dense<0.000000e+00> : vector<1xf32>
    %13 = vector.multi_reduction <add>, %12, %cst_3 [1, 2, 3] : vector<1x1x4x128xf32> to vector<1xf32>
    %14 = vector.shape_cast %13 : vector<1xf32> to vector<1x1x1x1xf32>
    %15 = vector.extract %14[0, 0, 0, 0] : f32 from vector<1x1x1x1xf32>
    %cst_4 = arith.constant 0.00195694715 : f32
    %16 = arith.mulf %15, %cst_4 : f32
    %cst_5 = arith.constant 9.99999996E-13 : f32
    %17 = arith.maximumf %16, %cst_5 : f32
    %18 = math.rsqrt %17 : f32
    %19 = vector.broadcast %18 : f32 to vector<1x4x128xf32>
    %20 = arith.mulf %1, %19 : vector<1x4x128xf32>
    %c0_6 = arith.constant 0 : index
    %c0_7 = arith.constant 0 : index
    %c0_8 = arith.constant 0 : index
    %21 = vector.load %arg2[%c0_6, %c0_7, %c0_8] : memref<1x4x128xf32, #tpu.memory_space<vmem>>, vector<1x4x128xf32>
    tpu.vector_store %arg2[%c0_6, %c0_7, %c0_8], %20 {strides = array<i32>} : memref<1x4x128xf32, #tpu.memory_space<vmem>>, vector<1x4x128xf32>,
    return
  }
  func.func @transform_0(%arg0: i32) -> (i32, i32, i32) {
    %c0_i32 = arith.constant 0 : i32
    %c0_i32_0 = arith.constant 0 : i32
    %c0_i32_1 = arith.constant 0 : i32
    return %arg0, %c0_i32, %c0_i32_0 : i32, i32, i32
  }
  func.func @transform_1(%arg0: i32) -> (i32, i32, i32) {
    %c0_i32 = arith.constant 0 : i32
    %c0_i32_0 = arith.constant 0 : i32
    %c0_i32_1 = arith.constant 0 : i32
    return %arg0, %c0_i32, %c0_i32_0 : i32, i32, i32
  }
}

module attributes {stable_mosaic.version = 11 : i64} {
  func.func @_norm_onepass_kernel(%arg0: i32, %arg1: memref<1x8x128xbf16, #tpu.memory_space<vmem>>, %arg2: memref<1x8x128xf32, #tpu.memory_space<vmem>>) attributes {dimension_semantics = [#tpu.dimension_semantics<parallel>], iteration_bounds = array<i64: 1>, scalar_prefetch = 0 : i64, scratch_operands = 0 : i64, tpu.core_type = #tpu.core_type<tc>, window_params = [{transform_indices = @transform_0, window_bounds = array<i64: 1, 8, 128>}, {transform_indices = @transform_1, window_bounds = array<i64: 1, 8, 128>}]} {
    %c0 = arith.constant 0 : index
    %c0_0 = arith.constant 0 : index
    %c0_1 = arith.constant 0 : index
    %0 = vector.load %arg1[%c0, %c0_0, %c0_1] : memref<1x8x128xbf16, #tpu.memory_space<vmem>>, vector<1x8x128xbf16>
    %1 = arith.extf %0 : vector<1x8x128xbf16> to vector<1x8x128xf32>
    %2 = vector.shape_cast %1 : vector<1x8x128xf32> to vector<1x1x8x128xf32>
    %cst = arith.constant dense<0.000000e+00> : vector<1xf32>
    %3 = vector.multi_reduction <add>, %2, %cst [1, 2, 3] : vector<1x1x8x128xf32> to vector<1xf32>
    %4 = vector.shape_cast %3 : vector<1xf32> to vector<1x1x1x1xf32>
    %5 = vector.extract %4[0, 0, 0, 0] : f32 from vector<1x1x1x1xf32>
    %cst_2 = arith.constant 9.765625E-4 : f32
    %6 = arith.mulf %5, %cst_2 : f32
    %7 = vector.broadcast %6 : f32 to vector<1x8x128xf32>
    %8 = arith.subf %1, %7 : vector<1x8x128xf32>
    %9 = vector.broadcast %6 : f32 to vector<1x8x128xf32>
    %10 = arith.subf %1, %9 : vector<1x8x128xf32>
    %11 = arith.mulf %8, %10 : vector<1x8x128xf32>
    %12 = vector.shape_cast %11 : vector<1x8x128xf32> to vector<1x1x8x128xf32>
    %cst_3 = arith.constant dense<0.000000e+00> : vector<1xf32>
    %13 = vector.multi_reduction <add>, %12, %cst_3 [1, 2, 3] : vector<1x1x8x128xf32> to vector<1xf32>
    %14 = vector.shape_cast %13 : vector<1xf32> to vector<1x1x1x1xf32>
    %15 = vector.extract %14[0, 0, 0, 0] : f32 from vector<1x1x1x1xf32>
    %cst_4 = arith.constant 9.77517105E-4 : f32
    %16 = arith.mulf %15, %cst_4 : f32
    %cst_5 = arith.constant 9.99999996E-13 : f32
    %17 = arith.maximumf %16, %cst_5 : f32
    %18 = math.rsqrt %17 : f32
    %19 = vector.broadcast %18 : f32 to vector<1x8x128xf32>
    %20 = arith.mulf %1, %19 : vector<1x8x128xf32>
    %c0_6 = arith.constant 0 : index
    %c0_7 = arith.constant 0 : index
    %c0_8 = arith.constant 0 : index
    %21 = vector.load %arg2[%c0_6, %c0_7, %c0_8] : memref<1x8x128xf32, #tpu.memory_space<vmem>>, vector<1x8x128xf32>
    tpu.vector_store %arg2[%c0_6, %c0_7, %c0_8], %20 {strides = array<i32>} : memref<1x8x128xf32, #tpu.memory_space<vmem>>, vector<1x8x128xf32>,
    return
  }
  func.func @transform_0(%arg0: i32) -> (i32, i32, i32) {
    %c0_i32 = arith.constant 0 : i32
    %c0_i32_0 = arith.constant 0 : i32
    %c0_i32_1 = arith.constant 0 : i32
    return %arg0, %c0_i32, %c0_i32_0 : i32, i32, i32
  }
  func.func @transform_1(%arg0: i32) -> (i32, i32, i32) {
    %c0_i32 = arith.constant 0 : i32
    %c0_i32_0 = arith.constant 0 : i32
    %c0_i32_1 = arith.constant 0 : i32
    return %arg0, %c0_i32, %c0_i32_0 : i32, i32, i32
  }
}

module attributes {stable_mosaic.version = 11 : i64} {
  func.func @_matmul_bias_kernel(%arg0: i32, %arg1: i32, %arg2: i32, %arg3: memref<32x128xbf16, #tpu.memory_space<vmem>>, %arg4: memref<128x128xbf16, #tpu.memory_space<vmem>>, %arg5: memref<1x128xf32, #tpu.memory_space<vmem>>, %arg6: memref<32x128xbf16, #tpu.memory_space<vmem>>, %arg7: memref<32x128xf32, #tpu.memory_space<vmem>>) attributes {dimension_semantics = [#tpu.dimension_semantics<parallel>, #tpu.dimension_semantics<parallel>, #tpu.dimension_semantics<arbitrary>], iteration_bounds = array<i64: 1, 1, 3>, scalar_prefetch = 0 : i64, scratch_operands = 1 : i64, tpu.core_type = #tpu.core_type<tc>, window_params = [{transform_indices = @transform_0, window_bounds = array<i64: 32, 128>}, {transform_indices = @transform_1, window_bounds = array<i64: 128, 128>}, {transform_indices = @transform_2, window_bounds = array<i64: 1, 128>}, {transform_indices = @transform_3, window_bounds = array<i64: 32, 128>}]} {
    %c0_i32 = arith.constant 0 : i32
    %0 = arith.cmpi eq, %arg2, %c0_i32 : i32
    %1 = arith.extui %0 : i1 to i32
    %c0_i32_0 = arith.constant 0 : i32
    %2 = arith.cmpi ne, %1, %c0_i32_0 : i32
    scf.if %2 {
      %cst_9 = arith.constant 0.000000e+00 : f32
      %12 = vector.broadcast %cst_9 : f32 to vector<32x128xf32>
      %c0_10 = arith.constant 0 : index
      %c0_11 = arith.constant 0 : index
      %13 = vector.load %arg7[%c0_10, %c0_11] : memref<32x128xf32, #tpu.memory_space<vmem>>, vector<32x128xf32>
      tpu.vector_store %arg7[%c0_10, %c0_11], %12 {strides = array<i32>} : memref<32x128xf32, #tpu.memory_space<vmem>>, vector<32x128xf32>,
    } else {
    }
    %c0 = arith.constant 0 : index
    %c0_1 = arith.constant 0 : index
    %3 = vector.load %arg7[%c0, %c0_1] : memref<32x128xf32, #tpu.memory_space<vmem>>, vector<32x128xf32>
    %c0_2 = arith.constant 0 : index
    %c0_3 = arith.constant 0 : index
    %4 = vector.load %arg3[%c0_2, %c0_3] : memref<32x128xbf16, #tpu.memory_space<vmem>>, vector<32x128xbf16>
    %c0_4 = arith.constant 0 : index
    %c0_5 = arith.constant 0 : index
    %5 = vector.load %arg4[%c0_4, %c0_5] : memref<128x128xbf16, #tpu.memory_space<vmem>>, vector<128x128xbf16>
    %cst = arith.constant dense<0.000000e+00> : vector<32x128xf32>
    %6 = tpu.matmul %4, %5, %cst {dimension_numbers = #tpu.dot_dimension_numbers<[1], [0], [0], [1], [0, 0, 1, 1], [], []>} : vector<32x128xbf16>, vector<128x128xbf16>, vector<32x128xf32> -> vector<32x128xf32>
    %7 = arith.addf %3, %6 : vector<32x128xf32>
    %c0_6 = arith.constant 0 : index
    %c0_7 = arith.constant 0 : index
    %8 = vector.load %arg7[%c0_6, %c0_7] : memref<32x128xf32, #tpu.memory_space<vmem>>, vector<32x128xf32>
    tpu.vector_store %arg7[%c0_6, %c0_7], %7 {strides = array<i32>} : memref<32x128xf32, #tpu.memory_space<vmem>>, vector<32x128xf32>,
    %c2_i32 = arith.constant 2 : i32
    %9 = arith.cmpi eq, %arg2, %c2_i32 : i32
    %10 = arith.extui %9 : i1 to i32
    %c0_i32_8 = arith.constant 0 : i32
    %11 = arith.cmpi ne, %10, %c0_i32_8 : i32
    scf.if %11 {
      %c0_9 = arith.constant 0 : index
      %c0_10 = arith.constant 0 : index
      %12 = vector.load %arg7[%c0_9, %c0_10] : memref<32x128xf32, #tpu.memory_space<vmem>>, vector<32x128xf32>
      %c0_11 = arith.constant 0 : index
      %c0_12 = arith.constant 0 : index
      %13 = vector.load %arg5[%c0_11, %c0_12] : memref<1x128xf32, #tpu.memory_space<vmem>>, vector<1x128xf32>
      %14 = vector.broadcast %13 : vector<1x128xf32> to vector<32x128xf32>
      %15 = arith.addf %12, %14 : vector<32x128xf32>
      %16 = arith.truncf %15 : vector<32x128xf32> to vector<32x128xbf16>
      %c0_13 = arith.constant 0 : index
      %c0_14 = arith.constant 0 : index
      %17 = vector.load %arg6[%c0_13, %c0_14] : memref<32x128xbf16, #tpu.memory_space<vmem>>, vector<32x128xbf16>
      tpu.vector_store %arg6[%c0_13, %c0_14], %16 {strides = array<i32>} : memref<32x128xbf16, #tpu.memory_space<vmem>>, vector<32x128xbf16>,
    } else {
    }
    return
  }
  func.func @transform_0(%arg0: i32, %arg1: i32, %arg2: i32) -> (i32, i32) {
    %c0_i32 = arith.constant 0 : i32
    return %arg0, %arg2 : i32, i32
  }
  func.func @transform_1(%arg0: i32, %arg1: i32, %arg2: i32) -> (i32, i32) {
    %c0_i32 = arith.constant 0 : i32
    return %arg2, %arg1 : i32, i32
  }
  func.func @transform_2(%arg0: i32, %arg1: i32, %arg2: i32) -> (i32, i32) {
    %c0_i32 = arith.constant 0 : i32
    %c0_i32_0 = arith.constant 0 : i32
    return %c0_i32, %arg1 : i32, i32
  }
  func.func @transform_3(%arg0: i32, %arg1: i32, %arg2: i32) -> (i32, i32) {
    %c0_i32 = arith.constant 0 : i32
    return %arg0, %arg1 : i32, i32
  }
}

module attributes {stable_mosaic.version = 11 : i64} {
  func.func @_norm_onepass_kernel(%arg0: i32, %arg1: memref<1x16x128xbf16, #tpu.memory_space<vmem>>, %arg2: memref<1x16x128xf32, #tpu.memory_space<vmem>>) attributes {dimension_semantics = [#tpu.dimension_semantics<parallel>], iteration_bounds = array<i64: 1>, scalar_prefetch = 0 : i64, scratch_operands = 0 : i64, tpu.core_type = #tpu.core_type<tc>, window_params = [{transform_indices = @transform_0, window_bounds = array<i64: 1, 16, 128>}, {transform_indices = @transform_1, window_bounds = array<i64: 1, 16, 128>}]} {
    %c0 = arith.constant 0 : index
    %c0_0 = arith.constant 0 : index
    %c0_1 = arith.constant 0 : index
    %0 = vector.load %arg1[%c0, %c0_0, %c0_1] : memref<1x16x128xbf16, #tpu.memory_space<vmem>>, vector<1x16x128xbf16>
    %1 = arith.extf %0 : vector<1x16x128xbf16> to vector<1x16x128xf32>
    %2 = vector.shape_cast %1 : vector<1x16x128xf32> to vector<1x1x16x128xf32>
    %cst = arith.constant dense<0.000000e+00> : vector<1xf32>
    %3 = vector.multi_reduction <add>, %2, %cst [1, 2, 3] : vector<1x1x16x128xf32> to vector<1xf32>
    %4 = vector.shape_cast %3 : vector<1xf32> to vector<1x1x1x1xf32>
    %5 = vector.extract %4[0, 0, 0, 0] : f32 from vector<1x1x1x1xf32>
    %cst_2 = arith.constant 4.8828125E-4 : f32
    %6 = arith.mulf %5, %cst_2 : f32
    %7 = vector.broadcast %6 : f32 to vector<1x16x128xf32>
    %8 = arith.subf %1, %7 : vector<1x16x128xf32>
    %9 = vector.broadcast %6 : f32 to vector<1x16x128xf32>
    %10 = arith.subf %1, %9 : vector<1x16x128xf32>
    %11 = arith.mulf %8, %10 : vector<1x16x128xf32>
    %12 = vector.shape_cast %11 : vector<1x16x128xf32> to vector<1x1x16x128xf32>
    %cst_3 = arith.constant dense<0.000000e+00> : vector<1xf32>
    %13 = vector.multi_reduction <add>, %12, %cst_3 [1, 2, 3] : vector<1x1x16x128xf32> to vector<1xf32>
    %14 = vector.shape_cast %13 : vector<1xf32> to vector<1x1x1x1xf32>
    %15 = vector.extract %14[0, 0, 0, 0] : f32 from vector<1x1x1x1xf32>
    %cst_4 = arith.constant 4.88519785E-4 : f32
    %16 = arith.mulf %15, %cst_4 : f32
    %cst_5 = arith.constant 9.99999996E-13 : f32
    %17 = arith.maximumf %16, %cst_5 : f32
    %18 = math.rsqrt %17 : f32
    %19 = vector.broadcast %18 : f32 to vector<1x16x128xf32>
    %20 = arith.mulf %1, %19 : vector<1x16x128xf32>
    %c0_6 = arith.constant 0 : index
    %c0_7 = arith.constant 0 : index
    %c0_8 = arith.constant 0 : index
    %21 = vector.load %arg2[%c0_6, %c0_7, %c0_8] : memref<1x16x128xf32, #tpu.memory_space<vmem>>, vector<1x16x128xf32>
    tpu.vector_store %arg2[%c0_6, %c0_7, %c0_8], %20 {strides = array<i32>} : memref<1x16x128xf32, #tpu.memory_space<vmem>>, vector<1x16x128xf32>,
    return
  }
  func.func @transform_0(%arg0: i32) -> (i32, i32, i32) {
    %c0_i32 = arith.constant 0 : i32
    %c0_i32_0 = arith.constant 0 : i32
    %c0_i32_1 = arith.constant 0 : i32
    return %arg0, %c0_i32, %c0_i32_0 : i32, i32, i32
  }
  func.func @transform_1(%arg0: i32) -> (i32, i32, i32) {
    %c0_i32 = arith.constant 0 : i32
    %c0_i32_0 = arith.constant 0 : i32
    %c0_i32_1 = arith.constant 0 : i32
    return %arg0, %c0_i32, %c0_i32_0 : i32, i32, i32
  }
}

module attributes {stable_mosaic.version = 11 : i64} {
  func.func @_matmul_bias_kernel(%arg0: i32, %arg1: i32, %arg2: i32, %arg3: memref<32x128xbf16, #tpu.memory_space<vmem>>, %arg4: memref<128x128xbf16, #tpu.memory_space<vmem>>, %arg5: memref<1x128xf32, #tpu.memory_space<vmem>>, %arg6: memref<32x128xf32, #tpu.memory_space<vmem>>, %arg7: memref<32x128xf32, #tpu.memory_space<vmem>>) attributes {dimension_semantics = [#tpu.dimension_semantics<parallel>, #tpu.dimension_semantics<parallel>, #tpu.dimension_semantics<arbitrary>], iteration_bounds = array<i64: 1, 1, 1>, scalar_prefetch = 0 : i64, scratch_operands = 1 : i64, tpu.core_type = #tpu.core_type<tc>, window_params = [{transform_indices = @transform_0, window_bounds = array<i64: 32, 128>}, {transform_indices = @transform_1, window_bounds = array<i64: 128, 128>}, {transform_indices = @transform_2, window_bounds = array<i64: 1, 128>}, {transform_indices = @transform_3, window_bounds = array<i64: 32, 128>}]} {
    %c0_i32 = arith.constant 0 : i32
    %0 = arith.cmpi eq, %arg2, %c0_i32 : i32
    %1 = arith.extui %0 : i1 to i32
    %c0_i32_0 = arith.constant 0 : i32
    %2 = arith.cmpi ne, %1, %c0_i32_0 : i32
    scf.if %2 {
      %cst_10 = arith.constant 0.000000e+00 : f32
      %12 = vector.broadcast %cst_10 : f32 to vector<32x128xf32>
      %c0_11 = arith.constant 0 : index
      %c0_12 = arith.constant 0 : index
      %13 = vector.load %arg7[%c0_11, %c0_12] : memref<32x128xf32, #tpu.memory_space<vmem>>, vector<32x128xf32>
      tpu.vector_store %arg7[%c0_11, %c0_12], %12 {strides = array<i32>} : memref<32x128xf32, #tpu.memory_space<vmem>>, vector<32x128xf32>,
    } else {
    }
    %c0 = arith.constant 0 : index
    %c0_1 = arith.constant 0 : index
    %3 = vector.load %arg7[%c0, %c0_1] : memref<32x128xf32, #tpu.memory_space<vmem>>, vector<32x128xf32>
    %c0_2 = arith.constant 0 : index
    %c0_3 = arith.constant 0 : index
    %4 = vector.load %arg3[%c0_2, %c0_3] : memref<32x128xbf16, #tpu.memory_space<vmem>>, vector<32x128xbf16>
    %c0_4 = arith.constant 0 : index
    %c0_5 = arith.constant 0 : index
    %5 = vector.load %arg4[%c0_4, %c0_5] : memref<128x128xbf16, #tpu.memory_space<vmem>>, vector<128x128xbf16>
    %cst = arith.constant dense<0.000000e+00> : vector<32x128xf32>
    %6 = tpu.matmul %4, %5, %cst {dimension_numbers = #tpu.dot_dimension_numbers<[1], [0], [0], [1], [0, 0, 1, 1], [], []>} : vector<32x128xbf16>, vector<128x128xbf16>, vector<32x128xf32> -> vector<32x128xf32>
    %7 = arith.addf %3, %6 : vector<32x128xf32>
    %c0_6 = arith.constant 0 : index
    %c0_7 = arith.constant 0 : index
    %8 = vector.load %arg7[%c0_6, %c0_7] : memref<32x128xf32, #tpu.memory_space<vmem>>, vector<32x128xf32>
    tpu.vector_store %arg7[%c0_6, %c0_7], %7 {strides = array<i32>} : memref<32x128xf32, #tpu.memory_space<vmem>>, vector<32x128xf32>,
    %c0_i32_8 = arith.constant 0 : i32
    %9 = arith.cmpi eq, %arg2, %c0_i32_8 : i32
    %10 = arith.extui %9 : i1 to i32
    %c0_i32_9 = arith.constant 0 : i32
    %11 = arith.cmpi ne, %10, %c0_i32_9 : i32
    scf.if %11 {
      %c0_10 = arith.constant 0 : index
      %c0_11 = arith.constant 0 : index
      %12 = vector.load %arg7[%c0_10, %c0_11] : memref<32x128xf32, #tpu.memory_space<vmem>>, vector<32x128xf32>
      %c0_12 = arith.constant 0 : index
      %c0_13 = arith.constant 0 : index
      %13 = vector.load %arg5[%c0_12, %c0_13] : memref<1x128xf32, #tpu.memory_space<vmem>>, vector<1x128xf32>
      %14 = vector.broadcast %13 : vector<1x128xf32> to vector<32x128xf32>
      %15 = arith.addf %12, %14 : vector<32x128xf32>
      %c0_14 = arith.constant 0 : index
      %c0_15 = arith.constant 0 : index
      %16 = vector.load %arg6[%c0_14, %c0_15] : memref<32x128xf32, #tpu.memory_space<vmem>>, vector<32x128xf32>
      tpu.vector_store %arg6[%c0_14, %c0_15], %15 {strides = array<i32>} : memref<32x128xf32, #tpu.memory_space<vmem>>, vector<32x128xf32>,
    } else {
    }
    return
  }
  func.func @transform_0(%arg0: i32, %arg1: i32, %arg2: i32) -> (i32, i32) {
    %c0_i32 = arith.constant 0 : i32
    return %arg0, %arg2 : i32, i32
  }
  func.func @transform_1(%arg0: i32, %arg1: i32, %arg2: i32) -> (i32, i32) {
    %c0_i32 = arith.constant 0 : i32
    return %arg2, %arg1 : i32, i32
  }
  func.func @transform_2(%arg0: i32, %arg1: i32, %arg2: i32) -> (i32, i32) {
    %c0_i32 = arith.constant 0 : i32
    %c0_i32_0 = arith.constant 0 : i32
    return %c0_i32, %arg1 : i32, i32
  }
  func.func @transform_3(%arg0: i32, %arg1: i32, %arg2: i32) -> (i32, i32) {
    %c0_i32 = arith.constant 0 : i32
    return %arg0, %arg1 : i32, i32
  }
}

</mosaic_0001>

<llo_original>
// kernel: yakir_forward.22
$region0: #{yakir_forward.22}
  #allocation0 [shape = 'u32[]', space=smem, size = 0x4, offset = 0x4, fixed_abs, tag = 'smem constant byte address 0x4 - core index']
  #allocation1 [shape = 'u32[72,128]{1,0:T(1,128)}', space=vmem, size = 0x9000, scoped, tag = 'internal scratch']
  #allocation2 [shape = 'f32[32,128]{1,0:T(8,128)}', space=vmem, size = 0x4000, scoped, tag = 'scratch operand']
  %s0 = inlined_call_operand.vmem [shape: bf16[32,128], index: 0, kind: input, shape index: {}]
  %s1 = inlined_call_operand.vmem [shape: bf16[128,128], index: 1, kind: input, shape index: {}]
  %s2 = inlined_call_operand.vmem [shape: f32[1,128], index: 2, kind: input, shape index: {}]
  %s3 = inlined_call_operand.vmem [shape: f32[32,128], index: 3, kind: output, shape index: {}]
  %s4 = sld [smem:[#allocation0]]
  $region30: #{yakir_forward.22} parent=0
    _
  %s6 = ssub.s32 1, %s4
  %s7 = scalar_select 0, %s6, %s4
  // Predicated region
  $region2: #{yakir_forward.22} parent=0 // pred_check
    _
  $region3: #{yakir_forward.22} parent=0 // pred_check_branch
    %9 = sbr.rel (0) target = $region5
  $region4: #{yakir_forward.22} parent=0 // pred_region
    _
  $region5: #{yakir_forward.22} parent=0 // pred_fallthru
    _
  // Predicated region
  $region6: #{yakir_forward.22} parent=0 // pred_check
    _
  $region7: #{yakir_forward.22} parent=0 // pred_check_branch
    %11 = sbr.rel (0) target = $region9
  $region8: #{yakir_forward.22} parent=0 // pred_region
    _
  $region9: #{yakir_forward.22} parent=0 // pred_fallthru
    _
  // Predicated region
  $region10: #{yakir_forward.22} parent=0 // pred_check
    _
  $region11: #{yakir_forward.22} parent=0 // pred_check_branch
    %13 = sbr.rel (0) target = $region13
  $region12: #{yakir_forward.22} parent=0 // pred_region
    _
  $region13: #{yakir_forward.22} parent=0 // pred_fallthru
    _
  %p14 = scmp.eq.s32.totalorder 0, 0
  // Predicated region
  $region14: #{yakir_forward.22} parent=0 // pred_check
    %p15 = pneg %p14
  $region15: #{yakir_forward.22} parent=0 // pred_check_branch
    %17 = sbr.rel (%p15) target = $region17
  $region16: #{yakir_forward.22} parent=0 // pred_region
    %18 = vst [vmem:[#allocation2] sm:$0xff] 0.0
    %19 = vst [vmem:[#allocation2 + $0x8] sm:$0xff] 0.0
    %20 = vst [vmem:[#allocation2 + $0x10] sm:$0xff] 0.0
    %21 = vst [vmem:[#allocation2 + $0x18] sm:$0xff] 0.0
  $region17: #{yakir_forward.22} parent=0 // pred_fallthru
    _
  %v22 = vld [vmem:[#allocation2] sm:$0xff]
  %v23 = vld [vmem:[#allocation2 + $0x8] sm:$0xff]
  %v24 = vld [vmem:[#allocation2 + $0x10] sm:$0xff]
  %v25 = vld [vmem:[#allocation2 + $0x18] sm:$0xff]
  %v26 = vld [vmem:[%s0] sm:$0xf]
  %v27 = vld [vmem:[%s0 + $0x4] sm:$0xf]
  %v28 = vld [vmem:[%s0 + $0x8] sm:$0xf]
  %v29 = vld [vmem:[%s0 + $0xc] sm:$0xf]
  %v30 = vld [vmem:[%s1] sm:$0xf]
  %v31 = vld [vmem:[%s1 + $0x4] sm:$0xf]
  %v32 = vld [vmem:[%s1 + $0x8] sm:$0xf]
  %v33 = vld [vmem:[%s1 + $0xc] sm:$0xf]
  %v34 = vld [vmem:[%s1 + $0x10] sm:$0xf]
  %v35 = vld [vmem:[%s1 + $0x14] sm:$0xf]
  %v36 = vld [vmem:[%s1 + $0x18] sm:$0xf]
  %v37 = vld [vmem:[%s1 + $0x1c] sm:$0xf]
  %v38 = vld [vmem:[%s1 + $0x20] sm:$0xf]
  %v39 = vld [vmem:[%s1 + $0x24] sm:$0xf]
  %v40 = vld [vmem:[%s1 + $0x28] sm:$0xf]
  %v41 = vld [vmem:[%s1 + $0x2c] sm:$0xf]
  %v42 = vld [vmem:[%s1 + $0x30] sm:$0xf]
  %v43 = vld [vmem:[%s1 + $0x34] sm:$0xf]
  %v44 = vld [vmem:[%s1 + $0x38] sm:$0xf]
  %v45 = vld [vmem:[%s1 + $0x3c] sm:$0xf]
  %v50 = vunpack.c.l.b16 %v26
  %v51 = vunpack.c.l.b16 %v27
  %v52 = vunpack.c.l.b16 %v28
  %v53 = vunpack.c.l.b16 %v29
  %v54 = vpack.c.b16 %v51, %v50
  %v55 = vpack.c.b16 %v53, %v52
  %v74 = vunpack.c.l.b16 %v30
  %v75 = vunpack.c.l.b16 %v31
  %v76 = vunpack.c.l.b16 %v32
  %v77 = vunpack.c.l.b16 %v33
  %v78 = vunpack.c.l.b16 %v34
  %v79 = vunpack.c.l.b16 %v35
  %v80 = vunpack.c.l.b16 %v36
  %v81 = vunpack.c.l.b16 %v37
  %v82 = vunpack.c.l.b16 %v38
  %v83 = vunpack.c.l.b16 %v39
  %v84 = vunpack.c.l.b16 %v40
  %v85 = vunpack.c.l.b16 %v41
  %v86 = vunpack.c.l.b16 %v42
  %v87 = vunpack.c.l.b16 %v43
  %v88 = vunpack.c.l.b16 %v44
  %v89 = vunpack.c.l.b16 %v45
  %v90 = vpack.c.b16 %v75, %v74
  %v91 = vpack.c.b16 %v77, %v76
  %v92 = vpack.c.b16 %v79, %v78
  %v93 = vpack.c.b16 %v81, %v80
  %v94 = vpack.c.b16 %v83, %v82
  %v95 = vpack.c.b16 %v85, %v84
  %v96 = vpack.c.b16 %v87, %v86
  %v97 = vpack.c.b16 %v89, %v88
  %106 = vmatpush.bf16.msra.mxu0 %v97
  %107 = vmatpush.bf16.msra.mxu0 %v96
  %108 = vmatpush.bf16.msra.mxu0 %v95
  %109 = vmatpush.bf16.msra.mxu0 %v94
  %110 = vmatpush.bf16.msra.mxu0 %v93
  %111 = vmatpush.bf16.msra.mxu0 %v92
  %112 = vmatpush.bf16.msra.mxu0 %v91
  %113 = vmatpush.bf16.msra.mxu0 %v90
  %114 = vmatmul.bf16.gmra.mxu0 %v54
  %v115 = vpop.f32.mrf.mxu0
  %v116 = vadd.f32 0.0, %v115
  %v117 = vpop.f32.mrf.mxu0
  %v118 = vadd.f32 0.0, %v117
  %119 = vmatmul.bf16.gmra.mxu0 %v55
  %v120 = vpop.f32.mrf.mxu0
  %v121 = vadd.f32 0.0, %v120
  %v122 = vpop.f32.mrf.mxu0
  %v123 = vadd.f32 0.0, %v122
  %124 = vdwg.mxu0
  %v125 = vadd.f32 %v22, %v116
  %v126 = vadd.f32 %v23, %v118
  %v127 = vadd.f32 %v24, %v121
  %v128 = vadd.f32 %v25, %v123
  %129 = vst [vmem:[#allocation2] sm:$0xff] %v125
  %130 = vst [vmem:[#allocation2 + $0x8] sm:$0xff] %v126
  %131 = vst [vmem:[#allocation2 + $0x10] sm:$0xff] %v127
  %132 = vst [vmem:[#allocation2 + $0x18] sm:$0xff] %v128
  // Predicated region
  $region18: #{yakir_forward.22} parent=0 // pred_check
    %p133 = pneg %p14
  $region19: #{yakir_forward.22} parent=0 // pred_check_branch
    %135 = sbr.rel (%p133) target = $region21
  $region20: #{yakir_forward.22} parent=0 // pred_region
    %v136 = vld [vmem:[#allocation2] sm:$0xff]
    %v137 = vld [vmem:[#allocation2 + $0x8] sm:$0xff]
    %v138 = vld [vmem:[#allocation2 + $0x10] sm:$0xff]
    %v139 = vld [vmem:[#allocation2 + $0x18] sm:$0xff]
    %v140 = vld [vmem:[%s2] sm:$0x1]
    %v142 = vperm.slane %v140, 0
    %v144 = vadd.f32 %v136, %v142
    %v145 = vadd.f32 %v137, %v142
    %v146 = vadd.f32 %v138, %v142
    %v147 = vadd.f32 %v139, %v142
    %148 = vst [vmem:[%s3] sm:$0xff] %v144
    %149 = vst [vmem:[%s3 + $0x8] sm:$0xff] %v145
    %150 = vst [vmem:[%s3 + $0x10] sm:$0xff] %v146
    %151 = vst [vmem:[%s3 + $0x18] sm:$0xff] %v147
  $region21: #{yakir_forward.22} parent=0 // pred_fallthru
    _
  // Predicated region
  $region22: #{yakir_forward.22} parent=0 // pred_check
    _
  $region23: #{yakir_forward.22} parent=0 // pred_check_branch
    %153 = sbr.rel (0) target = $region25
  $region24: #{yakir_forward.22} parent=0 // pred_region
    _
  $region25: #{yakir_forward.22} parent=0 // pred_fallthru
    _
  // Predicated region
  $region26: #{yakir_forward.22} parent=0 // pred_check
    _
  $region27: #{yakir_forward.22} parent=0 // pred_check_branch
    %155 = sbr.rel (0) target = $region29
  $region28: #{yakir_forward.22} parent=0 // pred_region
    _
  $region29: #{yakir_forward.22} parent=0 // pred_fallthru
    _

// kernel: yakir_forward.23
$region0: #{yakir_forward.23}
  #allocation0 [shape = 'u32[]', space=smem, size = 0x4, offset = 0x4, fixed_abs, tag = 'smem constant byte address 0x4 - core index']
  #allocation1 [shape = 'u32[72,128]{1,0:T(1,128)}', space=vmem, size = 0x9000, scoped, tag = 'internal scratch']
  #allocation2 [shape = 'f32[16,128]{1,0:T(8,128)}', space=vmem, size = 0x2000, scoped, tag = 'scratch operand']
  %s0 = inlined_call_operand.vmem [shape: bf16[16,256], index: 0, kind: input, shape index: {}]
  %s1 = inlined_call_operand.vmem [shape: bf16[256,128], index: 1, kind: input, shape index: {}]
  %s2 = inlined_call_operand.vmem [shape: f32[1,128], index: 2, kind: input, shape index: {}]
  %s3 = inlined_call_operand.vmem [shape: bf16[16,128], index: 3, kind: output, shape index: {}]
  %s4 = sld [smem:[#allocation0]]
  $region30: #{yakir_forward.23} parent=0
    _
  %s6 = ssub.s32 1, %s4
  %s7 = scalar_select 0, %s6, %s4
  // Predicated region
  $region2: #{yakir_forward.23} parent=0 // pred_check
    _
  $region3: #{yakir_forward.23} parent=0 // pred_check_branch
    %9 = sbr.rel (0) target = $region5
  $region4: #{yakir_forward.23} parent=0 // pred_region
    _
  $region5: #{yakir_forward.23} parent=0 // pred_fallthru
    _
  // Predicated region
  $region6: #{yakir_forward.23} parent=0 // pred_check
    _
  $region7: #{yakir_forward.23} parent=0 // pred_check_branch
    %11 = sbr.rel (0) target = $region9
  $region8: #{yakir_forward.23} parent=0 // pred_region
    _
  $region9: #{yakir_forward.23} parent=0 // pred_fallthru
    _
  // Predicated region
  $region10: #{yakir_forward.23} parent=0 // pred_check
    _
  $region11: #{yakir_forward.23} parent=0 // pred_check_branch
    %13 = sbr.rel (0) target = $region13
  $region12: #{yakir_forward.23} parent=0 // pred_region
    _
  $region13: #{yakir_forward.23} parent=0 // pred_fallthru
    _
  %p14 = scmp.eq.s32.totalorder 0, 0
  // Predicated region
  $region14: #{yakir_forward.23} parent=0 // pred_check
    %p15 = pneg %p14
  $region15: #{yakir_forward.23} parent=0 // pred_check_branch
    %17 = sbr.rel (%p15) target = $region17
  $region16: #{yakir_forward.23} parent=0 // pred_region
    %18 = vst [vmem:[#allocation2] sm:$0xff] 0.0
    %19 = vst [vmem:[#allocation2 + $0x8] sm:$0xff] 0.0
  $region17: #{yakir_forward.23} parent=0 // pred_fallthru
    _
  %v20 = vld [vmem:[#allocation2] sm:$0xff]
  %v21 = vld [vmem:[#allocation2 + $0x8] sm:$0xff]
  %v22 = vld [vmem:[%s0] sm:$0xff]
  %v23 = vld [vmem:[%s0 + $0x8] sm:$0xff]
  %v24 = vld [vmem:[%s1] sm:$0xf]
  %v25 = vld [vmem:[%s1 + $0x4] sm:$0xf]
  %v26 = vld [vmem:[%s1 + $0x8] sm:$0xf]
  %v27 = vld [vmem:[%s1 + $0xc] sm:$0xf]
  %v28 = vld [vmem:[%s1 + $0x10] sm:$0xf]
  %v29 = vld [vmem:[%s1 + $0x14] sm:$0xf]
  %v30 = vld [vmem:[%s1 + $0x18] sm:$0xf]
  %v31 = vld [vmem:[%s1 + $0x1c] sm:$0xf]
  %v32 = vld [vmem:[%s1 + $0x20] sm:$0xf]
  %v33 = vld [vmem:[%s1 + $0x24] sm:$0xf]
  %v34 = vld [vmem:[%s1 + $0x28] sm:$0xf]
  %v35 = vld [vmem:[%s1 + $0x2c] sm:$0xf]
  %v36 = vld [vmem:[%s1 + $0x30] sm:$0xf]
  %v37 = vld [vmem:[%s1 + $0x34] sm:$0xf]
  %v38 = vld [vmem:[%s1 + $0x38] sm:$0xf]
  %v39 = vld [vmem:[%s1 + $0x3c] sm:$0xf]
  %v40 = vld [vmem:[%s1 + $0x40] sm:$0xf]
  %v41 = vld [vmem:[%s1 + $0x44] sm:$0xf]
  %v42 = vld [vmem:[%s1 + $0x48] sm:$0xf]
  %v43 = vld [vmem:[%s1 + $0x4c] sm:$0xf]
  %v44 = vld [vmem:[%s1 + $0x50] sm:$0xf]
  %v45 = vld [vmem:[%s1 + $0x54] sm:$0xf]
  %v46 = vld [vmem:[%s1 + $0x58] sm:$0xf]
  %v47 = vld [vmem:[%s1 + $0x5c] sm:$0xf]
  %v48 = vld [vmem:[%s1 + $0x60] sm:$0xf]
  %v49 = vld [vmem:[%s1 + $0x64] sm:$0xf]
  %v50 = vld [vmem:[%s1 + $0x68] sm:$0xf]
  %v51 = vld [vmem:[%s1 + $0x6c] sm:$0xf]
  %v52 = vld [vmem:[%s1 + $0x70] sm:$0xf]
  %v53 = vld [vmem:[%s1 + $0x74] sm:$0xf]
  %v54 = vld [vmem:[%s1 + $0x78] sm:$0xf]
  %v55 = vld [vmem:[%s1 + $0x7c] sm:$0xf]
  %v58 = vunpack.c.l.b16 %v22
  %v59 = vunpack.c.h.b16 %v22
  %v60 = vunpack.c.l.b16 %v23
  %v61 = vunpack.c.h.b16 %v23
  %v62 = vpack.c.b16 %v60, %v58
  %v63 = vpack.c.b16 %v61, %v59
  %v98 = vunpack.c.l.b16 %v24
  %v99 = vunpack.c.l.b16 %v25
  %v100 = vunpack.c.l.b16 %v26
  %v101 = vunpack.c.l.b16 %v27
  %v102 = vunpack.c.l.b16 %v28
  %v103 = vunpack.c.l.b16 %v29
  %v104 = vunpack.c.l.b16 %v30
  %v105 = vunpack.c.l.b16 %v31
  %v106 = vunpack.c.l.b16 %v32
  %v107 = vunpack.c.l.b16 %v33
  %v108 = vunpack.c.l.b16 %v34
  %v109 = vunpack.c.l.b16 %v35
  %v110 = vunpack.c.l.b16 %v36
  %v111 = vunpack.c.l.b16 %v37
  %v112 = vunpack.c.l.b16 %v38
  %v113 = vunpack.c.l.b16 %v39
  %v114 = vunpack.c.l.b16 %v40
  %v115 = vunpack.c.l.b16 %v41
  %v116 = vunpack.c.l.b16 %v42
  %v117 = vunpack.c.l.b16 %v43
  %v118 = vunpack.c.l.b16 %v44
  %v119 = vunpack.c.l.b16 %v45
  %v120 = vunpack.c.l.b16 %v46
  %v121 = vunpack.c.l.b16 %v47
  %v122 = vunpack.c.l.b16 %v48
  %v123 = vunpack.c.l.b16 %v49
  %v124 = vunpack.c.l.b16 %v50
  %v125 = vunpack.c.l.b16 %v51
  %v126 = vunpack.c.l.b16 %v52
  %v127 = vunpack.c.l.b16 %v53
  %v128 = vunpack.c.l.b16 %v54
  %v129 = vunpack.c.l.b16 %v55
  %v130 = vpack.c.b16 %v99, %v98
  %v131 = vpack.c.b16 %v101, %v100
  %v132 = vpack.c.b16 %v103, %v102
  %v133 = vpack.c.b16 %v105, %v104
  %v134 = vpack.c.b16 %v107, %v106
  %v135 = vpack.c.b16 %v109, %v108
  %v136 = vpack.c.b16 %v111, %v110
  %v137 = vpack.c.b16 %v113, %v112
  %v138 = vpack.c.b16 %v115, %v114
  %v139 = vpack.c.b16 %v117, %v116
  %v140 = vpack.c.b16 %v119, %v118
  %v141 = vpack.c.b16 %v121, %v120
  %v142 = vpack.c.b16 %v123, %v122
  %v143 = vpack.c.b16 %v125, %v124
  %v144 = vpack.c.b16 %v127, %v126
  %v145 = vpack.c.b16 %v129, %v128
  %162 = vmatpush.bf16.msra.mxu0 %v137
  %163 = vmatpush.bf16.msra.mxu0 %v136
  %164 = vmatpush.bf16.msra.mxu0 %v135
  %165 = vmatpush.bf16.msra.mxu0 %v134
  %166 = vmatpush.bf16.msra.mxu0 %v133
  %167 = vmatpush.bf16.msra.mxu0 %v132
  %168 = vmatpush.bf16.msra.mxu0 %v131
  %169 = vmatpush.bf16.msra.mxu0 %v130
  %170 = vmatmul.bf16.gmra.mxu0 %v62
  %v171 = vpop.f32.mrf.mxu0
  %v172 = vadd.f32 0.0, %v171
  %v173 = vpop.f32.mrf.mxu0
  %v174 = vadd.f32 0.0, %v173
  %175 = vdwg.mxu0
  %176 = vmatpush.bf16.msra.mxu0 %v145
  %177 = vmatpush.bf16.msra.mxu0 %v144
  %178 = vmatpush.bf16.msra.mxu0 %v143
  %179 = vmatpush.bf16.msra.mxu0 %v142
  %180 = vmatpush.bf16.msra.mxu0 %v141
  %181 = vmatpush.bf16.msra.mxu0 %v140
  %182 = vmatpush.bf16.msra.mxu0 %v139
  %183 = vmatpush.bf16.msra.mxu0 %v138
  %184 = vmatmul.bf16.gmra.mxu0 %v63
  %v185 = vpop.f32.mrf.mxu0
  %v186 = vadd.f32 %v172, %v185
  %v187 = vpop.f32.mrf.mxu0
  %v188 = vadd.f32 %v174, %v187
  %189 = vdwg.mxu0
  %v190 = vadd.f32 %v20, %v186
  %v191 = vadd.f32 %v21, %v188
  %192 = vst [vmem:[#allocation2] sm:$0xff] %v190
  %193 = vst [vmem:[#allocation2 + $0x8] sm:$0xff] %v191
  // Predicated region
  $region18: #{yakir_forward.23} parent=0 // pred_check
    %p194 = pneg %p14
  $region19: #{yakir_forward.23} parent=0 // pred_check_branch
    %196 = sbr.rel (%p194) target = $region21
  $region20: #{yakir_forward.23} parent=0 // pred_region
    %v197 = vld [vmem:[#allocation2] sm:$0xff]
    %v198 = vld [vmem:[#allocation2 + $0x8] sm:$0xff]
    %v199 = vld [vmem:[%s2] sm:$0x1]
    %v201 = vperm.slane %v199, 0
    %v203 = vadd.f32 %v197, %v201
    %v204 = vadd.f32 %v198, %v201
    %v205 = vpack.c.bf16 %v203, %v203
    %v206 = vpack.c.bf16 %v204, %v204
    %207 = vst [vmem:[%s3] sm:$0xf] %v205
    %208 = vst [vmem:[%s3 + $0x4] sm:$0xf] %v206
  $region21: #{yakir_forward.23} parent=0 // pred_fallthru
    _
  // Predicated region
  $region22: #{yakir_forward.23} parent=0 // pred_check
    _
  $region23: #{yakir_forward.23} parent=0 // pred_check_branch
    %210 = sbr.rel (0) target = $region25
  $region24: #{yakir_forward.23} parent=0 // pred_region
    _
  $region25: #{yakir_forward.23} parent=0 // pred_fallthru
    _
  // Predicated region
  $region26: #{yakir_forward.23} parent=0 // pred_check
    _
  $region27: #{yakir_forward.23} parent=0 // pred_check_branch
    %212 = sbr.rel (0) target = $region29
  $region28: #{yakir_forward.23} parent=0 // pred_region
    _
  $region29: #{yakir_forward.23} parent=0 // pred_fallthru
    _

// kernel: reverse.2
$region0: #{reverse.2}
  %s0 = inlined_call_operand.vmem [shape: f32[4,64,3], index: 0, kind: input, shape index: {}]
  %s1 = inlined_call_operand.vmem [shape: f32[4,64,3], index: 1, kind: output, shape index: {}]
  $region1: #{reverse.2} parent=0
    #allocation0 [shape = 'u8[32768]{0}', space=vmem, size = 0x8000, scoped, tag = 'operand span for operand 0']
    #allocation1 [shape = 'u8[16384]{0}', space=vmem, size = 0x4000, scoped, tag = 'packed  for operand 0']
    #allocation2 [shape = 'u8[16384]{0}', space=vmem, size = 0x4000, scoped, tag = 'operand span for operand 1']
    #allocation3 [shape = 'u8[8192]{0}', space=vmem, size = 0x2000, scoped, tag = 'packed  for operand 1']
    %s2 = scalar_lea.vmem [#allocation1], 4
    // Predicated region
    $region2: #{reverse.2} parent=1 // pred_check
      _
    $region3: #{reverse.2} parent=1 // pred_check_branch
      %4 = sbr.rel (0) target = $region5
    $region4: #{reverse.2} parent=1 // pred_region
      // Predicated region
      $region6: #{reverse.2} parent=4 // pred_check
        _
      $region7: #{reverse.2} parent=4 // pred_check_branch
        %6 = sbr.rel target = $region9
      $region8: #{reverse.2} parent=4 // pred_region
        // Predicated region
        $region21: #{reverse.2} parent=8 // pred_check
          _
        $region22: #{reverse.2} parent=8 // pred_check_branch
          %28 = sbr.rel (0) target = $region24
        $region23: #{reverse.2} parent=8 // pred_region
          loop: start=0, step=1, limit=1
          $region25: #{reverse.2} parent=23 // loop_pre_header
            _
          $region26: #{reverse.2} parent=23 // loop_header
            %s30 = sphi 0, %s34
            %p31 = scmp.ge.s32.totalorder %s30, 1
            %s35 = sphi %s0, %s0
            %s36 = sphi %s2, %s2
          $region27: #{reverse.2} parent=23 // loop_header_branch
            %33 = sbr.rel (%p31) target = $region31
          $region28: #{reverse.2} parent=23 // loop_body
            _
          $region29: #{reverse.2} parent=23 // loop_footer
            %s34 = sadd.s32 1, %s30
          $region30: #{reverse.2} parent=23 // loop_footer_branch
            %29 = sbr.rel target = $region26
          $region31: #{reverse.2} parent=23 // loop_exit
            _
          %s38 = ssub.s32 16, 1
          loop: start=0, step=1, limit=1
          $region32: #{reverse.2} parent=23 // loop_pre_header
            _
          $region33: #{reverse.2} parent=23 // loop_header
            %s40 = sphi 0, %s44
            %p41 = scmp.ge.s32.totalorder %s40, 1
            %s45 = sphi %s0, %s0
            %s46 = sphi %s2, %s2
          $region34: #{reverse.2} parent=23 // loop_header_branch
            %43 = sbr.rel (%p41) target = $region38
          $region35: #{reverse.2} parent=23 // loop_body
            %v47 = vld [vmem:[%s45] sm:%s38]
            %48 = vst [vmem:[%s46] sm:%s38] %v47
            %v49 = vld [vmem:[%s45 + $0x4] sm:%s38]
            %50 = vst [vmem:[%s46 + $0x8] sm:%s38] %v49
            %v51 = vld [vmem:[%s45 + $0x8] sm:%s38]
            %52 = vst [vmem:[%s46 + $0x10] sm:%s38] %v51
            %v53 = vld [vmem:[%s45 + $0xc] sm:%s38]
            %54 = vst [vmem:[%s46 + $0x18] sm:%s38] %v53
          $region36: #{reverse.2} parent=23 // loop_footer
            %s44 = sadd.s32 1, %s40
          $region37: #{reverse.2} parent=23 // loop_footer_branch
            %39 = sbr.rel target = $region33
          $region38: #{reverse.2} parent=23 // loop_exit
            _
        $region24: #{reverse.2} parent=8 // pred_fallthru
          _
      $region9: #{reverse.2} parent=4 // pred_fallthru
        _
      // Predicated region
      $region10: #{reverse.2} parent=4 // pred_check
        _
      $region11: #{reverse.2} parent=4 // pred_check_branch
        %8 = sbr.rel (0) target = $region13
      $region12: #{reverse.2} parent=4 // pred_region
        %s10 = ssub.s32 16, 1
        loop: start=0, step=1, limit=1
        $region14: #{reverse.2} parent=12 // loop_pre_header
          _
        $region15: #{reverse.2} parent=12 // loop_header
          %s12 = sphi 0, %s16
          %p13 = scmp.ge.s32.totalorder %s12, 1
          %s17 = sphi %s0, %s0
          %s18 = sphi %s2, %s2
        $region16: #{reverse.2} parent=12 // loop_header_branch
          %15 = sbr.rel (%p13) target = $region20
        $region17: #{reverse.2} parent=12 // loop_body
          %v19 = vld [vmem:[%s17] sm:%s10]
          %20 = vst [vmem:[%s18] sm:%s10] %v19
          %v21 = vld [vmem:[%s17 + $0x4] sm:%s10]
          %22 = vst [vmem:[%s18 + $0x8] sm:%s10] %v21
          %v23 = vld [vmem:[%s17 + $0x8] sm:%s10]
          %24 = vst [vmem:[%s18 + $0x10] sm:%s10] %v23
          %v25 = vld [vmem:[%s17 + $0xc] sm:%s10]
          %26 = vst [vmem:[%s18 + $0x18] sm:%s10] %v25
        $region18: #{reverse.2} parent=12 // loop_footer
          %s16 = sadd.s32 1, %s12
        $region19: #{reverse.2} parent=12 // loop_footer_branch
          %11 = sbr.rel target = $region15
        $region20: #{reverse.2} parent=12 // loop_exit
          _
      $region13: #{reverse.2} parent=4 // pred_fallthru
        _
    $region5: #{reverse.2} parent=1 // pred_fallthru
      _
    %55 = vnop
    %s57 = ssub.s32 16, 1
    %s58 = scalar_lea.vmem [#allocation1], 28
    %v59 = vld [vmem:[%s58] sm:%s57]
    %s60 = scalar_lea.vmem [#allocation0], 56
    %61 = vst [vmem:[%s60] sm:%s57] %v59
    %s62 = scalar_lea.vmem [#allocation1], 24
    %v63 = vld [vmem:[%s62] sm:%s57]
    %s64 = scalar_lea.vmem [#allocation0], 48
    %65 = vst [vmem:[%s64] sm:%s57] %v63
    %s66 = scalar_lea.vmem [#allocation1], 20
    %v67 = vld [vmem:[%s66] sm:%s57]
    %s68 = scalar_lea.vmem [#allocation0], 40
    %69 = vst [vmem:[%s68] sm:%s57] %v67
    %s70 = scalar_lea.vmem [#allocation1], 16
    %v71 = vld [vmem:[%s70] sm:%s57]
    %s72 = scalar_lea.vmem [#allocation0], 32
    %73 = vst [vmem:[%s72] sm:%s57] %v71
    %s74 = scalar_lea.vmem [#allocation1], 12
    %v75 = vld [vmem:[%s74] sm:%s57]
    %s76 = scalar_lea.vmem [#allocation0], 24
    %77 = vst [vmem:[%s76] sm:%s57] %v75
    %s78 = scalar_lea.vmem [#allocation1], 8
    %v79 = vld [vmem:[%s78] sm:%s57]
    %s80 = scalar_lea.vmem [#allocation0], 16
    %81 = vst [vmem:[%s80] sm:%s57] %v79
    %s82 = scalar_lea.vmem [#allocation1], 4
    %v83 = vld [vmem:[%s82] sm:%s57]
    %s84 = scalar_lea.vmem [#allocation0], 8
    %85 = vst [vmem:[%s84] sm:%s57] %v83
    %v86 = vld [vmem:[#allocation1] sm:%s57]
    %87 = vst [vmem:[#allocation0] sm:%s57] %v86
    %s88 = scalar_lea.vmem [#allocation0], 7
    %v89 = vld [vmem:[%s88] ss:$-1 sm:$0xff]
    %v90 = vrot.slane %v89, 5
    %91 = vst [vmem:[#allocation2] sm:$0xff] %v90
    %s92 = scalar_lea.vmem [#allocation0], 8
    %s93 = scalar_lea.vmem %s92, 7 [#allocation0]
    %v94 = vld [vmem:[%s93] ss:$-1 sm:$0xff]
    %v95 = vrot.slane %v94, 5
    %v96 = vlaneseq
    %v97 = vshrl.u32 %v96, 7
    %vm98 = vcmp.lt.s32.totalorder %v97, 3
    %99 = vst.msk [vmem:[#allocation2] sm:$0xff] %vm98, %v95
    %s100 = scalar_lea.vmem [#allocation2], 8
    %s101 = scalar_lea.vmem [#allocation0], 16
    %s102 = scalar_lea.vmem %s101, 7 [#allocation0]
    %v103 = vld [vmem:[%s102] ss:$-1 sm:$0xff]
    %v104 = vrot.slane %v103, 5
    %105 = vst [vmem:[%s100] sm:$0xff] %v104
    %s106 = scalar_lea.vmem %s101, 8 [#allocation0]
    %s107 = scalar_lea.vmem %s106, 7 [#allocation0]
    %v108 = vld [vmem:[%s107] ss:$-1 sm:$0xff]
    %v109 = vrot.slane %v108, 5
    %v110 = vlaneseq
    %v111 = vshrl.u32 %v110, 7
    %vm112 = vcmp.lt.s32.totalorder %v111, 3
    %113 = vst.msk [vmem:[%s100] sm:$0xff] %vm112, %v109
    %s114 = scalar_lea.vmem [#allocation2], 16
    %s115 = scalar_lea.vmem [#allocation0], 32
    %s116 = scalar_lea.vmem %s115, 7 [#allocation0]
    %v117 = vld [vmem:[%s116] ss:$-1 sm:$0xff]
    %v118 = vrot.slane %v117, 5
    %119 = vst [vmem:[%s114] sm:$0xff] %v118
    %s120 = scalar_lea.vmem %s115, 8 [#allocation0]
    %s121 = scalar_lea.vmem %s120, 7 [#allocation0]
    %v122 = vld [vmem:[%s121] ss:$-1 sm:$0xff]
    %v123 = vrot.slane %v122, 5
    %v124 = vlaneseq
    %v125 = vshrl.u32 %v124, 7
    %vm126 = vcmp.lt.s32.totalorder %v125, 3
    %127 = vst.msk [vmem:[%s114] sm:$0xff] %vm126, %v123
    %s128 = scalar_lea.vmem [#allocation2], 24
    %s129 = scalar_lea.vmem [#allocation0], 48
    %s130 = scalar_lea.vmem %s129, 7 [#allocation0]
    %v131 = vld [vmem:[%s130] ss:$-1 sm:$0xff]
    %v132 = vrot.slane %v131, 5
    %133 = vst [vmem:[%s128] sm:$0xff] %v132
    %s134 = scalar_lea.vmem %s129, 8 [#allocation0]
    %s135 = scalar_lea.vmem %s134, 7 [#allocation0]
    %v136 = vld [vmem:[%s135] ss:$-1 sm:$0xff]
    %v137 = vrot.slane %v136, 5
    %v138 = vlaneseq
    %v139 = vshrl.u32 %v138, 7
    %vm140 = vcmp.lt.s32.totalorder %v139, 3
    %141 = vst.msk [vmem:[%s128] sm:$0xff] %vm140, %v137
    %s143 = ssub.s32 16, 1
    %v144 = vld [vmem:[#allocation2] sm:%s143]
    %s146 = ssub.s32 16, 1
    %147 = vst [vmem:[#allocation3] sm:%s146] %v144
    %s148 = scalar_lea.vmem [#allocation2], 8
    %v149 = vld [vmem:[%s148] sm:%s143]
    %s151 = ssub.s32 16, 1
    %s152 = scalar_lea.vmem [#allocation3], 4
    %153 = vst [vmem:[%s152] sm:%s151] %v149
    %s154 = scalar_lea.vmem [#allocation2], 16
    %v155 = vld [vmem:[%s154] sm:%s143]
    %s157 = ssub.s32 16, 1
    %s158 = scalar_lea.vmem [#allocation3], 8
    %159 = vst [vmem:[%s158] sm:%s157] %v155
    %s160 = scalar_lea.vmem [#allocation2], 24
    %v161 = vld [vmem:[%s160] sm:%s143]
    %s163 = ssub.s32 16, 1
    %s164 = scalar_lea.vmem [#allocation3], 12
    %165 = vst [vmem:[%s164] sm:%s163] %v161
    // Predicated region
    $region39: #{reverse.2} parent=1 // pred_check
      _
    $region40: #{reverse.2} parent=1 // pred_check_branch
      %167 = sbr.rel (0) target = $region42
    $region41: #{reverse.2} parent=1 // pred_region
      // Predicated region
      $region43: #{reverse.2} parent=41 // pred_check
        _
      $region44: #{reverse.2} parent=41 // pred_check_branch
        %169 = sbr.rel target = $region46
      $region45: #{reverse.2} parent=41 // pred_region
        // Predicated region
        $region58: #{reverse.2} parent=45 // pred_check
          _
        $region59: #{reverse.2} parent=45 // pred_check_branch
          %191 = sbr.rel (0) target = $region61
        $region60: #{reverse.2} parent=45 // pred_region
          loop: start=0, step=1, limit=1
          $region62: #{reverse.2} parent=60 // loop_pre_header
            _
          $region63: #{reverse.2} parent=60 // loop_header
            %s193 = sphi 0, %s197
            %p194 = scmp.ge.s32.totalorder %s193, 1
            %s198 = sphi [#allocation3], [#allocation3]
            %s199 = sphi %s1, %s1
          $region64: #{reverse.2} parent=60 // loop_header_branch
            %196 = sbr.rel (%p194) target = $region68
          $region65: #{reverse.2} parent=60 // loop_body
            _
          $region66: #{reverse.2} parent=60 // loop_footer
            %s197 = sadd.s32 1, %s193
          $region67: #{reverse.2} parent=60 // loop_footer_branch
            %192 = sbr.rel target = $region63
          $region68: #{reverse.2} parent=60 // loop_exit
            _
          %s201 = ssub.s32 16, 1
          loop: start=0, step=1, limit=1
          $region69: #{reverse.2} parent=60 // loop_pre_header
            _
          $region70: #{reverse.2} parent=60 // loop_header
            %s203 = sphi 0, %s207
            %p204 = scmp.ge.s32.totalorder %s203, 1
            %s208 = sphi [#allocation3], [#allocation3]
            %s209 = sphi %s1, %s1
          $region71: #{reverse.2} parent=60 // loop_header_branch
            %206 = sbr.rel (%p204) target = $region75
          $region72: #{reverse.2} parent=60 // loop_body
            %v210 = vld [vmem:[%s208] sm:%s201]
            %211 = vst [vmem:[%s209] sm:%s201] %v210
            %v212 = vld [vmem:[%s208 + $0x4] sm:%s201]
            %213 = vst [vmem:[%s209 + $0x4] sm:%s201] %v212
            %v214 = vld [vmem:[%s208 + $0x8] sm:%s201]
            %215 = vst [vmem:[%s209 + $0x8] sm:%s201] %v214
            %v216 = vld [vmem:[%s208 + $0xc] sm:%s201]
            %217 = vst [vmem:[%s209 + $0xc] sm:%s201] %v216
          $region73: #{reverse.2} parent=60 // loop_footer
            %s207 = sadd.s32 1, %s203
          $region74: #{reverse.2} parent=60 // loop_footer_branch
            %202 = sbr.rel target = $region70
          $region75: #{reverse.2} parent=60 // loop_exit
            _
        $region61: #{reverse.2} parent=45 // pred_fallthru
          _
      $region46: #{reverse.2} parent=41 // pred_fallthru
        _
      // Predicated region
      $region47: #{reverse.2} parent=41 // pred_check
        _
      $region48: #{reverse.2} parent=41 // pred_check_branch
        %171 = sbr.rel (0) target = $region50
      $region49: #{reverse.2} parent=41 // pred_region
        %s173 = ssub.s32 16, 1
        loop: start=0, step=1, limit=1
        $region51: #{reverse.2} parent=49 // loop_pre_header
          _
        $region52: #{reverse.2} parent=49 // loop_header
          %s175 = sphi 0, %s179
          %p176 = scmp.ge.s32.totalorder %s175, 1
          %s180 = sphi [#allocation3], [#allocation3]
          %s181 = sphi %s1, %s1
        $region53: #{reverse.2} parent=49 // loop_header_branch
          %178 = sbr.rel (%p176) target = $region57
        $region54: #{reverse.2} parent=49 // loop_body
          %v182 = vld [vmem:[%s180] sm:%s173]
          %183 = vst [vmem:[%s181] sm:%s173] %v182
          %v184 = vld [vmem:[%s180 + $0x4] sm:%s173]
          %185 = vst [vmem:[%s181 + $0x4] sm:%s173] %v184
          %v186 = vld [vmem:[%s180 + $0x8] sm:%s173]
          %187 = vst [vmem:[%s181 + $0x8] sm:%s173] %v186
          %v188 = vld [vmem:[%s180 + $0xc] sm:%s173]
          %189 = vst [vmem:[%s181 + $0xc] sm:%s173] %v188
        $region55: #{reverse.2} parent=49 // loop_footer
          %s179 = sadd.s32 1, %s175
        $region56: #{reverse.2} parent=49 // loop_footer_branch
          %174 = sbr.rel target = $region52
        $region57: #{reverse.2} parent=49 // loop_exit
          _
      $region50: #{reverse.2} parent=41 // pred_fallthru
        _
    $region42: #{reverse.2} parent=1 // pred_fallthru
      _
    %218 = vnop

// kernel: yakir_forward.25
$region0: #{yakir_forward.25}
  #allocation0 [shape = 'u32[]', space=smem, size = 0x4, offset = 0x4, fixed_abs, tag = 'smem constant byte address 0x4 - core index']
  #allocation1 [shape = 'u32[72,128]{1,0:T(1,128)}', space=vmem, size = 0x9000, scoped, tag = 'internal scratch']
  %s0 = inlined_call_operand.vmem [shape: f32[2,8,128], index: 0, kind: input, shape index: {}]
  %s1 = inlined_call_operand.vmem [shape: f32[2,8,128], index: 1, kind: output, shape index: {}]
  %s2 = sld [smem:[#allocation0]]
  $region37: #{yakir_forward.25} parent=0
    _
  %s4 = ssub.s32 1, %s2
  %s5 = scalar_select 0, %s4, %s2
  loop: start=0, step=1, limit=4
  $region2: #{yakir_forward.25} parent=0 // loop_pre_header
    _
  $region3: #{yakir_forward.25} parent=0 // loop_header
    %s7 = sphi 0, %s11
    %p8 = scmp.ge.s32.totalorder %s7, 4
    %s17 = sphi 0, %s19
    %s20 = sphi 0, %s17
    %s21 = sphi 0, %s20
    %s37 = sphi 0, %s21
    %s43 = sphi 0, %s45
    %s46 = sphi 0, %s43
    %s47 = sphi 0, %s46
    %s63 = sphi 0, %s47
  $region4: #{yakir_forward.25} parent=0 // loop_header_branch
    %10 = sbr.rel (%p8) target = $region8
  $region5: #{yakir_forward.25} parent=0 // loop_body
    %s12 = ssub.s32 %s7, 1
    %s13 = ssub.s32 %s7, 2
    %s14 = sadd.s32 %s7, 1
    %s15 = ssub.s32 %s7, %s14
    %p16 = scmp.eq.s32.totalorder %s15, 0
    %s18 = sadd.s32 %s17, 1
    %s19 = scalar_select %p16, %s17, %s18
    %p22 = pneg %p16
    %p23 = scmp.eq.s32.totalorder %s7, 1
    %p24 = por %p22, %p23
    %p25 = scmp.ne.s32.totalorder %s17, %s20
    %p26 = scmp.eq.s32.totalorder %s7, 0
    %p27 = por %p25, %p26
    %p28 = scmp.ne.s32.totalorder %s17, %s20
    %p29 = scmp.eq.s32.totalorder %s12, 1
    %p30 = por %p28, %p29
    %p31 = scmp.ne.s32.totalorder %s20, %s21
    %p32 = scmp.eq.s32.totalorder %s12, 0
    %p33 = por %p31, %p32
    %p34 = scmp.ne.s32.totalorder %s20, %s21
    %p35 = scmp.eq.s32.totalorder %s13, 1
    %p36 = por %p34, %p35
    %p38 = scmp.ne.s32.totalorder %s21, %s37
    %p39 = scmp.eq.s32.totalorder %s13, 0
    %p40 = por %p38, %p39
    %s41 = ssub.s32 %s7, %s14
    %p42 = scmp.eq.s32.totalorder %s41, 0
    %s44 = sadd.s32 %s43, 1
    %s45 = scalar_select %p42, %s43, %s44
    %p48 = pneg %p42
    %p49 = scmp.eq.s32.totalorder %s7, 1
    %p50 = por %p48, %p49
    %p51 = scmp.ne.s32.totalorder %s43, %s46
    %p52 = scmp.eq.s32.totalorder %s7, 0
    %p53 = por %p51, %p52
    %p54 = scmp.ne.s32.totalorder %s43, %s46
    %p55 = scmp.eq.s32.totalorder %s12, 1
    %p56 = por %p54, %p55
    %p57 = scmp.ne.s32.totalorder %s46, %s47
    %p58 = scmp.eq.s32.totalorder %s12, 0
    %p59 = por %p57, %p58
    %p60 = scmp.ne.s32.totalorder %s46, %s47
    %p61 = scmp.eq.s32.totalorder %s13, 1
    %p62 = por %p60, %p61
    %p64 = scmp.ne.s32.totalorder %s47, %s63
    %p65 = scmp.eq.s32.totalorder %s13, 0
    %p66 = por %p64, %p65
    %p67 = scmp.le.s32.totalorder 1, %s7
    %p68 = scmp.lt.s32.totalorder %s7, 3
    %p69 = pnand %p67, %p68
    %p70 = pneg %p69
    // Predicated region
    $region9: #{yakir_forward.25} parent=5 // pred_check
      _
    $region10: #{yakir_forward.25} parent=5 // pred_check_branch
      %72 = sbr.rel (%p69) target = $region12
    $region11: #{yakir_forward.25} parent=5 // pred_region
      %s73 = ssub.s32 %s7, 1
    $region12: #{yakir_forward.25} parent=5 // pred_fallthru
      _
    %p74 = scmp.lt.s32.totalorder %s7, 2
    // Predicated region
    $region13: #{yakir_forward.25} parent=5 // pred_check
      %p75 = pneg %p74
    $region14: #{yakir_forward.25} parent=5 // pred_check_branch
      %77 = sbr.rel (%p75) target = $region16
    $region15: #{yakir_forward.25} parent=5 // pred_region
      // Predicated region
      $region17: #{yakir_forward.25} parent=15 // pred_check
        %p78 = pneg %p27
      $region18: #{yakir_forward.25} parent=15 // pred_check_branch
        %80 = sbr.rel (%p78) target = $region20
      $region19: #{yakir_forward.25} parent=15 // pred_region
        %p81 = scmp.lt.s32.totalorder %s7, 1
        %s82 = scalar_select %p81, %s7, 1
        %s83 = smul.addr %s82, 8
        %s84 = scalar_lea.vmem %s0, %s83
      $region20: #{yakir_forward.25} parent=15 // pred_fallthru
        _
    $region16: #{yakir_forward.25} parent=5 // pred_fallthru
      _
    %p85 = scmp.le.s32.totalorder 1, %s7
    %p86 = scmp.lt.s32.totalorder %s7, 3
    %p87 = pnand %p85, %p86
    %p88 = pneg %p87
    // Predicated region
    $region21: #{yakir_forward.25} parent=5 // pred_check
      _
    $region22: #{yakir_forward.25} parent=5 // pred_check_branch
      %90 = sbr.rel (%p87) target = $region24
    $region23: #{yakir_forward.25} parent=5 // pred_region
      %s91 = ssub.s32 %s7, 1
      %p92 = scmp.lt.s32.totalorder %s12, 1
      %s93 = scalar_select %p92, %s12, 1
      %s94 = smul.addr %s93, 8
      %s95 = scalar_lea.vmem %s0, %s94
      %p96 = pneg %p33
      %p97 = pneg %p30
      %p98 = pneg %p59
      %p99 = pneg %p56
      %p100 = scmp.lt.s32.totalorder %s12, 1
      %s101 = scalar_select %p100, %s12, 1
      %s102 = smul.addr %s101, 8
      %s103 = scalar_lea.vmem %s1, %s102
      %p104 = scmp.lt.s32.totalorder %s12, 1
      %s105 = scalar_select %p104, %s12, 1
      %s106 = smul.addr %s105, 8
      %s107 = scalar_lea.vmem %s0, %s106
      %p108 = scmp.lt.s32.totalorder %s12, 1
      %s109 = scalar_select %p108, %s12, 1
      %s110 = smul.addr %s109, 8
      %s111 = scalar_lea.vmem %s1, %s110
      %v112 = vld [vmem:[%s107] sm:$0xff]
      %113 = vadd.xlane.f32.xlu0 %v112
      %v114 = vpop.xlane.xlu0 %113
      %v115 = vrot.slane %v114, 4
      %v116 = vadd.f32 %v114, %v115
      %v117 = vrot.slane %v116, 2
      %v118 = vadd.f32 %v116, %v117
      %v119 = vrot.slane %v118, 1
      %v120 = vadd.f32 %v118, %v119
      %s121 = vtos %v120
      %s122 = smul.f32 %s121, 0.0009765625
      %v123 = vstv %s122
      %v124 = vsub.f32 %v112, %v123
      %v125 = vmul.f32 %v124, %v124
      %126 = vadd.xlane.f32.xlu0 %v125
      %v127 = vpop.xlane.xlu0 %126
      %v128 = vrot.slane %v127, 4
      %v129 = vadd.f32 %v127, %v128
      %v130 = vrot.slane %v129, 2
      %v131 = vadd.f32 %v129, %v130
      %v132 = vrot.slane %v131, 1
      %v133 = vadd.f32 %v131, %v132
      %s134 = vtos %v133
      %s135 = smul.f32 %s134, 0.0009775171
      %s136 = smax.f32 %s135, 1e-12
      %v137 = vstv %s136
      %v138 = vrsqrt.pop %v137
      %v139 = vmul.f32 %v138, %v137
      %v140 = vmul.f32 %v139, %v138
      %v141 = vmul.f32 0.5, %v140
      %v142 = vsub.f32 1.5, %v141
      %v143 = vmul.f32 %v138, %v142
      %vm144 = vweird.f32 %v137
      %vm145 = vweird.f32 %v138
      %vm146 = vmor %vm144, %vm145
      %v147 = vsel %vm146, %v138, %v143
      %s148 = vtos %v147
      %v149 = vstv %s148
      %v150 = vmul.f32 %v124, %v149
      %151 = vst [vmem:[%s111] sm:$0xff] %v150
      %p152 = scmp.lt.s32.totalorder %s12, 1
      %s153 = scalar_select %p152, %s12, 1
      %s154 = smul.addr %s153, 8
      %s155 = scalar_lea.vmem %s1, %s154
      // Predicated region
      $region25: #{yakir_forward.25} parent=23 // pred_check
        %p156 = pneg %p56
      $region26: #{yakir_forward.25} parent=23 // pred_check_branch
        %158 = sbr.rel (%p156) target = $region28
      $region27: #{yakir_forward.25} parent=23 // pred_region
        _
      $region28: #{yakir_forward.25} parent=23 // pred_fallthru
        _
    $region24: #{yakir_forward.25} parent=5 // pred_fallthru
      _
    %p159 = scmp.le.s32.totalorder 2, %s7
    // Predicated region
    $region29: #{yakir_forward.25} parent=5 // pred_check
      %p160 = pneg %p159
    $region30: #{yakir_forward.25} parent=5 // pred_check_branch
      %162 = sbr.rel (%p160) target = $region32
    $region31: #{yakir_forward.25} parent=5 // pred_region
      %s163 = ssub.s32 %s7, 2
      // Predicated region
      $region33: #{yakir_forward.25} parent=31 // pred_check
        %p164 = pneg %p62
      $region34: #{yakir_forward.25} parent=31 // pred_check_branch
        %166 = sbr.rel (%p164) target = $region36
      $region35: #{yakir_forward.25} parent=31 // pred_region
        %p167 = scmp.lt.s32.totalorder %s13, 1
        %s168 = scalar_select %p167, %s13, 1
        %s169 = smul.addr %s168, 8
        %s170 = scalar_lea.vmem %s1, %s169
      $region36: #{yakir_forward.25} parent=31 // pred_fallthru
        _
    $region32: #{yakir_forward.25} parent=5 // pred_fallthru
      _
  $region6: #{yakir_forward.25} parent=0 // loop_footer
    %s11 = sadd.s32 1, %s7
  $region7: #{yakir_forward.25} parent=0 // loop_footer_branch
    %6 = sbr.rel target = $region3
  $region8: #{yakir_forward.25} parent=0 // loop_exit
    _

// kernel: yakir_forward.24
$region0: #{yakir_forward.24}
  #allocation0 [shape = 'u32[]', space=smem, size = 0x4, offset = 0x4, fixed_abs, tag = 'smem constant byte address 0x4 - core index']
  #allocation1 [shape = 'u32[72,128]{1,0:T(1,128)}', space=vmem, size = 0x9000, scoped, tag = 'internal scratch']
  %s0 = inlined_call_operand.vmem [shape: bf16[5,2,256], index: 0, kind: input, shape index: {}]
  %s1 = inlined_call_operand.vmem [shape: bf16[5,256,256], index: 1, kind: input, shape index: {}]
  %s2 = inlined_call_operand.vmem [shape: f32[5,2,256], index: 2, kind: output, shape index: {}]
  %s3 = sld [smem:[#allocation0]]
  $region18: #{yakir_forward.24} parent=0
    _
  %s5 = ssub.s32 1, %s3
  %s6 = scalar_select 0, %s5, %s3
  // Predicated region
  $region2: #{yakir_forward.24} parent=0 // pred_check
    _
  $region3: #{yakir_forward.24} parent=0 // pred_check_branch
    %8 = sbr.rel (0) target = $region5
  $region4: #{yakir_forward.24} parent=0 // pred_region
    _
  $region5: #{yakir_forward.24} parent=0 // pred_fallthru
    _
  // Predicated region
  $region6: #{yakir_forward.24} parent=0 // pred_check
    _
  $region7: #{yakir_forward.24} parent=0 // pred_check_branch
    %10 = sbr.rel (0) target = $region9
  $region8: #{yakir_forward.24} parent=0 // pred_region
    _
  $region9: #{yakir_forward.24} parent=0 // pred_fallthru
    _
  %v11 = vld [vmem:[%s0] sm:$0x3]
  %v12 = vld [vmem:[%s0 + $0x2] sm:$0x3]
  %v13 = vld [vmem:[%s0 + $0x4] sm:$0x3]
  %v14 = vld [vmem:[%s0 + $0x6] sm:$0x3]
  %v15 = vld [vmem:[%s0 + $0x8] sm:$0x3]
  %v16 = vld [vmem:[%s1] sm:$0xff]
  %v17 = vld [vmem:[%s1 + $0x8] sm:$0xff]
  %v18 = vld [vmem:[%s1 + $0x10] sm:$0xff]
  %v19 = vld [vmem:[%s1 + $0x18] sm:$0xff]
  %v20 = vld [vmem:[%s1 + $0x20] sm:$0xff]
  %v21 = vld [vmem:[%s1 + $0x28] sm:$0xff]
  %v22 = vld [vmem:[%s1 + $0x30] sm:$0xff]
  %v23 = vld [vmem:[%s1 + $0x38] sm:$0xff]
  %v24 = vld [vmem:[%s1 + $0x40] sm:$0xff]
  %v25 = vld [vmem:[%s1 + $0x48] sm:$0xff]
  %v26 = vld [vmem:[%s1 + $0x50] sm:$0xff]
  %v27 = vld [vmem:[%s1 + $0x58] sm:$0xff]
  %v28 = vld [vmem:[%s1 + $0x60] sm:$0xff]
  %v29 = vld [vmem:[%s1 + $0x68] sm:$0xff]
  %v30 = vld [vmem:[%s1 + $0x70] sm:$0xff]
  %v31 = vld [vmem:[%s1 + $0x78] sm:$0xff]
  %v32 = vld [vmem:[%s1 + $0x80] sm:$0xff]
  %v33 = vld [vmem:[%s1 + $0x88] sm:$0xff]
  %v34 = vld [vmem:[%s1 + $0x90] sm:$0xff]
  %v35 = vld [vmem:[%s1 + $0x98] sm:$0xff]
  %v36 = vld [vmem:[%s1 + $0xa0] sm:$0xff]
  %v37 = vld [vmem:[%s1 + $0xa8] sm:$0xff]
  %v38 = vld [vmem:[%s1 + $0xb0] sm:$0xff]
  %v39 = vld [vmem:[%s1 + $0xb8] sm:$0xff]
  %v40 = vld [vmem:[%s1 + $0xc0] sm:$0xff]
  %v41 = vld [vmem:[%s1 + $0xc8] sm:$0xff]
  %v42 = vld [vmem:[%s1 + $0xd0] sm:$0xff]
  %v43 = vld [vmem:[%s1 + $0xd8] sm:$0xff]
  %v44 = vld [vmem:[%s1 + $0xe0] sm:$0xff]
  %v45 = vld [vmem:[%s1 + $0xe8] sm:$0xff]
  %v46 = vld [vmem:[%s1 + $0xf0] sm:$0xff]
  %v47 = vld [vmem:[%s1 + $0xf8] sm:$0xff]
  %v48 = vld [vmem:[%s1 + $0x100] sm:$0xff]
  %v49 = vld [vmem:[%s1 + $0x108] sm:$0xff]
  %v50 = vld [vmem:[%s1 + $0x110] sm:$0xff]
  %v51 = vld [vmem:[%s1 + $0x118] sm:$0xff]
  %v52 = vld [vmem:[%s1 + $0x120] sm:$0xff]
  %v53 = vld [vmem:[%s1 + $0x128] sm:$0xff]
  %v54 = vld [vmem:[%s1 + $0x130] sm:$0xff]
  %v55 = vld [vmem:[%s1 + $0x138] sm:$0xff]
  %v56 = vld [vmem:[%s1 + $0x140] sm:$0xff]
  %v57 = vld [vmem:[%s1 + $0x148] sm:$0xff]
  %v58 = vld [vmem:[%s1 + $0x150] sm:$0xff]
  %v59 = vld [vmem:[%s1 + $0x158] sm:$0xff]
  %v60 = vld [vmem:[%s1 + $0x160] sm:$0xff]
  %v61 = vld [vmem:[%s1 + $0x168] sm:$0xff]
  %v62 = vld [vmem:[%s1 + $0x170] sm:$0xff]
  %v63 = vld [vmem:[%s1 + $0x178] sm:$0xff]
  %v64 = vld [vmem:[%s1 + $0x180] sm:$0xff]
  %v65 = vld [vmem:[%s1 + $0x188] sm:$0xff]
  %v66 = vld [vmem:[%s1 + $0x190] sm:$0xff]
  %v67 = vld [vmem:[%s1 + $0x198] sm:$0xff]
  %v68 = vld [vmem:[%s1 + $0x1a0] sm:$0xff]
  %v69 = vld [vmem:[%s1 + $0x1a8] sm:$0xff]
  %v70 = vld [vmem:[%s1 + $0x1b0] sm:$0xff]
  %v71 = vld [vmem:[%s1 + $0x1b8] sm:$0xff]
  %v72 = vld [vmem:[%s1 + $0x1c0] sm:$0xff]
  %v73 = vld [vmem:[%s1 + $0x1c8] sm:$0xff]
  %v74 = vld [vmem:[%s1 + $0x1d0] sm:$0xff]
  %v75 = vld [vmem:[%s1 + $0x1d8] sm:$0xff]
  %v76 = vld [vmem:[%s1 + $0x1e0] sm:$0xff]
  %v77 = vld [vmem:[%s1 + $0x1e8] sm:$0xff]
  %v78 = vld [vmem:[%s1 + $0x1f0] sm:$0xff]
  %v79 = vld [vmem:[%s1 + $0x1f8] sm:$0xff]
  %v80 = vld [vmem:[%s1 + $0x200] sm:$0xff]
  %v81 = vld [vmem:[%s1 + $0x208] sm:$0xff]
  %v82 = vld [vmem:[%s1 + $0x210] sm:$0xff]
  %v83 = vld [vmem:[%s1 + $0x218] sm:$0xff]
  %v84 = vld [vmem:[%s1 + $0x220] sm:$0xff]
  %v85 = vld [vmem:[%s1 + $0x228] sm:$0xff]
  %v86 = vld [vmem:[%s1 + $0x230] sm:$0xff]
  %v87 = vld [vmem:[%s1 + $0x238] sm:$0xff]
  %v88 = vld [vmem:[%s1 + $0x240] sm:$0xff]
  %v89 = vld [vmem:[%s1 + $0x248] sm:$0xff]
  %v90 = vld [vmem:[%s1 + $0x250] sm:$0xff]
  %v91 = vld [vmem:[%s1 + $0x258] sm:$0xff]
  %v92 = vld [vmem:[%s1 + $0x260] sm:$0xff]
  %v93 = vld [vmem:[%s1 + $0x268] sm:$0xff]
  %v94 = vld [vmem:[%s1 + $0x270] sm:$0xff]
  %v95 = vld [vmem:[%s1 + $0x278] sm:$0xff]
  %v96 = vld [vmem:[%s1 + $0x280] sm:$0xff]
  %v97 = vld [vmem:[%s1 + $0x288] sm:$0xff]
  %v98 = vld [vmem:[%s1 + $0x290] sm:$0xff]
  %v99 = vld [vmem:[%s1 + $0x298] sm:$0xff]
  %v100 = vld [vmem:[%s1 + $0x2a0] sm:$0xff]
  %v101 = vld [vmem:[%s1 + $0x2a8] sm:$0xff]
  %v102 = vld [vmem:[%s1 + $0x2b0] sm:$0xff]
  %v103 = vld [vmem:[%s1 + $0x2b8] sm:$0xff]
  %v104 = vld [vmem:[%s1 + $0x2c0] sm:$0xff]
  %v105 = vld [vmem:[%s1 + $0x2c8] sm:$0xff]
  %v106 = vld [vmem:[%s1 + $0x2d0] sm:$0xff]
  %v107 = vld [vmem:[%s1 + $0x2d8] sm:$0xff]
  %v108 = vld [vmem:[%s1 + $0x2e0] sm:$0xff]
  %v109 = vld [vmem:[%s1 + $0x2e8] sm:$0xff]
  %v110 = vld [vmem:[%s1 + $0x2f0] sm:$0xff]
  %v111 = vld [vmem:[%s1 + $0x2f8] sm:$0xff]
  %v112 = vld [vmem:[%s1 + $0x300] sm:$0xff]
  %v113 = vld [vmem:[%s1 + $0x308] sm:$0xff]
  %v114 = vld [vmem:[%s1 + $0x310] sm:$0xff]
  %v115 = vld [vmem:[%s1 + $0x318] sm:$0xff]
  %v116 = vld [vmem:[%s1 + $0x320] sm:$0xff]
  %v117 = vld [vmem:[%s1 + $0x328] sm:$0xff]
  %v118 = vld [vmem:[%s1 + $0x330] sm:$0xff]
  %v119 = vld [vmem:[%s1 + $0x338] sm:$0xff]
  %v120 = vld [vmem:[%s1 + $0x340] sm:$0xff]
  %v121 = vld [vmem:[%s1 + $0x348] sm:$0xff]
  %v122 = vld [vmem:[%s1 + $0x350] sm:$0xff]
  %v123 = vld [vmem:[%s1 + $0x358] sm:$0xff]
  %v124 = vld [vmem:[%s1 + $0x360] sm:$0xff]
  %v125 = vld [vmem:[%s1 + $0x368] sm:$0xff]
  %v126 = vld [vmem:[%s1 + $0x370] sm:$0xff]
  %v127 = vld [vmem:[%s1 + $0x378] sm:$0xff]
  %v128 = vld [vmem:[%s1 + $0x380] sm:$0xff]
  %v129 = vld [vmem:[%s1 + $0x388] sm:$0xff]
  %v130 = vld [vmem:[%s1 + $0x390] sm:$0xff]
  %v131 = vld [vmem:[%s1 + $0x398] sm:$0xff]
  %v132 = vld [vmem:[%s1 + $0x3a0] sm:$0xff]
  %v133 = vld [vmem:[%s1 + $0x3a8] sm:$0xff]
  %v134 = vld [vmem:[%s1 + $0x3b0] sm:$0xff]
  %v135 = vld [vmem:[%s1 + $0x3b8] sm:$0xff]
  %v136 = vld [vmem:[%s1 + $0x3c0] sm:$0xff]
  %v137 = vld [vmem:[%s1 + $0x3c8] sm:$0xff]
  %v138 = vld [vmem:[%s1 + $0x3d0] sm:$0xff]
  %v139 = vld [vmem:[%s1 + $0x3d8] sm:$0xff]
  %v140 = vld [vmem:[%s1 + $0x3e0] sm:$0xff]
  %v141 = vld [vmem:[%s1 + $0x3e8] sm:$0xff]
  %v142 = vld [vmem:[%s1 + $0x3f0] sm:$0xff]
  %v143 = vld [vmem:[%s1 + $0x3f8] sm:$0xff]
  %v144 = vld [vmem:[%s1 + $0x400] sm:$0xff]
  %v145 = vld [vmem:[%s1 + $0x408] sm:$0xff]
  %v146 = vld [vmem:[%s1 + $0x410] sm:$0xff]
  %v147 = vld [vmem:[%s1 + $0x418] sm:$0xff]
  %v148 = vld [vmem:[%s1 + $0x420] sm:$0xff]
  %v149 = vld [vmem:[%s1 + $0x428] sm:$0xff]
  %v150 = vld [vmem:[%s1 + $0x430] sm:$0xff]
  %v151 = vld [vmem:[%s1 + $0x438] sm:$0xff]
  %v152 = vld [vmem:[%s1 + $0x440] sm:$0xff]
  %v153 = vld [vmem:[%s1 + $0x448] sm:$0xff]
  %v154 = vld [vmem:[%s1 + $0x450] sm:$0xff]
  %v155 = vld [vmem:[%s1 + $0x458] sm:$0xff]
  %v156 = vld [vmem:[%s1 + $0x460] sm:$0xff]
  %v157 = vld [vmem:[%s1 + $0x468] sm:$0xff]
  %v158 = vld [vmem:[%s1 + $0x470] sm:$0xff]
  %v159 = vld [vmem:[%s1 + $0x478] sm:$0xff]
  %v160 = vld [vmem:[%s1 + $0x480] sm:$0xff]
  %v161 = vld [vmem:[%s1 + $0x488] sm:$0xff]
  %v162 = vld [vmem:[%s1 + $0x490] sm:$0xff]
  %v163 = vld [vmem:[%s1 + $0x498] sm:$0xff]
  %v164 = vld [vmem:[%s1 + $0x4a0] sm:$0xff]
  %v165 = vld [vmem:[%s1 + $0x4a8] sm:$0xff]
  %v166 = vld [vmem:[%s1 + $0x4b0] sm:$0xff]
  %v167 = vld [vmem:[%s1 + $0x4b8] sm:$0xff]
  %v168 = vld [vmem:[%s1 + $0x4c0] sm:$0xff]
  %v169 = vld [vmem:[%s1 + $0x4c8] sm:$0xff]
  %v170 = vld [vmem:[%s1 + $0x4d0] sm:$0xff]
  %v171 = vld [vmem:[%s1 + $0x4d8] sm:$0xff]
  %v172 = vld [vmem:[%s1 + $0x4e0] sm:$0xff]
  %v173 = vld [vmem:[%s1 + $0x4e8] sm:$0xff]
  %v174 = vld [vmem:[%s1 + $0x4f0] sm:$0xff]
  %v175 = vld [vmem:[%s1 + $0x4f8] sm:$0xff]
  %177 = vst [vmem:[#allocation1] ss:$9 sm:$0xff] %v11
  %v178 = vld [vmem:[#allocation1] sm:$0xff]
  %v179 = vld [vmem:[#allocation1 + $0x9] sm:$0xff]
  %v214 = vunpack.c.l.b16 %v16
  %v215 = vunpack.c.h.b16 %v16
  %v216 = vunpack.c.l.b16 %v17
  %v217 = vunpack.c.h.b16 %v17
  %v218 = vunpack.c.l.b16 %v18
  %v219 = vunpack.c.h.b16 %v18
  %v220 = vunpack.c.l.b16 %v19
  %v221 = vunpack.c.h.b16 %v19
  %v222 = vunpack.c.l.b16 %v20
  %v223 = vunpack.c.h.b16 %v20
  %v224 = vunpack.c.l.b16 %v21
  %v225 = vunpack.c.h.b16 %v21
  %v226 = vunpack.c.l.b16 %v22
  %v227 = vunpack.c.h.b16 %v22
  %v228 = vunpack.c.l.b16 %v23
  %v229 = vunpack.c.h.b16 %v23
  %v230 = vunpack.c.l.b16 %v24
  %v231 = vunpack.c.h.b16 %v24
  %v232 = vunpack.c.l.b16 %v25
  %v233 = vunpack.c.h.b16 %v25
  %v234 = vunpack.c.l.b16 %v26
  %v235 = vunpack.c.h.b16 %v26
  %v236 = vunpack.c.l.b16 %v27
  %v237 = vunpack.c.h.b16 %v27
  %v238 = vunpack.c.l.b16 %v28
  %v239 = vunpack.c.h.b16 %v28
  %v240 = vunpack.c.l.b16 %v29
  %v241 = vunpack.c.h.b16 %v29
  %v242 = vunpack.c.l.b16 %v30
  %v243 = vunpack.c.h.b16 %v30
  %v244 = vunpack.c.l.b16 %v31
  %v245 = vunpack.c.h.b16 %v31
  %v246 = vunpack.c.l.b16 %v32
  %v247 = vunpack.c.h.b16 %v32
  %v248 = vunpack.c.l.b16 %v33
  %v249 = vunpack.c.h.b16 %v33
  %v250 = vunpack.c.l.b16 %v34
  %v251 = vunpack.c.h.b16 %v34
  %v252 = vunpack.c.l.b16 %v35
  %v253 = vunpack.c.h.b16 %v35
  %v254 = vunpack.c.l.b16 %v36
  %v255 = vunpack.c.h.b16 %v36
  %v256 = vunpack.c.l.b16 %v37
  %v257 = vunpack.c.h.b16 %v37
  %v258 = vunpack.c.l.b16 %v38
  %v259 = vunpack.c.h.b16 %v38
  %v260 = vunpack.c.l.b16 %v39
  %v261 = vunpack.c.h.b16 %v39
  %v262 = vunpack.c.l.b16 %v40
  %v263 = vunpack.c.h.b16 %v40
  %v264 = vunpack.c.l.b16 %v41
  %v265 = vunpack.c.h.b16 %v41
  %v266 = vunpack.c.l.b16 %v42
  %v267 = vunpack.c.h.b16 %v42
  %v268 = vunpack.c.l.b16 %v43
  %v269 = vunpack.c.h.b16 %v43
  %v270 = vunpack.c.l.b16 %v44
  %v271 = vunpack.c.h.b16 %v44
  %v272 = vunpack.c.l.b16 %v45
  %v273 = vunpack.c.h.b16 %v45
  %v274 = vunpack.c.l.b16 %v46
  %v275 = vunpack.c.h.b16 %v46
  %v276 = vunpack.c.l.b16 %v47
  %v277 = vunpack.c.h.b16 %v47
  %v278 = vpack.c.b16 %v216, %v214
  %v279 = vpack.c.b16 %v217, %v215
  %v280 = vpack.c.b16 %v220, %v218
  %v281 = vpack.c.b16 %v221, %v219
  %v282 = vpack.c.b16 %v224, %v222
  %v283 = vpack.c.b16 %v225, %v223
  %v284 = vpack.c.b16 %v228, %v226
  %v285 = vpack.c.b16 %v229, %v227
  %v286 = vpack.c.b16 %v232, %v230
  %v287 = vpack.c.b16 %v233, %v231
  %v288 = vpack.c.b16 %v236, %v234
  %v289 = vpack.c.b16 %v237, %v235
  %v290 = vpack.c.b16 %v240, %v238
  %v291 = vpack.c.b16 %v241, %v239
  %v292 = vpack.c.b16 %v244, %v242
  %v293 = vpack.c.b16 %v245, %v243
  %v294 = vpack.c.b16 %v248, %v246
  %v295 = vpack.c.b16 %v249, %v247
  %v296 = vpack.c.b16 %v252, %v250
  %v297 = vpack.c.b16 %v253, %v251
  %v298 = vpack.c.b16 %v256, %v254
  %v299 = vpack.c.b16 %v257, %v255
  %v300 = vpack.c.b16 %v260, %v258
  %v301 = vpack.c.b16 %v261, %v259
  %v302 = vpack.c.b16 %v264, %v262
  %v303 = vpack.c.b16 %v265, %v263
  %v304 = vpack.c.b16 %v268, %v266
  %v305 = vpack.c.b16 %v269, %v267
  %v306 = vpack.c.b16 %v272, %v270
  %v307 = vpack.c.b16 %v273, %v271
  %v308 = vpack.c.b16 %v276, %v274
  %v309 = vpack.c.b16 %v277, %v275
  %342 = vmatpush.bf16.xpose.msra.mxu0 %v292
  %343 = vmatpush.bf16.xpose.msra.mxu0 %v290
  %344 = vmatpush.bf16.xpose.msra.mxu0 %v288
  %345 = vmatpush.bf16.xpose.msra.mxu0 %v286
  %346 = vmatpush.bf16.xpose.msra.mxu0 %v284
  %347 = vmatpush.bf16.xpose.msra.mxu0 %v282
  %348 = vmatpush.bf16.xpose.msra.mxu0 %v280
  %349 = vmatpush.bf16.xpose.msra.mxu0 %v278
  %350 = vmatmul.bf16.gmra.mxu0 %v178
  %v351 = vpop.f32.mrf.mxu0
  %v352 = vadd.f32 0.0, %v351
  %v353 = vpop.f32.mrf.mxu0
  %354 = vdwg.mxu0
  %355 = vmatpush.bf16.xpose.msra.mxu0 %v293
  %356 = vmatpush.bf16.xpose.msra.mxu0 %v291
  %357 = vmatpush.bf16.xpose.msra.mxu0 %v289
  %358 = vmatpush.bf16.xpose.msra.mxu0 %v287
  %359 = vmatpush.bf16.xpose.msra.mxu0 %v285
  %360 = vmatpush.bf16.xpose.msra.mxu0 %v283
  %361 = vmatpush.bf16.xpose.msra.mxu0 %v281
  %362 = vmatpush.bf16.xpose.msra.mxu0 %v279
  %363 = vmatmul.bf16.gmra.mxu0 %v179
  %v364 = vpop.f32.mrf.mxu0
  %v365 = vadd.f32 %v352, %v364
  %v366 = vpop.f32.mrf.mxu0
  %367 = vdwg.mxu0
  %368 = vmatpush.bf16.xpose.msra.mxu0 %v308
  %369 = vmatpush.bf16.xpose.msra.mxu0 %v306
  %370 = vmatpush.bf16.xpose.msra.mxu0 %v304
  %371 = vmatpush.bf16.xpose.msra.mxu0 %v302
  %372 = vmatpush.bf16.xpose.msra.mxu0 %v300
  %373 = vmatpush.bf16.xpose.msra.mxu0 %v298
  %374 = vmatpush.bf16.xpose.msra.mxu0 %v296
  %375 = vmatpush.bf16.xpose.msra.mxu0 %v294
  %376 = vmatmul.bf16.gmra.mxu0 %v178
  %v377 = vpop.f32.mrf.mxu0
  %v378 = vadd.f32 0.0, %v377
  %v379 = vpop.f32.mrf.mxu0
  %380 = vdwg.mxu0
  %381 = vmatpush.bf16.xpose.msra.mxu0 %v309
  %382 = vmatpush.bf16.xpose.msra.mxu0 %v307
  %383 = vmatpush.bf16.xpose.msra.mxu0 %v305
  %384 = vmatpush.bf16.xpose.msra.mxu0 %v303
  %385 = vmatpush.bf16.xpose.msra.mxu0 %v301
  %386 = vmatpush.bf16.xpose.msra.mxu0 %v299
  %387 = vmatpush.bf16.xpose.msra.mxu0 %v297
  %388 = vmatpush.bf16.xpose.msra.mxu0 %v295
  %389 = vmatmul.bf16.gmra.mxu0 %v179
  %v390 = vpop.f32.mrf.mxu0
  %v391 = vadd.f32 %v378, %v390
  %v392 = vpop.f32.mrf.mxu0
  %393 = vdwg.mxu0
  %395 = vst [vmem:[#allocation1] ss:$9 sm:$0xff] %v12
  %v396 = vld [vmem:[#allocation1] sm:$0xff]
  %v397 = vld [vmem:[#allocation1 + $0x9] sm:$0xff]
  %v432 = vunpack.c.l.b16 %v48
  %v433 = vunpack.c.h.b16 %v48
  %v434 = vunpack.c.l.b16 %v49
  %v435 = vunpack.c.h.b16 %v49
  %v436 = vunpack.c.l.b16 %v50
  %v437 = vunpack.c.h.b16 %v50
  %v438 = vunpack.c.l.b16 %v51
  %v439 = vunpack.c.h.b16 %v51
  %v440 = vunpack.c.l.b16 %v52
  %v441 = vunpack.c.h.b16 %v52
  %v442 = vunpack.c.l.b16 %v53
  %v443 = vunpack.c.h.b16 %v53
  %v444 = vunpack.c.l.b16 %v54
  %v445 = vunpack.c.h.b16 %v54
  %v446 = vunpack.c.l.b16 %v55
  %v447 = vunpack.c.h.b16 %v55
  %v448 = vunpack.c.l.b16 %v56
  %v449 = vunpack.c.h.b16 %v56
  %v450 = vunpack.c.l.b16 %v57
  %v451 = vunpack.c.h.b16 %v57
  %v452 = vunpack.c.l.b16 %v58
  %v453 = vunpack.c.h.b16 %v58
  %v454 = vunpack.c.l.b16 %v59
  %v455 = vunpack.c.h.b16 %v59
  %v456 = vunpack.c.l.b16 %v60
  %v457 = vunpack.c.h.b16 %v60
  %v458 = vunpack.c.l.b16 %v61
  %v459 = vunpack.c.h.b16 %v61
  %v460 = vunpack.c.l.b16 %v62
  %v461 = vunpack.c.h.b16 %v62
  %v462 = vunpack.c.l.b16 %v63
  %v463 = vunpack.c.h.b16 %v63
  %v464 = vunpack.c.l.b16 %v64
  %v465 = vunpack.c.h.b16 %v64
  %v466 = vunpack.c.l.b16 %v65
  %v467 = vunpack.c.h.b16 %v65
  %v468 = vunpack.c.l.b16 %v66
  %v469 = vunpack.c.h.b16 %v66
  %v470 = vunpack.c.l.b16 %v67
  %v471 = vunpack.c.h.b16 %v67
  %v472 = vunpack.c.l.b16 %v68
  %v473 = vunpack.c.h.b16 %v68
  %v474 = vunpack.c.l.b16 %v69
  %v475 = vunpack.c.h.b16 %v69
  %v476 = vunpack.c.l.b16 %v70
  %v477 = vunpack.c.h.b16 %v70
  %v478 = vunpack.c.l.b16 %v71
  %v479 = vunpack.c.h.b16 %v71
  %v480 = vunpack.c.l.b16 %v72
  %v481 = vunpack.c.h.b16 %v72
  %v482 = vunpack.c.l.b16 %v73
  %v483 = vunpack.c.h.b16 %v73
  %v484 = vunpack.c.l.b16 %v74
  %v485 = vunpack.c.h.b16 %v74
  %v486 = vunpack.c.l.b16 %v75
  %v487 = vunpack.c.h.b16 %v75
  %v488 = vunpack.c.l.b16 %v76
  %v489 = vunpack.c.h.b16 %v76
  %v490 = vunpack.c.l.b16 %v77
  %v491 = vunpack.c.h.b16 %v77
  %v492 = vunpack.c.l.b16 %v78
  %v493 = vunpack.c.h.b16 %v78
  %v494 = vunpack.c.l.b16 %v79
  %v495 = vunpack.c.h.b16 %v79
  %v496 = vpack.c.b16 %v434, %v432
  %v497 = vpack.c.b16 %v435, %v433
  %v498 = vpack.c.b16 %v438, %v436
  %v499 = vpack.c.b16 %v439, %v437
  %v500 = vpack.c.b16 %v442, %v440
  %v501 = vpack.c.b16 %v443, %v441
  %v502 = vpack.c.b16 %v446, %v444
  %v503 = vpack.c.b16 %v447, %v445
  %v504 = vpack.c.b16 %v450, %v448
  %v505 = vpack.c.b16 %v451, %v449
  %v506 = vpack.c.b16 %v454, %v452
  %v507 = vpack.c.b16 %v455, %v453
  %v508 = vpack.c.b16 %v458, %v456
  %v509 = vpack.c.b16 %v459, %v457
  %v510 = vpack.c.b16 %v462, %v460
  %v511 = vpack.c.b16 %v463, %v461
  %v512 = vpack.c.b16 %v466, %v464
  %v513 = vpack.c.b16 %v467, %v465
  %v514 = vpack.c.b16 %v470, %v468
  %v515 = vpack.c.b16 %v471, %v469
  %v516 = vpack.c.b16 %v474, %v472
  %v517 = vpack.c.b16 %v475, %v473
  %v518 = vpack.c.b16 %v478, %v476
  %v519 = vpack.c.b16 %v479, %v477
  %v520 = vpack.c.b16 %v482, %v480
  %v521 = vpack.c.b16 %v483, %v481
  %v522 = vpack.c.b16 %v486, %v484
  %v523 = vpack.c.b16 %v487, %v485
  %v524 = vpack.c.b16 %v490, %v488
  %v525 = vpack.c.b16 %v491, %v489
  %v526 = vpack.c.b16 %v494, %v492
  %v527 = vpack.c.b16 %v495, %v493
  %560 = vmatpush.bf16.xpose.msra.mxu0 %v510
  %561 = vmatpush.bf16.xpose.msra.mxu0 %v508
  %562 = vmatpush.bf16.xpose.msra.mxu0 %v506
  %563 = vmatpush.bf16.xpose.msra.mxu0 %v504
  %564 = vmatpush.bf16.xpose.msra.mxu0 %v502
  %565 = vmatpush.bf16.xpose.msra.mxu0 %v500
  %566 = vmatpush.bf16.xpose.msra.mxu0 %v498
  %567 = vmatpush.bf16.xpose.msra.mxu0 %v496
  %568 = vmatmul.bf16.gmra.mxu0 %v396
  %v569 = vpop.f32.mrf.mxu0
  %v570 = vadd.f32 0.0, %v569
  %v571 = vpop.f32.mrf.mxu0
  %572 = vdwg.mxu0
  %573 = vmatpush.bf16.xpose.msra.mxu0 %v511
  %574 = vmatpush.bf16.xpose.msra.mxu0 %v509
  %575 = vmatpush.bf16.xpose.msra.mxu0 %v507
  %576 = vmatpush.bf16.xpose.msra.mxu0 %v505
  %577 = vmatpush.bf16.xpose.msra.mxu0 %v503
  %578 = vmatpush.bf16.xpose.msra.mxu0 %v501
  %579 = vmatpush.bf16.xpose.msra.mxu0 %v499
  %580 = vmatpush.bf16.xpose.msra.mxu0 %v497
  %581 = vmatmul.bf16.gmra.mxu0 %v397
  %v582 = vpop.f32.mrf.mxu0
  %v583 = vadd.f32 %v570, %v582
  %v584 = vpop.f32.mrf.mxu0
  %585 = vdwg.mxu0
  %586 = vmatpush.bf16.xpose.msra.mxu0 %v526
  %587 = vmatpush.bf16.xpose.msra.mxu0 %v524
  %588 = vmatpush.bf16.xpose.msra.mxu0 %v522
  %589 = vmatpush.bf16.xpose.msra.mxu0 %v520
  %590 = vmatpush.bf16.xpose.msra.mxu0 %v518
  %591 = vmatpush.bf16.xpose.msra.mxu0 %v516
  %592 = vmatpush.bf16.xpose.msra.mxu0 %v514
  %593 = vmatpush.bf16.xpose.msra.mxu0 %v512
  %594 = vmatmul.bf16.gmra.mxu0 %v396
  %v595 = vpop.f32.mrf.mxu0
  %v596 = vadd.f32 0.0, %v595
  %v597 = vpop.f32.mrf.mxu0
  %598 = vdwg.mxu0
  %599 = vmatpush.bf16.xpose.msra.mxu0 %v527
  %600 = vmatpush.bf16.xpose.msra.mxu0 %v525
  %601 = vmatpush.bf16.xpose.msra.mxu0 %v523
  %602 = vmatpush.bf16.xpose.msra.mxu0 %v521
  %603 = vmatpush.bf16.xpose.msra.mxu0 %v519
  %604 = vmatpush.bf16.xpose.msra.mxu0 %v517
  %605 = vmatpush.bf16.xpose.msra.mxu0 %v515
  %606 = vmatpush.bf16.xpose.msra.mxu0 %v513
  %607 = vmatmul.bf16.gmra.mxu0 %v397
  %v608 = vpop.f32.mrf.mxu0
  %v609 = vadd.f32 %v596, %v608
  %v610 = vpop.f32.mrf.mxu0
  %611 = vdwg.mxu0
  %613 = vst [vmem:[#allocation1] ss:$9 sm:$0xff] %v13
  %v614 = vld [vmem:[#allocation1] sm:$0xff]
  %v615 = vld [vmem:[#allocation1 + $0x9] sm:$0xff]
  %v650 = vunpack.c.l.b16 %v80
  %v651 = vunpack.c.h.b16 %v80
  %v652 = vunpack.c.l.b16 %v81
  %v653 = vunpack.c.h.b16 %v81
  %v654 = vunpack.c.l.b16 %v82
  %v655 = vunpack.c.h.b16 %v82
  %v656 = vunpack.c.l.b16 %v83
  %v657 = vunpack.c.h.b16 %v83
  %v658 = vunpack.c.l.b16 %v84
  %v659 = vunpack.c.h.b16 %v84
  %v660 = vunpack.c.l.b16 %v85
  %v661 = vunpack.c.h.b16 %v85
  %v662 = vunpack.c.l.b16 %v86
  %v663 = vunpack.c.h.b16 %v86
  %v664 = vunpack.c.l.b16 %v87
  %v665 = vunpack.c.h.b16 %v87
  %v666 = vunpack.c.l.b16 %v88
  %v667 = vunpack.c.h.b16 %v88
  %v668 = vunpack.c.l.b16 %v89
  %v669 = vunpack.c.h.b16 %v89
  %v670 = vunpack.c.l.b16 %v90
  %v671 = vunpack.c.h.b16 %v90
  %v672 = vunpack.c.l.b16 %v91
  %v673 = vunpack.c.h.b16 %v91
  %v674 = vunpack.c.l.b16 %v92
  %v675 = vunpack.c.h.b16 %v92
  %v676 = vunpack.c.l.b16 %v93
  %v677 = vunpack.c.h.b16 %v93
  %v678 = vunpack.c.l.b16 %v94
  %v679 = vunpack.c.h.b16 %v94
  %v680 = vunpack.c.l.b16 %v95
  %v681 = vunpack.c.h.b16 %v95
  %v682 = vunpack.c.l.b16 %v96
  %v683 = vunpack.c.h.b16 %v96
  %v684 = vunpack.c.l.b16 %v97
  %v685 = vunpack.c.h.b16 %v97
  %v686 = vunpack.c.l.b16 %v98
  %v687 = vunpack.c.h.b16 %v98
  %v688 = vunpack.c.l.b16 %v99
  %v689 = vunpack.c.h.b16 %v99
  %v690 = vunpack.c.l.b16 %v100
  %v691 = vunpack.c.h.b16 %v100
  %v692 = vunpack.c.l.b16 %v101
  %v693 = vunpack.c.h.b16 %v101
  %v694 = vunpack.c.l.b16 %v102
  %v695 = vunpack.c.h.b16 %v102
  %v696 = vunpack.c.l.b16 %v103
  %v697 = vunpack.c.h.b16 %v103
  %v698 = vunpack.c.l.b16 %v104
  %v699 = vunpack.c.h.b16 %v104
  %v700 = vunpack.c.l.b16 %v105
  %v701 = vunpack.c.h.b16 %v105
  %v702 = vunpack.c.l.b16 %v106
  %v703 = vunpack.c.h.b16 %v106
  %v704 = vunpack.c.l.b16 %v107
  %v705 = vunpack.c.h.b16 %v107
  %v706 = vunpack.c.l.b16 %v108
  %v707 = vunpack.c.h.b16 %v108
  %v708 = vunpack.c.l.b16 %v109
  %v709 = vunpack.c.h.b16 %v109
  %v710 = vunpack.c.l.b16 %v110
  %v711 = vunpack.c.h.b16 %v110
  %v712 = vunpack.c.l.b16 %v111
  %v713 = vunpack.c.h.b16 %v111
  %v714 = vpack.c.b16 %v652, %v650
  %v715 = vpack.c.b16 %v653, %v651
  %v716 = vpack.c.b16 %v656, %v654
  %v717 = vpack.c.b16 %v657, %v655
  %v718 = vpack.c.b16 %v660, %v658
  %v719 = vpack.c.b16 %v661, %v659
  %v720 = vpack.c.b16 %v664, %v662
  %v721 = vpack.c.b16 %v665, %v663
  %v722 = vpack.c.b16 %v668, %v666
  %v723 = vpack.c.b16 %v669, %v667
  %v724 = vpack.c.b16 %v672, %v670
  %v725 = vpack.c.b16 %v673, %v671
  %v726 = vpack.c.b16 %v676, %v674
  %v727 = vpack.c.b16 %v677, %v675
  %v728 = vpack.c.b16 %v680, %v678
  %v729 = vpack.c.b16 %v681, %v679
  %v730 = vpack.c.b16 %v684, %v682
  %v731 = vpack.c.b16 %v685, %v683
  %v732 = vpack.c.b16 %v688, %v686
  %v733 = vpack.c.b16 %v689, %v687
  %v734 = vpack.c.b16 %v692, %v690
  %v735 = vpack.c.b16 %v693, %v691
  %v736 = vpack.c.b16 %v696, %v694
  %v737 = vpack.c.b16 %v697, %v695
  %v738 = vpack.c.b16 %v700, %v698
  %v739 = vpack.c.b16 %v701, %v699
  %v740 = vpack.c.b16 %v704, %v702
  %v741 = vpack.c.b16 %v705, %v703
  %v742 = vpack.c.b16 %v708, %v706
  %v743 = vpack.c.b16 %v709, %v707
  %v744 = vpack.c.b16 %v712, %v710
  %v745 = vpack.c.b16 %v713, %v711
  %778 = vmatpush.bf16.xpose.msra.mxu0 %v728
  %779 = vmatpush.bf16.xpose.msra.mxu0 %v726
  %780 = vmatpush.bf16.xpose.msra.mxu0 %v724
  %781 = vmatpush.bf16.xpose.msra.mxu0 %v722
  %782 = vmatpush.bf16.xpose.msra.mxu0 %v720
  %783 = vmatpush.bf16.xpose.msra.mxu0 %v718
  %784 = vmatpush.bf16.xpose.msra.mxu0 %v716
  %785 = vmatpush.bf16.xpose.msra.mxu0 %v714
  %786 = vmatmul.bf16.gmra.mxu0 %v614
  %v787 = vpop.f32.mrf.mxu0
  %v788 = vadd.f32 0.0, %v787
  %v789 = vpop.f32.mrf.mxu0
  %790 = vdwg.mxu0
  %791 = vmatpush.bf16.xpose.msra.mxu0 %v729
  %792 = vmatpush.bf16.xpose.msra.mxu0 %v727
  %793 = vmatpush.bf16.xpose.msra.mxu0 %v725
  %794 = vmatpush.bf16.xpose.msra.mxu0 %v723
  %795 = vmatpush.bf16.xpose.msra.mxu0 %v721
  %796 = vmatpush.bf16.xpose.msra.mxu0 %v719
  %797 = vmatpush.bf16.xpose.msra.mxu0 %v717
  %798 = vmatpush.bf16.xpose.msra.mxu0 %v715
  %799 = vmatmul.bf16.gmra.mxu0 %v615
  %v800 = vpop.f32.mrf.mxu0
  %v801 = vadd.f32 %v788, %v800
  %v802 = vpop.f32.mrf.mxu0
  %803 = vdwg.mxu0
  %804 = vmatpush.bf16.xpose.msra.mxu0 %v744
  %805 = vmatpush.bf16.xpose.msra.mxu0 %v742
  %806 = vmatpush.bf16.xpose.msra.mxu0 %v740
  %807 = vmatpush.bf16.xpose.msra.mxu0 %v738
  %808 = vmatpush.bf16.xpose.msra.mxu0 %v736
  %809 = vmatpush.bf16.xpose.msra.mxu0 %v734
  %810 = vmatpush.bf16.xpose.msra.mxu0 %v732
  %811 = vmatpush.bf16.xpose.msra.mxu0 %v730
  %812 = vmatmul.bf16.gmra.mxu0 %v614
  %v813 = vpop.f32.mrf.mxu0
  %v814 = vadd.f32 0.0, %v813
  %v815 = vpop.f32.mrf.mxu0
  %816 = vdwg.mxu0
  %817 = vmatpush.bf16.xpose.msra.mxu0 %v745
  %818 = vmatpush.bf16.xpose.msra.mxu0 %v743
  %819 = vmatpush.bf16.xpose.msra.mxu0 %v741
  %820 = vmatpush.bf16.xpose.msra.mxu0 %v739
  %821 = vmatpush.bf16.xpose.msra.mxu0 %v737
  %822 = vmatpush.bf16.xpose.msra.mxu0 %v735
  %823 = vmatpush.bf16.xpose.msra.mxu0 %v733
  %824 = vmatpush.bf16.xpose.msra.mxu0 %v731
  %825 = vmatmul.bf16.gmra.mxu0 %v615
  %v826 = vpop.f32.mrf.mxu0
  %v827 = vadd.f32 %v814, %v826
  %v828 = vpop.f32.mrf.mxu0
  %829 = vdwg.mxu0
  %831 = vst [vmem:[#allocation1] ss:$9 sm:$0xff] %v14
  %v832 = vld [vmem:[#allocation1] sm:$0xff]
  %v833 = vld [vmem:[#allocation1 + $0x9] sm:$0xff]
  %v868 = vunpack.c.l.b16 %v112
  %v869 = vunpack.c.h.b16 %v112
  %v870 = vunpack.c.l.b16 %v113
  %v871 = vunpack.c.h.b16 %v113
  %v872 = vunpack.c.l.b16 %v114
  %v873 = vunpack.c.h.b16 %v114
  %v874 = vunpack.c.l.b16 %v115
  %v875 = vunpack.c.h.b16 %v115
  %v876 = vunpack.c.l.b16 %v116
  %v877 = vunpack.c.h.b16 %v116
  %v878 = vunpack.c.l.b16 %v117
  %v879 = vunpack.c.h.b16 %v117
  %v880 = vunpack.c.l.b16 %v118
  %v881 = vunpack.c.h.b16 %v118
  %v882 = vunpack.c.l.b16 %v119
  %v883 = vunpack.c.h.b16 %v119
  %v884 = vunpack.c.l.b16 %v120
  %v885 = vunpack.c.h.b16 %v120
  %v886 = vunpack.c.l.b16 %v121
  %v887 = vunpack.c.h.b16 %v121
  %v888 = vunpack.c.l.b16 %v122
  %v889 = vunpack.c.h.b16 %v122
  %v890 = vunpack.c.l.b16 %v123
  %v891 = vunpack.c.h.b16 %v123
  %v892 = vunpack.c.l.b16 %v124
  %v893 = vunpack.c.h.b16 %v124
  %v894 = vunpack.c.l.b16 %v125
  %v895 = vunpack.c.h.b16 %v125
  %v896 = vunpack.c.l.b16 %v126
  %v897 = vunpack.c.h.b16 %v126
  %v898 = vunpack.c.l.b16 %v127
  %v899 = vunpack.c.h.b16 %v127
  %v900 = vunpack.c.l.b16 %v128
  %v901 = vunpack.c.h.b16 %v128
  %v902 = vunpack.c.l.b16 %v129
  %v903 = vunpack.c.h.b16 %v129
  %v904 = vunpack.c.l.b16 %v130
  %v905 = vunpack.c.h.b16 %v130
  %v906 = vunpack.c.l.b16 %v131
  %v907 = vunpack.c.h.b16 %v131
  %v908 = vunpack.c.l.b16 %v132
  %v909 = vunpack.c.h.b16 %v132
  %v910 = vunpack.c.l.b16 %v133
  %v911 = vunpack.c.h.b16 %v133
  %v912 = vunpack.c.l.b16 %v134
  %v913 = vunpack.c.h.b16 %v134
  %v914 = vunpack.c.l.b16 %v135
  %v915 = vunpack.c.h.b16 %v135
  %v916 = vunpack.c.l.b16 %v136
  %v917 = vunpack.c.h.b16 %v136
  %v918 = vunpack.c.l.b16 %v137
  %v919 = vunpack.c.h.b16 %v137
  %v920 = vunpack.c.l.b16 %v138
  %v921 = vunpack.c.h.b16 %v138
  %v922 = vunpack.c.l.b16 %v139
  %v923 = vunpack.c.h.b16 %v139
  %v924 = vunpack.c.l.b16 %v140
  %v925 = vunpack.c.h.b16 %v140
  %v926 = vunpack.c.l.b16 %v141
  %v927 = vunpack.c.h.b16 %v141
  %v928 = vunpack.c.l.b16 %v142
  %v929 = vunpack.c.h.b16 %v142
  %v930 = vunpack.c.l.b16 %v143
  %v931 = vunpack.c.h.b16 %v143
  %v932 = vpack.c.b16 %v870, %v868
  %v933 = vpack.c.b16 %v871, %v869
  %v934 = vpack.c.b16 %v874, %v872
  %v935 = vpack.c.b16 %v875, %v873
  %v936 = vpack.c.b16 %v878, %v876
  %v937 = vpack.c.b16 %v879, %v877
  %v938 = vpack.c.b16 %v882, %v880
  %v939 = vpack.c.b16 %v883, %v881
  %v940 = vpack.c.b16 %v886, %v884
  %v941 = vpack.c.b16 %v887, %v885
  %v942 = vpack.c.b16 %v890, %v888
  %v943 = vpack.c.b16 %v891, %v889
  %v944 = vpack.c.b16 %v894, %v892
  %v945 = vpack.c.b16 %v895, %v893
  %v946 = vpack.c.b16 %v898, %v896
  %v947 = vpack.c.b16 %v899, %v897
  %v948 = vpack.c.b16 %v902, %v900
  %v949 = vpack.c.b16 %v903, %v901
  %v950 = vpack.c.b16 %v906, %v904
  %v951 = vpack.c.b16 %v907, %v905
  %v952 = vpack.c.b16 %v910, %v908
  %v953 = vpack.c.b16 %v911, %v909
  %v954 = vpack.c.b16 %v914, %v912
  %v955 = vpack.c.b16 %v915, %v913
  %v956 = vpack.c.b16 %v918, %v916
  %v957 = vpack.c.b16 %v919, %v917
  %v958 = vpack.c.b16 %v922, %v920
  %v959 = vpack.c.b16 %v923, %v921
  %v960 = vpack.c.b16 %v926, %v924
  %v961 = vpack.c.b16 %v927, %v925
  %v962 = vpack.c.b16 %v930, %v928
  %v963 = vpack.c.b16 %v931, %v929
  %996 = vmatpush.bf16.xpose.msra.mxu0 %v946
  %997 = vmatpush.bf16.xpose.msra.mxu0 %v944
  %998 = vmatpush.bf16.xpose.msra.mxu0 %v942
  %999 = vmatpush.bf16.xpose.msra.mxu0 %v940
  %1000 = vmatpush.bf16.xpose.msra.mxu0 %v938
  %1001 = vmatpush.bf16.xpose.msra.mxu0 %v936
  %1002 = vmatpush.bf16.xpose.msra.mxu0 %v934
  %1003 = vmatpush.bf16.xpose.msra.mxu0 %v932
  %1004 = vmatmul.bf16.gmra.mxu0 %v832
  %v1005 = vpop.f32.mrf.mxu0
  %v1006 = vadd.f32 0.0, %v1005
  %v1007 = vpop.f32.mrf.mxu0
  %1008 = vdwg.mxu0
  %1009 = vmatpush.bf16.xpose.msra.mxu0 %v947
  %1010 = vmatpush.bf16.xpose.msra.mxu0 %v945
  %1011 = vmatpush.bf16.xpose.msra.mxu0 %v943
  %1012 = vmatpush.bf16.xpose.msra.mxu0 %v941
  %1013 = vmatpush.bf16.xpose.msra.mxu0 %v939
  %1014 = vmatpush.bf16.xpose.msra.mxu0 %v937
  %1015 = vmatpush.bf16.xpose.msra.mxu0 %v935
  %1016 = vmatpush.bf16.xpose.msra.mxu0 %v933
  %1017 = vmatmul.bf16.gmra.mxu0 %v833
  %v1018 = vpop.f32.mrf.mxu0
  %v1019 = vadd.f32 %v1006, %v1018
  %v1020 = vpop.f32.mrf.mxu0
  %1021 = vdwg.mxu0
  %1022 = vmatpush.bf16.xpose.msra.mxu0 %v962
  %1023 = vmatpush.bf16.xpose.msra.mxu0 %v960
  %1024 = vmatpush.bf16.xpose.msra.mxu0 %v958
  %1025 = vmatpush.bf16.xpose.msra.mxu0 %v956
  %1026 = vmatpush.bf16.xpose.msra.mxu0 %v954
  %1027 = vmatpush.bf16.xpose.msra.mxu0 %v952
  %1028 = vmatpush.bf16.xpose.msra.mxu0 %v950
  %1029 = vmatpush.bf16.xpose.msra.mxu0 %v948
  %1030 = vmatmul.bf16.gmra.mxu0 %v832
  %v1031 = vpop.f32.mrf.mxu0
  %v1032 = vadd.f32 0.0, %v1031
  %v1033 = vpop.f32.mrf.mxu0
  %1034 = vdwg.mxu0
  %1035 = vmatpush.bf16.xpose.msra.mxu0 %v963
  %1036 = vmatpush.bf16.xpose.msra.mxu0 %v961
  %1037 = vmatpush.bf16.xpose.msra.mxu0 %v959
  %1038 = vmatpush.bf16.xpose.msra.mxu0 %v957
  %1039 = vmatpush.bf16.xpose.msra.mxu0 %v955
  %1040 = vmatpush.bf16.xpose.msra.mxu0 %v953
  %1041 = vmatpush.bf16.xpose.msra.mxu0 %v951
  %1042 = vmatpush.bf16.xpose.msra.mxu0 %v949
  %1043 = vmatmul.bf16.gmra.mxu0 %v833
  %v1044 = vpop.f32.mrf.mxu0
  %v1045 = vadd.f32 %v1032, %v1044
  %v1046 = vpop.f32.mrf.mxu0
  %1047 = vdwg.mxu0
  %1049 = vst [vmem:[#allocation1] ss:$9 sm:$0xff] %v15
  %v1050 = vld [vmem:[#allocation1] sm:$0xff]
  %v1051 = vld [vmem:[#allocation1 + $0x9] sm:$0xff]
  %v1086 = vunpack.c.l.b16 %v144
  %v1087 = vunpack.c.h.b16 %v144
  %v1088 = vunpack.c.l.b16 %v145
  %v1089 = vunpack.c.h.b16 %v145
  %v1090 = vunpack.c.l.b16 %v146
  %v1091 = vunpack.c.h.b16 %v146
  %v1092 = vunpack.c.l.b16 %v147
  %v1093 = vunpack.c.h.b16 %v147
  %v1094 = vunpack.c.l.b16 %v148
  %v1095 = vunpack.c.h.b16 %v148
  %v1096 = vunpack.c.l.b16 %v149
  %v1097 = vunpack.c.h.b16 %v149
  %v1098 = vunpack.c.l.b16 %v150
  %v1099 = vunpack.c.h.b16 %v150
  %v1100 = vunpack.c.l.b16 %v151
  %v1101 = vunpack.c.h.b16 %v151
  %v1102 = vunpack.c.l.b16 %v152
  %v1103 = vunpack.c.h.b16 %v152
  %v1104 = vunpack.c.l.b16 %v153
  %v1105 = vunpack.c.h.b16 %v153
  %v1106 = vunpack.c.l.b16 %v154
  %v1107 = vunpack.c.h.b16 %v154
  %v1108 = vunpack.c.l.b16 %v155
  %v1109 = vunpack.c.h.b16 %v155
  %v1110 = vunpack.c.l.b16 %v156
  %v1111 = vunpack.c.h.b16 %v156
  %v1112 = vunpack.c.l.b16 %v157
  %v1113 = vunpack.c.h.b16 %v157
  %v1114 = vunpack.c.l.b16 %v158
  %v1115 = vunpack.c.h.b16 %v158
  %v1116 = vunpack.c.l.b16 %v159
  %v1117 = vunpack.c.h.b16 %v159
  %v1118 = vunpack.c.l.b16 %v160
  %v1119 = vunpack.c.h.b16 %v160
  %v1120 = vunpack.c.l.b16 %v161
  %v1121 = vunpack.c.h.b16 %v161
  %v1122 = vunpack.c.l.b16 %v162
  %v1123 = vunpack.c.h.b16 %v162
  %v1124 = vunpack.c.l.b16 %v163
  %v1125 = vunpack.c.h.b16 %v163
  %v1126 = vunpack.c.l.b16 %v164
  %v1127 = vunpack.c.h.b16 %v164
  %v1128 = vunpack.c.l.b16 %v165
  %v1129 = vunpack.c.h.b16 %v165
  %v1130 = vunpack.c.l.b16 %v166
  %v1131 = vunpack.c.h.b16 %v166
  %v1132 = vunpack.c.l.b16 %v167
  %v1133 = vunpack.c.h.b16 %v167
  %v1134 = vunpack.c.l.b16 %v168
  %v1135 = vunpack.c.h.b16 %v168
  %v1136 = vunpack.c.l.b16 %v169
  %v1137 = vunpack.c.h.b16 %v169
  %v1138 = vunpack.c.l.b16 %v170
  %v1139 = vunpack.c.h.b16 %v170
  %v1140 = vunpack.c.l.b16 %v171
  %v1141 = vunpack.c.h.b16 %v171
  %v1142 = vunpack.c.l.b16 %v172
  %v1143 = vunpack.c.h.b16 %v172
  %v1144 = vunpack.c.l.b16 %v173
  %v1145 = vunpack.c.h.b16 %v173
  %v1146 = vunpack.c.l.b16 %v174
  %v1147 = vunpack.c.h.b16 %v174
  %v1148 = vunpack.c.l.b16 %v175
  %v1149 = vunpack.c.h.b16 %v175
  %v1150 = vpack.c.b16 %v1088, %v1086
  %v1151 = vpack.c.b16 %v1089, %v1087
  %v1152 = vpack.c.b16 %v1092, %v1090
  %v1153 = vpack.c.b16 %v1093, %v1091
  %v1154 = vpack.c.b16 %v1096, %v1094
  %v1155 = vpack.c.b16 %v1097, %v1095
  %v1156 = vpack.c.b16 %v1100, %v1098
  %v1157 = vpack.c.b16 %v1101, %v1099
  %v1158 = vpack.c.b16 %v1104, %v1102
  %v1159 = vpack.c.b16 %v1105, %v1103
  %v1160 = vpack.c.b16 %v1108, %v1106
  %v1161 = vpack.c.b16 %v1109, %v1107
  %v1162 = vpack.c.b16 %v1112, %v1110
  %v1163 = vpack.c.b16 %v1113, %v1111
  %v1164 = vpack.c.b16 %v1116, %v1114
  %v1165 = vpack.c.b16 %v1117, %v1115
  %v1166 = vpack.c.b16 %v1120, %v1118
  %v1167 = vpack.c.b16 %v1121, %v1119
  %v1168 = vpack.c.b16 %v1124, %v1122
  %v1169 = vpack.c.b16 %v1125, %v1123
  %v1170 = vpack.c.b16 %v1128, %v1126
  %v1171 = vpack.c.b16 %v1129, %v1127
  %v1172 = vpack.c.b16 %v1132, %v1130
  %v1173 = vpack.c.b16 %v1133, %v1131
  %v1174 = vpack.c.b16 %v1136, %v1134
  %v1175 = vpack.c.b16 %v1137, %v1135
  %v1176 = vpack.c.b16 %v1140, %v1138
  %v1177 = vpack.c.b16 %v1141, %v1139
  %v1178 = vpack.c.b16 %v1144, %v1142
  %v1179 = vpack.c.b16 %v1145, %v1143
  %v1180 = vpack.c.b16 %v1148, %v1146
  %v1181 = vpack.c.b16 %v1149, %v1147
  %1214 = vmatpush.bf16.xpose.msra.mxu0 %v1164
  %1215 = vmatpush.bf16.xpose.msra.mxu0 %v1162
  %1216 = vmatpush.bf16.xpose.msra.mxu0 %v1160
  %1217 = vmatpush.bf16.xpose.msra.mxu0 %v1158
  %1218 = vmatpush.bf16.xpose.msra.mxu0 %v1156
  %1219 = vmatpush.bf16.xpose.msra.mxu0 %v1154
  %1220 = vmatpush.bf16.xpose.msra.mxu0 %v1152
  %1221 = vmatpush.bf16.xpose.msra.mxu0 %v1150
  %1222 = vmatmul.bf16.gmra.mxu0 %v1050
  %v1223 = vpop.f32.mrf.mxu0
  %v1224 = vadd.f32 0.0, %v1223
  %v1225 = vpop.f32.mrf.mxu0
  %1226 = vdwg.mxu0
  %1227 = vmatpush.bf16.xpose.msra.mxu0 %v1165
  %1228 = vmatpush.bf16.xpose.msra.mxu0 %v1163
  %1229 = vmatpush.bf16.xpose.msra.mxu0 %v1161
  %1230 = vmatpush.bf16.xpose.msra.mxu0 %v1159
  %1231 = vmatpush.bf16.xpose.msra.mxu0 %v1157
  %1232 = vmatpush.bf16.xpose.msra.mxu0 %v1155
  %1233 = vmatpush.bf16.xpose.msra.mxu0 %v1153
  %1234 = vmatpush.bf16.xpose.msra.mxu0 %v1151
  %1235 = vmatmul.bf16.gmra.mxu0 %v1051
  %v1236 = vpop.f32.mrf.mxu0
  %v1237 = vadd.f32 %v1224, %v1236
  %v1238 = vpop.f32.mrf.mxu0
  %1239 = vdwg.mxu0
  %1240 = vmatpush.bf16.xpose.msra.mxu0 %v1180
  %1241 = vmatpush.bf16.xpose.msra.mxu0 %v1178
  %1242 = vmatpush.bf16.xpose.msra.mxu0 %v1176
  %1243 = vmatpush.bf16.xpose.msra.mxu0 %v1174
  %1244 = vmatpush.bf16.xpose.msra.mxu0 %v1172
  %1245 = vmatpush.bf16.xpose.msra.mxu0 %v1170
  %1246 = vmatpush.bf16.xpose.msra.mxu0 %v1168
  %1247 = vmatpush.bf16.xpose.msra.mxu0 %v1166
  %1248 = vmatmul.bf16.gmra.mxu0 %v1050
  %v1249 = vpop.f32.mrf.mxu0
  %v1250 = vadd.f32 0.0, %v1249
  %v1251 = vpop.f32.mrf.mxu0
  %1252 = vdwg.mxu0
  %1253 = vmatpush.bf16.xpose.msra.mxu0 %v1181
  %1254 = vmatpush.bf16.xpose.msra.mxu0 %v1179
  %1255 = vmatpush.bf16.xpose.msra.mxu0 %v1177
  %1256 = vmatpush.bf16.xpose.msra.mxu0 %v1175
  %1257 = vmatpush.bf16.xpose.msra.mxu0 %v1173
  %1258 = vmatpush.bf16.xpose.msra.mxu0 %v1171
  %1259 = vmatpush.bf16.xpose.msra.mxu0 %v1169
  %1260 = vmatpush.bf16.xpose.msra.mxu0 %v1167
  %1261 = vmatmul.bf16.gmra.mxu0 %v1051
  %v1262 = vpop.f32.mrf.mxu0
  %v1263 = vadd.f32 %v1250, %v1262
  %v1264 = vpop.f32.mrf.mxu0
  %1265 = vdwg.mxu0
  %v1276 = vrot.slane %v391, 6
  %v1277 = vrot.slane %v609, 6
  %v1278 = vrot.slane %v827, 6
  %v1279 = vrot.slane %v1045, 6
  %v1280 = vrot.slane %v1263, 6
  %vm1281 = vcmask 1041408
  %v1282 = vsel %vm1281, %v365, %v1276
  %v1283 = vsel %vm1281, %v583, %v1277
  %v1284 = vsel %vm1281, %v801, %v1278
  %v1285 = vsel %vm1281, %v1019, %v1279
  %v1286 = vsel %vm1281, %v1237, %v1280
  %1292 = vst [vmem:[%s2] sm:$0xf] %v1282
  %1293 = vst [vmem:[%s2 + $0x4] sm:$0xf] %v1283
  %1294 = vst [vmem:[%s2 + $0x8] sm:$0xf] %v1284
  %1295 = vst [vmem:[%s2 + $0xc] sm:$0xf] %v1285
  %1296 = vst [vmem:[%s2 + $0x10] sm:$0xf] %v1286
  // Predicated region
  $region10: #{yakir_forward.24} parent=0 // pred_check
    _
  $region11: #{yakir_forward.24} parent=0 // pred_check_branch
    %1298 = sbr.rel (0) target = $region13
  $region12: #{yakir_forward.24} parent=0 // pred_region
    _
  $region13: #{yakir_forward.24} parent=0 // pred_fallthru
    _
  // Predicated region
  $region14: #{yakir_forward.24} parent=0 // pred_check
    _
  $region15: #{yakir_forward.24} parent=0 // pred_check_branch
    %1300 = sbr.rel (0) target = $region17
  $region16: #{yakir_forward.24} parent=0 // pred_region
    _
  $region17: #{yakir_forward.24} parent=0 // pred_fallthru
    _

// kernel: yakir_forward.28
$region0: #{yakir_forward.28}
  #allocation0 [shape = 'u32[]', space=smem, size = 0x4, offset = 0x4, fixed_abs, tag = 'smem constant byte address 0x4 - core index']
  #allocation1 [shape = 'u32[72,128]{1,0:T(1,128)}', space=vmem, size = 0x9000, scoped, tag = 'internal scratch']
  %s0 = inlined_call_operand.vmem [shape: f32[2,4,128], index: 0, kind: input, shape index: {}]
  %s1 = inlined_call_operand.vmem [shape: f32[2,4,128], index: 1, kind: output, shape index: {}]
  %s2 = sld [smem:[#allocation0]]
  $region37: #{yakir_forward.28} parent=0
    _
  %s4 = ssub.s32 1, %s2
  %s5 = scalar_select 0, %s4, %s2
  loop: start=0, step=1, limit=4
  $region2: #{yakir_forward.28} parent=0 // loop_pre_header
    _
  $region3: #{yakir_forward.28} parent=0 // loop_header
    %s7 = sphi 0, %s11
    %p8 = scmp.ge.s32.totalorder %s7, 4
    %s17 = sphi 0, %s19
    %s20 = sphi 0, %s17
    %s21 = sphi 0, %s20
    %s37 = sphi 0, %s21
    %s43 = sphi 0, %s45
    %s46 = sphi 0, %s43
    %s47 = sphi 0, %s46
    %s63 = sphi 0, %s47
  $region4: #{yakir_forward.28} parent=0 // loop_header_branch
    %10 = sbr.rel (%p8) target = $region8
  $region5: #{yakir_forward.28} parent=0 // loop_body
    %s12 = ssub.s32 %s7, 1
    %s13 = ssub.s32 %s7, 2
    %s14 = sadd.s32 %s7, 1
    %s15 = ssub.s32 %s7, %s14
    %p16 = scmp.eq.s32.totalorder %s15, 0
    %s18 = sadd.s32 %s17, 1
    %s19 = scalar_select %p16, %s17, %s18
    %p22 = pneg %p16
    %p23 = scmp.eq.s32.totalorder %s7, 1
    %p24 = por %p22, %p23
    %p25 = scmp.ne.s32.totalorder %s17, %s20
    %p26 = scmp.eq.s32.totalorder %s7, 0
    %p27 = por %p25, %p26
    %p28 = scmp.ne.s32.totalorder %s17, %s20
    %p29 = scmp.eq.s32.totalorder %s12, 1
    %p30 = por %p28, %p29
    %p31 = scmp.ne.s32.totalorder %s20, %s21
    %p32 = scmp.eq.s32.totalorder %s12, 0
    %p33 = por %p31, %p32
    %p34 = scmp.ne.s32.totalorder %s20, %s21
    %p35 = scmp.eq.s32.totalorder %s13, 1
    %p36 = por %p34, %p35
    %p38 = scmp.ne.s32.totalorder %s21, %s37
    %p39 = scmp.eq.s32.totalorder %s13, 0
    %p40 = por %p38, %p39
    %s41 = ssub.s32 %s7, %s14
    %p42 = scmp.eq.s32.totalorder %s41, 0
    %s44 = sadd.s32 %s43, 1
    %s45 = scalar_select %p42, %s43, %s44
    %p48 = pneg %p42
    %p49 = scmp.eq.s32.totalorder %s7, 1
    %p50 = por %p48, %p49
    %p51 = scmp.ne.s32.totalorder %s43, %s46
    %p52 = scmp.eq.s32.totalorder %s7, 0
    %p53 = por %p51, %p52
    %p54 = scmp.ne.s32.totalorder %s43, %s46
    %p55 = scmp.eq.s32.totalorder %s12, 1
    %p56 = por %p54, %p55
    %p57 = scmp.ne.s32.totalorder %s46, %s47
    %p58 = scmp.eq.s32.totalorder %s12, 0
    %p59 = por %p57, %p58
    %p60 = scmp.ne.s32.totalorder %s46, %s47
    %p61 = scmp.eq.s32.totalorder %s13, 1
    %p62 = por %p60, %p61
    %p64 = scmp.ne.s32.totalorder %s47, %s63
    %p65 = scmp.eq.s32.totalorder %s13, 0
    %p66 = por %p64, %p65
    %p67 = scmp.le.s32.totalorder 1, %s7
    %p68 = scmp.lt.s32.totalorder %s7, 3
    %p69 = pnand %p67, %p68
    %p70 = pneg %p69
    // Predicated region
    $region9: #{yakir_forward.28} parent=5 // pred_check
      _
    $region10: #{yakir_forward.28} parent=5 // pred_check_branch
      %72 = sbr.rel (%p69) target = $region12
    $region11: #{yakir_forward.28} parent=5 // pred_region
      %s73 = ssub.s32 %s7, 1
    $region12: #{yakir_forward.28} parent=5 // pred_fallthru
      _
    %p74 = scmp.lt.s32.totalorder %s7, 2
    // Predicated region
    $region13: #{yakir_forward.28} parent=5 // pred_check
      %p75 = pneg %p74
    $region14: #{yakir_forward.28} parent=5 // pred_check_branch
      %77 = sbr.rel (%p75) target = $region16
    $region15: #{yakir_forward.28} parent=5 // pred_region
      // Predicated region
      $region17: #{yakir_forward.28} parent=15 // pred_check
        %p78 = pneg %p27
      $region18: #{yakir_forward.28} parent=15 // pred_check_branch
        %80 = sbr.rel (%p78) target = $region20
      $region19: #{yakir_forward.28} parent=15 // pred_region
        %p81 = scmp.lt.s32.totalorder %s7, 1
        %s82 = scalar_select %p81, %s7, 1
        %s83 = smul.addr %s82, 4
        %s84 = scalar_lea.vmem %s0, %s83
      $region20: #{yakir_forward.28} parent=15 // pred_fallthru
        _
    $region16: #{yakir_forward.28} parent=5 // pred_fallthru
      _
    %p85 = scmp.le.s32.totalorder 1, %s7
    %p86 = scmp.lt.s32.totalorder %s7, 3
    %p87 = pnand %p85, %p86
    %p88 = pneg %p87
    // Predicated region
    $region21: #{yakir_forward.28} parent=5 // pred_check
      _
    $region22: #{yakir_forward.28} parent=5 // pred_check_branch
      %90 = sbr.rel (%p87) target = $region24
    $region23: #{yakir_forward.28} parent=5 // pred_region
      %s91 = ssub.s32 %s7, 1
      %p92 = scmp.lt.s32.totalorder %s12, 1
      %s93 = scalar_select %p92, %s12, 1
      %s94 = smul.addr %s93, 4
      %s95 = scalar_lea.vmem %s0, %s94
      %p96 = pneg %p33
      %p97 = pneg %p30
      %p98 = pneg %p59
      %p99 = pneg %p56
      %p100 = scmp.lt.s32.totalorder %s12, 1
      %s101 = scalar_select %p100, %s12, 1
      %s102 = smul.addr %s101, 4
      %s103 = scalar_lea.vmem %s1, %s102
      %p104 = scmp.lt.s32.totalorder %s12, 1
      %s105 = scalar_select %p104, %s12, 1
      %s106 = smul.addr %s105, 4
      %s107 = scalar_lea.vmem %s0, %s106
      %p108 = scmp.lt.s32.totalorder %s12, 1
      %s109 = scalar_select %p108, %s12, 1
      %s110 = smul.addr %s109, 4
      %s111 = scalar_lea.vmem %s1, %s110
      %v112 = vld [vmem:[%s107] sm:$0xf]
      %vm113 = vcmask 1043456
      %v114 = vsel %vm113, %v112, 0.0
      %115 = vadd.xlane.f32.xlu0 %v114
      %v116 = vpop.xlane.xlu0 %115
      %v117 = vrot.slane %v116, 4
      %v118 = vadd.f32 %v116, %v117
      %v119 = vrot.slane %v118, 2
      %v120 = vadd.f32 %v118, %v119
      %v121 = vrot.slane %v120, 1
      %v122 = vadd.f32 %v120, %v121
      %s123 = vtos %v122
      %s124 = smul.f32 %s123, 0.001953125
      %v125 = vstv %s124
      %v126 = vsub.f32 %v112, %v125
      %v127 = vmul.f32 %v126, %v126
      %v128 = vsel %vm113, %v127, 0.0
      %129 = vadd.xlane.f32.xlu0 %v128
      %v130 = vpop.xlane.xlu0 %129
      %v131 = vrot.slane %v130, 4
      %v132 = vadd.f32 %v130, %v131
      %v133 = vrot.slane %v132, 2
      %v134 = vadd.f32 %v132, %v133
      %v135 = vrot.slane %v134, 1
      %v136 = vadd.f32 %v134, %v135
      %s137 = vtos %v136
      %s138 = smul.f32 %s137, 0.0019569471
      %s139 = smax.f32 %s138, 1e-12
      %v140 = vstv %s139
      %v141 = vrsqrt.pop %v140
      %v142 = vmul.f32 %v141, %v140
      %v143 = vmul.f32 %v142, %v141
      %v144 = vmul.f32 0.5, %v143
      %v145 = vsub.f32 1.5, %v144
      %v146 = vmul.f32 %v141, %v145
      %vm147 = vweird.f32 %v140
      %vm148 = vweird.f32 %v141
      %vm149 = vmor %vm147, %vm148
      %v150 = vsel %vm149, %v141, %v146
      %s151 = vtos %v150
      %v152 = vstv %s151
      %v153 = vmul.f32 %v126, %v152
      %154 = vst [vmem:[%s111] sm:$0xf] %v153
      %p155 = scmp.lt.s32.totalorder %s12, 1
      %s156 = scalar_select %p155, %s12, 1
      %s157 = smul.addr %s156, 4
      %s158 = scalar_lea.vmem %s1, %s157
      // Predicated region
      $region25: #{yakir_forward.28} parent=23 // pred_check
        %p159 = pneg %p56
      $region26: #{yakir_forward.28} parent=23 // pred_check_branch
        %161 = sbr.rel (%p159) target = $region28
      $region27: #{yakir_forward.28} parent=23 // pred_region
        _
      $region28: #{yakir_forward.28} parent=23 // pred_fallthru
        _
    $region24: #{yakir_forward.28} parent=5 // pred_fallthru
      _
    %p162 = scmp.le.s32.totalorder 2, %s7
    // Predicated region
    $region29: #{yakir_forward.28} parent=5 // pred_check
      %p163 = pneg %p162
    $region30: #{yakir_forward.28} parent=5 // pred_check_branch
      %165 = sbr.rel (%p163) target = $region32
    $region31: #{yakir_forward.28} parent=5 // pred_region
      %s166 = ssub.s32 %s7, 2
      // Predicated region
      $region33: #{yakir_forward.28} parent=31 // pred_check
        %p167 = pneg %p62
      $region34: #{yakir_forward.28} parent=31 // pred_check_branch
        %169 = sbr.rel (%p167) target = $region36
      $region35: #{yakir_forward.28} parent=31 // pred_region
        %p170 = scmp.lt.s32.totalorder %s13, 1
        %s171 = scalar_select %p170, %s13, 1
        %s172 = smul.addr %s171, 4
        %s173 = scalar_lea.vmem %s1, %s172
      $region36: #{yakir_forward.28} parent=31 // pred_fallthru
        _
    $region32: #{yakir_forward.28} parent=5 // pred_fallthru
      _
  $region6: #{yakir_forward.28} parent=0 // loop_footer
    %s11 = sadd.s32 1, %s7
  $region7: #{yakir_forward.28} parent=0 // loop_footer_branch
    %6 = sbr.rel target = $region3
  $region8: #{yakir_forward.28} parent=0 // loop_exit
    _

// kernel: yakir_forward.27
$region0: #{yakir_forward.27}
  #allocation0 [shape = 'u32[]', space=smem, size = 0x4, offset = 0x4, fixed_abs, tag = 'smem constant byte address 0x4 - core index']
  #allocation1 [shape = 'u32[72,128]{1,0:T(1,128)}', space=vmem, size = 0x9000, scoped, tag = 'internal scratch']
  %s0 = inlined_call_operand.vmem [shape: bf16[3,2,256], index: 0, kind: input, shape index: {}]
  %s1 = inlined_call_operand.vmem [shape: bf16[3,256,256], index: 1, kind: input, shape index: {}]
  %s2 = inlined_call_operand.vmem [shape: f32[3,2,256], index: 2, kind: output, shape index: {}]
  %s3 = sld [smem:[#allocation0]]
  $region18: #{yakir_forward.27} parent=0
    _
  %s5 = ssub.s32 1, %s3
  %s6 = scalar_select 0, %s5, %s3
  // Predicated region
  $region2: #{yakir_forward.27} parent=0 // pred_check
    _
  $region3: #{yakir_forward.27} parent=0 // pred_check_branch
    %8 = sbr.rel (0) target = $region5
  $region4: #{yakir_forward.27} parent=0 // pred_region
    _
  $region5: #{yakir_forward.27} parent=0 // pred_fallthru
    _
  // Predicated region
  $region6: #{yakir_forward.27} parent=0 // pred_check
    _
  $region7: #{yakir_forward.27} parent=0 // pred_check_branch
    %10 = sbr.rel (0) target = $region9
  $region8: #{yakir_forward.27} parent=0 // pred_region
    _
  $region9: #{yakir_forward.27} parent=0 // pred_fallthru
    _
  %v11 = vld [vmem:[%s0] sm:$0x3]
  %v12 = vld [vmem:[%s0 + $0x2] sm:$0x3]
  %v13 = vld [vmem:[%s0 + $0x4] sm:$0x3]
  %v14 = vld [vmem:[%s1] sm:$0xff]
  %v15 = vld [vmem:[%s1 + $0x8] sm:$0xff]
  %v16 = vld [vmem:[%s1 + $0x10] sm:$0xff]
  %v17 = vld [vmem:[%s1 + $0x18] sm:$0xff]
  %v18 = vld [vmem:[%s1 + $0x20] sm:$0xff]
  %v19 = vld [vmem:[%s1 + $0x28] sm:$0xff]
  %v20 = vld [vmem:[%s1 + $0x30] sm:$0xff]
  %v21 = vld [vmem:[%s1 + $0x38] sm:$0xff]
  %v22 = vld [vmem:[%s1 + $0x40] sm:$0xff]
  %v23 = vld [vmem:[%s1 + $0x48] sm:$0xff]
  %v24 = vld [vmem:[%s1 + $0x50] sm:$0xff]
  %v25 = vld [vmem:[%s1 + $0x58] sm:$0xff]
  %v26 = vld [vmem:[%s1 + $0x60] sm:$0xff]
  %v27 = vld [vmem:[%s1 + $0x68] sm:$0xff]
  %v28 = vld [vmem:[%s1 + $0x70] sm:$0xff]
  %v29 = vld [vmem:[%s1 + $0x78] sm:$0xff]
  %v30 = vld [vmem:[%s1 + $0x80] sm:$0xff]
  %v31 = vld [vmem:[%s1 + $0x88] sm:$0xff]
  %v32 = vld [vmem:[%s1 + $0x90] sm:$0xff]
  %v33 = vld [vmem:[%s1 + $0x98] sm:$0xff]
  %v34 = vld [vmem:[%s1 + $0xa0] sm:$0xff]
  %v35 = vld [vmem:[%s1 + $0xa8] sm:$0xff]
  %v36 = vld [vmem:[%s1 + $0xb0] sm:$0xff]
  %v37 = vld [vmem:[%s1 + $0xb8] sm:$0xff]
  %v38 = vld [vmem:[%s1 + $0xc0] sm:$0xff]
  %v39 = vld [vmem:[%s1 + $0xc8] sm:$0xff]
  %v40 = vld [vmem:[%s1 + $0xd0] sm:$0xff]
  %v41 = vld [vmem:[%s1 + $0xd8] sm:$0xff]
  %v42 = vld [vmem:[%s1 + $0xe0] sm:$0xff]
  %v43 = vld [vmem:[%s1 + $0xe8] sm:$0xff]
  %v44 = vld [vmem:[%s1 + $0xf0] sm:$0xff]
  %v45 = vld [vmem:[%s1 + $0xf8] sm:$0xff]
  %v46 = vld [vmem:[%s1 + $0x100] sm:$0xff]
  %v47 = vld [vmem:[%s1 + $0x108] sm:$0xff]
  %v48 = vld [vmem:[%s1 + $0x110] sm:$0xff]
  %v49 = vld [vmem:[%s1 + $0x118] sm:$0xff]
  %v50 = vld [vmem:[%s1 + $0x120] sm:$0xff]
  %v51 = vld [vmem:[%s1 + $0x128] sm:$0xff]
  %v52 = vld [vmem:[%s1 + $0x130] sm:$0xff]
  %v53 = vld [vmem:[%s1 + $0x138] sm:$0xff]
  %v54 = vld [vmem:[%s1 + $0x140] sm:$0xff]
  %v55 = vld [vmem:[%s1 + $0x148] sm:$0xff]
  %v56 = vld [vmem:[%s1 + $0x150] sm:$0xff]
  %v57 = vld [vmem:[%s1 + $0x158] sm:$0xff]
  %v58 = vld [vmem:[%s1 + $0x160] sm:$0xff]
  %v59 = vld [vmem:[%s1 + $0x168] sm:$0xff]
  %v60 = vld [vmem:[%s1 + $0x170] sm:$0xff]
  %v61 = vld [vmem:[%s1 + $0x178] sm:$0xff]
  %v62 = vld [vmem:[%s1 + $0x180] sm:$0xff]
  %v63 = vld [vmem:[%s1 + $0x188] sm:$0xff]
  %v64 = vld [vmem:[%s1 + $0x190] sm:$0xff]
  %v65 = vld [vmem:[%s1 + $0x198] sm:$0xff]
  %v66 = vld [vmem:[%s1 + $0x1a0] sm:$0xff]
  %v67 = vld [vmem:[%s1 + $0x1a8] sm:$0xff]
  %v68 = vld [vmem:[%s1 + $0x1b0] sm:$0xff]
  %v69 = vld [vmem:[%s1 + $0x1b8] sm:$0xff]
  %v70 = vld [vmem:[%s1 + $0x1c0] sm:$0xff]
  %v71 = vld [vmem:[%s1 + $0x1c8] sm:$0xff]
  %v72 = vld [vmem:[%s1 + $0x1d0] sm:$0xff]
  %v73 = vld [vmem:[%s1 + $0x1d8] sm:$0xff]
  %v74 = vld [vmem:[%s1 + $0x1e0] sm:$0xff]
  %v75 = vld [vmem:[%s1 + $0x1e8] sm:$0xff]
  %v76 = vld [vmem:[%s1 + $0x1f0] sm:$0xff]
  %v77 = vld [vmem:[%s1 + $0x1f8] sm:$0xff]
  %v78 = vld [vmem:[%s1 + $0x200] sm:$0xff]
  %v79 = vld [vmem:[%s1 + $0x208] sm:$0xff]
  %v80 = vld [vmem:[%s1 + $0x210] sm:$0xff]
  %v81 = vld [vmem:[%s1 + $0x218] sm:$0xff]
  %v82 = vld [vmem:[%s1 + $0x220] sm:$0xff]
  %v83 = vld [vmem:[%s1 + $0x228] sm:$0xff]
  %v84 = vld [vmem:[%s1 + $0x230] sm:$0xff]
  %v85 = vld [vmem:[%s1 + $0x238] sm:$0xff]
  %v86 = vld [vmem:[%s1 + $0x240] sm:$0xff]
  %v87 = vld [vmem:[%s1 + $0x248] sm:$0xff]
  %v88 = vld [vmem:[%s1 + $0x250] sm:$0xff]
  %v89 = vld [vmem:[%s1 + $0x258] sm:$0xff]
  %v90 = vld [vmem:[%s1 + $0x260] sm:$0xff]
  %v91 = vld [vmem:[%s1 + $0x268] sm:$0xff]
  %v92 = vld [vmem:[%s1 + $0x270] sm:$0xff]
  %v93 = vld [vmem:[%s1 + $0x278] sm:$0xff]
  %v94 = vld [vmem:[%s1 + $0x280] sm:$0xff]
  %v95 = vld [vmem:[%s1 + $0x288] sm:$0xff]
  %v96 = vld [vmem:[%s1 + $0x290] sm:$0xff]
  %v97 = vld [vmem:[%s1 + $0x298] sm:$0xff]
  %v98 = vld [vmem:[%s1 + $0x2a0] sm:$0xff]
  %v99 = vld [vmem:[%s1 + $0x2a8] sm:$0xff]
  %v100 = vld [vmem:[%s1 + $0x2b0] sm:$0xff]
  %v101 = vld [vmem:[%s1 + $0x2b8] sm:$0xff]
  %v102 = vld [vmem:[%s1 + $0x2c0] sm:$0xff]
  %v103 = vld [vmem:[%s1 + $0x2c8] sm:$0xff]
  %v104 = vld [vmem:[%s1 + $0x2d0] sm:$0xff]
  %v105 = vld [vmem:[%s1 + $0x2d8] sm:$0xff]
  %v106 = vld [vmem:[%s1 + $0x2e0] sm:$0xff]
  %v107 = vld [vmem:[%s1 + $0x2e8] sm:$0xff]
  %v108 = vld [vmem:[%s1 + $0x2f0] sm:$0xff]
  %v109 = vld [vmem:[%s1 + $0x2f8] sm:$0xff]
  %111 = vst [vmem:[#allocation1] ss:$9 sm:$0xff] %v11
  %v112 = vld [vmem:[#allocation1] sm:$0xff]
  %v113 = vld [vmem:[#allocation1 + $0x9] sm:$0xff]
  %v148 = vunpack.c.l.b16 %v14
  %v149 = vunpack.c.h.b16 %v14
  %v150 = vunpack.c.l.b16 %v15
  %v151 = vunpack.c.h.b16 %v15
  %v152 = vunpack.c.l.b16 %v16
  %v153 = vunpack.c.h.b16 %v16
  %v154 = vunpack.c.l.b16 %v17
  %v155 = vunpack.c.h.b16 %v17
  %v156 = vunpack.c.l.b16 %v18
  %v157 = vunpack.c.h.b16 %v18
  %v158 = vunpack.c.l.b16 %v19
  %v159 = vunpack.c.h.b16 %v19
  %v160 = vunpack.c.l.b16 %v20
  %v161 = vunpack.c.h.b16 %v20
  %v162 = vunpack.c.l.b16 %v21
  %v163 = vunpack.c.h.b16 %v21
  %v164 = vunpack.c.l.b16 %v22
  %v165 = vunpack.c.h.b16 %v22
  %v166 = vunpack.c.l.b16 %v23
  %v167 = vunpack.c.h.b16 %v23
  %v168 = vunpack.c.l.b16 %v24
  %v169 = vunpack.c.h.b16 %v24
  %v170 = vunpack.c.l.b16 %v25
  %v171 = vunpack.c.h.b16 %v25
  %v172 = vunpack.c.l.b16 %v26
  %v173 = vunpack.c.h.b16 %v26
  %v174 = vunpack.c.l.b16 %v27
  %v175 = vunpack.c.h.b16 %v27
  %v176 = vunpack.c.l.b16 %v28
  %v177 = vunpack.c.h.b16 %v28
  %v178 = vunpack.c.l.b16 %v29
  %v179 = vunpack.c.h.b16 %v29
  %v180 = vunpack.c.l.b16 %v30
  %v181 = vunpack.c.h.b16 %v30
  %v182 = vunpack.c.l.b16 %v31
  %v183 = vunpack.c.h.b16 %v31
  %v184 = vunpack.c.l.b16 %v32
  %v185 = vunpack.c.h.b16 %v32
  %v186 = vunpack.c.l.b16 %v33
  %v187 = vunpack.c.h.b16 %v33
  %v188 = vunpack.c.l.b16 %v34
  %v189 = vunpack.c.h.b16 %v34
  %v190 = vunpack.c.l.b16 %v35
  %v191 = vunpack.c.h.b16 %v35
  %v192 = vunpack.c.l.b16 %v36
  %v193 = vunpack.c.h.b16 %v36
  %v194 = vunpack.c.l.b16 %v37
  %v195 = vunpack.c.h.b16 %v37
  %v196 = vunpack.c.l.b16 %v38
  %v197 = vunpack.c.h.b16 %v38
  %v198 = vunpack.c.l.b16 %v39
  %v199 = vunpack.c.h.b16 %v39
  %v200 = vunpack.c.l.b16 %v40
  %v201 = vunpack.c.h.b16 %v40
  %v202 = vunpack.c.l.b16 %v41
  %v203 = vunpack.c.h.b16 %v41
  %v204 = vunpack.c.l.b16 %v42
  %v205 = vunpack.c.h.b16 %v42
  %v206 = vunpack.c.l.b16 %v43
  %v207 = vunpack.c.h.b16 %v43
  %v208 = vunpack.c.l.b16 %v44
  %v209 = vunpack.c.h.b16 %v44
  %v210 = vunpack.c.l.b16 %v45
  %v211 = vunpack.c.h.b16 %v45
  %v212 = vpack.c.b16 %v150, %v148
  %v213 = vpack.c.b16 %v151, %v149
  %v214 = vpack.c.b16 %v154, %v152
  %v215 = vpack.c.b16 %v155, %v153
  %v216 = vpack.c.b16 %v158, %v156
  %v217 = vpack.c.b16 %v159, %v157
  %v218 = vpack.c.b16 %v162, %v160
  %v219 = vpack.c.b16 %v163, %v161
  %v220 = vpack.c.b16 %v166, %v164
  %v221 = vpack.c.b16 %v167, %v165
  %v222 = vpack.c.b16 %v170, %v168
  %v223 = vpack.c.b16 %v171, %v169
  %v224 = vpack.c.b16 %v174, %v172
  %v225 = vpack.c.b16 %v175, %v173
  %v226 = vpack.c.b16 %v178, %v176
  %v227 = vpack.c.b16 %v179, %v177
  %v228 = vpack.c.b16 %v182, %v180
  %v229 = vpack.c.b16 %v183, %v181
  %v230 = vpack.c.b16 %v186, %v184
  %v231 = vpack.c.b16 %v187, %v185
  %v232 = vpack.c.b16 %v190, %v188
  %v233 = vpack.c.b16 %v191, %v189
  %v234 = vpack.c.b16 %v194, %v192
  %v235 = vpack.c.b16 %v195, %v193
  %v236 = vpack.c.b16 %v198, %v196
  %v237 = vpack.c.b16 %v199, %v197
  %v238 = vpack.c.b16 %v202, %v200
  %v239 = vpack.c.b16 %v203, %v201
  %v240 = vpack.c.b16 %v206, %v204
  %v241 = vpack.c.b16 %v207, %v205
  %v242 = vpack.c.b16 %v210, %v208
  %v243 = vpack.c.b16 %v211, %v209
  %276 = vmatpush.bf16.xpose.msra.mxu0 %v226
  %277 = vmatpush.bf16.xpose.msra.mxu0 %v224
  %278 = vmatpush.bf16.xpose.msra.mxu0 %v222
  %279 = vmatpush.bf16.xpose.msra.mxu0 %v220
  %280 = vmatpush.bf16.xpose.msra.mxu0 %v218
  %281 = vmatpush.bf16.xpose.msra.mxu0 %v216
  %282 = vmatpush.bf16.xpose.msra.mxu0 %v214
  %283 = vmatpush.bf16.xpose.msra.mxu0 %v212
  %284 = vmatmul.bf16.gmra.mxu0 %v112
  %v285 = vpop.f32.mrf.mxu0
  %v286 = vadd.f32 0.0, %v285
  %v287 = vpop.f32.mrf.mxu0
  %288 = vdwg.mxu0
  %289 = vmatpush.bf16.xpose.msra.mxu0 %v227
  %290 = vmatpush.bf16.xpose.msra.mxu0 %v225
  %291 = vmatpush.bf16.xpose.msra.mxu0 %v223
  %292 = vmatpush.bf16.xpose.msra.mxu0 %v221
  %293 = vmatpush.bf16.xpose.msra.mxu0 %v219
  %294 = vmatpush.bf16.xpose.msra.mxu0 %v217
  %295 = vmatpush.bf16.xpose.msra.mxu0 %v215
  %296 = vmatpush.bf16.xpose.msra.mxu0 %v213
  %297 = vmatmul.bf16.gmra.mxu0 %v113
  %v298 = vpop.f32.mrf.mxu0
  %v299 = vadd.f32 %v286, %v298
  %v300 = vpop.f32.mrf.mxu0
  %301 = vdwg.mxu0
  %302 = vmatpush.bf16.xpose.msra.mxu0 %v242
  %303 = vmatpush.bf16.xpose.msra.mxu0 %v240
  %304 = vmatpush.bf16.xpose.msra.mxu0 %v238
  %305 = vmatpush.bf16.xpose.msra.mxu0 %v236
  %306 = vmatpush.bf16.xpose.msra.mxu0 %v234
  %307 = vmatpush.bf16.xpose.msra.mxu0 %v232
  %308 = vmatpush.bf16.xpose.msra.mxu0 %v230
  %309 = vmatpush.bf16.xpose.msra.mxu0 %v228
  %310 = vmatmul.bf16.gmra.mxu0 %v112
  %v311 = vpop.f32.mrf.mxu0
  %v312 = vadd.f32 0.0, %v311
  %v313 = vpop.f32.mrf.mxu0
  %314 = vdwg.mxu0
  %315 = vmatpush.bf16.xpose.msra.mxu0 %v243
  %316 = vmatpush.bf16.xpose.msra.mxu0 %v241
  %317 = vmatpush.bf16.xpose.msra.mxu0 %v239
  %318 = vmatpush.bf16.xpose.msra.mxu0 %v237
  %319 = vmatpush.bf16.xpose.msra.mxu0 %v235
  %320 = vmatpush.bf16.xpose.msra.mxu0 %v233
  %321 = vmatpush.bf16.xpose.msra.mxu0 %v231
  %322 = vmatpush.bf16.xpose.msra.mxu0 %v229
  %323 = vmatmul.bf16.gmra.mxu0 %v113
  %v324 = vpop.f32.mrf.mxu0
  %v325 = vadd.f32 %v312, %v324
  %v326 = vpop.f32.mrf.mxu0
  %327 = vdwg.mxu0
  %329 = vst [vmem:[#allocation1] ss:$9 sm:$0xff] %v12
  %v330 = vld [vmem:[#allocation1] sm:$0xff]
  %v331 = vld [vmem:[#allocation1 + $0x9] sm:$0xff]
  %v366 = vunpack.c.l.b16 %v46
  %v367 = vunpack.c.h.b16 %v46
  %v368 = vunpack.c.l.b16 %v47
  %v369 = vunpack.c.h.b16 %v47
  %v370 = vunpack.c.l.b16 %v48
  %v371 = vunpack.c.h.b16 %v48
  %v372 = vunpack.c.l.b16 %v49
  %v373 = vunpack.c.h.b16 %v49
  %v374 = vunpack.c.l.b16 %v50
  %v375 = vunpack.c.h.b16 %v50
  %v376 = vunpack.c.l.b16 %v51
  %v377 = vunpack.c.h.b16 %v51
  %v378 = vunpack.c.l.b16 %v52
  %v379 = vunpack.c.h.b16 %v52
  %v380 = vunpack.c.l.b16 %v53
  %v381 = vunpack.c.h.b16 %v53
  %v382 = vunpack.c.l.b16 %v54
  %v383 = vunpack.c.h.b16 %v54
  %v384 = vunpack.c.l.b16 %v55
  %v385 = vunpack.c.h.b16 %v55
  %v386 = vunpack.c.l.b16 %v56
  %v387 = vunpack.c.h.b16 %v56
  %v388 = vunpack.c.l.b16 %v57
  %v389 = vunpack.c.h.b16 %v57
  %v390 = vunpack.c.l.b16 %v58
  %v391 = vunpack.c.h.b16 %v58
  %v392 = vunpack.c.l.b16 %v59
  %v393 = vunpack.c.h.b16 %v59
  %v394 = vunpack.c.l.b16 %v60
  %v395 = vunpack.c.h.b16 %v60
  %v396 = vunpack.c.l.b16 %v61
  %v397 = vunpack.c.h.b16 %v61
  %v398 = vunpack.c.l.b16 %v62
  %v399 = vunpack.c.h.b16 %v62
  %v400 = vunpack.c.l.b16 %v63
  %v401 = vunpack.c.h.b16 %v63
  %v402 = vunpack.c.l.b16 %v64
  %v403 = vunpack.c.h.b16 %v64
  %v404 = vunpack.c.l.b16 %v65
  %v405 = vunpack.c.h.b16 %v65
  %v406 = vunpack.c.l.b16 %v66
  %v407 = vunpack.c.h.b16 %v66
  %v408 = vunpack.c.l.b16 %v67
  %v409 = vunpack.c.h.b16 %v67
  %v410 = vunpack.c.l.b16 %v68
  %v411 = vunpack.c.h.b16 %v68
  %v412 = vunpack.c.l.b16 %v69
  %v413 = vunpack.c.h.b16 %v69
  %v414 = vunpack.c.l.b16 %v70
  %v415 = vunpack.c.h.b16 %v70
  %v416 = vunpack.c.l.b16 %v71
  %v417 = vunpack.c.h.b16 %v71
  %v418 = vunpack.c.l.b16 %v72
  %v419 = vunpack.c.h.b16 %v72
  %v420 = vunpack.c.l.b16 %v73
  %v421 = vunpack.c.h.b16 %v73
  %v422 = vunpack.c.l.b16 %v74
  %v423 = vunpack.c.h.b16 %v74
  %v424 = vunpack.c.l.b16 %v75
  %v425 = vunpack.c.h.b16 %v75
  %v426 = vunpack.c.l.b16 %v76
  %v427 = vunpack.c.h.b16 %v76
  %v428 = vunpack.c.l.b16 %v77
  %v429 = vunpack.c.h.b16 %v77
  %v430 = vpack.c.b16 %v368, %v366
  %v431 = vpack.c.b16 %v369, %v367
  %v432 = vpack.c.b16 %v372, %v370
  %v433 = vpack.c.b16 %v373, %v371
  %v434 = vpack.c.b16 %v376, %v374
  %v435 = vpack.c.b16 %v377, %v375
  %v436 = vpack.c.b16 %v380, %v378
  %v437 = vpack.c.b16 %v381, %v379
  %v438 = vpack.c.b16 %v384, %v382
  %v439 = vpack.c.b16 %v385, %v383
  %v440 = vpack.c.b16 %v388, %v386
  %v441 = vpack.c.b16 %v389, %v387
  %v442 = vpack.c.b16 %v392, %v390
  %v443 = vpack.c.b16 %v393, %v391
  %v444 = vpack.c.b16 %v396, %v394
  %v445 = vpack.c.b16 %v397, %v395
  %v446 = vpack.c.b16 %v400, %v398
  %v447 = vpack.c.b16 %v401, %v399
  %v448 = vpack.c.b16 %v404, %v402
  %v449 = vpack.c.b16 %v405, %v403
  %v450 = vpack.c.b16 %v408, %v406
  %v451 = vpack.c.b16 %v409, %v407
  %v452 = vpack.c.b16 %v412, %v410
  %v453 = vpack.c.b16 %v413, %v411
  %v454 = vpack.c.b16 %v416, %v414
  %v455 = vpack.c.b16 %v417, %v415
  %v456 = vpack.c.b16 %v420, %v418
  %v457 = vpack.c.b16 %v421, %v419
  %v458 = vpack.c.b16 %v424, %v422
  %v459 = vpack.c.b16 %v425, %v423
  %v460 = vpack.c.b16 %v428, %v426
  %v461 = vpack.c.b16 %v429, %v427
  %494 = vmatpush.bf16.xpose.msra.mxu0 %v444
  %495 = vmatpush.bf16.xpose.msra.mxu0 %v442
  %496 = vmatpush.bf16.xpose.msra.mxu0 %v440
  %497 = vmatpush.bf16.xpose.msra.mxu0 %v438
  %498 = vmatpush.bf16.xpose.msra.mxu0 %v436
  %499 = vmatpush.bf16.xpose.msra.mxu0 %v434
  %500 = vmatpush.bf16.xpose.msra.mxu0 %v432
  %501 = vmatpush.bf16.xpose.msra.mxu0 %v430
  %502 = vmatmul.bf16.gmra.mxu0 %v330
  %v503 = vpop.f32.mrf.mxu0
  %v504 = vadd.f32 0.0, %v503
  %v505 = vpop.f32.mrf.mxu0
  %506 = vdwg.mxu0
  %507 = vmatpush.bf16.xpose.msra.mxu0 %v445
  %508 = vmatpush.bf16.xpose.msra.mxu0 %v443
  %509 = vmatpush.bf16.xpose.msra.mxu0 %v441
  %510 = vmatpush.bf16.xpose.msra.mxu0 %v439
  %511 = vmatpush.bf16.xpose.msra.mxu0 %v437
  %512 = vmatpush.bf16.xpose.msra.mxu0 %v435
  %513 = vmatpush.bf16.xpose.msra.mxu0 %v433
  %514 = vmatpush.bf16.xpose.msra.mxu0 %v431
  %515 = vmatmul.bf16.gmra.mxu0 %v331
  %v516 = vpop.f32.mrf.mxu0
  %v517 = vadd.f32 %v504, %v516
  %v518 = vpop.f32.mrf.mxu0
  %519 = vdwg.mxu0
  %520 = vmatpush.bf16.xpose.msra.mxu0 %v460
  %521 = vmatpush.bf16.xpose.msra.mxu0 %v458
  %522 = vmatpush.bf16.xpose.msra.mxu0 %v456
  %523 = vmatpush.bf16.xpose.msra.mxu0 %v454
  %524 = vmatpush.bf16.xpose.msra.mxu0 %v452
  %525 = vmatpush.bf16.xpose.msra.mxu0 %v450
  %526 = vmatpush.bf16.xpose.msra.mxu0 %v448
  %527 = vmatpush.bf16.xpose.msra.mxu0 %v446
  %528 = vmatmul.bf16.gmra.mxu0 %v330
  %v529 = vpop.f32.mrf.mxu0
  %v530 = vadd.f32 0.0, %v529
  %v531 = vpop.f32.mrf.mxu0
  %532 = vdwg.mxu0
  %533 = vmatpush.bf16.xpose.msra.mxu0 %v461
  %534 = vmatpush.bf16.xpose.msra.mxu0 %v459
  %535 = vmatpush.bf16.xpose.msra.mxu0 %v457
  %536 = vmatpush.bf16.xpose.msra.mxu0 %v455
  %537 = vmatpush.bf16.xpose.msra.mxu0 %v453
  %538 = vmatpush.bf16.xpose.msra.mxu0 %v451
  %539 = vmatpush.bf16.xpose.msra.mxu0 %v449
  %540 = vmatpush.bf16.xpose.msra.mxu0 %v447
  %541 = vmatmul.bf16.gmra.mxu0 %v331
  %v542 = vpop.f32.mrf.mxu0
  %v543 = vadd.f32 %v530, %v542
  %v544 = vpop.f32.mrf.mxu0
  %545 = vdwg.mxu0
  %547 = vst [vmem:[#allocation1] ss:$9 sm:$0xff] %v13
  %v548 = vld [vmem:[#allocation1] sm:$0xff]
  %v549 = vld [vmem:[#allocation1 + $0x9] sm:$0xff]
  %v584 = vunpack.c.l.b16 %v78
  %v585 = vunpack.c.h.b16 %v78
  %v586 = vunpack.c.l.b16 %v79
  %v587 = vunpack.c.h.b16 %v79
  %v588 = vunpack.c.l.b16 %v80
  %v589 = vunpack.c.h.b16 %v80
  %v590 = vunpack.c.l.b16 %v81
  %v591 = vunpack.c.h.b16 %v81
  %v592 = vunpack.c.l.b16 %v82
  %v593 = vunpack.c.h.b16 %v82
  %v594 = vunpack.c.l.b16 %v83
  %v595 = vunpack.c.h.b16 %v83
  %v596 = vunpack.c.l.b16 %v84
  %v597 = vunpack.c.h.b16 %v84
  %v598 = vunpack.c.l.b16 %v85
  %v599 = vunpack.c.h.b16 %v85
  %v600 = vunpack.c.l.b16 %v86
  %v601 = vunpack.c.h.b16 %v86
  %v602 = vunpack.c.l.b16 %v87
  %v603 = vunpack.c.h.b16 %v87
  %v604 = vunpack.c.l.b16 %v88
  %v605 = vunpack.c.h.b16 %v88
  %v606 = vunpack.c.l.b16 %v89
  %v607 = vunpack.c.h.b16 %v89
  %v608 = vunpack.c.l.b16 %v90
  %v609 = vunpack.c.h.b16 %v90
  %v610 = vunpack.c.l.b16 %v91
  %v611 = vunpack.c.h.b16 %v91
  %v612 = vunpack.c.l.b16 %v92
  %v613 = vunpack.c.h.b16 %v92
  %v614 = vunpack.c.l.b16 %v93
  %v615 = vunpack.c.h.b16 %v93
  %v616 = vunpack.c.l.b16 %v94
  %v617 = vunpack.c.h.b16 %v94
  %v618 = vunpack.c.l.b16 %v95
  %v619 = vunpack.c.h.b16 %v95
  %v620 = vunpack.c.l.b16 %v96
  %v621 = vunpack.c.h.b16 %v96
  %v622 = vunpack.c.l.b16 %v97
  %v623 = vunpack.c.h.b16 %v97
  %v624 = vunpack.c.l.b16 %v98
  %v625 = vunpack.c.h.b16 %v98
  %v626 = vunpack.c.l.b16 %v99
  %v627 = vunpack.c.h.b16 %v99
  %v628 = vunpack.c.l.b16 %v100
  %v629 = vunpack.c.h.b16 %v100
  %v630 = vunpack.c.l.b16 %v101
  %v631 = vunpack.c.h.b16 %v101
  %v632 = vunpack.c.l.b16 %v102
  %v633 = vunpack.c.h.b16 %v102
  %v634 = vunpack.c.l.b16 %v103
  %v635 = vunpack.c.h.b16 %v103
  %v636 = vunpack.c.l.b16 %v104
  %v637 = vunpack.c.h.b16 %v104
  %v638 = vunpack.c.l.b16 %v105
  %v639 = vunpack.c.h.b16 %v105
  %v640 = vunpack.c.l.b16 %v106
  %v641 = vunpack.c.h.b16 %v106
  %v642 = vunpack.c.l.b16 %v107
  %v643 = vunpack.c.h.b16 %v107
  %v644 = vunpack.c.l.b16 %v108
  %v645 = vunpack.c.h.b16 %v108
  %v646 = vunpack.c.l.b16 %v109
  %v647 = vunpack.c.h.b16 %v109
  %v648 = vpack.c.b16 %v586, %v584
  %v649 = vpack.c.b16 %v587, %v585
  %v650 = vpack.c.b16 %v590, %v588
  %v651 = vpack.c.b16 %v591, %v589
  %v652 = vpack.c.b16 %v594, %v592
  %v653 = vpack.c.b16 %v595, %v593
  %v654 = vpack.c.b16 %v598, %v596
  %v655 = vpack.c.b16 %v599, %v597
  %v656 = vpack.c.b16 %v602, %v600
  %v657 = vpack.c.b16 %v603, %v601
  %v658 = vpack.c.b16 %v606, %v604
  %v659 = vpack.c.b16 %v607, %v605
  %v660 = vpack.c.b16 %v610, %v608
  %v661 = vpack.c.b16 %v611, %v609
  %v662 = vpack.c.b16 %v614, %v612
  %v663 = vpack.c.b16 %v615, %v613
  %v664 = vpack.c.b16 %v618, %v616
  %v665 = vpack.c.b16 %v619, %v617
  %v666 = vpack.c.b16 %v622, %v620
  %v667 = vpack.c.b16 %v623, %v621
  %v668 = vpack.c.b16 %v626, %v624
  %v669 = vpack.c.b16 %v627, %v625
  %v670 = vpack.c.b16 %v630, %v628
  %v671 = vpack.c.b16 %v631, %v629
  %v672 = vpack.c.b16 %v634, %v632
  %v673 = vpack.c.b16 %v635, %v633
  %v674 = vpack.c.b16 %v638, %v636
  %v675 = vpack.c.b16 %v639, %v637
  %v676 = vpack.c.b16 %v642, %v640
  %v677 = vpack.c.b16 %v643, %v641
  %v678 = vpack.c.b16 %v646, %v644
  %v679 = vpack.c.b16 %v647, %v645
  %712 = vmatpush.bf16.xpose.msra.mxu0 %v662
  %713 = vmatpush.bf16.xpose.msra.mxu0 %v660
  %714 = vmatpush.bf16.xpose.msra.mxu0 %v658
  %715 = vmatpush.bf16.xpose.msra.mxu0 %v656
  %716 = vmatpush.bf16.xpose.msra.mxu0 %v654
  %717 = vmatpush.bf16.xpose.msra.mxu0 %v652
  %718 = vmatpush.bf16.xpose.msra.mxu0 %v650
  %719 = vmatpush.bf16.xpose.msra.mxu0 %v648
  %720 = vmatmul.bf16.gmra.mxu0 %v548
  %v721 = vpop.f32.mrf.mxu0
  %v722 = vadd.f32 0.0, %v721
  %v723 = vpop.f32.mrf.mxu0
  %724 = vdwg.mxu0
  %725 = vmatpush.bf16.xpose.msra.mxu0 %v663
  %726 = vmatpush.bf16.xpose.msra.mxu0 %v661
  %727 = vmatpush.bf16.xpose.msra.mxu0 %v659
  %728 = vmatpush.bf16.xpose.msra.mxu0 %v657
  %729 = vmatpush.bf16.xpose.msra.mxu0 %v655
  %730 = vmatpush.bf16.xpose.msra.mxu0 %v653
  %731 = vmatpush.bf16.xpose.msra.mxu0 %v651
  %732 = vmatpush.bf16.xpose.msra.mxu0 %v649
  %733 = vmatmul.bf16.gmra.mxu0 %v549
  %v734 = vpop.f32.mrf.mxu0
  %v735 = vadd.f32 %v722, %v734
  %v736 = vpop.f32.mrf.mxu0
  %737 = vdwg.mxu0
  %738 = vmatpush.bf16.xpose.msra.mxu0 %v678
  %739 = vmatpush.bf16.xpose.msra.mxu0 %v676
  %740 = vmatpush.bf16.xpose.msra.mxu0 %v674
  %741 = vmatpush.bf16.xpose.msra.mxu0 %v672
  %742 = vmatpush.bf16.xpose.msra.mxu0 %v670
  %743 = vmatpush.bf16.xpose.msra.mxu0 %v668
  %744 = vmatpush.bf16.xpose.msra.mxu0 %v666
  %745 = vmatpush.bf16.xpose.msra.mxu0 %v664
  %746 = vmatmul.bf16.gmra.mxu0 %v548
  %v747 = vpop.f32.mrf.mxu0
  %v748 = vadd.f32 0.0, %v747
  %v749 = vpop.f32.mrf.mxu0
  %750 = vdwg.mxu0
  %751 = vmatpush.bf16.xpose.msra.mxu0 %v679
  %752 = vmatpush.bf16.xpose.msra.mxu0 %v677
  %753 = vmatpush.bf16.xpose.msra.mxu0 %v675
  %754 = vmatpush.bf16.xpose.msra.mxu0 %v673
  %755 = vmatpush.bf16.xpose.msra.mxu0 %v671
  %756 = vmatpush.bf16.xpose.msra.mxu0 %v669
  %757 = vmatpush.bf16.xpose.msra.mxu0 %v667
  %758 = vmatpush.bf16.xpose.msra.mxu0 %v665
  %759 = vmatmul.bf16.gmra.mxu0 %v549
  %v760 = vpop.f32.mrf.mxu0
  %v761 = vadd.f32 %v748, %v760
  %v762 = vpop.f32.mrf.mxu0
  %763 = vdwg.mxu0
  %v770 = vrot.slane %v325, 6
  %v771 = vrot.slane %v543, 6
  %v772 = vrot.slane %v761, 6
  %vm773 = vcmask 1041408
  %v774 = vsel %vm773, %v299, %v770
  %v775 = vsel %vm773, %v517, %v771
  %v776 = vsel %vm773, %v735, %v772
  %780 = vst [vmem:[%s2] sm:$0xf] %v774
  %781 = vst [vmem:[%s2 + $0x4] sm:$0xf] %v775
  %782 = vst [vmem:[%s2 + $0x8] sm:$0xf] %v776
  // Predicated region
  $region10: #{yakir_forward.27} parent=0 // pred_check
    _
  $region11: #{yakir_forward.27} parent=0 // pred_check_branch
    %784 = sbr.rel (0) target = $region13
  $region12: #{yakir_forward.27} parent=0 // pred_region
    _
  $region13: #{yakir_forward.27} parent=0 // pred_fallthru
    _
  // Predicated region
  $region14: #{yakir_forward.27} parent=0 // pred_check
    _
  $region15: #{yakir_forward.27} parent=0 // pred_check_branch
    %786 = sbr.rel (0) target = $region17
  $region16: #{yakir_forward.27} parent=0 // pred_region
    _
  $region17: #{yakir_forward.27} parent=0 // pred_fallthru
    _

// kernel: yakir_forward.30
$region0: #{yakir_forward.30}
  #allocation0 [shape = 'u32[]', space=smem, size = 0x4, offset = 0x4, fixed_abs, tag = 'smem constant byte address 0x4 - core index']
  #allocation1 [shape = 'u32[72,128]{1,0:T(1,128)}', space=vmem, size = 0x9000, scoped, tag = 'internal scratch']
  %s0 = inlined_call_operand.vmem [shape: bf16[2,2,256], index: 0, kind: input, shape index: {}]
  %s1 = inlined_call_operand.vmem [shape: bf16[2,256,256], index: 1, kind: input, shape index: {}]
  %s2 = inlined_call_operand.vmem [shape: f32[2,2,256], index: 2, kind: output, shape index: {}]
  %s3 = sld [smem:[#allocation0]]
  $region18: #{yakir_forward.30} parent=0
    _
  %s5 = ssub.s32 1, %s3
  %s6 = scalar_select 0, %s5, %s3
  // Predicated region
  $region2: #{yakir_forward.30} parent=0 // pred_check
    _
  $region3: #{yakir_forward.30} parent=0 // pred_check_branch
    %8 = sbr.rel (0) target = $region5
  $region4: #{yakir_forward.30} parent=0 // pred_region
    _
  $region5: #{yakir_forward.30} parent=0 // pred_fallthru
    _
  // Predicated region
  $region6: #{yakir_forward.30} parent=0 // pred_check
    _
  $region7: #{yakir_forward.30} parent=0 // pred_check_branch
    %10 = sbr.rel (0) target = $region9
  $region8: #{yakir_forward.30} parent=0 // pred_region
    _
  $region9: #{yakir_forward.30} parent=0 // pred_fallthru
    _
  %v11 = vld [vmem:[%s0] sm:$0x3]
  %v12 = vld [vmem:[%s0 + $0x2] sm:$0x3]
  %v13 = vld [vmem:[%s1] sm:$0xff]
  %v14 = vld [vmem:[%s1 + $0x8] sm:$0xff]
  %v15 = vld [vmem:[%s1 + $0x10] sm:$0xff]
  %v16 = vld [vmem:[%s1 + $0x18] sm:$0xff]
  %v17 = vld [vmem:[%s1 + $0x20] sm:$0xff]
  %v18 = vld [vmem:[%s1 + $0x28] sm:$0xff]
  %v19 = vld [vmem:[%s1 + $0x30] sm:$0xff]
  %v20 = vld [vmem:[%s1 + $0x38] sm:$0xff]
  %v21 = vld [vmem:[%s1 + $0x40] sm:$0xff]
  %v22 = vld [vmem:[%s1 + $0x48] sm:$0xff]
  %v23 = vld [vmem:[%s1 + $0x50] sm:$0xff]
  %v24 = vld [vmem:[%s1 + $0x58] sm:$0xff]
  %v25 = vld [vmem:[%s1 + $0x60] sm:$0xff]
  %v26 = vld [vmem:[%s1 + $0x68] sm:$0xff]
  %v27 = vld [vmem:[%s1 + $0x70] sm:$0xff]
  %v28 = vld [vmem:[%s1 + $0x78] sm:$0xff]
  %v29 = vld [vmem:[%s1 + $0x80] sm:$0xff]
  %v30 = vld [vmem:[%s1 + $0x88] sm:$0xff]
  %v31 = vld [vmem:[%s1 + $0x90] sm:$0xff]
  %v32 = vld [vmem:[%s1 + $0x98] sm:$0xff]
  %v33 = vld [vmem:[%s1 + $0xa0] sm:$0xff]
  %v34 = vld [vmem:[%s1 + $0xa8] sm:$0xff]
  %v35 = vld [vmem:[%s1 + $0xb0] sm:$0xff]
  %v36 = vld [vmem:[%s1 + $0xb8] sm:$0xff]
  %v37 = vld [vmem:[%s1 + $0xc0] sm:$0xff]
  %v38 = vld [vmem:[%s1 + $0xc8] sm:$0xff]
  %v39 = vld [vmem:[%s1 + $0xd0] sm:$0xff]
  %v40 = vld [vmem:[%s1 + $0xd8] sm:$0xff]
  %v41 = vld [vmem:[%s1 + $0xe0] sm:$0xff]
  %v42 = vld [vmem:[%s1 + $0xe8] sm:$0xff]
  %v43 = vld [vmem:[%s1 + $0xf0] sm:$0xff]
  %v44 = vld [vmem:[%s1 + $0xf8] sm:$0xff]
  %v45 = vld [vmem:[%s1 + $0x100] sm:$0xff]
  %v46 = vld [vmem:[%s1 + $0x108] sm:$0xff]
  %v47 = vld [vmem:[%s1 + $0x110] sm:$0xff]
  %v48 = vld [vmem:[%s1 + $0x118] sm:$0xff]
  %v49 = vld [vmem:[%s1 + $0x120] sm:$0xff]
  %v50 = vld [vmem:[%s1 + $0x128] sm:$0xff]
  %v51 = vld [vmem:[%s1 + $0x130] sm:$0xff]
  %v52 = vld [vmem:[%s1 + $0x138] sm:$0xff]
  %v53 = vld [vmem:[%s1 + $0x140] sm:$0xff]
  %v54 = vld [vmem:[%s1 + $0x148] sm:$0xff]
  %v55 = vld [vmem:[%s1 + $0x150] sm:$0xff]
  %v56 = vld [vmem:[%s1 + $0x158] sm:$0xff]
  %v57 = vld [vmem:[%s1 + $0x160] sm:$0xff]
  %v58 = vld [vmem:[%s1 + $0x168] sm:$0xff]
  %v59 = vld [vmem:[%s1 + $0x170] sm:$0xff]
  %v60 = vld [vmem:[%s1 + $0x178] sm:$0xff]
  %v61 = vld [vmem:[%s1 + $0x180] sm:$0xff]
  %v62 = vld [vmem:[%s1 + $0x188] sm:$0xff]
  %v63 = vld [vmem:[%s1 + $0x190] sm:$0xff]
  %v64 = vld [vmem:[%s1 + $0x198] sm:$0xff]
  %v65 = vld [vmem:[%s1 + $0x1a0] sm:$0xff]
  %v66 = vld [vmem:[%s1 + $0x1a8] sm:$0xff]
  %v67 = vld [vmem:[%s1 + $0x1b0] sm:$0xff]
  %v68 = vld [vmem:[%s1 + $0x1b8] sm:$0xff]
  %v69 = vld [vmem:[%s1 + $0x1c0] sm:$0xff]
  %v70 = vld [vmem:[%s1 + $0x1c8] sm:$0xff]
  %v71 = vld [vmem:[%s1 + $0x1d0] sm:$0xff]
  %v72 = vld [vmem:[%s1 + $0x1d8] sm:$0xff]
  %v73 = vld [vmem:[%s1 + $0x1e0] sm:$0xff]
  %v74 = vld [vmem:[%s1 + $0x1e8] sm:$0xff]
  %v75 = vld [vmem:[%s1 + $0x1f0] sm:$0xff]
  %v76 = vld [vmem:[%s1 + $0x1f8] sm:$0xff]
  %78 = vst [vmem:[#allocation1] ss:$9 sm:$0xff] %v11
  %v79 = vld [vmem:[#allocation1] sm:$0xff]
  %v80 = vld [vmem:[#allocation1 + $0x9] sm:$0xff]
  %v115 = vunpack.c.l.b16 %v13
  %v116 = vunpack.c.h.b16 %v13
  %v117 = vunpack.c.l.b16 %v14
  %v118 = vunpack.c.h.b16 %v14
  %v119 = vunpack.c.l.b16 %v15
  %v120 = vunpack.c.h.b16 %v15
  %v121 = vunpack.c.l.b16 %v16
  %v122 = vunpack.c.h.b16 %v16
  %v123 = vunpack.c.l.b16 %v17
  %v124 = vunpack.c.h.b16 %v17
  %v125 = vunpack.c.l.b16 %v18
  %v126 = vunpack.c.h.b16 %v18
  %v127 = vunpack.c.l.b16 %v19
  %v128 = vunpack.c.h.b16 %v19
  %v129 = vunpack.c.l.b16 %v20
  %v130 = vunpack.c.h.b16 %v20
  %v131 = vunpack.c.l.b16 %v21
  %v132 = vunpack.c.h.b16 %v21
  %v133 = vunpack.c.l.b16 %v22
  %v134 = vunpack.c.h.b16 %v22
  %v135 = vunpack.c.l.b16 %v23
  %v136 = vunpack.c.h.b16 %v23
  %v137 = vunpack.c.l.b16 %v24
  %v138 = vunpack.c.h.b16 %v24
  %v139 = vunpack.c.l.b16 %v25
  %v140 = vunpack.c.h.b16 %v25
  %v141 = vunpack.c.l.b16 %v26
  %v142 = vunpack.c.h.b16 %v26
  %v143 = vunpack.c.l.b16 %v27
  %v144 = vunpack.c.h.b16 %v27
  %v145 = vunpack.c.l.b16 %v28
  %v146 = vunpack.c.h.b16 %v28
  %v147 = vunpack.c.l.b16 %v29
  %v148 = vunpack.c.h.b16 %v29
  %v149 = vunpack.c.l.b16 %v30
  %v150 = vunpack.c.h.b16 %v30
  %v151 = vunpack.c.l.b16 %v31
  %v152 = vunpack.c.h.b16 %v31
  %v153 = vunpack.c.l.b16 %v32
  %v154 = vunpack.c.h.b16 %v32
  %v155 = vunpack.c.l.b16 %v33
  %v156 = vunpack.c.h.b16 %v33
  %v157 = vunpack.c.l.b16 %v34
  %v158 = vunpack.c.h.b16 %v34
  %v159 = vunpack.c.l.b16 %v35
  %v160 = vunpack.c.h.b16 %v35
  %v161 = vunpack.c.l.b16 %v36
  %v162 = vunpack.c.h.b16 %v36
  %v163 = vunpack.c.l.b16 %v37
  %v164 = vunpack.c.h.b16 %v37
  %v165 = vunpack.c.l.b16 %v38
  %v166 = vunpack.c.h.b16 %v38
  %v167 = vunpack.c.l.b16 %v39
  %v168 = vunpack.c.h.b16 %v39
  %v169 = vunpack.c.l.b16 %v40
  %v170 = vunpack.c.h.b16 %v40
  %v171 = vunpack.c.l.b16 %v41
  %v172 = vunpack.c.h.b16 %v41
  %v173 = vunpack.c.l.b16 %v42
  %v174 = vunpack.c.h.b16 %v42
  %v175 = vunpack.c.l.b16 %v43
  %v176 = vunpack.c.h.b16 %v43
  %v177 = vunpack.c.l.b16 %v44
  %v178 = vunpack.c.h.b16 %v44
  %v179 = vpack.c.b16 %v117, %v115
  %v180 = vpack.c.b16 %v118, %v116
  %v181 = vpack.c.b16 %v121, %v119
  %v182 = vpack.c.b16 %v122, %v120
  %v183 = vpack.c.b16 %v125, %v123
  %v184 = vpack.c.b16 %v126, %v124
  %v185 = vpack.c.b16 %v129, %v127
  %v186 = vpack.c.b16 %v130, %v128
  %v187 = vpack.c.b16 %v133, %v131
  %v188 = vpack.c.b16 %v134, %v132
  %v189 = vpack.c.b16 %v137, %v135
  %v190 = vpack.c.b16 %v138, %v136
  %v191 = vpack.c.b16 %v141, %v139
  %v192 = vpack.c.b16 %v142, %v140
  %v193 = vpack.c.b16 %v145, %v143
  %v194 = vpack.c.b16 %v146, %v144
  %v195 = vpack.c.b16 %v149, %v147
  %v196 = vpack.c.b16 %v150, %v148
  %v197 = vpack.c.b16 %v153, %v151
  %v198 = vpack.c.b16 %v154, %v152
  %v199 = vpack.c.b16 %v157, %v155
  %v200 = vpack.c.b16 %v158, %v156
  %v201 = vpack.c.b16 %v161, %v159
  %v202 = vpack.c.b16 %v162, %v160
  %v203 = vpack.c.b16 %v165, %v163
  %v204 = vpack.c.b16 %v166, %v164
  %v205 = vpack.c.b16 %v169, %v167
  %v206 = vpack.c.b16 %v170, %v168
  %v207 = vpack.c.b16 %v173, %v171
  %v208 = vpack.c.b16 %v174, %v172
  %v209 = vpack.c.b16 %v177, %v175
  %v210 = vpack.c.b16 %v178, %v176
  %243 = vmatpush.bf16.xpose.msra.mxu0 %v193
  %244 = vmatpush.bf16.xpose.msra.mxu0 %v191
  %245 = vmatpush.bf16.xpose.msra.mxu0 %v189
  %246 = vmatpush.bf16.xpose.msra.mxu0 %v187
  %247 = vmatpush.bf16.xpose.msra.mxu0 %v185
  %248 = vmatpush.bf16.xpose.msra.mxu0 %v183
  %249 = vmatpush.bf16.xpose.msra.mxu0 %v181
  %250 = vmatpush.bf16.xpose.msra.mxu0 %v179
  %251 = vmatmul.bf16.gmra.mxu0 %v79
  %v252 = vpop.f32.mrf.mxu0
  %v253 = vadd.f32 0.0, %v252
  %v254 = vpop.f32.mrf.mxu0
  %255 = vdwg.mxu0
  %256 = vmatpush.bf16.xpose.msra.mxu0 %v194
  %257 = vmatpush.bf16.xpose.msra.mxu0 %v192
  %258 = vmatpush.bf16.xpose.msra.mxu0 %v190
  %259 = vmatpush.bf16.xpose.msra.mxu0 %v188
  %260 = vmatpush.bf16.xpose.msra.mxu0 %v186
  %261 = vmatpush.bf16.xpose.msra.mxu0 %v184
  %262 = vmatpush.bf16.xpose.msra.mxu0 %v182
  %263 = vmatpush.bf16.xpose.msra.mxu0 %v180
  %264 = vmatmul.bf16.gmra.mxu0 %v80
  %v265 = vpop.f32.mrf.mxu0
  %v266 = vadd.f32 %v253, %v265
  %v267 = vpop.f32.mrf.mxu0
  %268 = vdwg.mxu0
  %269 = vmatpush.bf16.xpose.msra.mxu0 %v209
  %270 = vmatpush.bf16.xpose.msra.mxu0 %v207
  %271 = vmatpush.bf16.xpose.msra.mxu0 %v205
  %272 = vmatpush.bf16.xpose.msra.mxu0 %v203
  %273 = vmatpush.bf16.xpose.msra.mxu0 %v201
  %274 = vmatpush.bf16.xpose.msra.mxu0 %v199
  %275 = vmatpush.bf16.xpose.msra.mxu0 %v197
  %276 = vmatpush.bf16.xpose.msra.mxu0 %v195
  %277 = vmatmul.bf16.gmra.mxu0 %v79
  %v278 = vpop.f32.mrf.mxu0
  %v279 = vadd.f32 0.0, %v278
  %v280 = vpop.f32.mrf.mxu0
  %281 = vdwg.mxu0
  %282 = vmatpush.bf16.xpose.msra.mxu0 %v210
  %283 = vmatpush.bf16.xpose.msra.mxu0 %v208
  %284 = vmatpush.bf16.xpose.msra.mxu0 %v206
  %285 = vmatpush.bf16.xpose.msra.mxu0 %v204
  %286 = vmatpush.bf16.xpose.msra.mxu0 %v202
  %287 = vmatpush.bf16.xpose.msra.mxu0 %v200
  %288 = vmatpush.bf16.xpose.msra.mxu0 %v198
  %289 = vmatpush.bf16.xpose.msra.mxu0 %v196
  %290 = vmatmul.bf16.gmra.mxu0 %v80
  %v291 = vpop.f32.mrf.mxu0
  %v292 = vadd.f32 %v279, %v291
  %v293 = vpop.f32.mrf.mxu0
  %294 = vdwg.mxu0
  %296 = vst [vmem:[#allocation1] ss:$9 sm:$0xff] %v12
  %v297 = vld [vmem:[#allocation1] sm:$0xff]
  %v298 = vld [vmem:[#allocation1 + $0x9] sm:$0xff]
  %v333 = vunpack.c.l.b16 %v45
  %v334 = vunpack.c.h.b16 %v45
  %v335 = vunpack.c.l.b16 %v46
  %v336 = vunpack.c.h.b16 %v46
  %v337 = vunpack.c.l.b16 %v47
  %v338 = vunpack.c.h.b16 %v47
  %v339 = vunpack.c.l.b16 %v48
  %v340 = vunpack.c.h.b16 %v48
  %v341 = vunpack.c.l.b16 %v49
  %v342 = vunpack.c.h.b16 %v49
  %v343 = vunpack.c.l.b16 %v50
  %v344 = vunpack.c.h.b16 %v50
  %v345 = vunpack.c.l.b16 %v51
  %v346 = vunpack.c.h.b16 %v51
  %v347 = vunpack.c.l.b16 %v52
  %v348 = vunpack.c.h.b16 %v52
  %v349 = vunpack.c.l.b16 %v53
  %v350 = vunpack.c.h.b16 %v53
  %v351 = vunpack.c.l.b16 %v54
  %v352 = vunpack.c.h.b16 %v54
  %v353 = vunpack.c.l.b16 %v55
  %v354 = vunpack.c.h.b16 %v55
  %v355 = vunpack.c.l.b16 %v56
  %v356 = vunpack.c.h.b16 %v56
  %v357 = vunpack.c.l.b16 %v57
  %v358 = vunpack.c.h.b16 %v57
  %v359 = vunpack.c.l.b16 %v58
  %v360 = vunpack.c.h.b16 %v58
  %v361 = vunpack.c.l.b16 %v59
  %v362 = vunpack.c.h.b16 %v59
  %v363 = vunpack.c.l.b16 %v60
  %v364 = vunpack.c.h.b16 %v60
  %v365 = vunpack.c.l.b16 %v61
  %v366 = vunpack.c.h.b16 %v61
  %v367 = vunpack.c.l.b16 %v62
  %v368 = vunpack.c.h.b16 %v62
  %v369 = vunpack.c.l.b16 %v63
  %v370 = vunpack.c.h.b16 %v63
  %v371 = vunpack.c.l.b16 %v64
  %v372 = vunpack.c.h.b16 %v64
  %v373 = vunpack.c.l.b16 %v65
  %v374 = vunpack.c.h.b16 %v65
  %v375 = vunpack.c.l.b16 %v66
  %v376 = vunpack.c.h.b16 %v66
  %v377 = vunpack.c.l.b16 %v67
  %v378 = vunpack.c.h.b16 %v67
  %v379 = vunpack.c.l.b16 %v68
  %v380 = vunpack.c.h.b16 %v68
  %v381 = vunpack.c.l.b16 %v69
  %v382 = vunpack.c.h.b16 %v69
  %v383 = vunpack.c.l.b16 %v70
  %v384 = vunpack.c.h.b16 %v70
  %v385 = vunpack.c.l.b16 %v71
  %v386 = vunpack.c.h.b16 %v71
  %v387 = vunpack.c.l.b16 %v72
  %v388 = vunpack.c.h.b16 %v72
  %v389 = vunpack.c.l.b16 %v73
  %v390 = vunpack.c.h.b16 %v73
  %v391 = vunpack.c.l.b16 %v74
  %v392 = vunpack.c.h.b16 %v74
  %v393 = vunpack.c.l.b16 %v75
  %v394 = vunpack.c.h.b16 %v75
  %v395 = vunpack.c.l.b16 %v76
  %v396 = vunpack.c.h.b16 %v76
  %v397 = vpack.c.b16 %v335, %v333
  %v398 = vpack.c.b16 %v336, %v334
  %v399 = vpack.c.b16 %v339, %v337
  %v400 = vpack.c.b16 %v340, %v338
  %v401 = vpack.c.b16 %v343, %v341
  %v402 = vpack.c.b16 %v344, %v342
  %v403 = vpack.c.b16 %v347, %v345
  %v404 = vpack.c.b16 %v348, %v346
  %v405 = vpack.c.b16 %v351, %v349
  %v406 = vpack.c.b16 %v352, %v350
  %v407 = vpack.c.b16 %v355, %v353
  %v408 = vpack.c.b16 %v356, %v354
  %v409 = vpack.c.b16 %v359, %v357
  %v410 = vpack.c.b16 %v360, %v358
  %v411 = vpack.c.b16 %v363, %v361
  %v412 = vpack.c.b16 %v364, %v362
  %v413 = vpack.c.b16 %v367, %v365
  %v414 = vpack.c.b16 %v368, %v366
  %v415 = vpack.c.b16 %v371, %v369
  %v416 = vpack.c.b16 %v372, %v370
  %v417 = vpack.c.b16 %v375, %v373
  %v418 = vpack.c.b16 %v376, %v374
  %v419 = vpack.c.b16 %v379, %v377
  %v420 = vpack.c.b16 %v380, %v378
  %v421 = vpack.c.b16 %v383, %v381
  %v422 = vpack.c.b16 %v384, %v382
  %v423 = vpack.c.b16 %v387, %v385
  %v424 = vpack.c.b16 %v388, %v386
  %v425 = vpack.c.b16 %v391, %v389
  %v426 = vpack.c.b16 %v392, %v390
  %v427 = vpack.c.b16 %v395, %v393
  %v428 = vpack.c.b16 %v396, %v394
  %461 = vmatpush.bf16.xpose.msra.mxu0 %v411
  %462 = vmatpush.bf16.xpose.msra.mxu0 %v409
  %463 = vmatpush.bf16.xpose.msra.mxu0 %v407
  %464 = vmatpush.bf16.xpose.msra.mxu0 %v405
  %465 = vmatpush.bf16.xpose.msra.mxu0 %v403
  %466 = vmatpush.bf16.xpose.msra.mxu0 %v401
  %467 = vmatpush.bf16.xpose.msra.mxu0 %v399
  %468 = vmatpush.bf16.xpose.msra.mxu0 %v397
  %469 = vmatmul.bf16.gmra.mxu0 %v297
  %v470 = vpop.f32.mrf.mxu0
  %v471 = vadd.f32 0.0, %v470
  %v472 = vpop.f32.mrf.mxu0
  %473 = vdwg.mxu0
  %474 = vmatpush.bf16.xpose.msra.mxu0 %v412
  %475 = vmatpush.bf16.xpose.msra.mxu0 %v410
  %476 = vmatpush.bf16.xpose.msra.mxu0 %v408
  %477 = vmatpush.bf16.xpose.msra.mxu0 %v406
  %478 = vmatpush.bf16.xpose.msra.mxu0 %v404
  %479 = vmatpush.bf16.xpose.msra.mxu0 %v402
  %480 = vmatpush.bf16.xpose.msra.mxu0 %v400
  %481 = vmatpush.bf16.xpose.msra.mxu0 %v398
  %482 = vmatmul.bf16.gmra.mxu0 %v298
  %v483 = vpop.f32.mrf.mxu0
  %v484 = vadd.f32 %v471, %v483
  %v485 = vpop.f32.mrf.mxu0
  %486 = vdwg.mxu0
  %487 = vmatpush.bf16.xpose.msra.mxu0 %v427
  %488 = vmatpush.bf16.xpose.msra.mxu0 %v425
  %489 = vmatpush.bf16.xpose.msra.mxu0 %v423
  %490 = vmatpush.bf16.xpose.msra.mxu0 %v421
  %491 = vmatpush.bf16.xpose.msra.mxu0 %v419
  %492 = vmatpush.bf16.xpose.msra.mxu0 %v417
  %493 = vmatpush.bf16.xpose.msra.mxu0 %v415
  %494 = vmatpush.bf16.xpose.msra.mxu0 %v413
  %495 = vmatmul.bf16.gmra.mxu0 %v297
  %v496 = vpop.f32.mrf.mxu0
  %v497 = vadd.f32 0.0, %v496
  %v498 = vpop.f32.mrf.mxu0
  %499 = vdwg.mxu0
  %500 = vmatpush.bf16.xpose.msra.mxu0 %v428
  %501 = vmatpush.bf16.xpose.msra.mxu0 %v426
  %502 = vmatpush.bf16.xpose.msra.mxu0 %v424
  %503 = vmatpush.bf16.xpose.msra.mxu0 %v422
  %504 = vmatpush.bf16.xpose.msra.mxu0 %v420
  %505 = vmatpush.bf16.xpose.msra.mxu0 %v418
  %506 = vmatpush.bf16.xpose.msra.mxu0 %v416
  %507 = vmatpush.bf16.xpose.msra.mxu0 %v414
  %508 = vmatmul.bf16.gmra.mxu0 %v298
  %v509 = vpop.f32.mrf.mxu0
  %v510 = vadd.f32 %v497, %v509
  %v511 = vpop.f32.mrf.mxu0
  %512 = vdwg.mxu0
  %v517 = vrot.slane %v292, 6
  %v518 = vrot.slane %v510, 6
  %vm519 = vcmask 1041408
  %v520 = vsel %vm519, %v266, %v517
  %v521 = vsel %vm519, %v484, %v518
  %524 = vst [vmem:[%s2] sm:$0xf] %v520
  %525 = vst [vmem:[%s2 + $0x4] sm:$0xf] %v521
  // Predicated region
  $region10: #{yakir_forward.30} parent=0 // pred_check
    _
  $region11: #{yakir_forward.30} parent=0 // pred_check_branch
    %527 = sbr.rel (0) target = $region13
  $region12: #{yakir_forward.30} parent=0 // pred_region
    _
  $region13: #{yakir_forward.30} parent=0 // pred_fallthru
    _
  // Predicated region
  $region14: #{yakir_forward.30} parent=0 // pred_check
    _
  $region15: #{yakir_forward.30} parent=0 // pred_check_branch
    %529 = sbr.rel (0) target = $region17
  $region16: #{yakir_forward.30} parent=0 // pred_region
    _
  $region17: #{yakir_forward.30} parent=0 // pred_fallthru
    _

// kernel: yakir_forward.31
$region0: #{yakir_forward.31}
  #allocation0 [shape = 'u32[]', space=smem, size = 0x4, offset = 0x4, fixed_abs, tag = 'smem constant byte address 0x4 - core index']
  #allocation1 [shape = 'u32[72,128]{1,0:T(1,128)}', space=vmem, size = 0x9000, scoped, tag = 'internal scratch']
  %s0 = inlined_call_operand.vmem [shape: f32[2,2,128], index: 0, kind: input, shape index: {}]
  %s1 = inlined_call_operand.vmem [shape: f32[2,2,128], index: 1, kind: output, shape index: {}]
  %s2 = sld [smem:[#allocation0]]
  $region37: #{yakir_forward.31} parent=0
    _
  %s4 = ssub.s32 1, %s2
  %s5 = scalar_select 0, %s4, %s2
  loop: start=0, step=1, limit=4
  $region2: #{yakir_forward.31} parent=0 // loop_pre_header
    _
  $region3: #{yakir_forward.31} parent=0 // loop_header
    %s7 = sphi 0, %s11
    %p8 = scmp.ge.s32.totalorder %s7, 4
    %s17 = sphi 0, %s19
    %s20 = sphi 0, %s17
    %s21 = sphi 0, %s20
    %s37 = sphi 0, %s21
    %s43 = sphi 0, %s45
    %s46 = sphi 0, %s43
    %s47 = sphi 0, %s46
    %s63 = sphi 0, %s47
  $region4: #{yakir_forward.31} parent=0 // loop_header_branch
    %10 = sbr.rel (%p8) target = $region8
  $region5: #{yakir_forward.31} parent=0 // loop_body
    %s12 = ssub.s32 %s7, 1
    %s13 = ssub.s32 %s7, 2
    %s14 = sadd.s32 %s7, 1
    %s15 = ssub.s32 %s7, %s14
    %p16 = scmp.eq.s32.totalorder %s15, 0
    %s18 = sadd.s32 %s17, 1
    %s19 = scalar_select %p16, %s17, %s18
    %p22 = pneg %p16
    %p23 = scmp.eq.s32.totalorder %s7, 1
    %p24 = por %p22, %p23
    %p25 = scmp.ne.s32.totalorder %s17, %s20
    %p26 = scmp.eq.s32.totalorder %s7, 0
    %p27 = por %p25, %p26
    %p28 = scmp.ne.s32.totalorder %s17, %s20
    %p29 = scmp.eq.s32.totalorder %s12, 1
    %p30 = por %p28, %p29
    %p31 = scmp.ne.s32.totalorder %s20, %s21
    %p32 = scmp.eq.s32.totalorder %s12, 0
    %p33 = por %p31, %p32
    %p34 = scmp.ne.s32.totalorder %s20, %s21
    %p35 = scmp.eq.s32.totalorder %s13, 1
    %p36 = por %p34, %p35
    %p38 = scmp.ne.s32.totalorder %s21, %s37
    %p39 = scmp.eq.s32.totalorder %s13, 0
    %p40 = por %p38, %p39
    %s41 = ssub.s32 %s7, %s14
    %p42 = scmp.eq.s32.totalorder %s41, 0
    %s44 = sadd.s32 %s43, 1
    %s45 = scalar_select %p42, %s43, %s44
    %p48 = pneg %p42
    %p49 = scmp.eq.s32.totalorder %s7, 1
    %p50 = por %p48, %p49
    %p51 = scmp.ne.s32.totalorder %s43, %s46
    %p52 = scmp.eq.s32.totalorder %s7, 0
    %p53 = por %p51, %p52
    %p54 = scmp.ne.s32.totalorder %s43, %s46
    %p55 = scmp.eq.s32.totalorder %s12, 1
    %p56 = por %p54, %p55
    %p57 = scmp.ne.s32.totalorder %s46, %s47
    %p58 = scmp.eq.s32.totalorder %s12, 0
    %p59 = por %p57, %p58
    %p60 = scmp.ne.s32.totalorder %s46, %s47
    %p61 = scmp.eq.s32.totalorder %s13, 1
    %p62 = por %p60, %p61
    %p64 = scmp.ne.s32.totalorder %s47, %s63
    %p65 = scmp.eq.s32.totalorder %s13, 0
    %p66 = por %p64, %p65
    %p67 = scmp.le.s32.totalorder 1, %s7
    %p68 = scmp.lt.s32.totalorder %s7, 3
    %p69 = pnand %p67, %p68
    %p70 = pneg %p69
    // Predicated region
    $region9: #{yakir_forward.31} parent=5 // pred_check
      _
    $region10: #{yakir_forward.31} parent=5 // pred_check_branch
      %72 = sbr.rel (%p69) target = $region12
    $region11: #{yakir_forward.31} parent=5 // pred_region
      %s73 = ssub.s32 %s7, 1
    $region12: #{yakir_forward.31} parent=5 // pred_fallthru
      _
    %p74 = scmp.lt.s32.totalorder %s7, 2
    // Predicated region
    $region13: #{yakir_forward.31} parent=5 // pred_check
      %p75 = pneg %p74
    $region14: #{yakir_forward.31} parent=5 // pred_check_branch
      %77 = sbr.rel (%p75) target = $region16
    $region15: #{yakir_forward.31} parent=5 // pred_region
      // Predicated region
      $region17: #{yakir_forward.31} parent=15 // pred_check
        %p78 = pneg %p27
      $region18: #{yakir_forward.31} parent=15 // pred_check_branch
        %80 = sbr.rel (%p78) target = $region20
      $region19: #{yakir_forward.31} parent=15 // pred_region
        %p81 = scmp.lt.s32.totalorder %s7, 1
        %s82 = scalar_select %p81, %s7, 1
        %s83 = smul.addr %s82, 2
        %s84 = scalar_lea.vmem %s0, %s83
      $region20: #{yakir_forward.31} parent=15 // pred_fallthru
        _
    $region16: #{yakir_forward.31} parent=5 // pred_fallthru
      _
    %p85 = scmp.le.s32.totalorder 1, %s7
    %p86 = scmp.lt.s32.totalorder %s7, 3
    %p87 = pnand %p85, %p86
    %p88 = pneg %p87
    // Predicated region
    $region21: #{yakir_forward.31} parent=5 // pred_check
      _
    $region22: #{yakir_forward.31} parent=5 // pred_check_branch
      %90 = sbr.rel (%p87) target = $region24
    $region23: #{yakir_forward.31} parent=5 // pred_region
      %s91 = ssub.s32 %s7, 1
      %p92 = scmp.lt.s32.totalorder %s12, 1
      %s93 = scalar_select %p92, %s12, 1
      %s94 = smul.addr %s93, 2
      %s95 = scalar_lea.vmem %s0, %s94
      %p96 = pneg %p33
      %p97 = pneg %p30
      %p98 = pneg %p59
      %p99 = pneg %p56
      %p100 = scmp.lt.s32.totalorder %s12, 1
      %s101 = scalar_select %p100, %s12, 1
      %s102 = smul.addr %s101, 2
      %s103 = scalar_lea.vmem %s1, %s102
      %p104 = scmp.lt.s32.totalorder %s12, 1
      %s105 = scalar_select %p104, %s12, 1
      %s106 = smul.addr %s105, 2
      %s107 = scalar_lea.vmem %s0, %s106
      %p108 = scmp.lt.s32.totalorder %s12, 1
      %s109 = scalar_select %p108, %s12, 1
      %s110 = smul.addr %s109, 2
      %s111 = scalar_lea.vmem %s1, %s110
      %v112 = vld [vmem:[%s107] sm:$0x3]
      %vm113 = vcmask 1041408
      %v114 = vsel %vm113, %v112, 0.0
      %115 = vadd.xlane.f32.xlu0 %v114
      %v116 = vpop.xlane.xlu0 %115
      %v117 = vrot.slane %v116, 4
      %v118 = vadd.f32 %v116, %v117
      %v119 = vrot.slane %v118, 2
      %v120 = vadd.f32 %v118, %v119
      %v121 = vrot.slane %v120, 1
      %v122 = vadd.f32 %v120, %v121
      %s123 = vtos %v122
      %s124 = smul.f32 %s123, 0.00390625
      %v125 = vstv %s124
      %v126 = vsub.f32 %v112, %v125
      %v127 = vmul.f32 %v126, %v126
      %v128 = vsel %vm113, %v127, 0.0
      %129 = vadd.xlane.f32.xlu0 %v128
      %v130 = vpop.xlane.xlu0 %129
      %v131 = vrot.slane %v130, 4
      %v132 = vadd.f32 %v130, %v131
      %v133 = vrot.slane %v132, 2
      %v134 = vadd.f32 %v132, %v133
      %v135 = vrot.slane %v134, 1
      %v136 = vadd.f32 %v134, %v135
      %s137 = vtos %v136
      %s138 = smul.f32 %s137, 0.003921569
      %s139 = smax.f32 %s138, 1e-12
      %v140 = vstv %s139
      %v141 = vrsqrt.pop %v140
      %v142 = vmul.f32 %v141, %v140
      %v143 = vmul.f32 %v142, %v141
      %v144 = vmul.f32 0.5, %v143
      %v145 = vsub.f32 1.5, %v144
      %v146 = vmul.f32 %v141, %v145
      %vm147 = vweird.f32 %v140
      %vm148 = vweird.f32 %v141
      %vm149 = vmor %vm147, %vm148
      %v150 = vsel %vm149, %v141, %v146
      %s151 = vtos %v150
      %v152 = vstv %s151
      %v153 = vmul.f32 %v126, %v152
      %154 = vst [vmem:[%s111] sm:$0x3] %v153
      %p155 = scmp.lt.s32.totalorder %s12, 1
      %s156 = scalar_select %p155, %s12, 1
      %s157 = smul.addr %s156, 2
      %s158 = scalar_lea.vmem %s1, %s157
      // Predicated region
      $region25: #{yakir_forward.31} parent=23 // pred_check
        %p159 = pneg %p56
      $region26: #{yakir_forward.31} parent=23 // pred_check_branch
        %161 = sbr.rel (%p159) target = $region28
      $region27: #{yakir_forward.31} parent=23 // pred_region
        _
      $region28: #{yakir_forward.31} parent=23 // pred_fallthru
        _
    $region24: #{yakir_forward.31} parent=5 // pred_fallthru
      _
    %p162 = scmp.le.s32.totalorder 2, %s7
    // Predicated region
    $region29: #{yakir_forward.31} parent=5 // pred_check
      %p163 = pneg %p162
    $region30: #{yakir_forward.31} parent=5 // pred_check_branch
      %165 = sbr.rel (%p163) target = $region32
    $region31: #{yakir_forward.31} parent=5 // pred_region
      %s166 = ssub.s32 %s7, 2
      // Predicated region
      $region33: #{yakir_forward.31} parent=31 // pred_check
        %p167 = pneg %p62
      $region34: #{yakir_forward.31} parent=31 // pred_check_branch
        %169 = sbr.rel (%p167) target = $region36
      $region35: #{yakir_forward.31} parent=31 // pred_region
        %p170 = scmp.lt.s32.totalorder %s13, 1
        %s171 = scalar_select %p170, %s13, 1
        %s172 = smul.addr %s171, 2
        %s173 = scalar_lea.vmem %s1, %s172
      $region36: #{yakir_forward.31} parent=31 // pred_fallthru
        _
    $region32: #{yakir_forward.31} parent=5 // pred_fallthru
      _
  $region6: #{yakir_forward.31} parent=0 // loop_footer
    %s11 = sadd.s32 1, %s7
  $region7: #{yakir_forward.31} parent=0 // loop_footer_branch
    %6 = sbr.rel target = $region3
  $region8: #{yakir_forward.31} parent=0 // loop_exit
    _

// kernel: yakir_forward.34
$region0: #{yakir_forward.34}
  #allocation0 [shape = 'u32[]', space=smem, size = 0x4, offset = 0x4, fixed_abs, tag = 'smem constant byte address 0x4 - core index']
  #allocation1 [shape = 'u32[72,128]{1,0:T(1,128)}', space=vmem, size = 0x9000, scoped, tag = 'internal scratch']
  %s0 = inlined_call_operand.vmem [shape: f32[2,1,128], index: 0, kind: input, shape index: {}]
  %s1 = inlined_call_operand.vmem [shape: f32[2,1,128], index: 1, kind: output, shape index: {}]
  %s2 = sld [smem:[#allocation0]]
  $region37: #{yakir_forward.34} parent=0
    _
  %s4 = ssub.s32 1, %s2
  %s5 = scalar_select 0, %s4, %s2
  loop: start=0, step=1, limit=4
  $region2: #{yakir_forward.34} parent=0 // loop_pre_header
    _
  $region3: #{yakir_forward.34} parent=0 // loop_header
    %s7 = sphi 0, %s11
    %p8 = scmp.ge.s32.totalorder %s7, 4
    %s17 = sphi 0, %s19
    %s20 = sphi 0, %s17
    %s21 = sphi 0, %s20
    %s37 = sphi 0, %s21
    %s43 = sphi 0, %s45
    %s46 = sphi 0, %s43
    %s47 = sphi 0, %s46
    %s63 = sphi 0, %s47
  $region4: #{yakir_forward.34} parent=0 // loop_header_branch
    %10 = sbr.rel (%p8) target = $region8
  $region5: #{yakir_forward.34} parent=0 // loop_body
    %s12 = ssub.s32 %s7, 1
    %s13 = ssub.s32 %s7, 2
    %s14 = sadd.s32 %s7, 1
    %s15 = ssub.s32 %s7, %s14
    %p16 = scmp.eq.s32.totalorder %s15, 0
    %s18 = sadd.s32 %s17, 1
    %s19 = scalar_select %p16, %s17, %s18
    %p22 = pneg %p16
    %p23 = scmp.eq.s32.totalorder %s7, 1
    %p24 = por %p22, %p23
    %p25 = scmp.ne.s32.totalorder %s17, %s20
    %p26 = scmp.eq.s32.totalorder %s7, 0
    %p27 = por %p25, %p26
    %p28 = scmp.ne.s32.totalorder %s17, %s20
    %p29 = scmp.eq.s32.totalorder %s12, 1
    %p30 = por %p28, %p29
    %p31 = scmp.ne.s32.totalorder %s20, %s21
    %p32 = scmp.eq.s32.totalorder %s12, 0
    %p33 = por %p31, %p32
    %p34 = scmp.ne.s32.totalorder %s20, %s21
    %p35 = scmp.eq.s32.totalorder %s13, 1
    %p36 = por %p34, %p35
    %p38 = scmp.ne.s32.totalorder %s21, %s37
    %p39 = scmp.eq.s32.totalorder %s13, 0
    %p40 = por %p38, %p39
    %s41 = ssub.s32 %s7, %s14
    %p42 = scmp.eq.s32.totalorder %s41, 0
    %s44 = sadd.s32 %s43, 1
    %s45 = scalar_select %p42, %s43, %s44
    %p48 = pneg %p42
    %p49 = scmp.eq.s32.totalorder %s7, 1
    %p50 = por %p48, %p49
    %p51 = scmp.ne.s32.totalorder %s43, %s46
    %p52 = scmp.eq.s32.totalorder %s7, 0
    %p53 = por %p51, %p52
    %p54 = scmp.ne.s32.totalorder %s43, %s46
    %p55 = scmp.eq.s32.totalorder %s12, 1
    %p56 = por %p54, %p55
    %p57 = scmp.ne.s32.totalorder %s46, %s47
    %p58 = scmp.eq.s32.totalorder %s12, 0
    %p59 = por %p57, %p58
    %p60 = scmp.ne.s32.totalorder %s46, %s47
    %p61 = scmp.eq.s32.totalorder %s13, 1
    %p62 = por %p60, %p61
    %p64 = scmp.ne.s32.totalorder %s47, %s63
    %p65 = scmp.eq.s32.totalorder %s13, 0
    %p66 = por %p64, %p65
    %p67 = scmp.le.s32.totalorder 1, %s7
    %p68 = scmp.lt.s32.totalorder %s7, 3
    %p69 = pnand %p67, %p68
    %p70 = pneg %p69
    // Predicated region
    $region9: #{yakir_forward.34} parent=5 // pred_check
      _
    $region10: #{yakir_forward.34} parent=5 // pred_check_branch
      %72 = sbr.rel (%p69) target = $region12
    $region11: #{yakir_forward.34} parent=5 // pred_region
      %s73 = ssub.s32 %s7, 1
    $region12: #{yakir_forward.34} parent=5 // pred_fallthru
      _
    %p74 = scmp.lt.s32.totalorder %s7, 2
    // Predicated region
    $region13: #{yakir_forward.34} parent=5 // pred_check
      %p75 = pneg %p74
    $region14: #{yakir_forward.34} parent=5 // pred_check_branch
      %77 = sbr.rel (%p75) target = $region16
    $region15: #{yakir_forward.34} parent=5 // pred_region
      // Predicated region
      $region17: #{yakir_forward.34} parent=15 // pred_check
        %p78 = pneg %p27
      $region18: #{yakir_forward.34} parent=15 // pred_check_branch
        %80 = sbr.rel (%p78) target = $region20
      $region19: #{yakir_forward.34} parent=15 // pred_region
        %p81 = scmp.lt.s32.totalorder %s7, 1
        %s82 = scalar_select %p81, %s7, 1
        %s83 = scalar_lea.vmem %s0, %s82
      $region20: #{yakir_forward.34} parent=15 // pred_fallthru
        _
    $region16: #{yakir_forward.34} parent=5 // pred_fallthru
      _
    %p84 = scmp.le.s32.totalorder 1, %s7
    %p85 = scmp.lt.s32.totalorder %s7, 3
    %p86 = pnand %p84, %p85
    %p87 = pneg %p86
    // Predicated region
    $region21: #{yakir_forward.34} parent=5 // pred_check
      _
    $region22: #{yakir_forward.34} parent=5 // pred_check_branch
      %89 = sbr.rel (%p86) target = $region24
    $region23: #{yakir_forward.34} parent=5 // pred_region
      %s90 = ssub.s32 %s7, 1
      %p91 = scmp.lt.s32.totalorder %s12, 1
      %s92 = scalar_select %p91, %s12, 1
      %s93 = scalar_lea.vmem %s0, %s92
      %p94 = pneg %p33
      %p95 = pneg %p30
      %p96 = pneg %p59
      %p97 = pneg %p56
      %p98 = scmp.lt.s32.totalorder %s12, 1
      %s99 = scalar_select %p98, %s12, 1
      %s100 = scalar_lea.vmem %s1, %s99
      %p101 = scmp.lt.s32.totalorder %s12, 1
      %s102 = scalar_select %p101, %s12, 1
      %s103 = scalar_lea.vmem %s0, %s102
      %p104 = scmp.lt.s32.totalorder %s12, 1
      %s105 = scalar_select %p104, %s12, 1
      %s106 = scalar_lea.vmem %s1, %s105
      %v107 = vld [vmem:[%s103] sm:$0x1]
      %vm108 = vcmask 1040384
      %v109 = vsel %vm108, %v107, 0.0
      %110 = vadd.xlane.f32.xlu0 %v109
      %v111 = vpop.xlane.xlu0 %110
      %v112 = vrot.slane %v111, 4
      %v113 = vadd.f32 %v111, %v112
      %v114 = vrot.slane %v113, 2
      %v115 = vadd.f32 %v113, %v114
      %v116 = vrot.slane %v115, 1
      %v117 = vadd.f32 %v115, %v116
      %s118 = vtos %v117
      %s119 = smul.f32 %s118, 0.0078125
      %v120 = vstv %s119
      %v121 = vsub.f32 %v107, %v120
      %v122 = vmul.f32 %v121, %v121
      %v123 = vsel %vm108, %v122, 0.0
      %124 = vadd.xlane.f32.xlu0 %v123
      %v125 = vpop.xlane.xlu0 %124
      %v126 = vrot.slane %v125, 4
      %v127 = vadd.f32 %v125, %v126
      %v128 = vrot.slane %v127, 2
      %v129 = vadd.f32 %v127, %v128
      %v130 = vrot.slane %v129, 1
      %v131 = vadd.f32 %v129, %v130
      %s132 = vtos %v131
      %s133 = smul.f32 %s132, 0.007874016
      %s134 = smax.f32 %s133, 1e-12
      %v135 = vstv %s134
      %v136 = vrsqrt.pop %v135
      %v137 = vmul.f32 %v136, %v135
      %v138 = vmul.f32 %v137, %v136
      %v139 = vmul.f32 0.5, %v138
      %v140 = vsub.f32 1.5, %v139
      %v141 = vmul.f32 %v136, %v140
      %vm142 = vweird.f32 %v135
      %vm143 = vweird.f32 %v136
      %vm144 = vmor %vm142, %vm143
      %v145 = vsel %vm144, %v136, %v141
      %s146 = vtos %v145
      %v147 = vstv %s146
      %v148 = vmul.f32 %v121, %v147
      %149 = vst [vmem:[%s106] sm:$0x1] %v148
      %p150 = scmp.lt.s32.totalorder %s12, 1
      %s151 = scalar_select %p150, %s12, 1
      %s152 = scalar_lea.vmem %s1, %s151
      // Predicated region
      $region25: #{yakir_forward.34} parent=23 // pred_check
        %p153 = pneg %p56
      $region26: #{yakir_forward.34} parent=23 // pred_check_branch
        %155 = sbr.rel (%p153) target = $region28
      $region27: #{yakir_forward.34} parent=23 // pred_region
        _
      $region28: #{yakir_forward.34} parent=23 // pred_fallthru
        _
    $region24: #{yakir_forward.34} parent=5 // pred_fallthru
      _
    %p156 = scmp.le.s32.totalorder 2, %s7
    // Predicated region
    $region29: #{yakir_forward.34} parent=5 // pred_check
      %p157 = pneg %p156
    $region30: #{yakir_forward.34} parent=5 // pred_check_branch
      %159 = sbr.rel (%p157) target = $region32
    $region31: #{yakir_forward.34} parent=5 // pred_region
      %s160 = ssub.s32 %s7, 2
      // Predicated region
      $region33: #{yakir_forward.34} parent=31 // pred_check
        %p161 = pneg %p62
      $region34: #{yakir_forward.34} parent=31 // pred_check_branch
        %163 = sbr.rel (%p161) target = $region36
      $region35: #{yakir_forward.34} parent=31 // pred_region
        %p164 = scmp.lt.s32.totalorder %s13, 1
        %s165 = scalar_select %p164, %s13, 1
        %s166 = scalar_lea.vmem %s1, %s165
      $region36: #{yakir_forward.34} parent=31 // pred_fallthru
        _
    $region32: #{yakir_forward.34} parent=5 // pred_fallthru
      _
  $region6: #{yakir_forward.34} parent=0 // loop_footer
    %s11 = sadd.s32 1, %s7
  $region7: #{yakir_forward.34} parent=0 // loop_footer_branch
    %6 = sbr.rel target = $region3
  $region8: #{yakir_forward.34} parent=0 // loop_exit
    _

// kernel: yakir_forward.33
$region0: #{yakir_forward.33}
  #allocation0 [shape = 'u32[]', space=smem, size = 0x4, offset = 0x4, fixed_abs, tag = 'smem constant byte address 0x4 - core index']
  #allocation1 [shape = 'u32[72,128]{1,0:T(1,128)}', space=vmem, size = 0x9000, scoped, tag = 'internal scratch']
  %s0 = inlined_call_operand.vmem [shape: bf16[1,2,256], index: 0, kind: input, shape index: {}]
  %s1 = inlined_call_operand.vmem [shape: bf16[1,256,256], index: 1, kind: input, shape index: {}]
  %s2 = inlined_call_operand.vmem [shape: f32[1,2,256], index: 2, kind: output, shape index: {}]
  %s3 = sld [smem:[#allocation0]]
  $region18: #{yakir_forward.33} parent=0
    _
  %s5 = ssub.s32 1, %s3
  %s6 = scalar_select 0, %s5, %s3
  // Predicated region
  $region2: #{yakir_forward.33} parent=0 // pred_check
    _
  $region3: #{yakir_forward.33} parent=0 // pred_check_branch
    %8 = sbr.rel (0) target = $region5
  $region4: #{yakir_forward.33} parent=0 // pred_region
    _
  $region5: #{yakir_forward.33} parent=0 // pred_fallthru
    _
  // Predicated region
  $region6: #{yakir_forward.33} parent=0 // pred_check
    _
  $region7: #{yakir_forward.33} parent=0 // pred_check_branch
    %10 = sbr.rel (0) target = $region9
  $region8: #{yakir_forward.33} parent=0 // pred_region
    _
  $region9: #{yakir_forward.33} parent=0 // pred_fallthru
    _
  %v11 = vld [vmem:[%s0] sm:$0x3]
  %v12 = vld [vmem:[%s1] sm:$0xff]
  %v13 = vld [vmem:[%s1 + $0x8] sm:$0xff]
  %v14 = vld [vmem:[%s1 + $0x10] sm:$0xff]
  %v15 = vld [vmem:[%s1 + $0x18] sm:$0xff]
  %v16 = vld [vmem:[%s1 + $0x20] sm:$0xff]
  %v17 = vld [vmem:[%s1 + $0x28] sm:$0xff]
  %v18 = vld [vmem:[%s1 + $0x30] sm:$0xff]
  %v19 = vld [vmem:[%s1 + $0x38] sm:$0xff]
  %v20 = vld [vmem:[%s1 + $0x40] sm:$0xff]
  %v21 = vld [vmem:[%s1 + $0x48] sm:$0xff]
  %v22 = vld [vmem:[%s1 + $0x50] sm:$0xff]
  %v23 = vld [vmem:[%s1 + $0x58] sm:$0xff]
  %v24 = vld [vmem:[%s1 + $0x60] sm:$0xff]
  %v25 = vld [vmem:[%s1 + $0x68] sm:$0xff]
  %v26 = vld [vmem:[%s1 + $0x70] sm:$0xff]
  %v27 = vld [vmem:[%s1 + $0x78] sm:$0xff]
  %v28 = vld [vmem:[%s1 + $0x80] sm:$0xff]
  %v29 = vld [vmem:[%s1 + $0x88] sm:$0xff]
  %v30 = vld [vmem:[%s1 + $0x90] sm:$0xff]
  %v31 = vld [vmem:[%s1 + $0x98] sm:$0xff]
  %v32 = vld [vmem:[%s1 + $0xa0] sm:$0xff]
  %v33 = vld [vmem:[%s1 + $0xa8] sm:$0xff]
  %v34 = vld [vmem:[%s1 + $0xb0] sm:$0xff]
  %v35 = vld [vmem:[%s1 + $0xb8] sm:$0xff]
  %v36 = vld [vmem:[%s1 + $0xc0] sm:$0xff]
  %v37 = vld [vmem:[%s1 + $0xc8] sm:$0xff]
  %v38 = vld [vmem:[%s1 + $0xd0] sm:$0xff]
  %v39 = vld [vmem:[%s1 + $0xd8] sm:$0xff]
  %v40 = vld [vmem:[%s1 + $0xe0] sm:$0xff]
  %v41 = vld [vmem:[%s1 + $0xe8] sm:$0xff]
  %v42 = vld [vmem:[%s1 + $0xf0] sm:$0xff]
  %v43 = vld [vmem:[%s1 + $0xf8] sm:$0xff]
  %45 = vst [vmem:[#allocation1] ss:$9 sm:$0xff] %v11
  %v46 = vld [vmem:[#allocation1] sm:$0xff]
  %v47 = vld [vmem:[#allocation1 + $0x9] sm:$0xff]
  %v82 = vunpack.c.l.b16 %v12
  %v83 = vunpack.c.h.b16 %v12
  %v84 = vunpack.c.l.b16 %v13
  %v85 = vunpack.c.h.b16 %v13
  %v86 = vunpack.c.l.b16 %v14
  %v87 = vunpack.c.h.b16 %v14
  %v88 = vunpack.c.l.b16 %v15
  %v89 = vunpack.c.h.b16 %v15
  %v90 = vunpack.c.l.b16 %v16
  %v91 = vunpack.c.h.b16 %v16
  %v92 = vunpack.c.l.b16 %v17
  %v93 = vunpack.c.h.b16 %v17
  %v94 = vunpack.c.l.b16 %v18
  %v95 = vunpack.c.h.b16 %v18
  %v96 = vunpack.c.l.b16 %v19
  %v97 = vunpack.c.h.b16 %v19
  %v98 = vunpack.c.l.b16 %v20
  %v99 = vunpack.c.h.b16 %v20
  %v100 = vunpack.c.l.b16 %v21
  %v101 = vunpack.c.h.b16 %v21
  %v102 = vunpack.c.l.b16 %v22
  %v103 = vunpack.c.h.b16 %v22
  %v104 = vunpack.c.l.b16 %v23
  %v105 = vunpack.c.h.b16 %v23
  %v106 = vunpack.c.l.b16 %v24
  %v107 = vunpack.c.h.b16 %v24
  %v108 = vunpack.c.l.b16 %v25
  %v109 = vunpack.c.h.b16 %v25
  %v110 = vunpack.c.l.b16 %v26
  %v111 = vunpack.c.h.b16 %v26
  %v112 = vunpack.c.l.b16 %v27
  %v113 = vunpack.c.h.b16 %v27
  %v114 = vunpack.c.l.b16 %v28
  %v115 = vunpack.c.h.b16 %v28
  %v116 = vunpack.c.l.b16 %v29
  %v117 = vunpack.c.h.b16 %v29
  %v118 = vunpack.c.l.b16 %v30
  %v119 = vunpack.c.h.b16 %v30
  %v120 = vunpack.c.l.b16 %v31
  %v121 = vunpack.c.h.b16 %v31
  %v122 = vunpack.c.l.b16 %v32
  %v123 = vunpack.c.h.b16 %v32
  %v124 = vunpack.c.l.b16 %v33
  %v125 = vunpack.c.h.b16 %v33
  %v126 = vunpack.c.l.b16 %v34
  %v127 = vunpack.c.h.b16 %v34
  %v128 = vunpack.c.l.b16 %v35
  %v129 = vunpack.c.h.b16 %v35
  %v130 = vunpack.c.l.b16 %v36
  %v131 = vunpack.c.h.b16 %v36
  %v132 = vunpack.c.l.b16 %v37
  %v133 = vunpack.c.h.b16 %v37
  %v134 = vunpack.c.l.b16 %v38
  %v135 = vunpack.c.h.b16 %v38
  %v136 = vunpack.c.l.b16 %v39
  %v137 = vunpack.c.h.b16 %v39
  %v138 = vunpack.c.l.b16 %v40
  %v139 = vunpack.c.h.b16 %v40
  %v140 = vunpack.c.l.b16 %v41
  %v141 = vunpack.c.h.b16 %v41
  %v142 = vunpack.c.l.b16 %v42
  %v143 = vunpack.c.h.b16 %v42
  %v144 = vunpack.c.l.b16 %v43
  %v145 = vunpack.c.h.b16 %v43
  %v146 = vpack.c.b16 %v84, %v82
  %v147 = vpack.c.b16 %v85, %v83
  %v148 = vpack.c.b16 %v88, %v86
  %v149 = vpack.c.b16 %v89, %v87
  %v150 = vpack.c.b16 %v92, %v90
  %v151 = vpack.c.b16 %v93, %v91
  %v152 = vpack.c.b16 %v96, %v94
  %v153 = vpack.c.b16 %v97, %v95
  %v154 = vpack.c.b16 %v100, %v98
  %v155 = vpack.c.b16 %v101, %v99
  %v156 = vpack.c.b16 %v104, %v102
  %v157 = vpack.c.b16 %v105, %v103
  %v158 = vpack.c.b16 %v108, %v106
  %v159 = vpack.c.b16 %v109, %v107
  %v160 = vpack.c.b16 %v112, %v110
  %v161 = vpack.c.b16 %v113, %v111
  %v162 = vpack.c.b16 %v116, %v114
  %v163 = vpack.c.b16 %v117, %v115
  %v164 = vpack.c.b16 %v120, %v118
  %v165 = vpack.c.b16 %v121, %v119
  %v166 = vpack.c.b16 %v124, %v122
  %v167 = vpack.c.b16 %v125, %v123
  %v168 = vpack.c.b16 %v128, %v126
  %v169 = vpack.c.b16 %v129, %v127
  %v170 = vpack.c.b16 %v132, %v130
  %v171 = vpack.c.b16 %v133, %v131
  %v172 = vpack.c.b16 %v136, %v134
  %v173 = vpack.c.b16 %v137, %v135
  %v174 = vpack.c.b16 %v140, %v138
  %v175 = vpack.c.b16 %v141, %v139
  %v176 = vpack.c.b16 %v144, %v142
  %v177 = vpack.c.b16 %v145, %v143
  %210 = vmatpush.bf16.xpose.msra.mxu0 %v160
  %211 = vmatpush.bf16.xpose.msra.mxu0 %v158
  %212 = vmatpush.bf16.xpose.msra.mxu0 %v156
  %213 = vmatpush.bf16.xpose.msra.mxu0 %v154
  %214 = vmatpush.bf16.xpose.msra.mxu0 %v152
  %215 = vmatpush.bf16.xpose.msra.mxu0 %v150
  %216 = vmatpush.bf16.xpose.msra.mxu0 %v148
  %217 = vmatpush.bf16.xpose.msra.mxu0 %v146
  %218 = vmatmul.bf16.gmra.mxu0 %v46
  %v219 = vpop.f32.mrf.mxu0
  %v220 = vadd.f32 0.0, %v219
  %v221 = vpop.f32.mrf.mxu0
  %222 = vdwg.mxu0
  %223 = vmatpush.bf16.xpose.msra.mxu0 %v161
  %224 = vmatpush.bf16.xpose.msra.mxu0 %v159
  %225 = vmatpush.bf16.xpose.msra.mxu0 %v157
  %226 = vmatpush.bf16.xpose.msra.mxu0 %v155
  %227 = vmatpush.bf16.xpose.msra.mxu0 %v153
  %228 = vmatpush.bf16.xpose.msra.mxu0 %v151
  %229 = vmatpush.bf16.xpose.msra.mxu0 %v149
  %230 = vmatpush.bf16.xpose.msra.mxu0 %v147
  %231 = vmatmul.bf16.gmra.mxu0 %v47
  %v232 = vpop.f32.mrf.mxu0
  %v233 = vadd.f32 %v220, %v232
  %v234 = vpop.f32.mrf.mxu0
  %235 = vdwg.mxu0
  %236 = vmatpush.bf16.xpose.msra.mxu0 %v176
  %237 = vmatpush.bf16.xpose.msra.mxu0 %v174
  %238 = vmatpush.bf16.xpose.msra.mxu0 %v172
  %239 = vmatpush.bf16.xpose.msra.mxu0 %v170
  %240 = vmatpush.bf16.xpose.msra.mxu0 %v168
  %241 = vmatpush.bf16.xpose.msra.mxu0 %v166
  %242 = vmatpush.bf16.xpose.msra.mxu0 %v164
  %243 = vmatpush.bf16.xpose.msra.mxu0 %v162
  %244 = vmatmul.bf16.gmra.mxu0 %v46
  %v245 = vpop.f32.mrf.mxu0
  %v246 = vadd.f32 0.0, %v245
  %v247 = vpop.f32.mrf.mxu0
  %248 = vdwg.mxu0
  %249 = vmatpush.bf16.xpose.msra.mxu0 %v177
  %250 = vmatpush.bf16.xpose.msra.mxu0 %v175
  %251 = vmatpush.bf16.xpose.msra.mxu0 %v173
  %252 = vmatpush.bf16.xpose.msra.mxu0 %v171
  %253 = vmatpush.bf16.xpose.msra.mxu0 %v169
  %254 = vmatpush.bf16.xpose.msra.mxu0 %v167
  %255 = vmatpush.bf16.xpose.msra.mxu0 %v165
  %256 = vmatpush.bf16.xpose.msra.mxu0 %v163
  %257 = vmatmul.bf16.gmra.mxu0 %v47
  %v258 = vpop.f32.mrf.mxu0
  %v259 = vadd.f32 %v246, %v258
  %v260 = vpop.f32.mrf.mxu0
  %261 = vdwg.mxu0
  %v264 = vrot.slane %v259, 6
  %vm265 = vcmask 1041408
  %v266 = vsel %vm265, %v233, %v264
  %268 = vst [vmem:[%s2] sm:$0xf] %v266
  // Predicated region
  $region10: #{yakir_forward.33} parent=0 // pred_check
    _
  $region11: #{yakir_forward.33} parent=0 // pred_check_branch
    %270 = sbr.rel (0) target = $region13
  $region12: #{yakir_forward.33} parent=0 // pred_region
    _
  $region13: #{yakir_forward.33} parent=0 // pred_fallthru
    _
  // Predicated region
  $region14: #{yakir_forward.33} parent=0 // pred_check
    _
  $region15: #{yakir_forward.33} parent=0 // pred_check_branch
    %272 = sbr.rel (0) target = $region17
  $region16: #{yakir_forward.33} parent=0 // pred_region
    _
  $region17: #{yakir_forward.33} parent=0 // pred_fallthru
    _

// kernel: yakir_forward.35
$region0: #{yakir_forward.35}
  #allocation0 [shape = 'u32[]', space=smem, size = 0x4, offset = 0x4, fixed_abs, tag = 'smem constant byte address 0x4 - core index']
  #allocation1 [shape = 'u32[72,128]{1,0:T(1,128)}', space=vmem, size = 0x9000, scoped, tag = 'internal scratch']
  #allocation2 [shape = 'f32[16,128]{1,0:T(8,128)}', space=vmem, size = 0x2000, scoped, tag = 'scratch operand']
  %s0 = inlined_call_operand.vmem [shape: bf16[16,384], index: 0, kind: input, shape index: {}]
  %s1 = inlined_call_operand.vmem [shape: bf16[384,128], index: 1, kind: input, shape index: {}]
  %s2 = inlined_call_operand.vmem [shape: f32[1,128], index: 2, kind: input, shape index: {}]
  %s3 = inlined_call_operand.vmem [shape: bf16[16,128], index: 3, kind: output, shape index: {}]
  %s4 = sld [smem:[#allocation0]]
  $region94: #{yakir_forward.35} parent=0
    _
  %s6 = ssub.s32 1, %s4
  %s7 = scalar_select 0, %s6, %s4
  $region1: #{yakir_forward.35} parent=0
    #allocation3 [shape = 'u8[8192]{0}', space=vmem, size = 0x2000, scoped, tag = 'input window, operand 0']
    loop: start=0, step=1, limit=5
    $region2: #{yakir_forward.35} parent=1 // loop_pre_header
      _
    $region3: #{yakir_forward.35} parent=1 // loop_header
      %s9 = sphi 0, %s13
      %p10 = scmp.ge.s32.totalorder %s9, 5
      %s16 = sphi 0, %s35
      %s17 = sphi 0, %s31
      %s18 = sphi 0, %s27
      %s19 = sphi 0, %s16
      %s20 = sphi 0, %s17
      %s21 = sphi 0, %s18
      %s22 = sphi 0, %s19
      %s23 = sphi 0, %s20
      %s24 = sphi 0, %s21
      %s40 = sphi 0, %s42
      %s43 = sphi 0, %s40
      %s44 = sphi 0, %s43
      %s60 = sphi 0, %s44
      %s68 = sphi 0, %s70
      %s71 = sphi 0, %s68
      %s72 = sphi 0, %s71
      %s88 = sphi 0, %s72
      %s94 = sphi 0, %s96
      %s97 = sphi 0, %s94
      %s98 = sphi 0, %s97
      %s114 = sphi 0, %s98
      %s122 = sphi 0, %s124
      %s125 = sphi 0, %s122
      %s126 = sphi 0, %s125
      %s142 = sphi 0, %s126
    $region4: #{yakir_forward.35} parent=1 // loop_header_branch
      %12 = sbr.rel (%p10) target = $region8
    $region5: #{yakir_forward.35} parent=1 // loop_body
      %s14 = ssub.s32 %s9, 1
      %s15 = ssub.s32 %s9, 2
      %s25 = sadd.s32 1, %s18
      %p26 = scmp.ge.s32.totalorder %s25, 3
      %s27 = scalar_select %p26, 0, %s25
      %s28 = sadd.s32 1, %s17
      %s29 = scalar_select %p26, %s28, %s17
      %p30 = scmp.ge.s32.totalorder %s29, 1
      %s31 = scalar_select %p30, 0, %s29
      %s32 = sadd.s32 1, %s16
      %s33 = scalar_select %p30, %s32, %s16
      %p34 = scmp.ge.s32.totalorder %s33, 1
      %s35 = scalar_select %p34, 0, %s33
      %s36 = ssub.s32 %s16, %s35
      %s37 = ssub.s32 %s18, %s27
      %s38 = sor.u32 %s36, %s37
      %p39 = scmp.eq.s32.totalorder %s38, 0
      %s41 = sadd.s32 %s40, 1
      %s42 = scalar_select %p39, %s40, %s41
      %p45 = pneg %p39
      %p46 = scmp.eq.s32.totalorder %s9, 2
      %p47 = por %p45, %p46
      %p48 = scmp.ne.s32.totalorder %s40, %s43
      %p49 = scmp.eq.s32.totalorder %s9, 0
      %p50 = por %p48, %p49
      %p51 = scmp.ne.s32.totalorder %s40, %s43
      %p52 = scmp.eq.s32.totalorder %s14, 2
      %p53 = por %p51, %p52
      %p54 = scmp.ne.s32.totalorder %s43, %s44
      %p55 = scmp.eq.s32.totalorder %s14, 0
      %p56 = por %p54, %p55
      %p57 = scmp.ne.s32.totalorder %s43, %s44
      %p58 = scmp.eq.s32.totalorder %s15, 2
      %p59 = por %p57, %p58
      %p61 = scmp.ne.s32.totalorder %s44, %s60
      %p62 = scmp.eq.s32.totalorder %s15, 0
      %p63 = por %p61, %p62
      %s64 = ssub.s32 %s18, %s27
      %s65 = ssub.s32 %s17, %s31
      %s66 = sor.u32 %s64, %s65
      %p67 = scmp.eq.s32.totalorder %s66, 0
      %s69 = sadd.s32 %s68, 1
      %s70 = scalar_select %p67, %s68, %s69
      %p73 = pneg %p67
      %p74 = scmp.eq.s32.totalorder %s9, 2
      %p75 = por %p73, %p74
      %p76 = scmp.ne.s32.totalorder %s68, %s71
      %p77 = scmp.eq.s32.totalorder %s9, 0
      %p78 = por %p76, %p77
      %p79 = scmp.ne.s32.totalorder %s68, %s71
      %p80 = scmp.eq.s32.totalorder %s14, 2
      %p81 = por %p79, %p80
      %p82 = scmp.ne.s32.totalorder %s71, %s72
      %p83 = scmp.eq.s32.totalorder %s14, 0
      %p84 = por %p82, %p83
      %p85 = scmp.ne.s32.totalorder %s71, %s72
      %p86 = scmp.eq.s32.totalorder %s15, 2
      %p87 = por %p85, %p86
      %p89 = scmp.ne.s32.totalorder %s72, %s88
      %p90 = scmp.eq.s32.totalorder %s15, 0
      %p91 = por %p89, %p90
      %s92 = ssub.s32 %s17, %s31
      %p93 = scmp.eq.s32.totalorder %s92, 0
      %s95 = sadd.s32 %s94, 1
      %s96 = scalar_select %p93, %s94, %s95
      %p99 = pneg %p93
      %p100 = scmp.eq.s32.totalorder %s9, 2
      %p101 = por %p99, %p100
      %p102 = scmp.ne.s32.totalorder %s94, %s97
      %p103 = scmp.eq.s32.totalorder %s9, 0
      %p104 = por %p102, %p103
      %p105 = scmp.ne.s32.totalorder %s94, %s97
      %p106 = scmp.eq.s32.totalorder %s14, 2
      %p107 = por %p105, %p106
      %p108 = scmp.ne.s32.totalorder %s97, %s98
      %p109 = scmp.eq.s32.totalorder %s14, 0
      %p110 = por %p108, %p109
      %p111 = scmp.ne.s32.totalorder %s97, %s98
      %p112 = scmp.eq.s32.totalorder %s15, 2
      %p113 = por %p111, %p112
      %p115 = scmp.ne.s32.totalorder %s98, %s114
      %p116 = scmp.eq.s32.totalorder %s15, 0
      %p117 = por %p115, %p116
      %s118 = ssub.s32 %s16, %s35
      %s119 = ssub.s32 %s17, %s31
      %s120 = sor.u32 %s118, %s119
      %p121 = scmp.eq.s32.totalorder %s120, 0
      %s123 = sadd.s32 %s122, 1
      %s124 = scalar_select %p121, %s122, %s123
      %p127 = pneg %p121
      %p128 = scmp.eq.s32.totalorder %s9, 2
      %p129 = por %p127, %p128
      %p130 = scmp.ne.s32.totalorder %s122, %s125
      %p131 = scmp.eq.s32.totalorder %s9, 0
      %p132 = por %p130, %p131
      %p133 = scmp.ne.s32.totalorder %s122, %s125
      %p134 = scmp.eq.s32.totalorder %s14, 2
      %p135 = por %p133, %p134
      %p136 = scmp.ne.s32.totalorder %s125, %s126
      %p137 = scmp.eq.s32.totalorder %s14, 0
      %p138 = por %p136, %p137
      %p139 = scmp.ne.s32.totalorder %s125, %s126
      %p140 = scmp.eq.s32.totalorder %s15, 2
      %p141 = por %p139, %p140
      %p143 = scmp.ne.s32.totalorder %s126, %s142
      %p144 = scmp.eq.s32.totalorder %s15, 0
      %p145 = por %p143, %p144
      %p146 = scmp.le.s32.totalorder 1, %s9
      %p147 = scmp.lt.s32.totalorder %s9, 4
      %p148 = pnand %p146, %p147
      %p149 = pneg %p148
      // Predicated region
      $region9: #{yakir_forward.35} parent=5 // pred_check
        _
      $region10: #{yakir_forward.35} parent=5 // pred_check_branch
        %151 = sbr.rel (%p148) target = $region12
      $region11: #{yakir_forward.35} parent=5 // pred_region
        %s152 = ssub.s32 %s9, 1
        // Predicated region
        $region13: #{yakir_forward.35} parent=11 // pred_check
          %p153 = pneg %p110
        $region14: #{yakir_forward.35} parent=11 // pred_check_branch
          %155 = sbr.rel (%p153) target = $region16
        $region15: #{yakir_forward.35} parent=11 // pred_region
          %p156 = scmp.lt.s32.totalorder %s20, 0
          %s157 = scalar_select %p156, %s20, 0
          %s158 = scalar_lea.vmem %s2, %s157
        $region16: #{yakir_forward.35} parent=11 // pred_fallthru
          _
      $region12: #{yakir_forward.35} parent=5 // pred_fallthru
        _
      %p159 = scmp.lt.s32.totalorder %s9, 3
      // Predicated region
      $region17: #{yakir_forward.35} parent=5 // pred_check
        %p160 = pneg %p159
      $region18: #{yakir_forward.35} parent=5 // pred_check_branch
        %162 = sbr.rel (%p160) target = $region20
      $region19: #{yakir_forward.35} parent=5 // pred_region
        // Predicated region
        $region21: #{yakir_forward.35} parent=19 // pred_check
          %p163 = pneg %p50
        $region22: #{yakir_forward.35} parent=19 // pred_check_branch
          %165 = sbr.rel (%p163) target = $region24
        $region23: #{yakir_forward.35} parent=19 // pred_region
          %s166 = sand.u32 %s40, 1
          %s167 = sand.u32 %s40, 1
          %s168 = smul.addr %s167, 8
          %s169 = scalar_lea.vmem [#allocation3], %s168
          %s170 = smul.u32 2, %s16
          %s171 = smul.addr %s170, 3
          %s172 = sadd.s32 %s18, %s171
          %s173 = smul.addr %s172, 4
          %s174 = scalar_lea.vmem %s0, %s173
          // Predicated region
          $region25: #{yakir_forward.35} parent=23 // pred_check
            _
          $region26: #{yakir_forward.35} parent=23 // pred_check_branch
            %176 = sbr.rel (0) target = $region28
          $region27: #{yakir_forward.35} parent=23 // pred_region
            // Predicated region
            $region29: #{yakir_forward.35} parent=27 // pred_check
              _
            $region30: #{yakir_forward.35} parent=27 // pred_check_branch
              %178 = sbr.rel target = $region32
            $region31: #{yakir_forward.35} parent=27 // pred_region
              // Predicated region
              $region44: #{yakir_forward.35} parent=31 // pred_check
                _
              $region45: #{yakir_forward.35} parent=31 // pred_check_branch
                %196 = sbr.rel (0) target = $region47
              $region46: #{yakir_forward.35} parent=31 // pred_region
                loop: start=0, step=1, limit=1
                $region48: #{yakir_forward.35} parent=46 // loop_pre_header
                  _
                $region49: #{yakir_forward.35} parent=46 // loop_header
                  %s198 = sphi 0, %s202
                  %p199 = scmp.ge.s32.totalorder %s198, 1
                  %s203 = sphi %s174, %s174
                  %s204 = sphi %s169, %s169
                $region50: #{yakir_forward.35} parent=46 // loop_header_branch
                  %201 = sbr.rel (%p199) target = $region54
                $region51: #{yakir_forward.35} parent=46 // loop_body
                  _
                $region52: #{yakir_forward.35} parent=46 // loop_footer
                  %s202 = sadd.s32 1, %s198
                $region53: #{yakir_forward.35} parent=46 // loop_footer_branch
                  %197 = sbr.rel target = $region49
                $region54: #{yakir_forward.35} parent=46 // loop_exit
                  _
                %s206 = ssub.s32 16, 1
                loop: start=0, step=1, limit=1
                $region55: #{yakir_forward.35} parent=46 // loop_pre_header
                  _
                $region56: #{yakir_forward.35} parent=46 // loop_header
                  %s208 = sphi 0, %s212
                  %p209 = scmp.ge.s32.totalorder %s208, 1
                  %s213 = sphi %s174, %s174
                  %s214 = sphi %s169, %s169
                $region57: #{yakir_forward.35} parent=46 // loop_header_branch
                  %211 = sbr.rel (%p209) target = $region61
                $region58: #{yakir_forward.35} parent=46 // loop_body
                  %v215 = vld [vmem:[%s213] sm:%s206]
                  %216 = vst [vmem:[%s214] sm:%s206] %v215
                  %v217 = vld [vmem:[%s213 + $0xc] sm:%s206]
                  %218 = vst [vmem:[%s214 + $0x4] sm:%s206] %v217
                $region59: #{yakir_forward.35} parent=46 // loop_footer
                  %s212 = sadd.s32 1, %s208
                $region60: #{yakir_forward.35} parent=46 // loop_footer_branch
                  %207 = sbr.rel target = $region56
                $region61: #{yakir_forward.35} parent=46 // loop_exit
                  _
              $region47: #{yakir_forward.35} parent=31 // pred_fallthru
                _
            $region32: #{yakir_forward.35} parent=27 // pred_fallthru
              _
            // Predicated region
            $region33: #{yakir_forward.35} parent=27 // pred_check
              _
            $region34: #{yakir_forward.35} parent=27 // pred_check_branch
              %180 = sbr.rel (0) target = $region36
            $region35: #{yakir_forward.35} parent=27 // pred_region
              %s182 = ssub.s32 16, 1
              loop: start=0, step=1, limit=1
              $region37: #{yakir_forward.35} parent=35 // loop_pre_header
                _
              $region38: #{yakir_forward.35} parent=35 // loop_header
                %s184 = sphi 0, %s188
                %p185 = scmp.ge.s32.totalorder %s184, 1
                %s189 = sphi %s174, %s174
                %s190 = sphi %s169, %s169
              $region39: #{yakir_forward.35} parent=35 // loop_header_branch
                %187 = sbr.rel (%p185) target = $region43
              $region40: #{yakir_forward.35} parent=35 // loop_body
                %v191 = vld [vmem:[%s189] sm:%s182]
                %192 = vst [vmem:[%s190] sm:%s182] %v191
                %v193 = vld [vmem:[%s189 + $0xc] sm:%s182]
                %194 = vst [vmem:[%s190 + $0x4] sm:%s182] %v193
              $region41: #{yakir_forward.35} parent=35 // loop_footer
                %s188 = sadd.s32 1, %s184
              $region42: #{yakir_forward.35} parent=35 // loop_footer_branch
                %183 = sbr.rel target = $region38
              $region43: #{yakir_forward.35} parent=35 // loop_exit
                _
            $region36: #{yakir_forward.35} parent=27 // pred_fallthru
              _
          $region28: #{yakir_forward.35} parent=23 // pred_fallthru
            _
          %219 = vnop
        $region24: #{yakir_forward.35} parent=19 // pred_fallthru
          _
        // Predicated region
        $region62: #{yakir_forward.35} parent=19 // pred_check
          %p220 = pneg %p78
        $region63: #{yakir_forward.35} parent=19 // pred_check_branch
          %222 = sbr.rel (%p220) target = $region65
        $region64: #{yakir_forward.35} parent=19 // pred_region
          %s223 = smul.u32 16, %s18
          %p224 = scmp.lt.s32.totalorder %s223, 47
          %s225 = scalar_select %p224, %s223, 47
          %p226 = scmp.lt.s32.totalorder %s17, 0
          %s227 = scalar_select %p226, %s17, 0
          %s228 = sadd.s32 %s227, %s225
          %s229 = smul.addr %s228, 4
          %s230 = scalar_lea.vmem %s1, %s229
          %s231 = smul.u32 16, %s18
        $region65: #{yakir_forward.35} parent=19 // pred_fallthru
          _
      $region20: #{yakir_forward.35} parent=5 // pred_fallthru
        _
      %p232 = scmp.le.s32.totalorder 1, %s9
      %p233 = scmp.lt.s32.totalorder %s9, 4
      %p234 = pnand %p232, %p233
      %p235 = pneg %p234
      // Predicated region
      $region66: #{yakir_forward.35} parent=5 // pred_check
        _
      $region67: #{yakir_forward.35} parent=5 // pred_check_branch
        %237 = sbr.rel (%p234) target = $region69
      $region68: #{yakir_forward.35} parent=5 // pred_region
        %s238 = ssub.s32 %s9, 1
        %s239 = sand.u32 %s43, 1
        %s240 = sand.u32 %s43, 1
        %s241 = smul.addr %s240, 8
        %s242 = scalar_lea.vmem [#allocation3], %s241
        // Predicated region
        $region70: #{yakir_forward.35} parent=68 // pred_check
          %p243 = pneg %p56
        $region71: #{yakir_forward.35} parent=68 // pred_check_branch
          %245 = sbr.rel (%p243) target = $region73
        $region72: #{yakir_forward.35} parent=68 // pred_region
          _
        $region73: #{yakir_forward.35} parent=68 // pred_fallthru
          _
        %s246 = sand.u32 %s43, 1
        %s247 = sand.u32 %s43, 1
        %s248 = smul.addr %s247, 8
        %s249 = scalar_lea.vmem [#allocation3], %s248
        %p250 = pneg %p56
        %p251 = pneg %p53
        %s252 = smul.u32 16, %s21
        %p253 = scmp.lt.s32.totalorder %s252, 47
        %s254 = scalar_select %p253, %s252, 47
        %p255 = scmp.lt.s32.totalorder %s20, 0
        %s256 = scalar_select %p255, %s20, 0
        %s257 = sadd.s32 %s256, %s254
        %s258 = smul.addr %s257, 4
        %s259 = scalar_lea.vmem %s1, %s258
        %p260 = pneg %p84
        %p261 = pneg %p81
        %p262 = scmp.lt.s32.totalorder %s20, 0
        %s263 = scalar_select %p262, %s20, 0
        %s264 = scalar_lea.vmem %s2, %s263
        %p265 = pneg %p110
        %p266 = pneg %p107
        %p267 = pneg %p138
        %p268 = pneg %p135
        %s269 = smul.u32 2, %s19
        %p270 = scmp.lt.s32.totalorder %s269, 1
        %s271 = scalar_select %p270, %s269, 1
        %p272 = scmp.lt.s32.totalorder %s20, 0
        %s273 = scalar_select %p272, %s20, 0
        %s274 = sadd.s32 %s273, %s271
        %s275 = smul.addr %s274, 4
        %s276 = scalar_lea.vmem %s3, %s275
        %s277 = smul.u32 2, %s19
        %s278 = smul.u32 16, %s21
        %p279 = scmp.lt.s32.totalorder %s278, 47
        %s280 = scalar_select %p279, %s278, 47
        %p281 = scmp.lt.s32.totalorder %s20, 0
        %s282 = scalar_select %p281, %s20, 0
        %s283 = sadd.s32 %s282, %s280
        %s284 = smul.addr %s283, 4
        %s285 = scalar_lea.vmem %s1, %s284
        %s286 = smul.u32 16, %s21
        %p287 = scmp.lt.s32.totalorder %s20, 0
        %s288 = scalar_select %p287, %s20, 0
        %s289 = scalar_lea.vmem %s2, %s288
        %s290 = smul.u32 2, %s19
        %p291 = scmp.lt.s32.totalorder %s290, 1
        %s292 = scalar_select %p291, %s290, 1
        %p293 = scmp.lt.s32.totalorder %s20, 0
        %s294 = scalar_select %p293, %s20, 0
        %s295 = sadd.s32 %s294, %s292
        %s296 = smul.addr %s295, 4
        %s297 = scalar_lea.vmem %s3, %s296
        %s298 = smul.u32 2, %s19
        %p299 = scmp.eq.s32.totalorder %s21, 0
        // Predicated region
        $region74: #{yakir_forward.35} parent=68 // pred_check
          %p300 = pneg %p299
        $region75: #{yakir_forward.35} parent=68 // pred_check_branch
          %302 = sbr.rel (%p300) target = $region77
        $region76: #{yakir_forward.35} parent=68 // pred_region
          %303 = vst [vmem:[#allocation2] sm:$0xff] 0.0
          %304 = vst [vmem:[#allocation2 + $0x8] sm:$0xff] 0.0
        $region77: #{yakir_forward.35} parent=68 // pred_fallthru
          _
        %v305 = vld [vmem:[#allocation2] sm:$0xff]
        %v306 = vld [vmem:[#allocation2 + $0x8] sm:$0xff]
        %v307 = vld [vmem:[%s242] sm:$0xf]
        %v308 = vld [vmem:[%s242 + $0x4] sm:$0xf]
        %v309 = vld [vmem:[%s285] sm:$0xf]
        %v310 = vld [vmem:[%s285 + $0x4] sm:$0xf]
        %v311 = vld [vmem:[%s285 + $0x8] sm:$0xf]
        %v312 = vld [vmem:[%s285 + $0xc] sm:$0xf]
        %v313 = vld [vmem:[%s285 + $0x10] sm:$0xf]
        %v314 = vld [vmem:[%s285 + $0x14] sm:$0xf]
        %v315 = vld [vmem:[%s285 + $0x18] sm:$0xf]
        %v316 = vld [vmem:[%s285 + $0x1c] sm:$0xf]
        %v317 = vld [vmem:[%s285 + $0x20] sm:$0xf]
        %v318 = vld [vmem:[%s285 + $0x24] sm:$0xf]
        %v319 = vld [vmem:[%s285 + $0x28] sm:$0xf]
        %v320 = vld [vmem:[%s285 + $0x2c] sm:$0xf]
        %v321 = vld [vmem:[%s285 + $0x30] sm:$0xf]
        %v322 = vld [vmem:[%s285 + $0x34] sm:$0xf]
        %v323 = vld [vmem:[%s285 + $0x38] sm:$0xf]
        %v324 = vld [vmem:[%s285 + $0x3c] sm:$0xf]
        %v327 = vunpack.c.l.b16 %v307
        %v328 = vunpack.c.l.b16 %v308
        %v329 = vpack.c.b16 %v328, %v327
        %v347 = vunpack.c.l.b16 %v309
        %v348 = vunpack.c.l.b16 %v310
        %v349 = vunpack.c.l.b16 %v311
        %v350 = vunpack.c.l.b16 %v312
        %v351 = vunpack.c.l.b16 %v313
        %v352 = vunpack.c.l.b16 %v314
        %v353 = vunpack.c.l.b16 %v315
        %v354 = vunpack.c.l.b16 %v316
        %v355 = vunpack.c.l.b16 %v317
        %v356 = vunpack.c.l.b16 %v318
        %v357 = vunpack.c.l.b16 %v319
        %v358 = vunpack.c.l.b16 %v320
        %v359 = vunpack.c.l.b16 %v321
        %v360 = vunpack.c.l.b16 %v322
        %v361 = vunpack.c.l.b16 %v323
        %v362 = vunpack.c.l.b16 %v324
        %v363 = vpack.c.b16 %v348, %v347
        %v364 = vpack.c.b16 %v350, %v349
        %v365 = vpack.c.b16 %v352, %v351
        %v366 = vpack.c.b16 %v354, %v353
        %v367 = vpack.c.b16 %v356, %v355
        %v368 = vpack.c.b16 %v358, %v357
        %v369 = vpack.c.b16 %v360, %v359
        %v370 = vpack.c.b16 %v362, %v361
        %379 = vmatpush.bf16.msra.mxu0 %v370
        %380 = vmatpush.bf16.msra.mxu0 %v369
        %381 = vmatpush.bf16.msra.mxu0 %v368
        %382 = vmatpush.bf16.msra.mxu0 %v367
        %383 = vmatpush.bf16.msra.mxu0 %v366
        %384 = vmatpush.bf16.msra.mxu0 %v365
        %385 = vmatpush.bf16.msra.mxu0 %v364
        %386 = vmatpush.bf16.msra.mxu0 %v363
        %387 = vmatmul.bf16.gmra.mxu0 %v329
        %v388 = vpop.f32.mrf.mxu0
        %v389 = vadd.f32 0.0, %v388
        %v390 = vpop.f32.mrf.mxu0
        %v391 = vadd.f32 0.0, %v390
        %392 = vdwg.mxu0
        %v393 = vadd.f32 %v305, %v389
        %v394 = vadd.f32 %v306, %v391
        %395 = vst [vmem:[#allocation2] sm:$0xff] %v393
        %396 = vst [vmem:[#allocation2 + $0x8] sm:$0xff] %v394
        %p397 = scmp.eq.s32.totalorder %s21, 2
        // Predicated region
        $region78: #{yakir_forward.35} parent=68 // pred_check
          %p398 = pneg %p397
        $region79: #{yakir_forward.35} parent=68 // pred_check_branch
          %400 = sbr.rel (%p398) target = $region81
        $region80: #{yakir_forward.35} parent=68 // pred_region
          %v401 = vld [vmem:[#allocation2] sm:$0xff]
          %v402 = vld [vmem:[#allocation2 + $0x8] sm:$0xff]
          %v403 = vld [vmem:[%s289] sm:$0x1]
          %v405 = vperm.slane %v403, 0
          %v407 = vadd.f32 %v401, %v405
          %v408 = vadd.f32 %v402, %v405
          %v409 = vpack.c.bf16 %v407, %v407
          %v410 = vpack.c.bf16 %v408, %v408
          %411 = vst [vmem:[%s297] sm:$0xf] %v409
          %412 = vst [vmem:[%s297 + $0x4] sm:$0xf] %v410
        $region81: #{yakir_forward.35} parent=68 // pred_fallthru
          _
        %s413 = smul.u32 2, %s19
        %p414 = scmp.lt.s32.totalorder %s413, 1
        %s415 = scalar_select %p414, %s413, 1
        %p416 = scmp.lt.s32.totalorder %s20, 0
        %s417 = scalar_select %p416, %s20, 0
        %s418 = sadd.s32 %s417, %s415
        %s419 = smul.addr %s418, 4
        %s420 = scalar_lea.vmem %s3, %s419
        // Predicated region
        $region82: #{yakir_forward.35} parent=68 // pred_check
          %p421 = pneg %p135
        $region83: #{yakir_forward.35} parent=68 // pred_check_branch
          %423 = sbr.rel (%p421) target = $region85
        $region84: #{yakir_forward.35} parent=68 // pred_region
          %s424 = smul.u32 2, %s19
        $region85: #{yakir_forward.35} parent=68 // pred_fallthru
          _
        // Predicated region
        $region86: #{yakir_forward.35} parent=68 // pred_check
          %p425 = pneg %p135
        $region87: #{yakir_forward.35} parent=68 // pred_check_branch
          %427 = sbr.rel (%p425) target = $region89
        $region88: #{yakir_forward.35} parent=68 // pred_region
          %s428 = smul.u32 2, %s19
          %p429 = scmp.lt.s32.totalorder %s428, 1
          %s430 = scalar_select %p429, %s428, 1
          %p431 = scmp.lt.s32.totalorder %s20, 0
          %s432 = scalar_select %p431, %s20, 0
          %s433 = sadd.s32 %s432, %s430
          %s434 = smul.addr %s433, 4
          %s435 = scalar_lea.vmem %s3, %s434
        $region89: #{yakir_forward.35} parent=68 // pred_fallthru
          _
      $region69: #{yakir_forward.35} parent=5 // pred_fallthru
        _
      %p436 = scmp.le.s32.totalorder 2, %s9
      // Predicated region
      $region90: #{yakir_forward.35} parent=5 // pred_check
        %p437 = pneg %p436
      $region91: #{yakir_forward.35} parent=5 // pred_check_branch
        %439 = sbr.rel (%p437) target = $region93
      $region92: #{yakir_forward.35} parent=5 // pred_region
        %s440 = ssub.s32 %s9, 2
      $region93: #{yakir_forward.35} parent=5 // pred_fallthru
        _
    $region6: #{yakir_forward.35} parent=1 // loop_footer
      %s13 = sadd.s32 1, %s9
    $region7: #{yakir_forward.35} parent=1 // loop_footer_branch
      %8 = sbr.rel target = $region3
    $region8: #{yakir_forward.35} parent=1 // loop_exit
      _

// kernel: yakir_forward.36
$region0: #{yakir_forward.36}
  #allocation0 [shape = 'u32[]', space=smem, size = 0x4, offset = 0x4, fixed_abs, tag = 'smem constant byte address 0x4 - core index']
  #allocation1 [shape = 'u32[72,128]{1,0:T(1,128)}', space=vmem, size = 0x9000, scoped, tag = 'internal scratch']
  %s0 = inlined_call_operand.vmem [shape: bf16[1,2,128], index: 0, kind: input, shape index: {}]
  %s1 = inlined_call_operand.vmem [shape: f32[1,2,128], index: 1, kind: output, shape index: {}]
  %s2 = sld [smem:[#allocation0]]
  $region14: #{yakir_forward.36} parent=0
    _
  %s4 = ssub.s32 1, %s2
  %s5 = scalar_select 0, %s4, %s2
  // Predicated region
  $region2: #{yakir_forward.36} parent=0 // pred_check
    _
  $region3: #{yakir_forward.36} parent=0 // pred_check_branch
    %7 = sbr.rel (0) target = $region5
  $region4: #{yakir_forward.36} parent=0 // pred_region
    _
  $region5: #{yakir_forward.36} parent=0 // pred_fallthru
    _
  %v8 = vld [vmem:[%s0] sm:$0x1]
  %v9 = vunpack.c.l.bf16 %v8
  %vm10 = vcmask 1041408
  %v11 = vsel %vm10, %v9, 0.0
  %12 = vadd.xlane.f32.xlu0 %v11
  %v13 = vpop.xlane.xlu0 %12
  %v14 = vrot.slane %v13, 4
  %v15 = vadd.f32 %v13, %v14
  %v16 = vrot.slane %v15, 2
  %v17 = vadd.f32 %v15, %v16
  %v18 = vrot.slane %v17, 1
  %v19 = vadd.f32 %v17, %v18
  %s20 = vtos %v19
  %s21 = smul.f32 %s20, 0.00390625
  %v22 = vstv %s21
  %v23 = vsub.f32 %v9, %v22
  %v24 = vmul.f32 %v23, %v23
  %v25 = vsel %vm10, %v24, 0.0
  %26 = vadd.xlane.f32.xlu0 %v25
  %v27 = vpop.xlane.xlu0 %26
  %v28 = vrot.slane %v27, 4
  %v29 = vadd.f32 %v27, %v28
  %v30 = vrot.slane %v29, 2
  %v31 = vadd.f32 %v29, %v30
  %v32 = vrot.slane %v31, 1
  %v33 = vadd.f32 %v31, %v32
  %s34 = vtos %v33
  %s35 = smul.f32 %s34, 0.003921569
  %s36 = smax.f32 %s35, 1e-12
  %v37 = vstv %s36
  %v38 = vrsqrt.pop %v37
  %v39 = vmul.f32 %v38, %v37
  %v40 = vmul.f32 %v39, %v38
  %v41 = vmul.f32 0.5, %v40
  %v42 = vsub.f32 1.5, %v41
  %v43 = vmul.f32 %v38, %v42
  %vm44 = vweird.f32 %v37
  %vm45 = vweird.f32 %v38
  %vm46 = vmor %vm44, %vm45
  %v47 = vsel %vm46, %v38, %v43
  %s48 = vtos %v47
  %v49 = vstv %s48
  %v50 = vmul.f32 %v9, %v49
  %51 = vst [vmem:[%s1] sm:$0x3] %v50
  // Predicated region
  $region6: #{yakir_forward.36} parent=0 // pred_check
    _
  $region7: #{yakir_forward.36} parent=0 // pred_check_branch
    %53 = sbr.rel (0) target = $region9
  $region8: #{yakir_forward.36} parent=0 // pred_region
    _
  $region9: #{yakir_forward.36} parent=0 // pred_fallthru
    _
  // Predicated region
  $region10: #{yakir_forward.36} parent=0 // pred_check
    _
  $region11: #{yakir_forward.36} parent=0 // pred_check_branch
    %55 = sbr.rel (0) target = $region13
  $region12: #{yakir_forward.36} parent=0 // pred_region
    _
  $region13: #{yakir_forward.36} parent=0 // pred_fallthru
    _

// kernel: yakir_forward.38
$region0: #{yakir_forward.38}
  #allocation0 [shape = 'u32[]', space=smem, size = 0x4, offset = 0x4, fixed_abs, tag = 'smem constant byte address 0x4 - core index']
  #allocation1 [shape = 'u32[72,128]{1,0:T(1,128)}', space=vmem, size = 0x9000, scoped, tag = 'internal scratch']
  %s0 = inlined_call_operand.vmem [shape: bf16[1,4,128], index: 0, kind: input, shape index: {}]
  %s1 = inlined_call_operand.vmem [shape: f32[1,4,128], index: 1, kind: output, shape index: {}]
  %s2 = sld [smem:[#allocation0]]
  $region14: #{yakir_forward.38} parent=0
    _
  %s4 = ssub.s32 1, %s2
  %s5 = scalar_select 0, %s4, %s2
  // Predicated region
  $region2: #{yakir_forward.38} parent=0 // pred_check
    _
  $region3: #{yakir_forward.38} parent=0 // pred_check_branch
    %7 = sbr.rel (0) target = $region5
  $region4: #{yakir_forward.38} parent=0 // pred_region
    _
  $region5: #{yakir_forward.38} parent=0 // pred_fallthru
    _
  %v8 = vld [vmem:[%s0] sm:$0x3]
  %v9 = vunpack.c.l.bf16 %v8
  %vm10 = vcmask 1043456
  %v11 = vsel %vm10, %v9, 0.0
  %12 = vadd.xlane.f32.xlu0 %v11
  %v13 = vpop.xlane.xlu0 %12
  %v14 = vrot.slane %v13, 4
  %v15 = vadd.f32 %v13, %v14
  %v16 = vrot.slane %v15, 2
  %v17 = vadd.f32 %v15, %v16
  %v18 = vrot.slane %v17, 1
  %v19 = vadd.f32 %v17, %v18
  %s20 = vtos %v19
  %s21 = smul.f32 %s20, 0.001953125
  %v22 = vstv %s21
  %v23 = vsub.f32 %v9, %v22
  %v24 = vmul.f32 %v23, %v23
  %v25 = vsel %vm10, %v24, 0.0
  %26 = vadd.xlane.f32.xlu0 %v25
  %v27 = vpop.xlane.xlu0 %26
  %v28 = vrot.slane %v27, 4
  %v29 = vadd.f32 %v27, %v28
  %v30 = vrot.slane %v29, 2
  %v31 = vadd.f32 %v29, %v30
  %v32 = vrot.slane %v31, 1
  %v33 = vadd.f32 %v31, %v32
  %s34 = vtos %v33
  %s35 = smul.f32 %s34, 0.0019569471
  %s36 = smax.f32 %s35, 1e-12
  %v37 = vstv %s36
  %v38 = vrsqrt.pop %v37
  %v39 = vmul.f32 %v38, %v37
  %v40 = vmul.f32 %v39, %v38
  %v41 = vmul.f32 0.5, %v40
  %v42 = vsub.f32 1.5, %v41
  %v43 = vmul.f32 %v38, %v42
  %vm44 = vweird.f32 %v37
  %vm45 = vweird.f32 %v38
  %vm46 = vmor %vm44, %vm45
  %v47 = vsel %vm46, %v38, %v43
  %s48 = vtos %v47
  %v49 = vstv %s48
  %v50 = vmul.f32 %v9, %v49
  %51 = vst [vmem:[%s1] sm:$0xf] %v50
  // Predicated region
  $region6: #{yakir_forward.38} parent=0 // pred_check
    _
  $region7: #{yakir_forward.38} parent=0 // pred_check_branch
    %53 = sbr.rel (0) target = $region9
  $region8: #{yakir_forward.38} parent=0 // pred_region
    _
  $region9: #{yakir_forward.38} parent=0 // pred_fallthru
    _
  // Predicated region
  $region10: #{yakir_forward.38} parent=0 // pred_check
    _
  $region11: #{yakir_forward.38} parent=0 // pred_check_branch
    %55 = sbr.rel (0) target = $region13
  $region12: #{yakir_forward.38} parent=0 // pred_region
    _
  $region13: #{yakir_forward.38} parent=0 // pred_fallthru
    _

// kernel: yakir_forward.40
$region0: #{yakir_forward.40}
  #allocation0 [shape = 'u32[]', space=smem, size = 0x4, offset = 0x4, fixed_abs, tag = 'smem constant byte address 0x4 - core index']
  #allocation1 [shape = 'u32[72,128]{1,0:T(1,128)}', space=vmem, size = 0x9000, scoped, tag = 'internal scratch']
  %s0 = inlined_call_operand.vmem [shape: bf16[1,8,128], index: 0, kind: input, shape index: {}]
  %s1 = inlined_call_operand.vmem [shape: f32[1,8,128], index: 1, kind: output, shape index: {}]
  %s2 = sld [smem:[#allocation0]]
  $region14: #{yakir_forward.40} parent=0
    _
  %s4 = ssub.s32 1, %s2
  %s5 = scalar_select 0, %s4, %s2
  // Predicated region
  $region2: #{yakir_forward.40} parent=0 // pred_check
    _
  $region3: #{yakir_forward.40} parent=0 // pred_check_branch
    %7 = sbr.rel (0) target = $region5
  $region4: #{yakir_forward.40} parent=0 // pred_region
    _
  $region5: #{yakir_forward.40} parent=0 // pred_fallthru
    _
  %v8 = vld [vmem:[%s0] sm:$0xf]
  %v9 = vunpack.c.l.bf16 %v8
  %10 = vadd.xlane.f32.xlu0 %v9
  %v11 = vpop.xlane.xlu0 %10
  %v12 = vrot.slane %v11, 4
  %v13 = vadd.f32 %v11, %v12
  %v14 = vrot.slane %v13, 2
  %v15 = vadd.f32 %v13, %v14
  %v16 = vrot.slane %v15, 1
  %v17 = vadd.f32 %v15, %v16
  %s18 = vtos %v17
  %s19 = smul.f32 %s18, 0.0009765625
  %v20 = vstv %s19
  %v21 = vsub.f32 %v9, %v20
  %v22 = vmul.f32 %v21, %v21
  %23 = vadd.xlane.f32.xlu0 %v22
  %v24 = vpop.xlane.xlu0 %23
  %v25 = vrot.slane %v24, 4
  %v26 = vadd.f32 %v24, %v25
  %v27 = vrot.slane %v26, 2
  %v28 = vadd.f32 %v26, %v27
  %v29 = vrot.slane %v28, 1
  %v30 = vadd.f32 %v28, %v29
  %s31 = vtos %v30
  %s32 = smul.f32 %s31, 0.0009775171
  %s33 = smax.f32 %s32, 1e-12
  %v34 = vstv %s33
  %v35 = vrsqrt.pop %v34
  %v36 = vmul.f32 %v35, %v34
  %v37 = vmul.f32 %v36, %v35
  %v38 = vmul.f32 0.5, %v37
  %v39 = vsub.f32 1.5, %v38
  %v40 = vmul.f32 %v35, %v39
  %vm41 = vweird.f32 %v34
  %vm42 = vweird.f32 %v35
  %vm43 = vmor %vm41, %vm42
  %v44 = vsel %vm43, %v35, %v40
  %s45 = vtos %v44
  %v46 = vstv %s45
  %v47 = vmul.f32 %v9, %v46
  %48 = vst [vmem:[%s1] sm:$0xff] %v47
  // Predicated region
  $region6: #{yakir_forward.40} parent=0 // pred_check
    _
  $region7: #{yakir_forward.40} parent=0 // pred_check_branch
    %50 = sbr.rel (0) target = $region9
  $region8: #{yakir_forward.40} parent=0 // pred_region
    _
  $region9: #{yakir_forward.40} parent=0 // pred_fallthru
    _
  // Predicated region
  $region10: #{yakir_forward.40} parent=0 // pred_check
    _
  $region11: #{yakir_forward.40} parent=0 // pred_check_branch
    %52 = sbr.rel (0) target = $region13
  $region12: #{yakir_forward.40} parent=0 // pred_region
    _
  $region13: #{yakir_forward.40} parent=0 // pred_fallthru
    _

// kernel: yakir_forward.41
$region0: #{yakir_forward.41}
  #allocation0 [shape = 'u32[]', space=smem, size = 0x4, offset = 0x4, fixed_abs, tag = 'smem constant byte address 0x4 - core index']
  #allocation1 [shape = 'u32[72,128]{1,0:T(1,128)}', space=vmem, size = 0x9000, scoped, tag = 'internal scratch']
  #allocation2 [shape = 'f32[32,128]{1,0:T(8,128)}', space=vmem, size = 0x4000, scoped, tag = 'scratch operand']
  %s0 = inlined_call_operand.vmem [shape: bf16[32,384], index: 0, kind: input, shape index: {}]
  %s1 = inlined_call_operand.vmem [shape: bf16[384,128], index: 1, kind: input, shape index: {}]
  %s2 = inlined_call_operand.vmem [shape: f32[1,128], index: 2, kind: input, shape index: {}]
  %s3 = inlined_call_operand.vmem [shape: bf16[32,128], index: 3, kind: output, shape index: {}]
  %s4 = sld [smem:[#allocation0]]
  $region94: #{yakir_forward.41} parent=0
    _
  %s6 = ssub.s32 1, %s4
  %s7 = scalar_select 0, %s6, %s4
  $region1: #{yakir_forward.41} parent=0
    #allocation3 [shape = 'u8[16384]{0}', space=vmem, size = 0x4000, scoped, tag = 'input window, operand 0']
    loop: start=0, step=1, limit=5
    $region2: #{yakir_forward.41} parent=1 // loop_pre_header
      _
    $region3: #{yakir_forward.41} parent=1 // loop_header
      %s9 = sphi 0, %s13
      %p10 = scmp.ge.s32.totalorder %s9, 5
      %s16 = sphi 0, %s35
      %s17 = sphi 0, %s31
      %s18 = sphi 0, %s27
      %s19 = sphi 0, %s16
      %s20 = sphi 0, %s17
      %s21 = sphi 0, %s18
      %s22 = sphi 0, %s19
      %s23 = sphi 0, %s20
      %s24 = sphi 0, %s21
      %s40 = sphi 0, %s42
      %s43 = sphi 0, %s40
      %s44 = sphi 0, %s43
      %s60 = sphi 0, %s44
      %s68 = sphi 0, %s70
      %s71 = sphi 0, %s68
      %s72 = sphi 0, %s71
      %s88 = sphi 0, %s72
      %s94 = sphi 0, %s96
      %s97 = sphi 0, %s94
      %s98 = sphi 0, %s97
      %s114 = sphi 0, %s98
      %s122 = sphi 0, %s124
      %s125 = sphi 0, %s122
      %s126 = sphi 0, %s125
      %s142 = sphi 0, %s126
    $region4: #{yakir_forward.41} parent=1 // loop_header_branch
      %12 = sbr.rel (%p10) target = $region8
    $region5: #{yakir_forward.41} parent=1 // loop_body
      %s14 = ssub.s32 %s9, 1
      %s15 = ssub.s32 %s9, 2
      %s25 = sadd.s32 1, %s18
      %p26 = scmp.ge.s32.totalorder %s25, 3
      %s27 = scalar_select %p26, 0, %s25
      %s28 = sadd.s32 1, %s17
      %s29 = scalar_select %p26, %s28, %s17
      %p30 = scmp.ge.s32.totalorder %s29, 1
      %s31 = scalar_select %p30, 0, %s29
      %s32 = sadd.s32 1, %s16
      %s33 = scalar_select %p30, %s32, %s16
      %p34 = scmp.ge.s32.totalorder %s33, 1
      %s35 = scalar_select %p34, 0, %s33
      %s36 = ssub.s32 %s16, %s35
      %s37 = ssub.s32 %s18, %s27
      %s38 = sor.u32 %s36, %s37
      %p39 = scmp.eq.s32.totalorder %s38, 0
      %s41 = sadd.s32 %s40, 1
      %s42 = scalar_select %p39, %s40, %s41
      %p45 = pneg %p39
      %p46 = scmp.eq.s32.totalorder %s9, 2
      %p47 = por %p45, %p46
      %p48 = scmp.ne.s32.totalorder %s40, %s43
      %p49 = scmp.eq.s32.totalorder %s9, 0
      %p50 = por %p48, %p49
      %p51 = scmp.ne.s32.totalorder %s40, %s43
      %p52 = scmp.eq.s32.totalorder %s14, 2
      %p53 = por %p51, %p52
      %p54 = scmp.ne.s32.totalorder %s43, %s44
      %p55 = scmp.eq.s32.totalorder %s14, 0
      %p56 = por %p54, %p55
      %p57 = scmp.ne.s32.totalorder %s43, %s44
      %p58 = scmp.eq.s32.totalorder %s15, 2
      %p59 = por %p57, %p58
      %p61 = scmp.ne.s32.totalorder %s44, %s60
      %p62 = scmp.eq.s32.totalorder %s15, 0
      %p63 = por %p61, %p62
      %s64 = ssub.s32 %s18, %s27
      %s65 = ssub.s32 %s17, %s31
      %s66 = sor.u32 %s64, %s65
      %p67 = scmp.eq.s32.totalorder %s66, 0
      %s69 = sadd.s32 %s68, 1
      %s70 = scalar_select %p67, %s68, %s69
      %p73 = pneg %p67
      %p74 = scmp.eq.s32.totalorder %s9, 2
      %p75 = por %p73, %p74
      %p76 = scmp.ne.s32.totalorder %s68, %s71
      %p77 = scmp.eq.s32.totalorder %s9, 0
      %p78 = por %p76, %p77
      %p79 = scmp.ne.s32.totalorder %s68, %s71
      %p80 = scmp.eq.s32.totalorder %s14, 2
      %p81 = por %p79, %p80
      %p82 = scmp.ne.s32.totalorder %s71, %s72
      %p83 = scmp.eq.s32.totalorder %s14, 0
      %p84 = por %p82, %p83
      %p85 = scmp.ne.s32.totalorder %s71, %s72
      %p86 = scmp.eq.s32.totalorder %s15, 2
      %p87 = por %p85, %p86
      %p89 = scmp.ne.s32.totalorder %s72, %s88
      %p90 = scmp.eq.s32.totalorder %s15, 0
      %p91 = por %p89, %p90
      %s92 = ssub.s32 %s17, %s31
      %p93 = scmp.eq.s32.totalorder %s92, 0
      %s95 = sadd.s32 %s94, 1
      %s96 = scalar_select %p93, %s94, %s95
      %p99 = pneg %p93
      %p100 = scmp.eq.s32.totalorder %s9, 2
      %p101 = por %p99, %p100
      %p102 = scmp.ne.s32.totalorder %s94, %s97
      %p103 = scmp.eq.s32.totalorder %s9, 0
      %p104 = por %p102, %p103
      %p105 = scmp.ne.s32.totalorder %s94, %s97
      %p106 = scmp.eq.s32.totalorder %s14, 2
      %p107 = por %p105, %p106
      %p108 = scmp.ne.s32.totalorder %s97, %s98
      %p109 = scmp.eq.s32.totalorder %s14, 0
      %p110 = por %p108, %p109
      %p111 = scmp.ne.s32.totalorder %s97, %s98
      %p112 = scmp.eq.s32.totalorder %s15, 2
      %p113 = por %p111, %p112
      %p115 = scmp.ne.s32.totalorder %s98, %s114
      %p116 = scmp.eq.s32.totalorder %s15, 0
      %p117 = por %p115, %p116
      %s118 = ssub.s32 %s16, %s35
      %s119 = ssub.s32 %s17, %s31
      %s120 = sor.u32 %s118, %s119
      %p121 = scmp.eq.s32.totalorder %s120, 0
      %s123 = sadd.s32 %s122, 1
      %s124 = scalar_select %p121, %s122, %s123
      %p127 = pneg %p121
      %p128 = scmp.eq.s32.totalorder %s9, 2
      %p129 = por %p127, %p128
      %p130 = scmp.ne.s32.totalorder %s122, %s125
      %p131 = scmp.eq.s32.totalorder %s9, 0
      %p132 = por %p130, %p131
      %p133 = scmp.ne.s32.totalorder %s122, %s125
      %p134 = scmp.eq.s32.totalorder %s14, 2
      %p135 = por %p133, %p134
      %p136 = scmp.ne.s32.totalorder %s125, %s126
      %p137 = scmp.eq.s32.totalorder %s14, 0
      %p138 = por %p136, %p137
      %p139 = scmp.ne.s32.totalorder %s125, %s126
      %p140 = scmp.eq.s32.totalorder %s15, 2
      %p141 = por %p139, %p140
      %p143 = scmp.ne.s32.totalorder %s126, %s142
      %p144 = scmp.eq.s32.totalorder %s15, 0
      %p145 = por %p143, %p144
      %p146 = scmp.le.s32.totalorder 1, %s9
      %p147 = scmp.lt.s32.totalorder %s9, 4
      %p148 = pnand %p146, %p147
      %p149 = pneg %p148
      // Predicated region
      $region9: #{yakir_forward.41} parent=5 // pred_check
        _
      $region10: #{yakir_forward.41} parent=5 // pred_check_branch
        %151 = sbr.rel (%p148) target = $region12
      $region11: #{yakir_forward.41} parent=5 // pred_region
        %s152 = ssub.s32 %s9, 1
        // Predicated region
        $region13: #{yakir_forward.41} parent=11 // pred_check
          %p153 = pneg %p110
        $region14: #{yakir_forward.41} parent=11 // pred_check_branch
          %155 = sbr.rel (%p153) target = $region16
        $region15: #{yakir_forward.41} parent=11 // pred_region
          %p156 = scmp.lt.s32.totalorder %s20, 0
          %s157 = scalar_select %p156, %s20, 0
          %s158 = scalar_lea.vmem %s2, %s157
        $region16: #{yakir_forward.41} parent=11 // pred_fallthru
          _
      $region12: #{yakir_forward.41} parent=5 // pred_fallthru
        _
      %p159 = scmp.lt.s32.totalorder %s9, 3
      // Predicated region
      $region17: #{yakir_forward.41} parent=5 // pred_check
        %p160 = pneg %p159
      $region18: #{yakir_forward.41} parent=5 // pred_check_branch
        %162 = sbr.rel (%p160) target = $region20
      $region19: #{yakir_forward.41} parent=5 // pred_region
        // Predicated region
        $region21: #{yakir_forward.41} parent=19 // pred_check
          %p163 = pneg %p50
        $region22: #{yakir_forward.41} parent=19 // pred_check_branch
          %165 = sbr.rel (%p163) target = $region24
        $region23: #{yakir_forward.41} parent=19 // pred_region
          %s166 = sand.u32 %s40, 1
          %s167 = sand.u32 %s40, 1
          %s168 = smul.addr %s167, 16
          %s169 = scalar_lea.vmem [#allocation3], %s168
          %s170 = smul.u32 4, %s16
          %s171 = smul.addr %s170, 3
          %s172 = sadd.s32 %s18, %s171
          %s173 = smul.addr %s172, 4
          %s174 = scalar_lea.vmem %s0, %s173
          // Predicated region
          $region25: #{yakir_forward.41} parent=23 // pred_check
            _
          $region26: #{yakir_forward.41} parent=23 // pred_check_branch
            %176 = sbr.rel (0) target = $region28
          $region27: #{yakir_forward.41} parent=23 // pred_region
            // Predicated region
            $region29: #{yakir_forward.41} parent=27 // pred_check
              _
            $region30: #{yakir_forward.41} parent=27 // pred_check_branch
              %178 = sbr.rel target = $region32
            $region31: #{yakir_forward.41} parent=27 // pred_region
              // Predicated region
              $region44: #{yakir_forward.41} parent=31 // pred_check
                _
              $region45: #{yakir_forward.41} parent=31 // pred_check_branch
                %200 = sbr.rel (0) target = $region47
              $region46: #{yakir_forward.41} parent=31 // pred_region
                loop: start=0, step=1, limit=1
                $region48: #{yakir_forward.41} parent=46 // loop_pre_header
                  _
                $region49: #{yakir_forward.41} parent=46 // loop_header
                  %s202 = sphi 0, %s206
                  %p203 = scmp.ge.s32.totalorder %s202, 1
                  %s207 = sphi %s174, %s174
                  %s208 = sphi %s169, %s169
                $region50: #{yakir_forward.41} parent=46 // loop_header_branch
                  %205 = sbr.rel (%p203) target = $region54
                $region51: #{yakir_forward.41} parent=46 // loop_body
                  _
                $region52: #{yakir_forward.41} parent=46 // loop_footer
                  %s206 = sadd.s32 1, %s202
                $region53: #{yakir_forward.41} parent=46 // loop_footer_branch
                  %201 = sbr.rel target = $region49
                $region54: #{yakir_forward.41} parent=46 // loop_exit
                  _
                %s210 = ssub.s32 16, 1
                loop: start=0, step=1, limit=1
                $region55: #{yakir_forward.41} parent=46 // loop_pre_header
                  _
                $region56: #{yakir_forward.41} parent=46 // loop_header
                  %s212 = sphi 0, %s216
                  %p213 = scmp.ge.s32.totalorder %s212, 1
                  %s217 = sphi %s174, %s174
                  %s218 = sphi %s169, %s169
                $region57: #{yakir_forward.41} parent=46 // loop_header_branch
                  %215 = sbr.rel (%p213) target = $region61
                $region58: #{yakir_forward.41} parent=46 // loop_body
                  %v219 = vld [vmem:[%s217] sm:%s210]
                  %220 = vst [vmem:[%s218] sm:%s210] %v219
                  %v221 = vld [vmem:[%s217 + $0xc] sm:%s210]
                  %222 = vst [vmem:[%s218 + $0x4] sm:%s210] %v221
                  %v223 = vld [vmem:[%s217 + $0x18] sm:%s210]
                  %224 = vst [vmem:[%s218 + $0x8] sm:%s210] %v223
                  %v225 = vld [vmem:[%s217 + $0x24] sm:%s210]
                  %226 = vst [vmem:[%s218 + $0xc] sm:%s210] %v225
                $region59: #{yakir_forward.41} parent=46 // loop_footer
                  %s216 = sadd.s32 1, %s212
                $region60: #{yakir_forward.41} parent=46 // loop_footer_branch
                  %211 = sbr.rel target = $region56
                $region61: #{yakir_forward.41} parent=46 // loop_exit
                  _
              $region47: #{yakir_forward.41} parent=31 // pred_fallthru
                _
            $region32: #{yakir_forward.41} parent=27 // pred_fallthru
              _
            // Predicated region
            $region33: #{yakir_forward.41} parent=27 // pred_check
              _
            $region34: #{yakir_forward.41} parent=27 // pred_check_branch
              %180 = sbr.rel (0) target = $region36
            $region35: #{yakir_forward.41} parent=27 // pred_region
              %s182 = ssub.s32 16, 1
              loop: start=0, step=1, limit=1
              $region37: #{yakir_forward.41} parent=35 // loop_pre_header
                _
              $region38: #{yakir_forward.41} parent=35 // loop_header
                %s184 = sphi 0, %s188
                %p185 = scmp.ge.s32.totalorder %s184, 1
                %s189 = sphi %s174, %s174
                %s190 = sphi %s169, %s169
              $region39: #{yakir_forward.41} parent=35 // loop_header_branch
                %187 = sbr.rel (%p185) target = $region43
              $region40: #{yakir_forward.41} parent=35 // loop_body
                %v191 = vld [vmem:[%s189] sm:%s182]
                %192 = vst [vmem:[%s190] sm:%s182] %v191
                %v193 = vld [vmem:[%s189 + $0xc] sm:%s182]
                %194 = vst [vmem:[%s190 + $0x4] sm:%s182] %v193
                %v195 = vld [vmem:[%s189 + $0x18] sm:%s182]
                %196 = vst [vmem:[%s190 + $0x8] sm:%s182] %v195
                %v197 = vld [vmem:[%s189 + $0x24] sm:%s182]
                %198 = vst [vmem:[%s190 + $0xc] sm:%s182] %v197
              $region41: #{yakir_forward.41} parent=35 // loop_footer
                %s188 = sadd.s32 1, %s184
              $region42: #{yakir_forward.41} parent=35 // loop_footer_branch
                %183 = sbr.rel target = $region38
              $region43: #{yakir_forward.41} parent=35 // loop_exit
                _
            $region36: #{yakir_forward.41} parent=27 // pred_fallthru
              _
          $region28: #{yakir_forward.41} parent=23 // pred_fallthru
            _
          %227 = vnop
        $region24: #{yakir_forward.41} parent=19 // pred_fallthru
          _
        // Predicated region
        $region62: #{yakir_forward.41} parent=19 // pred_check
          %p228 = pneg %p78
        $region63: #{yakir_forward.41} parent=19 // pred_check_branch
          %230 = sbr.rel (%p228) target = $region65
        $region64: #{yakir_forward.41} parent=19 // pred_region
          %s231 = smul.u32 16, %s18
          %p232 = scmp.lt.s32.totalorder %s231, 47
          %s233 = scalar_select %p232, %s231, 47
          %p234 = scmp.lt.s32.totalorder %s17, 0
          %s235 = scalar_select %p234, %s17, 0
          %s236 = sadd.s32 %s235, %s233
          %s237 = smul.addr %s236, 4
          %s238 = scalar_lea.vmem %s1, %s237
          %s239 = smul.u32 16, %s18
        $region65: #{yakir_forward.41} parent=19 // pred_fallthru
          _
      $region20: #{yakir_forward.41} parent=5 // pred_fallthru
        _
      %p240 = scmp.le.s32.totalorder 1, %s9
      %p241 = scmp.lt.s32.totalorder %s9, 4
      %p242 = pnand %p240, %p241
      %p243 = pneg %p242
      // Predicated region
      $region66: #{yakir_forward.41} parent=5 // pred_check
        _
      $region67: #{yakir_forward.41} parent=5 // pred_check_branch
        %245 = sbr.rel (%p242) target = $region69
      $region68: #{yakir_forward.41} parent=5 // pred_region
        %s246 = ssub.s32 %s9, 1
        %s247 = sand.u32 %s43, 1
        %s248 = sand.u32 %s43, 1
        %s249 = smul.addr %s248, 16
        %s250 = scalar_lea.vmem [#allocation3], %s249
        // Predicated region
        $region70: #{yakir_forward.41} parent=68 // pred_check
          %p251 = pneg %p56
        $region71: #{yakir_forward.41} parent=68 // pred_check_branch
          %253 = sbr.rel (%p251) target = $region73
        $region72: #{yakir_forward.41} parent=68 // pred_region
          _
        $region73: #{yakir_forward.41} parent=68 // pred_fallthru
          _
        %s254 = sand.u32 %s43, 1
        %s255 = sand.u32 %s43, 1
        %s256 = smul.addr %s255, 16
        %s257 = scalar_lea.vmem [#allocation3], %s256
        %p258 = pneg %p56
        %p259 = pneg %p53
        %s260 = smul.u32 16, %s21
        %p261 = scmp.lt.s32.totalorder %s260, 47
        %s262 = scalar_select %p261, %s260, 47
        %p263 = scmp.lt.s32.totalorder %s20, 0
        %s264 = scalar_select %p263, %s20, 0
        %s265 = sadd.s32 %s264, %s262
        %s266 = smul.addr %s265, 4
        %s267 = scalar_lea.vmem %s1, %s266
        %p268 = pneg %p84
        %p269 = pneg %p81
        %p270 = scmp.lt.s32.totalorder %s20, 0
        %s271 = scalar_select %p270, %s20, 0
        %s272 = scalar_lea.vmem %s2, %s271
        %p273 = pneg %p110
        %p274 = pneg %p107
        %p275 = pneg %p138
        %p276 = pneg %p135
        %s277 = smul.u32 4, %s19
        %p278 = scmp.lt.s32.totalorder %s277, 3
        %s279 = scalar_select %p278, %s277, 3
        %p280 = scmp.lt.s32.totalorder %s20, 0
        %s281 = scalar_select %p280, %s20, 0
        %s282 = sadd.s32 %s281, %s279
        %s283 = smul.addr %s282, 4
        %s284 = scalar_lea.vmem %s3, %s283
        %s285 = smul.u32 4, %s19
        %s286 = smul.u32 16, %s21
        %p287 = scmp.lt.s32.totalorder %s286, 47
        %s288 = scalar_select %p287, %s286, 47
        %p289 = scmp.lt.s32.totalorder %s20, 0
        %s290 = scalar_select %p289, %s20, 0
        %s291 = sadd.s32 %s290, %s288
        %s292 = smul.addr %s291, 4
        %s293 = scalar_lea.vmem %s1, %s292
        %s294 = smul.u32 16, %s21
        %p295 = scmp.lt.s32.totalorder %s20, 0
        %s296 = scalar_select %p295, %s20, 0
        %s297 = scalar_lea.vmem %s2, %s296
        %s298 = smul.u32 4, %s19
        %p299 = scmp.lt.s32.totalorder %s298, 3
        %s300 = scalar_select %p299, %s298, 3
        %p301 = scmp.lt.s32.totalorder %s20, 0
        %s302 = scalar_select %p301, %s20, 0
        %s303 = sadd.s32 %s302, %s300
        %s304 = smul.addr %s303, 4
        %s305 = scalar_lea.vmem %s3, %s304
        %s306 = smul.u32 4, %s19
        %p307 = scmp.eq.s32.totalorder %s21, 0
        // Predicated region
        $region74: #{yakir_forward.41} parent=68 // pred_check
          %p308 = pneg %p307
        $region75: #{yakir_forward.41} parent=68 // pred_check_branch
          %310 = sbr.rel (%p308) target = $region77
        $region76: #{yakir_forward.41} parent=68 // pred_region
          %311 = vst [vmem:[#allocation2] sm:$0xff] 0.0
          %312 = vst [vmem:[#allocation2 + $0x8] sm:$0xff] 0.0
          %313 = vst [vmem:[#allocation2 + $0x10] sm:$0xff] 0.0
          %314 = vst [vmem:[#allocation2 + $0x18] sm:$0xff] 0.0
        $region77: #{yakir_forward.41} parent=68 // pred_fallthru
          _
        %v315 = vld [vmem:[#allocation2] sm:$0xff]
        %v316 = vld [vmem:[#allocation2 + $0x8] sm:$0xff]
        %v317 = vld [vmem:[#allocation2 + $0x10] sm:$0xff]
        %v318 = vld [vmem:[#allocation2 + $0x18] sm:$0xff]
        %v319 = vld [vmem:[%s250] sm:$0xf]
        %v320 = vld [vmem:[%s250 + $0x4] sm:$0xf]
        %v321 = vld [vmem:[%s250 + $0x8] sm:$0xf]
        %v322 = vld [vmem:[%s250 + $0xc] sm:$0xf]
        %v323 = vld [vmem:[%s293] sm:$0xf]
        %v324 = vld [vmem:[%s293 + $0x4] sm:$0xf]
        %v325 = vld [vmem:[%s293 + $0x8] sm:$0xf]
        %v326 = vld [vmem:[%s293 + $0xc] sm:$0xf]
        %v327 = vld [vmem:[%s293 + $0x10] sm:$0xf]
        %v328 = vld [vmem:[%s293 + $0x14] sm:$0xf]
        %v329 = vld [vmem:[%s293 + $0x18] sm:$0xf]
        %v330 = vld [vmem:[%s293 + $0x1c] sm:$0xf]
        %v331 = vld [vmem:[%s293 + $0x20] sm:$0xf]
        %v332 = vld [vmem:[%s293 + $0x24] sm:$0xf]
        %v333 = vld [vmem:[%s293 + $0x28] sm:$0xf]
        %v334 = vld [vmem:[%s293 + $0x2c] sm:$0xf]
        %v335 = vld [vmem:[%s293 + $0x30] sm:$0xf]
        %v336 = vld [vmem:[%s293 + $0x34] sm:$0xf]
        %v337 = vld [vmem:[%s293 + $0x38] sm:$0xf]
        %v338 = vld [vmem:[%s293 + $0x3c] sm:$0xf]
        %v343 = vunpack.c.l.b16 %v319
        %v344 = vunpack.c.l.b16 %v320
        %v345 = vunpack.c.l.b16 %v321
        %v346 = vunpack.c.l.b16 %v322
        %v347 = vpack.c.b16 %v344, %v343
        %v348 = vpack.c.b16 %v346, %v345
        %v367 = vunpack.c.l.b16 %v323
        %v368 = vunpack.c.l.b16 %v324
        %v369 = vunpack.c.l.b16 %v325
        %v370 = vunpack.c.l.b16 %v326
        %v371 = vunpack.c.l.b16 %v327
        %v372 = vunpack.c.l.b16 %v328
        %v373 = vunpack.c.l.b16 %v329
        %v374 = vunpack.c.l.b16 %v330
        %v375 = vunpack.c.l.b16 %v331
        %v376 = vunpack.c.l.b16 %v332
        %v377 = vunpack.c.l.b16 %v333
        %v378 = vunpack.c.l.b16 %v334
        %v379 = vunpack.c.l.b16 %v335
        %v380 = vunpack.c.l.b16 %v336
        %v381 = vunpack.c.l.b16 %v337
        %v382 = vunpack.c.l.b16 %v338
        %v383 = vpack.c.b16 %v368, %v367
        %v384 = vpack.c.b16 %v370, %v369
        %v385 = vpack.c.b16 %v372, %v371
        %v386 = vpack.c.b16 %v374, %v373
        %v387 = vpack.c.b16 %v376, %v375
        %v388 = vpack.c.b16 %v378, %v377
        %v389 = vpack.c.b16 %v380, %v379
        %v390 = vpack.c.b16 %v382, %v381
        %399 = vmatpush.bf16.msra.mxu0 %v390
        %400 = vmatpush.bf16.msra.mxu0 %v389
        %401 = vmatpush.bf16.msra.mxu0 %v388
        %402 = vmatpush.bf16.msra.mxu0 %v387
        %403 = vmatpush.bf16.msra.mxu0 %v386
        %404 = vmatpush.bf16.msra.mxu0 %v385
        %405 = vmatpush.bf16.msra.mxu0 %v384
        %406 = vmatpush.bf16.msra.mxu0 %v383
        %407 = vmatmul.bf16.gmra.mxu0 %v347
        %v408 = vpop.f32.mrf.mxu0
        %v409 = vadd.f32 0.0, %v408
        %v410 = vpop.f32.mrf.mxu0
        %v411 = vadd.f32 0.0, %v410
        %412 = vmatmul.bf16.gmra.mxu0 %v348
        %v413 = vpop.f32.mrf.mxu0
        %v414 = vadd.f32 0.0, %v413
        %v415 = vpop.f32.mrf.mxu0
        %v416 = vadd.f32 0.0, %v415
        %417 = vdwg.mxu0
        %v418 = vadd.f32 %v315, %v409
        %v419 = vadd.f32 %v316, %v411
        %v420 = vadd.f32 %v317, %v414
        %v421 = vadd.f32 %v318, %v416
        %422 = vst [vmem:[#allocation2] sm:$0xff] %v418
        %423 = vst [vmem:[#allocation2 + $0x8] sm:$0xff] %v419
        %424 = vst [vmem:[#allocation2 + $0x10] sm:$0xff] %v420
        %425 = vst [vmem:[#allocation2 + $0x18] sm:$0xff] %v421
        %p426 = scmp.eq.s32.totalorder %s21, 2
        // Predicated region
        $region78: #{yakir_forward.41} parent=68 // pred_check
          %p427 = pneg %p426
        $region79: #{yakir_forward.41} parent=68 // pred_check_branch
          %429 = sbr.rel (%p427) target = $region81
        $region80: #{yakir_forward.41} parent=68 // pred_region
          %v430 = vld [vmem:[#allocation2] sm:$0xff]
          %v431 = vld [vmem:[#allocation2 + $0x8] sm:$0xff]
          %v432 = vld [vmem:[#allocation2 + $0x10] sm:$0xff]
          %v433 = vld [vmem:[#allocation2 + $0x18] sm:$0xff]
          %v434 = vld [vmem:[%s297] sm:$0x1]
          %v436 = vperm.slane %v434, 0
          %v438 = vadd.f32 %v430, %v436
          %v439 = vadd.f32 %v431, %v436
          %v440 = vadd.f32 %v432, %v436
          %v441 = vadd.f32 %v433, %v436
          %v442 = vpack.c.bf16 %v438, %v438
          %v443 = vpack.c.bf16 %v439, %v439
          %v444 = vpack.c.bf16 %v440, %v440
          %v445 = vpack.c.bf16 %v441, %v441
          %446 = vst [vmem:[%s305] sm:$0xf] %v442
          %447 = vst [vmem:[%s305 + $0x4] sm:$0xf] %v443
          %448 = vst [vmem:[%s305 + $0x8] sm:$0xf] %v444
          %449 = vst [vmem:[%s305 + $0xc] sm:$0xf] %v445
        $region81: #{yakir_forward.41} parent=68 // pred_fallthru
          _
        %s450 = smul.u32 4, %s19
        %p451 = scmp.lt.s32.totalorder %s450, 3
        %s452 = scalar_select %p451, %s450, 3
        %p453 = scmp.lt.s32.totalorder %s20, 0
        %s454 = scalar_select %p453, %s20, 0
        %s455 = sadd.s32 %s454, %s452
        %s456 = smul.addr %s455, 4
        %s457 = scalar_lea.vmem %s3, %s456
        // Predicated region
        $region82: #{yakir_forward.41} parent=68 // pred_check
          %p458 = pneg %p135
        $region83: #{yakir_forward.41} parent=68 // pred_check_branch
          %460 = sbr.rel (%p458) target = $region85
        $region84: #{yakir_forward.41} parent=68 // pred_region
          %s461 = smul.u32 4, %s19
        $region85: #{yakir_forward.41} parent=68 // pred_fallthru
          _
        // Predicated region
        $region86: #{yakir_forward.41} parent=68 // pred_check
          %p462 = pneg %p135
        $region87: #{yakir_forward.41} parent=68 // pred_check_branch
          %464 = sbr.rel (%p462) target = $region89
        $region88: #{yakir_forward.41} parent=68 // pred_region
          %s465 = smul.u32 4, %s19
          %p466 = scmp.lt.s32.totalorder %s465, 3
          %s467 = scalar_select %p466, %s465, 3
          %p468 = scmp.lt.s32.totalorder %s20, 0
          %s469 = scalar_select %p468, %s20, 0
          %s470 = sadd.s32 %s469, %s467
          %s471 = smul.addr %s470, 4
          %s472 = scalar_lea.vmem %s3, %s471
        $region89: #{yakir_forward.41} parent=68 // pred_fallthru
          _
      $region69: #{yakir_forward.41} parent=5 // pred_fallthru
        _
      %p473 = scmp.le.s32.totalorder 2, %s9
      // Predicated region
      $region90: #{yakir_forward.41} parent=5 // pred_check
        %p474 = pneg %p473
      $region91: #{yakir_forward.41} parent=5 // pred_check_branch
        %476 = sbr.rel (%p474) target = $region93
      $region92: #{yakir_forward.41} parent=5 // pred_region
        %s477 = ssub.s32 %s9, 2
      $region93: #{yakir_forward.41} parent=5 // pred_fallthru
        _
    $region6: #{yakir_forward.41} parent=1 // loop_footer
      %s13 = sadd.s32 1, %s9
    $region7: #{yakir_forward.41} parent=1 // loop_footer_branch
      %8 = sbr.rel target = $region3
    $region8: #{yakir_forward.41} parent=1 // loop_exit
      _

// kernel: yakir_forward.42
$region0: #{yakir_forward.42}
  #allocation0 [shape = 'u32[]', space=smem, size = 0x4, offset = 0x4, fixed_abs, tag = 'smem constant byte address 0x4 - core index']
  #allocation1 [shape = 'u32[72,128]{1,0:T(1,128)}', space=vmem, size = 0x9000, scoped, tag = 'internal scratch']
  %s0 = inlined_call_operand.vmem [shape: bf16[1,16,128], index: 0, kind: input, shape index: {}]
  %s1 = inlined_call_operand.vmem [shape: f32[1,16,128], index: 1, kind: output, shape index: {}]
  %s2 = sld [smem:[#allocation0]]
  $region14: #{yakir_forward.42} parent=0
    _
  %s4 = ssub.s32 1, %s2
  %s5 = scalar_select 0, %s4, %s2
  // Predicated region
  $region2: #{yakir_forward.42} parent=0 // pred_check
    _
  $region3: #{yakir_forward.42} parent=0 // pred_check_branch
    %7 = sbr.rel (0) target = $region5
  $region4: #{yakir_forward.42} parent=0 // pred_region
    _
  $region5: #{yakir_forward.42} parent=0 // pred_fallthru
    _
  %v8 = vld [vmem:[%s0] sm:$0xf]
  %v9 = vld [vmem:[%s0 + $0x4] sm:$0xf]
  %v10 = vunpack.c.l.bf16 %v8
  %v11 = vunpack.c.l.bf16 %v9
  %v12 = vadd.f32 %v10, %v11
  %13 = vadd.xlane.f32.xlu0 %v12
  %v14 = vpop.xlane.xlu0 %13
  %v15 = vrot.slane %v14, 4
  %v16 = vadd.f32 %v14, %v15
  %v17 = vrot.slane %v16, 2
  %v18 = vadd.f32 %v16, %v17
  %v19 = vrot.slane %v18, 1
  %v20 = vadd.f32 %v18, %v19
  %s21 = vtos %v20
  %s22 = smul.f32 %s21, 0.00048828125
  %v23 = vstv %s22
  %v24 = vsub.f32 %v10, %v23
  %v25 = vsub.f32 %v11, %v23
  %v26 = vmul.f32 %v24, %v24
  %v27 = vmul.f32 %v25, %v25
  %v28 = vadd.f32 %v26, %v27
  %29 = vadd.xlane.f32.xlu0 %v28
  %v30 = vpop.xlane.xlu0 %29
  %v31 = vrot.slane %v30, 4
  %v32 = vadd.f32 %v30, %v31
  %v33 = vrot.slane %v32, 2
  %v34 = vadd.f32 %v32, %v33
  %v35 = vrot.slane %v34, 1
  %v36 = vadd.f32 %v34, %v35
  %s37 = vtos %v36
  %s38 = smul.f32 %s37, 0.0004885198
  %s39 = smax.f32 %s38, 1e-12
  %v40 = vstv %s39
  %v41 = vrsqrt.pop %v40
  %v42 = vmul.f32 %v41, %v40
  %v43 = vmul.f32 %v42, %v41
  %v44 = vmul.f32 0.5, %v43
  %v45 = vsub.f32 1.5, %v44
  %v46 = vmul.f32 %v41, %v45
  %vm47 = vweird.f32 %v40
  %vm48 = vweird.f32 %v41
  %vm49 = vmor %vm47, %vm48
  %v50 = vsel %vm49, %v41, %v46
  %s51 = vtos %v50
  %v52 = vstv %s51
  %v53 = vmul.f32 %v10, %v52
  %v54 = vmul.f32 %v11, %v52
  %55 = vst [vmem:[%s1] sm:$0xff] %v53
  %56 = vst [vmem:[%s1 + $0x8] sm:$0xff] %v54
  // Predicated region
  $region6: #{yakir_forward.42} parent=0 // pred_check
    _
  $region7: #{yakir_forward.42} parent=0 // pred_check_branch
    %58 = sbr.rel (0) target = $region9
  $region8: #{yakir_forward.42} parent=0 // pred_region
    _
  $region9: #{yakir_forward.42} parent=0 // pred_fallthru
    _
  // Predicated region
  $region10: #{yakir_forward.42} parent=0 // pred_check
    _
  $region11: #{yakir_forward.42} parent=0 // pred_check_branch
    %60 = sbr.rel (0) target = $region13
  $region12: #{yakir_forward.42} parent=0 // pred_region
    _
  $region13: #{yakir_forward.42} parent=0 // pred_fallthru
    _

// kernel: yakir_forward.43
$region0: #{yakir_forward.43}
  #allocation0 [shape = 'u32[]', space=smem, size = 0x4, offset = 0x4, fixed_abs, tag = 'smem constant byte address 0x4 - core index']
  #allocation1 [shape = 'u32[72,128]{1,0:T(1,128)}', space=vmem, size = 0x9000, scoped, tag = 'internal scratch']
  #allocation2 [shape = 'f32[32,128]{1,0:T(8,128)}', space=vmem, size = 0x4000, scoped, tag = 'scratch operand']
  %s0 = inlined_call_operand.vmem [shape: bf16[32,128], index: 0, kind: input, shape index: {}]
  %s1 = inlined_call_operand.vmem [shape: bf16[128,128], index: 1, kind: input, shape index: {}]
  %s2 = inlined_call_operand.vmem [shape: f32[1,128], index: 2, kind: input, shape index: {}]
  %s3 = inlined_call_operand.hbm [shape: f32[32,128], index: 3, kind: output, shape index: {}]
  %s4 = sld [smem:[#allocation0]]
  $region30: #{yakir_forward.43} parent=0
    _
  %s6 = ssub.s32 1, %s4
  %s7 = scalar_select 0, %s6, %s4
  $region1: #{yakir_forward.43} parent=0
    #allocation3 [shape = 'u8[16384]{0}', space=vmem, size = 0x4000, scoped, tag = 'output window, operand 0, single buffered']
    #allocation4 [shape = 's32[1]{0}', space=sflag, size = 0x4, scoped, tag = 'scoped memory for yakir_forward.43']
    %8 = vsyncpa [#allocation4], 0
    // Predicated region
    $region2: #{yakir_forward.43} parent=1 // pred_check
      _
    $region3: #{yakir_forward.43} parent=1 // pred_check_branch
      %10 = sbr.rel (0) target = $region5
    $region4: #{yakir_forward.43} parent=1 // pred_region
      _
    $region5: #{yakir_forward.43} parent=1 // pred_fallthru
      _
    // Predicated region
    $region6: #{yakir_forward.43} parent=1 // pred_check
      _
    $region7: #{yakir_forward.43} parent=1 // pred_check_branch
      %12 = sbr.rel (0) target = $region9
    $region8: #{yakir_forward.43} parent=1 // pred_region
      _
    $region9: #{yakir_forward.43} parent=1 // pred_fallthru
      _
    // Predicated region
    $region10: #{yakir_forward.43} parent=1 // pred_check
      _
    $region11: #{yakir_forward.43} parent=1 // pred_check_branch
      %14 = sbr.rel (0) target = $region13
    $region12: #{yakir_forward.43} parent=1 // pred_region
      _
    $region13: #{yakir_forward.43} parent=1 // pred_fallthru
      _
    %p15 = scmp.eq.s32.totalorder 0, 0
    // Predicated region
    $region14: #{yakir_forward.43} parent=1 // pred_check
      %p16 = pneg %p15
    $region15: #{yakir_forward.43} parent=1 // pred_check_branch
      %18 = sbr.rel (%p16) target = $region17
    $region16: #{yakir_forward.43} parent=1 // pred_region
      %19 = vst [vmem:[#allocation2] sm:$0xff] 0.0
      %20 = vst [vmem:[#allocation2 + $0x8] sm:$0xff] 0.0
      %21 = vst [vmem:[#allocation2 + $0x10] sm:$0xff] 0.0
      %22 = vst [vmem:[#allocation2 + $0x18] sm:$0xff] 0.0
    $region17: #{yakir_forward.43} parent=1 // pred_fallthru
      _
    %v23 = vld [vmem:[#allocation2] sm:$0xff]
    %v24 = vld [vmem:[#allocation2 + $0x8] sm:$0xff]
    %v25 = vld [vmem:[#allocation2 + $0x10] sm:$0xff]
    %v26 = vld [vmem:[#allocation2 + $0x18] sm:$0xff]
    %v27 = vld [vmem:[%s0] sm:$0xf]
    %v28 = vld [vmem:[%s0 + $0x4] sm:$0xf]
    %v29 = vld [vmem:[%s0 + $0x8] sm:$0xf]
    %v30 = vld [vmem:[%s0 + $0xc] sm:$0xf]
    %v31 = vld [vmem:[%s1] sm:$0xf]
    %v32 = vld [vmem:[%s1 + $0x4] sm:$0xf]
    %v33 = vld [vmem:[%s1 + $0x8] sm:$0xf]
    %v34 = vld [vmem:[%s1 + $0xc] sm:$0xf]
    %v35 = vld [vmem:[%s1 + $0x10] sm:$0xf]
    %v36 = vld [vmem:[%s1 + $0x14] sm:$0xf]
    %v37 = vld [vmem:[%s1 + $0x18] sm:$0xf]
    %v38 = vld [vmem:[%s1 + $0x1c] sm:$0xf]
    %v39 = vld [vmem:[%s1 + $0x20] sm:$0xf]
    %v40 = vld [vmem:[%s1 + $0x24] sm:$0xf]
    %v41 = vld [vmem:[%s1 + $0x28] sm:$0xf]
    %v42 = vld [vmem:[%s1 + $0x2c] sm:$0xf]
    %v43 = vld [vmem:[%s1 + $0x30] sm:$0xf]
    %v44 = vld [vmem:[%s1 + $0x34] sm:$0xf]
    %v45 = vld [vmem:[%s1 + $0x38] sm:$0xf]
    %v46 = vld [vmem:[%s1 + $0x3c] sm:$0xf]
    %v51 = vunpack.c.l.b16 %v27
    %v52 = vunpack.c.l.b16 %v28
    %v53 = vunpack.c.l.b16 %v29
    %v54 = vunpack.c.l.b16 %v30
    %v55 = vpack.c.b16 %v52, %v51
    %v56 = vpack.c.b16 %v54, %v53
    %v75 = vunpack.c.l.b16 %v31
    %v76 = vunpack.c.l.b16 %v32
    %v77 = vunpack.c.l.b16 %v33
    %v78 = vunpack.c.l.b16 %v34
    %v79 = vunpack.c.l.b16 %v35
    %v80 = vunpack.c.l.b16 %v36
    %v81 = vunpack.c.l.b16 %v37
    %v82 = vunpack.c.l.b16 %v38
    %v83 = vunpack.c.l.b16 %v39
    %v84 = vunpack.c.l.b16 %v40
    %v85 = vunpack.c.l.b16 %v41
    %v86 = vunpack.c.l.b16 %v42
    %v87 = vunpack.c.l.b16 %v43
    %v88 = vunpack.c.l.b16 %v44
    %v89 = vunpack.c.l.b16 %v45
    %v90 = vunpack.c.l.b16 %v46
    %v91 = vpack.c.b16 %v76, %v75
    %v92 = vpack.c.b16 %v78, %v77
    %v93 = vpack.c.b16 %v80, %v79
    %v94 = vpack.c.b16 %v82, %v81
    %v95 = vpack.c.b16 %v84, %v83
    %v96 = vpack.c.b16 %v86, %v85
    %v97 = vpack.c.b16 %v88, %v87
    %v98 = vpack.c.b16 %v90, %v89
    %107 = vmatpush.bf16.msra.mxu0 %v98
    %108 = vmatpush.bf16.msra.mxu0 %v97
    %109 = vmatpush.bf16.msra.mxu0 %v96
    %110 = vmatpush.bf16.msra.mxu0 %v95
    %111 = vmatpush.bf16.msra.mxu0 %v94
    %112 = vmatpush.bf16.msra.mxu0 %v93
    %113 = vmatpush.bf16.msra.mxu0 %v92
    %114 = vmatpush.bf16.msra.mxu0 %v91
    %115 = vmatmul.bf16.gmra.mxu0 %v55
    %v116 = vpop.f32.mrf.mxu0
    %v117 = vadd.f32 0.0, %v116
    %v118 = vpop.f32.mrf.mxu0
    %v119 = vadd.f32 0.0, %v118
    %120 = vmatmul.bf16.gmra.mxu0 %v56
    %v121 = vpop.f32.mrf.mxu0
    %v122 = vadd.f32 0.0, %v121
    %v123 = vpop.f32.mrf.mxu0
    %v124 = vadd.f32 0.0, %v123
    %125 = vdwg.mxu0
    %v126 = vadd.f32 %v23, %v117
    %v127 = vadd.f32 %v24, %v119
    %v128 = vadd.f32 %v25, %v122
    %v129 = vadd.f32 %v26, %v124
    %130 = vst [vmem:[#allocation2] sm:$0xff] %v126
    %131 = vst [vmem:[#allocation2 + $0x8] sm:$0xff] %v127
    %132 = vst [vmem:[#allocation2 + $0x10] sm:$0xff] %v128
    %133 = vst [vmem:[#allocation2 + $0x18] sm:$0xff] %v129
    // Predicated region
    $region18: #{yakir_forward.43} parent=1 // pred_check
      %p134 = pneg %p15
    $region19: #{yakir_forward.43} parent=1 // pred_check_branch
      %136 = sbr.rel (%p134) target = $region21
    $region20: #{yakir_forward.43} parent=1 // pred_region
      %v137 = vld [vmem:[#allocation2] sm:$0xff]
      %v138 = vld [vmem:[#allocation2 + $0x8] sm:$0xff]
      %v139 = vld [vmem:[#allocation2 + $0x10] sm:$0xff]
      %v140 = vld [vmem:[#allocation2 + $0x18] sm:$0xff]
      %v141 = vld [vmem:[%s2] sm:$0x1]
      %v143 = vperm.slane %v141, 0
      %v145 = vadd.f32 %v137, %v143
      %v146 = vadd.f32 %v138, %v143
      %v147 = vadd.f32 %v139, %v143
      %v148 = vadd.f32 %v140, %v143
      %149 = vst [vmem:[#allocation3] sm:$0xff] %v145
      %150 = vst [vmem:[#allocation3 + $0x8] sm:$0xff] %v146
      %151 = vst [vmem:[#allocation3 + $0x10] sm:$0xff] %v147
      %152 = vst [vmem:[#allocation3 + $0x18] sm:$0xff] %v148
    $region21: #{yakir_forward.43} parent=1 // pred_fallthru
      _
    // Predicated region
    $region22: #{yakir_forward.43} parent=1 // pred_check
      _
    $region23: #{yakir_forward.43} parent=1 // pred_check_branch
      %154 = sbr.rel (0) target = $region25
    $region24: #{yakir_forward.43} parent=1 // pred_region
      %156 = vsyncadd [#allocation4], 0
      %s157 = sshll.u32 [#allocation3], 4
      %s158 = int_to_ptr.vmem [resolvable:$true] %s157
      %s159 = sshll.u32 %s3, 4
      %s160 = int_to_ptr.hbm [resolvable:$true] %s159
      %165 = dma.vmem_to_hbm [thread:$0]  %s158, 512, %s160, [#allocation4], 128, 128, 8
    $region25: #{yakir_forward.43} parent=1 // pred_fallthru
      _
    // Predicated region
    $region26: #{yakir_forward.43} parent=1 // pred_check
      _
    $region27: #{yakir_forward.43} parent=1 // pred_check_branch
      %167 = sbr.rel (0) target = $region29
    $region28: #{yakir_forward.43} parent=1 // pred_region
      %169 = dma.done [#allocation4], 512
    $region29: #{yakir_forward.43} parent=1 // pred_fallthru
      _
    %170 = vsyncpa [#allocation4], 1

</llo_original>
